<compile_context>
chip_gen: v5e
topology: v5e:2x2
jax: 0.10.0
libtpu: 0.0.40
codegen_flags: <defaults>
</compile_context>

<pallas_src>
import numpy as np
import jax
import jax.numpy as jnp
from jax import lax
from jax.experimental import pallas as pl
from jax.experimental.pallas import tpu as pltpu

NUM_GROUPS = 16
EMBED_T = 256


# ----------------------------- fused kernel -----------------------------

def make_downblock_kernel(H, W, Cin, Cout, with_res_conv, with_attn):
    HW = H * W
    G = NUM_GROUPS
    Cg = Cout // G
    eps_res = 1e-5     # nn.GroupNorm default (ResBlock)
    eps_attn = 1e-6    # explicit eps in AttnBlock

    # tap t = ky*3 + kx, offset (dy, dx) = (ky-1, kx-1); lane-roll amount such
    # that rolled[p] == h[p + dy*W + dx] (pltpu.roll follows jnp.roll semantics).
    tap_shifts = [(-(dy * W + dx)) % HW
                  for dy in (-1, 0, 1) for dx in (-1, 0, 1)]

    def kernel(*refs):
        it = iter(refs)
        x_ref = next(it)          # (Cin, HW)    f32
        temb1_ref = next(it)      # (Cout, 1)    f32
        temb2_ref = next(it)      # (Cout, 1)    f32
        masks_ref = next(it)      # (9, HW)      f32
        gmat_ref = next(it)       # (Cout, G)    f32
        gmatT_ref = next(it)      # (G, Cout)    f32
        poolmat_ref = next(it)    # (HW, HW//4)  bf16
        if with_res_conv:
            rc_w, rc_b = next(it), next(it)
        r1_c1w, r1_c1b = next(it), next(it)
        r1_g, r1_b = next(it), next(it)
        r1_c2w, r1_c2b = next(it), next(it)
        r2_c1w, r2_c1b = next(it), next(it)
        r2_g, r2_b = next(it), next(it)
        r2_c2w, r2_c2b = next(it), next(it)
        if with_attn:
            a_g, a_b = next(it), next(it)
            wq, bq = next(it), next(it)
            wk, bk = next(it), next(it)
            wv, bv = next(it), next(it)
            wp, bp = next(it), next(it)
        skip1_ref, skip2_ref, pooled_ref = next(it), next(it), next(it)

        x0 = x_ref[...].astype(jnp.float32)            # (Cin, HW)
        masks = masks_ref[...]                         # (9, HW) f32
        mask_rows = [masks[t:t + 1, :] for t in range(9)]
        gmat = gmat_ref[...]                           # (Cout, G)
        gmatT = gmatT_ref[...]                         # (G, Cout)

        def conv3x3(h, w9_ref, b_ref):
            # h: (Ci, HW) f32.  im2col via 9 masked lane rolls (XLU), then one
            # bf16 MXU matmul  (Cout, 9*Ci) @ (9*Ci, HW)  with f32 accumulation.
            cols = []
            for t in range(9):
                sh = tap_shifts[t]
                if sh == 0:                            # center tap, mask == 1
                    cols.append(h.astype(jnp.bfloat16))
                else:
                    rolled = pltpu.roll(h, sh, 1)
                    cols.append((rolled * mask_rows[t]).astype(jnp.bfloat16))
            patches = jnp.concatenate(cols, axis=0)    # (9*Ci, HW) bf16
            out = jnp.dot(w9_ref[...], patches,
                          preferred_element_type=jnp.float32)
            return out + b_ref[...]                    # (Cout, HW) f32

        def group_norm(h, gamma_ref, beta_ref, eps):
            # h: (Cout, HW) f32.  Biased variance; stats stay in f32.
            n = float(HW * Cg)
            s1 = jnp.sum(h, axis=1, keepdims=True)                 # (C, 1)
            s2 = jnp.sum(h * h, axis=1, keepdims=True)             # (C, 1)
            s12 = jnp.concatenate([s1, s2], axis=1)                # (C, 2)
            gsum = jnp.dot(gmatT, s12,
                           preferred_element_type=jnp.float32)     # (G, 2)
            cstat = jnp.dot(gmat, gsum,
                            preferred_element_type=jnp.float32) / n  # (C, 2)
            mean_c = cstat[:, 0:1]
            var_c = jnp.maximum(cstat[:, 1:2] - mean_c * mean_c, 0.0)
            inv = lax.rsqrt(var_c + eps)
            return (h - mean_c) * inv * gamma_ref[...] + beta_ref[...]

        def silu(v):
            return v * jax.nn.sigmoid(v)

        def res_block(h_in, c1w, c1b, gw, gb, temb_ref, c2w, c2b, residual):
            h = conv3x3(h_in, c1w, c1b)
            h = group_norm(h, gw, gb, eps_res)
            h = silu(h + temb_ref[...])                # temb broadcasts over HW
            # TODO(synk): nn.Dropout(p=0.1) treated as identity (eval-mode).
            return conv3x3(h, c2w, c2b) + residual

        # ---- ResBlock 1 ----
        residual = conv3x3(x0, rc_w, rc_b) if with_res_conv else x0
        h1 = res_block(x0, r1_c1w, r1_c1b, r1_g, r1_b, temb1_ref,
                       r1_c2w, r1_c2b, residual)
        skip1_ref[...] = h1.astype(skip1_ref.dtype)

        # ---- ResBlock 2 ----
        h2 = res_block(h1, r2_c1w, r2_c1b, r2_g, r2_b, temb2_ref,
                       r2_c2w, r2_c2b, h1)
        skip2_ref[...] = h2.astype(skip2_ref.dtype)

        # ---- AttnBlock (single-head spatial self-attention) ----
        h3 = h2
        if with_attn:
            hn = group_norm(h2, a_g, a_b, eps_attn)
            hn_b = hn.astype(jnp.bfloat16)
            q = jnp.dot(wq[...], hn_b, preferred_element_type=jnp.float32) + bq[...]
            k = jnp.dot(wk[...], hn_b, preferred_element_type=jnp.float32) + bk[...]
            v = jnp.dot(wv[...], hn_b, preferred_element_type=jnp.float32) + bv[...]
            # logits[i, j] = sum_c q[c, i] * k[c, j] * Cout^-0.5
            qT_b = jnp.transpose(q).astype(jnp.bfloat16)           # (HW, C)
            logits = jnp.dot(qT_b, k.astype(jnp.bfloat16),
                             preferred_element_type=jnp.float32) * (Cout ** -0.5)
            logits = logits - jnp.max(logits, axis=-1, keepdims=True)
            p = jnp.exp(logits)
            p = p * pl.reciprocal(jnp.sum(p, axis=-1, keepdims=True), approx=False)
            # TODO(synk): switch to flash-style KV tiling once the (HW, HW) f32
            # logits no longer fit VMEM (H = W >= 64 on v7x's 64 MiB budget).
            # att[c, i] = sum_j v[c, j] * p[i, j]
            att = lax.dot_general(v.astype(jnp.bfloat16), p.astype(jnp.bfloat16),
                                  (((1,), (1,)), ((), ())),
                                  preferred_element_type=jnp.float32)
            proj = jnp.dot(wp[...], att.astype(jnp.bfloat16),
                           preferred_element_type=jnp.float32) + bp[...]
            h3 = h2 + proj

        # ---- 2x2 average pool (one bf16 matmul), fused into the final write ----
        pooled_ref[...] = jnp.dot(h3.astype(jnp.bfloat16), poolmat_ref[...],
                                  preferred_element_type=jnp.float32
                                  ).astype(pooled_ref.dtype)

    return kernel


# ----------------------------- wrapper -----------------------------

def down_block(x, embeddings, params):
    """x: (B, Cin, H, W) NCHW float32 (same layout as the PyTorch module);
    embeddings: (B, EMBED_T) float32.
    Returns (pooled (B, Cout, H//2, W//2), [skip1, skip2] each (B, Cout, H, W))."""
    B, Cin, H, W = x.shape
    r1, r2 = params["res1"], params["res2"]
    Cout = r1["conv1"]["w"].shape[-1]
    HW = H * W
    H2, W2 = H // 2, W // 2
    H2W2 = H2 * W2
    G = NUM_GROUPS
    with_res_conv = r1["res_conv"] is not None
    with_attn = params["attn"] is not None

    # ---- host-precomputed constants (hoisted out of the kernel body) ----
    ys, xs = np.divmod(np.arange(HW), W)
    masks = np.zeros((9, HW), np.float32)
    t = 0
    for dy in (-1, 0, 1):
        for dx in (-1, 0, 1):
            yy, xx = ys + dy, xs + dx
            masks[t] = (yy >= 0) & (yy < H) & (xx >= 0) & (xx < W)
            t += 1
    gmat = (np.arange(Cout)[:, None] // (Cout // G)
            == np.arange(G)[None, :]).astype(np.float32)            # (Cout, G)
    poolmat = np.zeros((HW, H2W2), np.float32)
    poolmat[np.arange(HW), (ys // 2) * W2 + (xs // 2)] = 0.25        # 2x2 avg pool

    def w9(p):   # (3,3,Cin,Cout) HWIO -> (Cout, 9*Cin) C-major im2col weight, bf16
        w = p["w"]
        return (jnp.transpose(w, (3, 0, 1, 2))
                .reshape(w.shape[-1], -1).astype(jnp.bfloat16))

    def col(v):  # (C,) -> (C, 1)
        return v.reshape(-1, 1)

    # t_emb Linear folded out of the kernel: per-sample (Cout, 1) vectors.
    temb1 = (embeddings @ r1["t_w"] + r1["t_b"]).reshape(B, Cout, 1)
    temb2 = (embeddings @ r2["t_w"] + r2["t_b"]).reshape(B, Cout, 1)

    args = [x.reshape(B, Cin, HW), temb1, temb2]
    in_specs = [
        pl.BlockSpec((None, Cin, HW), lambda b: (b, 0, 0)),
        pl.BlockSpec((None, Cout, 1), lambda b: (b, 0, 0)),
        pl.BlockSpec((None, Cout, 1), lambda b: (b, 0, 0)),
    ]

    def add_const(arr):
        # Constant-index (2D) input: DMA'd into VMEM once, never re-fetched.
        arr = jnp.asarray(arr)
        args.append(arr)
        in_specs.append(pl.BlockSpec(arr.shape, lambda b: (0, 0)))

    add_const(masks)
    add_const(gmat)
    add_const(np.ascontiguousarray(gmat.T))
    add_const(jnp.asarray(poolmat, jnp.bfloat16))

    if with_res_conv:
        add_const(w9(r1["res_conv"])); add_const(col(r1["res_conv"]["b"]))
    add_const(w9(r1["conv1"])); add_const(col(r1["conv1"]["b"]))
    add_const(col(r1["gamma"])); add_const(col(r1["beta"]))
    add_const(w9(r1["conv2"])); add_const(col(r1["conv2"]["b"]))

    add_const(w9(r2["conv1"])); add_const(col(r2["conv1"]["b"]))
    add_const(col(r2["gamma"])); add_const(col(r2["beta"]))
    add_const(w9(r2["conv2"])); add_const(col(r2["conv2"]["b"]))

    if with_attn:
        a = params["attn"]
        add_const(col(a["gamma"])); add_const(col(a["beta"]))
        for wn, bn in (("wq", "bq"), ("wk", "bk"), ("wv", "bv"), ("wp", "bp")):
            add_const(a[wn].astype(jnp.bfloat16)); add_const(col(a[bn]))

    kernel = make_downblock_kernel(H, W, Cin, Cout, with_res_conv, with_attn)

    out_shape = (
        jax.ShapeDtypeStruct((B, Cout, HW), x.dtype),
        jax.ShapeDtypeStruct((B, Cout, HW), x.dtype),
        jax.ShapeDtypeStruct((B, Cout, H2W2), x.dtype),
    )
    out_specs = (
        pl.BlockSpec((None, Cout, HW), lambda b: (b, 0, 0)),
        pl.BlockSpec((None, Cout, HW), lambda b: (b, 0, 0)),
        pl.BlockSpec((None, Cout, H2W2), lambda b: (b, 0, 0)),
    )

    # Advisory cost estimate (helps XLA schedule around the fused custom call).
    n_io = 1 + int(with_res_conv)
    flops = 2 * HW * (n_io * 9 * Cin * Cout + 3 * 9 * Cout * Cout)
    flops += 2 * HW * H2W2 * Cout
    trans = 2 * 2 * HW * Cout
    if with_attn:
        flops += 4 * 2 * HW * Cout * Cout + 2 * 2 * HW * HW * Cout
        trans += HW * HW
    bytes_accessed = 4 * B * (Cin * HW + 2 * Cout * HW + Cout * H2W2 + 2 * Cout)
    cost = pl.CostEstimate(flops=B * flops, transcendentals=B * trans,
                           bytes_accessed=bytes_accessed)

    skip1, skip2, pooled = pl.pallas_call(
        kernel,
        out_shape=out_shape,
        grid=(B,),
        in_specs=in_specs,
        out_specs=out_specs,
        compiler_params=pltpu.CompilerParams(
            dimension_semantics=("parallel",),   # v7x: batch split across TCs
            vmem_limit_bytes=48 * 1024 * 1024),
        cost_estimate=cost,
    )(*args)

    pooled = pooled.reshape(B, Cout, H2, W2)
    skip1 = skip1.reshape(B, Cout, H, W)
    skip2 = skip2.reshape(B, Cout, H, W)
    return pooled, [skip1, skip2]


# ----------------------------- parameter init -----------------------------

def init_params(key, in_ch, out_ch, attention):
    keys = iter(jax.random.split(key, 64))

    def nrm(shape, scale=0.05):
        return scale * jax.random.normal(next(keys), shape, jnp.float32)

    def conv3x3_p(cin, cout):
        # HWIO layout (torch OIHW: w.permute(2, 3, 1, 0))
        return {"w": nrm((3, 3, cin, cout)), "b": nrm((cout,))}

    def res_p(cin, cout):
        return {
            "res_conv": conv3x3_p(cin, cout) if cin != cout else None,
            "conv1": conv3x3_p(cin, cout),
            "gamma": 1.0 + nrm((cout,)),
            "beta": nrm((cout,)),
            "t_w": nrm((EMBED_T, cout)),   # torch Linear weight.T
            "t_b": nrm((cout,)),
            "conv2": conv3x3_p(cout, cout),
        }

    def attn_p(c):
        # 1x1 conv weights stored as (Cout, Cin) = torch w[:, :, 0, 0]
        return {
            "gamma": 1.0 + nrm((c,)),
            "beta": nrm((c,)),
            "wq": nrm((c, c)), "bq": nrm((c,)),
            "wk": nrm((c, c)), "bk": nrm((c,)),
            "wv": nrm((c, c)), "bv": nrm((c,)),
            "wp": nrm((c, c)), "bp": nrm((c,)),
        }

    return {
        "res1": res_p(in_ch, out_ch),
        "res2": res_p(out_ch, out_ch),
        "attn": attn_p(out_ch) if attention else None,
    }


# ----------------------------- main -----------------------------

if __name__ == "__main__":
    B, IN_CH, OUT_CH, H, W = 2, 16, 32, 16, 16

    key = jax.random.PRNGKey(0)
    kx, ke, kp = jax.random.split(key, 3)
    x = jax.random.normal(kx, (B, IN_CH, H, W), jnp.float32)        # NCHW
    embeddings = jax.random.normal(ke, (B, EMBED_T), jnp.float32)
    params = init_params(kp, IN_CH, OUT_CH, attention=True)

    pooled, skips = jax.jit(down_block)(x, embeddings, params)
    pooled = jax.block_until_ready(pooled)
    skips = [jax.block_until_ready(s) for s in skips]

    assert pooled.shape == (B, OUT_CH, H // 2, W // 2)
    assert skips[0].shape == (B, OUT_CH, H, W)
    assert skips[1].shape == (B, OUT_CH, H, W)
    assert bool(jnp.all(jnp.isfinite(pooled)))
    assert bool(jnp.all(jnp.isfinite(skips[0])))
    assert bool(jnp.all(jnp.isfinite(skips[1])))
    print("KERNEL_OK")
</pallas_src>

<mosaic_0001>
module attributes {stable_mosaic.version = 11 : i64} {
  func.func @kernel(%arg0: i32, %arg1: memref<1x16x256xf32, #tpu.memory_space<vmem>>, %arg2: memref<1x32x1xf32, #tpu.memory_space<vmem>>, %arg3: memref<1x32x1xf32, #tpu.memory_space<vmem>>, %arg4: memref<9x256xf32, #tpu.memory_space<vmem>>, %arg5: memref<32x16xf32, #tpu.memory_space<vmem>>, %arg6: memref<16x32xf32, #tpu.memory_space<vmem>>, %arg7: memref<256x64xbf16, #tpu.memory_space<vmem>>, %arg8: memref<32x144xbf16, #tpu.memory_space<vmem>>, %arg9: memref<32x1xf32, #tpu.memory_space<vmem>>, %arg10: memref<32x144xbf16, #tpu.memory_space<vmem>>, %arg11: memref<32x1xf32, #tpu.memory_space<vmem>>, %arg12: memref<32x1xf32, #tpu.memory_space<vmem>>, %arg13: memref<32x1xf32, #tpu.memory_space<vmem>>, %arg14: memref<32x288xbf16, #tpu.memory_space<vmem>>, %arg15: memref<32x1xf32, #tpu.memory_space<vmem>>, %arg16: memref<32x288xbf16, #tpu.memory_space<vmem>>, %arg17: memref<32x1xf32, #tpu.memory_space<vmem>>, %arg18: memref<32x1xf32, #tpu.memory_space<vmem>>, %arg19: memref<32x1xf32, #tpu.memory_space<vmem>>, %arg20: memref<32x288xbf16, #tpu.memory_space<vmem>>, %arg21: memref<32x1xf32, #tpu.memory_space<vmem>>, %arg22: memref<32x1xf32, #tpu.memory_space<vmem>>, %arg23: memref<32x1xf32, #tpu.memory_space<vmem>>, %arg24: memref<32x32xbf16, #tpu.memory_space<vmem>>, %arg25: memref<32x1xf32, #tpu.memory_space<vmem>>, %arg26: memref<32x32xbf16, #tpu.memory_space<vmem>>, %arg27: memref<32x1xf32, #tpu.memory_space<vmem>>, %arg28: memref<32x32xbf16, #tpu.memory_space<vmem>>, %arg29: memref<32x1xf32, #tpu.memory_space<vmem>>, %arg30: memref<32x32xbf16, #tpu.memory_space<vmem>>, %arg31: memref<32x1xf32, #tpu.memory_space<vmem>>, %arg32: memref<1x32x256xf32, #tpu.memory_space<vmem>>, %arg33: memref<1x32x256xf32, #tpu.memory_space<vmem>>, %arg34: memref<1x32x64xf32, #tpu.memory_space<vmem>>) attributes {dimension_semantics = [#tpu.dimension_semantics<parallel>], iteration_bounds = array<i64: 2>, scalar_prefetch = 0 : i64, scratch_operands = 0 : i64, tpu.core_type = #tpu.core_type<tc>, window_params = [{transform_indices = @transform_0, window_bounds = array<i64: 1, 16, 256>}, {transform_indices = @transform_1, window_bounds = array<i64: 1, 32, 1>}, {transform_indices = @transform_2, window_bounds = array<i64: 1, 32, 1>}, {pipeline_mode = #tpu.pipeline_mode<synchronous>, transform_indices = @transform_3, window_bounds = array<i64: 9, 256>}, {pipeline_mode = #tpu.pipeline_mode<synchronous>, transform_indices = @transform_4, window_bounds = array<i64: 32, 16>}, {pipeline_mode = #tpu.pipeline_mode<synchronous>, transform_indices = @transform_5, window_bounds = array<i64: 16, 32>}, {pipeline_mode = #tpu.pipeline_mode<synchronous>, transform_indices = @transform_6, window_bounds = array<i64: 256, 64>}, {pipeline_mode = #tpu.pipeline_mode<synchronous>, transform_indices = @transform_7, window_bounds = array<i64: 32, 144>}, {pipeline_mode = #tpu.pipeline_mode<synchronous>, transform_indices = @transform_8, window_bounds = array<i64: 32, 1>}, {pipeline_mode = #tpu.pipeline_mode<synchronous>, transform_indices = @transform_9, window_bounds = array<i64: 32, 144>}, {pipeline_mode = #tpu.pipeline_mode<synchronous>, transform_indices = @transform_10, window_bounds = array<i64: 32, 1>}, {pipeline_mode = #tpu.pipeline_mode<synchronous>, transform_indices = @transform_11, window_bounds = array<i64: 32, 1>}, {pipeline_mode = #tpu.pipeline_mode<synchronous>, transform_indices = @transform_12, window_bounds = array<i64: 32, 1>}, {pipeline_mode = #tpu.pipeline_mode<synchronous>, transform_indices = @transform_13, window_bounds = array<i64: 32, 288>}, {pipeline_mode = #tpu.pipeline_mode<synchronous>, transform_indices = @transform_14, window_bounds = array<i64: 32, 1>}, {pipeline_mode = #tpu.pipeline_mode<synchronous>, transform_indices = @transform_15, window_bounds = array<i64: 32, 288>}, {pipeline_mode = #tpu.pipeline_mode<synchronous>, transform_indices = @transform_16, window_bounds = array<i64: 32, 1>}, {pipeline_mode = #tpu.pipeline_mode<synchronous>, transform_indices = @transform_17, window_bounds = array<i64: 32, 1>}, {pipeline_mode = #tpu.pipeline_mode<synchronous>, transform_indices = @transform_18, window_bounds = array<i64: 32, 1>}, {pipeline_mode = #tpu.pipeline_mode<synchronous>, transform_indices = @transform_19, window_bounds = array<i64: 32, 288>}, {pipeline_mode = #tpu.pipeline_mode<synchronous>, transform_indices = @transform_20, window_bounds = array<i64: 32, 1>}, {pipeline_mode = #tpu.pipeline_mode<synchronous>, transform_indices = @transform_21, window_bounds = array<i64: 32, 1>}, {pipeline_mode = #tpu.pipeline_mode<synchronous>, transform_indices = @transform_22, window_bounds = array<i64: 32, 1>}, {pipeline_mode = #tpu.pipeline_mode<synchronous>, transform_indices = @transform_23, window_bounds = array<i64: 32, 32>}, {pipeline_mode = #tpu.pipeline_mode<synchronous>, transform_indices = @transform_24, window_bounds = array<i64: 32, 1>}, {pipeline_mode = #tpu.pipeline_mode<synchronous>, transform_indices = @transform_25, window_bounds = array<i64: 32, 32>}, {pipeline_mode = #tpu.pipeline_mode<synchronous>, transform_indices = @transform_26, window_bounds = array<i64: 32, 1>}, {pipeline_mode = #tpu.pipeline_mode<synchronous>, transform_indices = @transform_27, window_bounds = array<i64: 32, 32>}, {pipeline_mode = #tpu.pipeline_mode<synchronous>, transform_indices = @transform_28, window_bounds = array<i64: 32, 1>}, {pipeline_mode = #tpu.pipeline_mode<synchronous>, transform_indices = @transform_29, window_bounds = array<i64: 32, 32>}, {pipeline_mode = #tpu.pipeline_mode<synchronous>, transform_indices = @transform_30, window_bounds = array<i64: 32, 1>}, {transform_indices = @transform_31, window_bounds = array<i64: 1, 32, 256>}, {transform_indices = @transform_32, window_bounds = array<i64: 1, 32, 256>}, {transform_indices = @transform_33, window_bounds = array<i64: 1, 32, 64>}]} {
    %c0 = arith.constant 0 : index
    %c0_0 = arith.constant 0 : index
    %c0_1 = arith.constant 0 : index
    %0 = vector.load %arg1[%c0, %c0_0, %c0_1] : memref<1x16x256xf32, #tpu.memory_space<vmem>>, vector<1x16x256xf32>
    %1 = vector.shape_cast %0 : vector<1x16x256xf32> to vector<16x256xf32>
    %c0_2 = arith.constant 0 : index
    %c0_3 = arith.constant 0 : index
    %2 = vector.load %arg4[%c0_2, %c0_3] : memref<9x256xf32, #tpu.memory_space<vmem>>, vector<9x256xf32>
    %3 = vector.extract_strided_slice %2 {offsets = [0, 0], sizes = [1, 256], strides = [1, 1]} : vector<9x256xf32> to vector<1x256xf32>
    %4 = vector.extract_strided_slice %2 {offsets = [1, 0], sizes = [1, 256], strides = [1, 1]} : vector<9x256xf32> to vector<1x256xf32>
    %5 = vector.extract_strided_slice %2 {offsets = [2, 0], sizes = [1, 256], strides = [1, 1]} : vector<9x256xf32> to vector<1x256xf32>
    %6 = vector.extract_strided_slice %2 {offsets = [3, 0], sizes = [1, 256], strides = [1, 1]} : vector<9x256xf32> to vector<1x256xf32>
    %7 = vector.extract_strided_slice %2 {offsets = [5, 0], sizes = [1, 256], strides = [1, 1]} : vector<9x256xf32> to vector<1x256xf32>
    %8 = vector.extract_strided_slice %2 {offsets = [6, 0], sizes = [1, 256], strides = [1, 1]} : vector<9x256xf32> to vector<1x256xf32>
    %9 = vector.extract_strided_slice %2 {offsets = [7, 0], sizes = [1, 256], strides = [1, 1]} : vector<9x256xf32> to vector<1x256xf32>
    %10 = vector.extract_strided_slice %2 {offsets = [8, 0], sizes = [1, 256], strides = [1, 1]} : vector<9x256xf32> to vector<1x256xf32>
    %c0_4 = arith.constant 0 : index
    %c0_5 = arith.constant 0 : index
    %11 = vector.load %arg5[%c0_4, %c0_5] : memref<32x16xf32, #tpu.memory_space<vmem>>, vector<32x16xf32>
    %c0_6 = arith.constant 0 : index
    %c0_7 = arith.constant 0 : index
    %12 = vector.load %arg6[%c0_6, %c0_7] : memref<16x32xf32, #tpu.memory_space<vmem>>, vector<16x32xf32>
    %c17_i32 = arith.constant 17 : i32
    %13 = tpu.dynamic_rotate %1 by %c17_i32 dim 1 : vector<16x256xf32>, i32 -> vector<16x256xf32>
    %14 = vector.broadcast %3 : vector<1x256xf32> to vector<16x256xf32>
    %15 = arith.mulf %13, %14 : vector<16x256xf32>
    %16 = arith.truncf %15 : vector<16x256xf32> to vector<16x256xbf16>
    %c16_i32 = arith.constant 16 : i32
    %17 = tpu.dynamic_rotate %1 by %c16_i32 dim 1 : vector<16x256xf32>, i32 -> vector<16x256xf32>
    %18 = vector.broadcast %4 : vector<1x256xf32> to vector<16x256xf32>
    %19 = arith.mulf %17, %18 : vector<16x256xf32>
    %20 = arith.truncf %19 : vector<16x256xf32> to vector<16x256xbf16>
    %c15_i32 = arith.constant 15 : i32
    %21 = tpu.dynamic_rotate %1 by %c15_i32 dim 1 : vector<16x256xf32>, i32 -> vector<16x256xf32>
    %22 = vector.broadcast %5 : vector<1x256xf32> to vector<16x256xf32>
    %23 = arith.mulf %21, %22 : vector<16x256xf32>
    %24 = arith.truncf %23 : vector<16x256xf32> to vector<16x256xbf16>
    %c1_i32 = arith.constant 1 : i32
    %25 = tpu.dynamic_rotate %1 by %c1_i32 dim 1 : vector<16x256xf32>, i32 -> vector<16x256xf32>
    %26 = vector.broadcast %6 : vector<1x256xf32> to vector<16x256xf32>
    %27 = arith.mulf %25, %26 : vector<16x256xf32>
    %28 = arith.truncf %27 : vector<16x256xf32> to vector<16x256xbf16>
    %29 = arith.truncf %1 : vector<16x256xf32> to vector<16x256xbf16>
    %c255_i32 = arith.constant 255 : i32
    %30 = tpu.dynamic_rotate %1 by %c255_i32 dim 1 : vector<16x256xf32>, i32 -> vector<16x256xf32>
    %31 = vector.broadcast %7 : vector<1x256xf32> to vector<16x256xf32>
    %32 = arith.mulf %30, %31 : vector<16x256xf32>
    %33 = arith.truncf %32 : vector<16x256xf32> to vector<16x256xbf16>
    %c241_i32 = arith.constant 241 : i32
    %34 = tpu.dynamic_rotate %1 by %c241_i32 dim 1 : vector<16x256xf32>, i32 -> vector<16x256xf32>
    %35 = vector.broadcast %8 : vector<1x256xf32> to vector<16x256xf32>
    %36 = arith.mulf %34, %35 : vector<16x256xf32>
    %37 = arith.truncf %36 : vector<16x256xf32> to vector<16x256xbf16>
    %c240_i32 = arith.constant 240 : i32
    %38 = tpu.dynamic_rotate %1 by %c240_i32 dim 1 : vector<16x256xf32>, i32 -> vector<16x256xf32>
    %39 = vector.broadcast %9 : vector<1x256xf32> to vector<16x256xf32>
    %40 = arith.mulf %38, %39 : vector<16x256xf32>
    %41 = arith.truncf %40 : vector<16x256xf32> to vector<16x256xbf16>
    %c239_i32 = arith.constant 239 : i32
    %42 = tpu.dynamic_rotate %1 by %c239_i32 dim 1 : vector<16x256xf32>, i32 -> vector<16x256xf32>
    %43 = vector.broadcast %10 : vector<1x256xf32> to vector<16x256xf32>
    %44 = arith.mulf %42, %43 : vector<16x256xf32>
    %45 = arith.truncf %44 : vector<16x256xf32> to vector<16x256xbf16>
    %46 = tpu.concatenate %16, %20, %24, %28, %29, %33, %37, %41, %45 in 0 : vector<16x256xbf16>, vector<16x256xbf16>, vector<16x256xbf16>, vector<16x256xbf16>, vector<16x256xbf16>, vector<16x256xbf16>, vector<16x256xbf16>, vector<16x256xbf16>, vector<16x256xbf16> -> vector<144x256xbf16>
    %c0_8 = arith.constant 0 : index
    %c0_9 = arith.constant 0 : index
    %47 = vector.load %arg8[%c0_8, %c0_9] : memref<32x144xbf16, #tpu.memory_space<vmem>>, vector<32x144xbf16>
    %cst = arith.constant dense<0.000000e+00> : vector<32x256xf32>
    %48 = tpu.matmul %47, %46, %cst {dimension_numbers = #tpu.dot_dimension_numbers<[1], [0], [0], [1], [0, 0, 1, 1], [], []>} : vector<32x144xbf16>, vector<144x256xbf16>, vector<32x256xf32> -> vector<32x256xf32>
    %c0_10 = arith.constant 0 : index
    %c0_11 = arith.constant 0 : index
    %49 = vector.load %arg9[%c0_10, %c0_11] : memref<32x1xf32, #tpu.memory_space<vmem>>, vector<32x1xf32>
    %50 = vector.broadcast %49 : vector<32x1xf32> to vector<32x256xf32>
    %51 = arith.addf %48, %50 : vector<32x256xf32>
    %c17_i32_12 = arith.constant 17 : i32
    %52 = tpu.dynamic_rotate %1 by %c17_i32_12 dim 1 : vector<16x256xf32>, i32 -> vector<16x256xf32>
    %53 = vector.broadcast %3 : vector<1x256xf32> to vector<16x256xf32>
    %54 = arith.mulf %52, %53 : vector<16x256xf32>
    %55 = arith.truncf %54 : vector<16x256xf32> to vector<16x256xbf16>
    %c16_i32_13 = arith.constant 16 : i32
    %56 = tpu.dynamic_rotate %1 by %c16_i32_13 dim 1 : vector<16x256xf32>, i32 -> vector<16x256xf32>
    %57 = vector.broadcast %4 : vector<1x256xf32> to vector<16x256xf32>
    %58 = arith.mulf %56, %57 : vector<16x256xf32>
    %59 = arith.truncf %58 : vector<16x256xf32> to vector<16x256xbf16>
    %c15_i32_14 = arith.constant 15 : i32
    %60 = tpu.dynamic_rotate %1 by %c15_i32_14 dim 1 : vector<16x256xf32>, i32 -> vector<16x256xf32>
    %61 = vector.broadcast %5 : vector<1x256xf32> to vector<16x256xf32>
    %62 = arith.mulf %60, %61 : vector<16x256xf32>
    %63 = arith.truncf %62 : vector<16x256xf32> to vector<16x256xbf16>
    %c1_i32_15 = arith.constant 1 : i32
    %64 = tpu.dynamic_rotate %1 by %c1_i32_15 dim 1 : vector<16x256xf32>, i32 -> vector<16x256xf32>
    %65 = vector.broadcast %6 : vector<1x256xf32> to vector<16x256xf32>
    %66 = arith.mulf %64, %65 : vector<16x256xf32>
    %67 = arith.truncf %66 : vector<16x256xf32> to vector<16x256xbf16>
    %68 = arith.truncf %1 : vector<16x256xf32> to vector<16x256xbf16>
    %c255_i32_16 = arith.constant 255 : i32
    %69 = tpu.dynamic_rotate %1 by %c255_i32_16 dim 1 : vector<16x256xf32>, i32 -> vector<16x256xf32>
    %70 = vector.broadcast %7 : vector<1x256xf32> to vector<16x256xf32>
    %71 = arith.mulf %69, %70 : vector<16x256xf32>
    %72 = arith.truncf %71 : vector<16x256xf32> to vector<16x256xbf16>
    %c241_i32_17 = arith.constant 241 : i32
    %73 = tpu.dynamic_rotate %1 by %c241_i32_17 dim 1 : vector<16x256xf32>, i32 -> vector<16x256xf32>
    %74 = vector.broadcast %8 : vector<1x256xf32> to vector<16x256xf32>
    %75 = arith.mulf %73, %74 : vector<16x256xf32>
    %76 = arith.truncf %75 : vector<16x256xf32> to vector<16x256xbf16>
    %c240_i32_18 = arith.constant 240 : i32
    %77 = tpu.dynamic_rotate %1 by %c240_i32_18 dim 1 : vector<16x256xf32>, i32 -> vector<16x256xf32>
    %78 = vector.broadcast %9 : vector<1x256xf32> to vector<16x256xf32>
    %79 = arith.mulf %77, %78 : vector<16x256xf32>
    %80 = arith.truncf %79 : vector<16x256xf32> to vector<16x256xbf16>
    %c239_i32_19 = arith.constant 239 : i32
    %81 = tpu.dynamic_rotate %1 by %c239_i32_19 dim 1 : vector<16x256xf32>, i32 -> vector<16x256xf32>
    %82 = vector.broadcast %10 : vector<1x256xf32> to vector<16x256xf32>
    %83 = arith.mulf %81, %82 : vector<16x256xf32>
    %84 = arith.truncf %83 : vector<16x256xf32> to vector<16x256xbf16>
    %85 = tpu.concatenate %55, %59, %63, %67, %68, %72, %76, %80, %84 in 0 : vector<16x256xbf16>, vector<16x256xbf16>, vector<16x256xbf16>, vector<16x256xbf16>, vector<16x256xbf16>, vector<16x256xbf16>, vector<16x256xbf16>, vector<16x256xbf16>, vector<16x256xbf16> -> vector<144x256xbf16>
    %c0_20 = arith.constant 0 : index
    %c0_21 = arith.constant 0 : index
    %86 = vector.load %arg10[%c0_20, %c0_21] : memref<32x144xbf16, #tpu.memory_space<vmem>>, vector<32x144xbf16>
    %cst_22 = arith.constant dense<0.000000e+00> : vector<32x256xf32>
    %87 = tpu.matmul %86, %85, %cst_22 {dimension_numbers = #tpu.dot_dimension_numbers<[1], [0], [0], [1], [0, 0, 1, 1], [], []>} : vector<32x144xbf16>, vector<144x256xbf16>, vector<32x256xf32> -> vector<32x256xf32>
    %c0_23 = arith.constant 0 : index
    %c0_24 = arith.constant 0 : index
    %88 = vector.load %arg11[%c0_23, %c0_24] : memref<32x1xf32, #tpu.memory_space<vmem>>, vector<32x1xf32>
    %89 = vector.broadcast %88 : vector<32x1xf32> to vector<32x256xf32>
    %90 = arith.addf %87, %89 : vector<32x256xf32>
    %cst_25 = arith.constant dense<0.000000e+00> : vector<32xf32>
    %91 = vector.multi_reduction <add>, %90, %cst_25 [1] : vector<32x256xf32> to vector<32xf32>
    %92 = vector.shape_cast %91 : vector<32xf32> to vector<32x1xf32>
    %93 = arith.mulf %90, %90 : vector<32x256xf32>
    %cst_26 = arith.constant dense<0.000000e+00> : vector<32xf32>
    %94 = vector.multi_reduction <add>, %93, %cst_26 [1] : vector<32x256xf32> to vector<32xf32>
    %95 = vector.shape_cast %94 : vector<32xf32> to vector<32x1xf32>
    %96 = tpu.concatenate %92, %95 in 1 : vector<32x1xf32>, vector<32x1xf32> -> vector<32x2xf32>
    %cst_27 = arith.constant dense<0.000000e+00> : vector<16x2xf32>
    %97 = tpu.matmul %12, %96, %cst_27 {dimension_numbers = #tpu.dot_dimension_numbers<[1], [0], [0], [1], [0, 0, 1, 1], [], []>} : vector<16x32xf32>, vector<32x2xf32>, vector<16x2xf32> -> vector<16x2xf32>
    %cst_28 = arith.constant dense<0.000000e+00> : vector<32x2xf32>
    %98 = tpu.matmul %11, %97, %cst_28 {dimension_numbers = #tpu.dot_dimension_numbers<[1], [0], [0], [1], [0, 0, 1, 1], [], []>} : vector<32x16xf32>, vector<16x2xf32>, vector<32x2xf32> -> vector<32x2xf32>
    %cst_29 = arith.constant 5.120000e+02 : f32
    %99 = vector.broadcast %cst_29 : f32 to vector<32x2xf32>
    %100 = arith.divf %98, %99 : vector<32x2xf32>
    %101 = vector.extract_strided_slice %100 {offsets = [0, 0], sizes = [32, 1], strides = [1, 1]} : vector<32x2xf32> to vector<32x1xf32>
    %102 = vector.extract_strided_slice %100 {offsets = [0, 1], sizes = [32, 1], strides = [1, 1]} : vector<32x2xf32> to vector<32x1xf32>
    %103 = arith.mulf %101, %101 : vector<32x1xf32>
    %104 = arith.subf %102, %103 : vector<32x1xf32>
    %cst_30 = arith.constant 0.000000e+00 : f32
    %105 = vector.broadcast %cst_30 : f32 to vector<32x1xf32>
    %106 = arith.maximumf %104, %105 : vector<32x1xf32>
    %cst_31 = arith.constant 9.99999974E-6 : f32
    %107 = vector.broadcast %cst_31 : f32 to vector<32x1xf32>
    %108 = arith.addf %106, %107 : vector<32x1xf32>
    %109 = math.rsqrt %108 : vector<32x1xf32>
    %110 = vector.broadcast %101 : vector<32x1xf32> to vector<32x256xf32>
    %111 = arith.subf %90, %110 : vector<32x256xf32>
    %112 = vector.broadcast %109 : vector<32x1xf32> to vector<32x256xf32>
    %113 = arith.mulf %111, %112 : vector<32x256xf32>
    %c0_32 = arith.constant 0 : index
    %c0_33 = arith.constant 0 : index
    %114 = vector.load %arg12[%c0_32, %c0_33] : memref<32x1xf32, #tpu.memory_space<vmem>>, vector<32x1xf32>
    %115 = vector.broadcast %114 : vector<32x1xf32> to vector<32x256xf32>
    %116 = arith.mulf %113, %115 : vector<32x256xf32>
    %c0_34 = arith.constant 0 : index
    %c0_35 = arith.constant 0 : index
    %117 = vector.load %arg13[%c0_34, %c0_35] : memref<32x1xf32, #tpu.memory_space<vmem>>, vector<32x1xf32>
    %118 = vector.broadcast %117 : vector<32x1xf32> to vector<32x256xf32>
    %119 = arith.addf %116, %118 : vector<32x256xf32>
    %c0_36 = arith.constant 0 : index
    %c0_37 = arith.constant 0 : index
    %c0_38 = arith.constant 0 : index
    %120 = vector.load %arg2[%c0_36, %c0_37, %c0_38] : memref<1x32x1xf32, #tpu.memory_space<vmem>>, vector<1x32x1xf32>
    %121 = vector.shape_cast %120 : vector<1x32x1xf32> to vector<32x1xf32>
    %122 = vector.broadcast %121 : vector<32x1xf32> to vector<32x256xf32>
    %123 = arith.addf %119, %122 : vector<32x256xf32>
    %124 = arith.negf %123 : vector<32x256xf32>
    %125 = math.exp %124 : vector<32x256xf32>
    %cst_39 = arith.constant 1.000000e+00 : f32
    %126 = vector.broadcast %cst_39 : f32 to vector<32x256xf32>
    %127 = arith.addf %126, %125 : vector<32x256xf32>
    %128 = arith.divf %126, %127 : vector<32x256xf32>
    %129 = arith.mulf %123, %128 : vector<32x256xf32>
    %c17_i32_40 = arith.constant 17 : i32
    %130 = tpu.dynamic_rotate %129 by %c17_i32_40 dim 1 : vector<32x256xf32>, i32 -> vector<32x256xf32>
    %131 = vector.broadcast %3 : vector<1x256xf32> to vector<32x256xf32>
    %132 = arith.mulf %130, %131 : vector<32x256xf32>
    %133 = arith.truncf %132 : vector<32x256xf32> to vector<32x256xbf16>
    %c16_i32_41 = arith.constant 16 : i32
    %134 = tpu.dynamic_rotate %129 by %c16_i32_41 dim 1 : vector<32x256xf32>, i32 -> vector<32x256xf32>
    %135 = vector.broadcast %4 : vector<1x256xf32> to vector<32x256xf32>
    %136 = arith.mulf %134, %135 : vector<32x256xf32>
    %137 = arith.truncf %136 : vector<32x256xf32> to vector<32x256xbf16>
    %c15_i32_42 = arith.constant 15 : i32
    %138 = tpu.dynamic_rotate %129 by %c15_i32_42 dim 1 : vector<32x256xf32>, i32 -> vector<32x256xf32>
    %139 = vector.broadcast %5 : vector<1x256xf32> to vector<32x256xf32>
    %140 = arith.mulf %138, %139 : vector<32x256xf32>
    %141 = arith.truncf %140 : vector<32x256xf32> to vector<32x256xbf16>
    %c1_i32_43 = arith.constant 1 : i32
    %142 = tpu.dynamic_rotate %129 by %c1_i32_43 dim 1 : vector<32x256xf32>, i32 -> vector<32x256xf32>
    %143 = vector.broadcast %6 : vector<1x256xf32> to vector<32x256xf32>
    %144 = arith.mulf %142, %143 : vector<32x256xf32>
    %145 = arith.truncf %144 : vector<32x256xf32> to vector<32x256xbf16>
    %146 = arith.truncf %129 : vector<32x256xf32> to vector<32x256xbf16>
    %c255_i32_44 = arith.constant 255 : i32
    %147 = tpu.dynamic_rotate %129 by %c255_i32_44 dim 1 : vector<32x256xf32>, i32 -> vector<32x256xf32>
    %148 = vector.broadcast %7 : vector<1x256xf32> to vector<32x256xf32>
    %149 = arith.mulf %147, %148 : vector<32x256xf32>
    %150 = arith.truncf %149 : vector<32x256xf32> to vector<32x256xbf16>
    %c241_i32_45 = arith.constant 241 : i32
    %151 = tpu.dynamic_rotate %129 by %c241_i32_45 dim 1 : vector<32x256xf32>, i32 -> vector<32x256xf32>
    %152 = vector.broadcast %8 : vector<1x256xf32> to vector<32x256xf32>
    %153 = arith.mulf %151, %152 : vector<32x256xf32>
    %154 = arith.truncf %153 : vector<32x256xf32> to vector<32x256xbf16>
    %c240_i32_46 = arith.constant 240 : i32
    %155 = tpu.dynamic_rotate %129 by %c240_i32_46 dim 1 : vector<32x256xf32>, i32 -> vector<32x256xf32>
    %156 = vector.broadcast %9 : vector<1x256xf32> to vector<32x256xf32>
    %157 = arith.mulf %155, %156 : vector<32x256xf32>
    %158 = arith.truncf %157 : vector<32x256xf32> to vector<32x256xbf16>
    %c239_i32_47 = arith.constant 239 : i32
    %159 = tpu.dynamic_rotate %129 by %c239_i32_47 dim 1 : vector<32x256xf32>, i32 -> vector<32x256xf32>
    %160 = vector.broadcast %10 : vector<1x256xf32> to vector<32x256xf32>
    %161 = arith.mulf %159, %160 : vector<32x256xf32>
    %162 = arith.truncf %161 : vector<32x256xf32> to vector<32x256xbf16>
    %163 = tpu.concatenate %133, %137, %141, %145, %146, %150, %154, %158, %162 in 0 : vector<32x256xbf16>, vector<32x256xbf16>, vector<32x256xbf16>, vector<32x256xbf16>, vector<32x256xbf16>, vector<32x256xbf16>, vector<32x256xbf16>, vector<32x256xbf16>, vector<32x256xbf16> -> vector<288x256xbf16>
    %c0_48 = arith.constant 0 : index
    %c0_49 = arith.constant 0 : index
    %164 = vector.load %arg14[%c0_48, %c0_49] : memref<32x288xbf16, #tpu.memory_space<vmem>>, vector<32x288xbf16>
    %cst_50 = arith.constant dense<0.000000e+00> : vector<32x256xf32>
    %165 = tpu.matmul %164, %163, %cst_50 {dimension_numbers = #tpu.dot_dimension_numbers<[1], [0], [0], [1], [0, 0, 1, 1], [], []>} : vector<32x288xbf16>, vector<288x256xbf16>, vector<32x256xf32> -> vector<32x256xf32>
    %c0_51 = arith.constant 0 : index
    %c0_52 = arith.constant 0 : index
    %166 = vector.load %arg15[%c0_51, %c0_52] : memref<32x1xf32, #tpu.memory_space<vmem>>, vector<32x1xf32>
    %167 = vector.broadcast %166 : vector<32x1xf32> to vector<32x256xf32>
    %168 = arith.addf %165, %167 : vector<32x256xf32>
    %169 = arith.addf %168, %51 : vector<32x256xf32>
    %c0_53 = arith.constant 0 : index
    %c0_54 = arith.constant 0 : index
    %c0_55 = arith.constant 0 : index
    %170 = vector.load %arg32[%c0_53, %c0_54, %c0_55] : memref<1x32x256xf32, #tpu.memory_space<vmem>>, vector<1x32x256xf32>
    %171 = vector.shape_cast %170 : vector<1x32x256xf32> to vector<32x256xf32>
    %172 = vector.shape_cast %169 : vector<32x256xf32> to vector<1x32x256xf32>
    tpu.vector_store %arg32[%c0_53, %c0_54, %c0_55], %172 {strides = array<i32>} : memref<1x32x256xf32, #tpu.memory_space<vmem>>, vector<1x32x256xf32>,
    %c17_i32_56 = arith.constant 17 : i32
    %173 = tpu.dynamic_rotate %169 by %c17_i32_56 dim 1 : vector<32x256xf32>, i32 -> vector<32x256xf32>
    %174 = vector.broadcast %3 : vector<1x256xf32> to vector<32x256xf32>
    %175 = arith.mulf %173, %174 : vector<32x256xf32>
    %176 = arith.truncf %175 : vector<32x256xf32> to vector<32x256xbf16>
    %c16_i32_57 = arith.constant 16 : i32
    %177 = tpu.dynamic_rotate %169 by %c16_i32_57 dim 1 : vector<32x256xf32>, i32 -> vector<32x256xf32>
    %178 = vector.broadcast %4 : vector<1x256xf32> to vector<32x256xf32>
    %179 = arith.mulf %177, %178 : vector<32x256xf32>
    %180 = arith.truncf %179 : vector<32x256xf32> to vector<32x256xbf16>
    %c15_i32_58 = arith.constant 15 : i32
    %181 = tpu.dynamic_rotate %169 by %c15_i32_58 dim 1 : vector<32x256xf32>, i32 -> vector<32x256xf32>
    %182 = vector.broadcast %5 : vector<1x256xf32> to vector<32x256xf32>
    %183 = arith.mulf %181, %182 : vector<32x256xf32>
    %184 = arith.truncf %183 : vector<32x256xf32> to vector<32x256xbf16>
    %c1_i32_59 = arith.constant 1 : i32
    %185 = tpu.dynamic_rotate %169 by %c1_i32_59 dim 1 : vector<32x256xf32>, i32 -> vector<32x256xf32>
    %186 = vector.broadcast %6 : vector<1x256xf32> to vector<32x256xf32>
    %187 = arith.mulf %185, %186 : vector<32x256xf32>
    %188 = arith.truncf %187 : vector<32x256xf32> to vector<32x256xbf16>
    %189 = arith.truncf %169 : vector<32x256xf32> to vector<32x256xbf16>
    %c255_i32_60 = arith.constant 255 : i32
    %190 = tpu.dynamic_rotate %169 by %c255_i32_60 dim 1 : vector<32x256xf32>, i32 -> vector<32x256xf32>
    %191 = vector.broadcast %7 : vector<1x256xf32> to vector<32x256xf32>
    %192 = arith.mulf %190, %191 : vector<32x256xf32>
    %193 = arith.truncf %192 : vector<32x256xf32> to vector<32x256xbf16>
    %c241_i32_61 = arith.constant 241 : i32
    %194 = tpu.dynamic_rotate %169 by %c241_i32_61 dim 1 : vector<32x256xf32>, i32 -> vector<32x256xf32>
    %195 = vector.broadcast %8 : vector<1x256xf32> to vector<32x256xf32>
    %196 = arith.mulf %194, %195 : vector<32x256xf32>
    %197 = arith.truncf %196 : vector<32x256xf32> to vector<32x256xbf16>
    %c240_i32_62 = arith.constant 240 : i32
    %198 = tpu.dynamic_rotate %169 by %c240_i32_62 dim 1 : vector<32x256xf32>, i32 -> vector<32x256xf32>
    %199 = vector.broadcast %9 : vector<1x256xf32> to vector<32x256xf32>
    %200 = arith.mulf %198, %199 : vector<32x256xf32>
    %201 = arith.truncf %200 : vector<32x256xf32> to vector<32x256xbf16>
    %c239_i32_63 = arith.constant 239 : i32
    %202 = tpu.dynamic_rotate %169 by %c239_i32_63 dim 1 : vector<32x256xf32>, i32 -> vector<32x256xf32>
    %203 = vector.broadcast %10 : vector<1x256xf32> to vector<32x256xf32>
    %204 = arith.mulf %202, %203 : vector<32x256xf32>
    %205 = arith.truncf %204 : vector<32x256xf32> to vector<32x256xbf16>
    %206 = tpu.concatenate %176, %180, %184, %188, %189, %193, %197, %201, %205 in 0 : vector<32x256xbf16>, vector<32x256xbf16>, vector<32x256xbf16>, vector<32x256xbf16>, vector<32x256xbf16>, vector<32x256xbf16>, vector<32x256xbf16>, vector<32x256xbf16>, vector<32x256xbf16> -> vector<288x256xbf16>
    %c0_64 = arith.constant 0 : index
    %c0_65 = arith.constant 0 : index
    %207 = vector.load %arg16[%c0_64, %c0_65] : memref<32x288xbf16, #tpu.memory_space<vmem>>, vector<32x288xbf16>
    %cst_66 = arith.constant dense<0.000000e+00> : vector<32x256xf32>
    %208 = tpu.matmul %207, %206, %cst_66 {dimension_numbers = #tpu.dot_dimension_numbers<[1], [0], [0], [1], [0, 0, 1, 1], [], []>} : vector<32x288xbf16>, vector<288x256xbf16>, vector<32x256xf32> -> vector<32x256xf32>
    %c0_67 = arith.constant 0 : index
    %c0_68 = arith.constant 0 : index
    %209 = vector.load %arg17[%c0_67, %c0_68] : memref<32x1xf32, #tpu.memory_space<vmem>>, vector<32x1xf32>
    %210 = vector.broadcast %209 : vector<32x1xf32> to vector<32x256xf32>
    %211 = arith.addf %208, %210 : vector<32x256xf32>
    %cst_69 = arith.constant dense<0.000000e+00> : vector<32xf32>
    %212 = vector.multi_reduction <add>, %211, %cst_69 [1] : vector<32x256xf32> to vector<32xf32>
    %213 = vector.shape_cast %212 : vector<32xf32> to vector<32x1xf32>
    %214 = arith.mulf %211, %211 : vector<32x256xf32>
    %cst_70 = arith.constant dense<0.000000e+00> : vector<32xf32>
    %215 = vector.multi_reduction <add>, %214, %cst_70 [1] : vector<32x256xf32> to vector<32xf32>
    %216 = vector.shape_cast %215 : vector<32xf32> to vector<32x1xf32>
    %217 = tpu.concatenate %213, %216 in 1 : vector<32x1xf32>, vector<32x1xf32> -> vector<32x2xf32>
    %cst_71 = arith.constant dense<0.000000e+00> : vector<16x2xf32>
    %218 = tpu.matmul %12, %217, %cst_71 {dimension_numbers = #tpu.dot_dimension_numbers<[1], [0], [0], [1], [0, 0, 1, 1], [], []>} : vector<16x32xf32>, vector<32x2xf32>, vector<16x2xf32> -> vector<16x2xf32>
    %cst_72 = arith.constant dense<0.000000e+00> : vector<32x2xf32>
    %219 = tpu.matmul %11, %218, %cst_72 {dimension_numbers = #tpu.dot_dimension_numbers<[1], [0], [0], [1], [0, 0, 1, 1], [], []>} : vector<32x16xf32>, vector<16x2xf32>, vector<32x2xf32> -> vector<32x2xf32>
    %cst_73 = arith.constant 5.120000e+02 : f32
    %220 = vector.broadcast %cst_73 : f32 to vector<32x2xf32>
    %221 = arith.divf %219, %220 : vector<32x2xf32>
    %222 = vector.extract_strided_slice %221 {offsets = [0, 0], sizes = [32, 1], strides = [1, 1]} : vector<32x2xf32> to vector<32x1xf32>
    %223 = vector.extract_strided_slice %221 {offsets = [0, 1], sizes = [32, 1], strides = [1, 1]} : vector<32x2xf32> to vector<32x1xf32>
    %224 = arith.mulf %222, %222 : vector<32x1xf32>
    %225 = arith.subf %223, %224 : vector<32x1xf32>
    %cst_74 = arith.constant 0.000000e+00 : f32
    %226 = vector.broadcast %cst_74 : f32 to vector<32x1xf32>
    %227 = arith.maximumf %225, %226 : vector<32x1xf32>
    %cst_75 = arith.constant 9.99999974E-6 : f32
    %228 = vector.broadcast %cst_75 : f32 to vector<32x1xf32>
    %229 = arith.addf %227, %228 : vector<32x1xf32>
    %230 = math.rsqrt %229 : vector<32x1xf32>
    %231 = vector.broadcast %222 : vector<32x1xf32> to vector<32x256xf32>
    %232 = arith.subf %211, %231 : vector<32x256xf32>
    %233 = vector.broadcast %230 : vector<32x1xf32> to vector<32x256xf32>
    %234 = arith.mulf %232, %233 : vector<32x256xf32>
    %c0_76 = arith.constant 0 : index
    %c0_77 = arith.constant 0 : index
    %235 = vector.load %arg18[%c0_76, %c0_77] : memref<32x1xf32, #tpu.memory_space<vmem>>, vector<32x1xf32>
    %236 = vector.broadcast %235 : vector<32x1xf32> to vector<32x256xf32>
    %237 = arith.mulf %234, %236 : vector<32x256xf32>
    %c0_78 = arith.constant 0 : index
    %c0_79 = arith.constant 0 : index
    %238 = vector.load %arg19[%c0_78, %c0_79] : memref<32x1xf32, #tpu.memory_space<vmem>>, vector<32x1xf32>
    %239 = vector.broadcast %238 : vector<32x1xf32> to vector<32x256xf32>
    %240 = arith.addf %237, %239 : vector<32x256xf32>
    %c0_80 = arith.constant 0 : index
    %c0_81 = arith.constant 0 : index
    %c0_82 = arith.constant 0 : index
    %241 = vector.load %arg3[%c0_80, %c0_81, %c0_82] : memref<1x32x1xf32, #tpu.memory_space<vmem>>, vector<1x32x1xf32>
    %242 = vector.shape_cast %241 : vector<1x32x1xf32> to vector<32x1xf32>
    %243 = vector.broadcast %242 : vector<32x1xf32> to vector<32x256xf32>
    %244 = arith.addf %240, %243 : vector<32x256xf32>
    %245 = arith.negf %244 : vector<32x256xf32>
    %246 = math.exp %245 : vector<32x256xf32>
    %cst_83 = arith.constant 1.000000e+00 : f32
    %247 = vector.broadcast %cst_83 : f32 to vector<32x256xf32>
    %248 = arith.addf %247, %246 : vector<32x256xf32>
    %249 = arith.divf %247, %248 : vector<32x256xf32>
    %250 = arith.mulf %244, %249 : vector<32x256xf32>
    %c17_i32_84 = arith.constant 17 : i32
    %251 = tpu.dynamic_rotate %250 by %c17_i32_84 dim 1 : vector<32x256xf32>, i32 -> vector<32x256xf32>
    %252 = vector.broadcast %3 : vector<1x256xf32> to vector<32x256xf32>
    %253 = arith.mulf %251, %252 : vector<32x256xf32>
    %254 = arith.truncf %253 : vector<32x256xf32> to vector<32x256xbf16>
    %c16_i32_85 = arith.constant 16 : i32
    %255 = tpu.dynamic_rotate %250 by %c16_i32_85 dim 1 : vector<32x256xf32>, i32 -> vector<32x256xf32>
    %256 = vector.broadcast %4 : vector<1x256xf32> to vector<32x256xf32>
    %257 = arith.mulf %255, %256 : vector<32x256xf32>
    %258 = arith.truncf %257 : vector<32x256xf32> to vector<32x256xbf16>
    %c15_i32_86 = arith.constant 15 : i32
    %259 = tpu.dynamic_rotate %250 by %c15_i32_86 dim 1 : vector<32x256xf32>, i32 -> vector<32x256xf32>
    %260 = vector.broadcast %5 : vector<1x256xf32> to vector<32x256xf32>
    %261 = arith.mulf %259, %260 : vector<32x256xf32>
    %262 = arith.truncf %261 : vector<32x256xf32> to vector<32x256xbf16>
    %c1_i32_87 = arith.constant 1 : i32
    %263 = tpu.dynamic_rotate %250 by %c1_i32_87 dim 1 : vector<32x256xf32>, i32 -> vector<32x256xf32>
    %264 = vector.broadcast %6 : vector<1x256xf32> to vector<32x256xf32>
    %265 = arith.mulf %263, %264 : vector<32x256xf32>
    %266 = arith.truncf %265 : vector<32x256xf32> to vector<32x256xbf16>
    %267 = arith.truncf %250 : vector<32x256xf32> to vector<32x256xbf16>
    %c255_i32_88 = arith.constant 255 : i32
    %268 = tpu.dynamic_rotate %250 by %c255_i32_88 dim 1 : vector<32x256xf32>, i32 -> vector<32x256xf32>
    %269 = vector.broadcast %7 : vector<1x256xf32> to vector<32x256xf32>
    %270 = arith.mulf %268, %269 : vector<32x256xf32>
    %271 = arith.truncf %270 : vector<32x256xf32> to vector<32x256xbf16>
    %c241_i32_89 = arith.constant 241 : i32
    %272 = tpu.dynamic_rotate %250 by %c241_i32_89 dim 1 : vector<32x256xf32>, i32 -> vector<32x256xf32>
    %273 = vector.broadcast %8 : vector<1x256xf32> to vector<32x256xf32>
    %274 = arith.mulf %272, %273 : vector<32x256xf32>
    %275 = arith.truncf %274 : vector<32x256xf32> to vector<32x256xbf16>
    %c240_i32_90 = arith.constant 240 : i32
    %276 = tpu.dynamic_rotate %250 by %c240_i32_90 dim 1 : vector<32x256xf32>, i32 -> vector<32x256xf32>
    %277 = vector.broadcast %9 : vector<1x256xf32> to vector<32x256xf32>
    %278 = arith.mulf %276, %277 : vector<32x256xf32>
    %279 = arith.truncf %278 : vector<32x256xf32> to vector<32x256xbf16>
    %c239_i32_91 = arith.constant 239 : i32
    %280 = tpu.dynamic_rotate %250 by %c239_i32_91 dim 1 : vector<32x256xf32>, i32 -> vector<32x256xf32>
    %281 = vector.broadcast %10 : vector<1x256xf32> to vector<32x256xf32>
    %282 = arith.mulf %280, %281 : vector<32x256xf32>
    %283 = arith.truncf %282 : vector<32x256xf32> to vector<32x256xbf16>
    %284 = tpu.concatenate %254, %258, %262, %266, %267, %271, %275, %279, %283 in 0 : vector<32x256xbf16>, vector<32x256xbf16>, vector<32x256xbf16>, vector<32x256xbf16>, vector<32x256xbf16>, vector<32x256xbf16>, vector<32x256xbf16>, vector<32x256xbf16>, vector<32x256xbf16> -> vector<288x256xbf16>
    %c0_92 = arith.constant 0 : index
    %c0_93 = arith.constant 0 : index
    %285 = vector.load %arg20[%c0_92, %c0_93] : memref<32x288xbf16, #tpu.memory_space<vmem>>, vector<32x288xbf16>
    %cst_94 = arith.constant dense<0.000000e+00> : vector<32x256xf32>
    %286 = tpu.matmul %285, %284, %cst_94 {dimension_numbers = #tpu.dot_dimension_numbers<[1], [0], [0], [1], [0, 0, 1, 1], [], []>} : vector<32x288xbf16>, vector<288x256xbf16>, vector<32x256xf32> -> vector<32x256xf32>
    %c0_95 = arith.constant 0 : index
    %c0_96 = arith.constant 0 : index
    %287 = vector.load %arg21[%c0_95, %c0_96] : memref<32x1xf32, #tpu.memory_space<vmem>>, vector<32x1xf32>
    %288 = vector.broadcast %287 : vector<32x1xf32> to vector<32x256xf32>
    %289 = arith.addf %286, %288 : vector<32x256xf32>
    %290 = arith.addf %289, %169 : vector<32x256xf32>
    %c0_97 = arith.constant 0 : index
    %c0_98 = arith.constant 0 : index
    %c0_99 = arith.constant 0 : index
    %291 = vector.load %arg33[%c0_97, %c0_98, %c0_99] : memref<1x32x256xf32, #tpu.memory_space<vmem>>, vector<1x32x256xf32>
    %292 = vector.shape_cast %291 : vector<1x32x256xf32> to vector<32x256xf32>
    %293 = vector.shape_cast %290 : vector<32x256xf32> to vector<1x32x256xf32>
    tpu.vector_store %arg33[%c0_97, %c0_98, %c0_99], %293 {strides = array<i32>} : memref<1x32x256xf32, #tpu.memory_space<vmem>>, vector<1x32x256xf32>,
    %cst_100 = arith.constant dense<0.000000e+00> : vector<32xf32>
    %294 = vector.multi_reduction <add>, %290, %cst_100 [1] : vector<32x256xf32> to vector<32xf32>
    %295 = vector.shape_cast %294 : vector<32xf32> to vector<32x1xf32>
    %296 = arith.mulf %290, %290 : vector<32x256xf32>
    %cst_101 = arith.constant dense<0.000000e+00> : vector<32xf32>
    %297 = vector.multi_reduction <add>, %296, %cst_101 [1] : vector<32x256xf32> to vector<32xf32>
    %298 = vector.shape_cast %297 : vector<32xf32> to vector<32x1xf32>
    %299 = tpu.concatenate %295, %298 in 1 : vector<32x1xf32>, vector<32x1xf32> -> vector<32x2xf32>
    %cst_102 = arith.constant dense<0.000000e+00> : vector<16x2xf32>
    %300 = tpu.matmul %12, %299, %cst_102 {dimension_numbers = #tpu.dot_dimension_numbers<[1], [0], [0], [1], [0, 0, 1, 1], [], []>} : vector<16x32xf32>, vector<32x2xf32>, vector<16x2xf32> -> vector<16x2xf32>
    %cst_103 = arith.constant dense<0.000000e+00> : vector<32x2xf32>
    %301 = tpu.matmul %11, %300, %cst_103 {dimension_numbers = #tpu.dot_dimension_numbers<[1], [0], [0], [1], [0, 0, 1, 1], [], []>} : vector<32x16xf32>, vector<16x2xf32>, vector<32x2xf32> -> vector<32x2xf32>
    %cst_104 = arith.constant 5.120000e+02 : f32
    %302 = vector.broadcast %cst_104 : f32 to vector<32x2xf32>
    %303 = arith.divf %301, %302 : vector<32x2xf32>
    %304 = vector.extract_strided_slice %303 {offsets = [0, 0], sizes = [32, 1], strides = [1, 1]} : vector<32x2xf32> to vector<32x1xf32>
    %305 = vector.extract_strided_slice %303 {offsets = [0, 1], sizes = [32, 1], strides = [1, 1]} : vector<32x2xf32> to vector<32x1xf32>
    %306 = arith.mulf %304, %304 : vector<32x1xf32>
    %307 = arith.subf %305, %306 : vector<32x1xf32>
    %cst_105 = arith.constant 0.000000e+00 : f32
    %308 = vector.broadcast %cst_105 : f32 to vector<32x1xf32>
    %309 = arith.maximumf %307, %308 : vector<32x1xf32>
    %cst_106 = arith.constant 9.99999997E-7 : f32
    %310 = vector.broadcast %cst_106 : f32 to vector<32x1xf32>
    %311 = arith.addf %309, %310 : vector<32x1xf32>
    %312 = math.rsqrt %311 : vector<32x1xf32>
    %313 = vector.broadcast %304 : vector<32x1xf32> to vector<32x256xf32>
    %314 = arith.subf %290, %313 : vector<32x256xf32>
    %315 = vector.broadcast %312 : vector<32x1xf32> to vector<32x256xf32>
    %316 = arith.mulf %314, %315 : vector<32x256xf32>
    %c0_107 = arith.constant 0 : index
    %c0_108 = arith.constant 0 : index
    %317 = vector.load %arg22[%c0_107, %c0_108] : memref<32x1xf32, #tpu.memory_space<vmem>>, vector<32x1xf32>
    %318 = vector.broadcast %317 : vector<32x1xf32> to vector<32x256xf32>
    %319 = arith.mulf %316, %318 : vector<32x256xf32>
    %c0_109 = arith.constant 0 : index
    %c0_110 = arith.constant 0 : index
    %320 = vector.load %arg23[%c0_109, %c0_110] : memref<32x1xf32, #tpu.memory_space<vmem>>, vector<32x1xf32>
    %321 = vector.broadcast %320 : vector<32x1xf32> to vector<32x256xf32>
    %322 = arith.addf %319, %321 : vector<32x256xf32>
    %323 = arith.truncf %322 : vector<32x256xf32> to vector<32x256xbf16>
    %c0_111 = arith.constant 0 : index
    %c0_112 = arith.constant 0 : index
    %324 = vector.load %arg24[%c0_111, %c0_112] : memref<32x32xbf16, #tpu.memory_space<vmem>>, vector<32x32xbf16>
    %cst_113 = arith.constant dense<0.000000e+00> : vector<32x256xf32>
    %325 = tpu.matmul %324, %323, %cst_113 {dimension_numbers = #tpu.dot_dimension_numbers<[1], [0], [0], [1], [0, 0, 1, 1], [], []>} : vector<32x32xbf16>, vector<32x256xbf16>, vector<32x256xf32> -> vector<32x256xf32>
    %c0_114 = arith.constant 0 : index
    %c0_115 = arith.constant 0 : index
    %326 = vector.load %arg25[%c0_114, %c0_115] : memref<32x1xf32, #tpu.memory_space<vmem>>, vector<32x1xf32>
    %327 = vector.broadcast %326 : vector<32x1xf32> to vector<32x256xf32>
    %328 = arith.addf %325, %327 : vector<32x256xf32>
    %c0_116 = arith.constant 0 : index
    %c0_117 = arith.constant 0 : index
    %329 = vector.load %arg26[%c0_116, %c0_117] : memref<32x32xbf16, #tpu.memory_space<vmem>>, vector<32x32xbf16>
    %cst_118 = arith.constant dense<0.000000e+00> : vector<32x256xf32>
    %330 = tpu.matmul %329, %323, %cst_118 {dimension_numbers = #tpu.dot_dimension_numbers<[1], [0], [0], [1], [0, 0, 1, 1], [], []>} : vector<32x32xbf16>, vector<32x256xbf16>, vector<32x256xf32> -> vector<32x256xf32>
    %c0_119 = arith.constant 0 : index
    %c0_120 = arith.constant 0 : index
    %331 = vector.load %arg27[%c0_119, %c0_120] : memref<32x1xf32, #tpu.memory_space<vmem>>, vector<32x1xf32>
    %332 = vector.broadcast %331 : vector<32x1xf32> to vector<32x256xf32>
    %333 = arith.addf %330, %332 : vector<32x256xf32>
    %c0_121 = arith.constant 0 : index
    %c0_122 = arith.constant 0 : index
    %334 = vector.load %arg28[%c0_121, %c0_122] : memref<32x32xbf16, #tpu.memory_space<vmem>>, vector<32x32xbf16>
    %cst_123 = arith.constant dense<0.000000e+00> : vector<32x256xf32>
    %335 = tpu.matmul %334, %323, %cst_123 {dimension_numbers = #tpu.dot_dimension_numbers<[1], [0], [0], [1], [0, 0, 1, 1], [], []>} : vector<32x32xbf16>, vector<32x256xbf16>, vector<32x256xf32> -> vector<32x256xf32>
    %c0_124 = arith.constant 0 : index
    %c0_125 = arith.constant 0 : index
    %336 = vector.load %arg29[%c0_124, %c0_125] : memref<32x1xf32, #tpu.memory_space<vmem>>, vector<32x1xf32>
    %337 = vector.broadcast %336 : vector<32x1xf32> to vector<32x256xf32>
    %338 = arith.addf %335, %337 : vector<32x256xf32>
    %339 = tpu.transpose %328, [1, 0] : vector<32x256xf32> -> vector<256x32xf32>
    %340 = arith.truncf %339 : vector<256x32xf32> to vector<256x32xbf16>
    %341 = arith.truncf %333 : vector<32x256xf32> to vector<32x256xbf16>
    %cst_126 = arith.constant dense<0.000000e+00> : vector<256x256xf32>
    %342 = tpu.matmul %340, %341, %cst_126 {dimension_numbers = #tpu.dot_dimension_numbers<[1], [0], [0], [1], [0, 0, 1, 1], [], []>} : vector<256x32xbf16>, vector<32x256xbf16>, vector<256x256xf32> -> vector<256x256xf32>
    %cst_127 = arith.constant 0.176776692 : f32
    %343 = vector.broadcast %cst_127 : f32 to vector<256x256xf32>
    %344 = arith.mulf %342, %343 : vector<256x256xf32>
    %cst_128 = arith.constant dense<0xFF800000> : vector<256xf32>
    %345 = vector.multi_reduction <maximumf>, %344, %cst_128 [1] : vector<256x256xf32> to vector<256xf32>
    %346 = vector.shape_cast %345 : vector<256xf32> to vector<256x1xf32>
    %347 = vector.broadcast %346 : vector<256x1xf32> to vector<256x256xf32>
    %348 = arith.subf %344, %347 : vector<256x256xf32>
    %349 = math.exp %348 : vector<256x256xf32>
    %cst_129 = arith.constant dense<0.000000e+00> : vector<256xf32>
    %350 = vector.multi_reduction <add>, %349, %cst_129 [1] : vector<256x256xf32> to vector<256xf32>
    %351 = vector.shape_cast %350 : vector<256xf32> to vector<256x1xf32>
    %352 = tpu.reciprocal %351 : vector<256x1xf32> -> vector<256x1xf32>
    %353 = vector.broadcast %352 : vector<256x1xf32> to vector<256x256xf32>
    %354 = arith.mulf %349, %353 : vector<256x256xf32>
    %355 = arith.truncf %338 : vector<32x256xf32> to vector<32x256xbf16>
    %356 = arith.truncf %354 : vector<256x256xf32> to vector<256x256xbf16>
    %cst_130 = arith.constant dense<0.000000e+00> : vector<32x256xf32>
    %357 = tpu.matmul %355, %356, %cst_130 {dimension_numbers = #tpu.dot_dimension_numbers<[1], [1], [0], [0], [0, 0, 1, 0], [], []>} : vector<32x256xbf16>, vector<256x256xbf16>, vector<32x256xf32> -> vector<32x256xf32>
    %c0_131 = arith.constant 0 : index
    %c0_132 = arith.constant 0 : index
    %358 = vector.load %arg30[%c0_131, %c0_132] : memref<32x32xbf16, #tpu.memory_space<vmem>>, vector<32x32xbf16>
    %359 = arith.truncf %357 : vector<32x256xf32> to vector<32x256xbf16>
    %cst_133 = arith.constant dense<0.000000e+00> : vector<32x256xf32>
    %360 = tpu.matmul %358, %359, %cst_133 {dimension_numbers = #tpu.dot_dimension_numbers<[1], [0], [0], [1], [0, 0, 1, 1], [], []>} : vector<32x32xbf16>, vector<32x256xbf16>, vector<32x256xf32> -> vector<32x256xf32>
    %c0_134 = arith.constant 0 : index
    %c0_135 = arith.constant 0 : index
    %361 = vector.load %arg31[%c0_134, %c0_135] : memref<32x1xf32, #tpu.memory_space<vmem>>, vector<32x1xf32>
    %362 = vector.broadcast %361 : vector<32x1xf32> to vector<32x256xf32>
    %363 = arith.addf %360, %362 : vector<32x256xf32>
    %364 = arith.addf %290, %363 : vector<32x256xf32>
    %365 = arith.truncf %364 : vector<32x256xf32> to vector<32x256xbf16>
    %c0_136 = arith.constant 0 : index
    %c0_137 = arith.constant 0 : index
    %366 = vector.load %arg7[%c0_136, %c0_137] : memref<256x64xbf16, #tpu.memory_space<vmem>>, vector<256x64xbf16>
    %cst_138 = arith.constant dense<0.000000e+00> : vector<32x64xf32>
    %367 = tpu.matmul %365, %366, %cst_138 {dimension_numbers = #tpu.dot_dimension_numbers<[1], [0], [0], [1], [0, 0, 1, 1], [], []>} : vector<32x256xbf16>, vector<256x64xbf16>, vector<32x64xf32> -> vector<32x64xf32>
    %c0_139 = arith.constant 0 : index
    %c0_140 = arith.constant 0 : index
    %c0_141 = arith.constant 0 : index
    %368 = vector.load %arg34[%c0_139, %c0_140, %c0_141] : memref<1x32x64xf32, #tpu.memory_space<vmem>>, vector<1x32x64xf32>
    %369 = vector.shape_cast %368 : vector<1x32x64xf32> to vector<32x64xf32>
    %370 = vector.shape_cast %367 : vector<32x64xf32> to vector<1x32x64xf32>
    tpu.vector_store %arg34[%c0_139, %c0_140, %c0_141], %370 {strides = array<i32>} : memref<1x32x64xf32, #tpu.memory_space<vmem>>, vector<1x32x64xf32>,
    return
  }
  func.func @transform_0(%arg0: i32) -> (i32, i32, i32) {
    %c0_i32 = arith.constant 0 : i32
    %c0_i32_0 = arith.constant 0 : i32
    %c0_i32_1 = arith.constant 0 : i32
    return %arg0, %c0_i32, %c0_i32_0 : i32, i32, i32
  }
  func.func @transform_1(%arg0: i32) -> (i32, i32, i32) {
    %c0_i32 = arith.constant 0 : i32
    %c0_i32_0 = arith.constant 0 : i32
    %c0_i32_1 = arith.constant 0 : i32
    return %arg0, %c0_i32, %c0_i32_0 : i32, i32, i32
  }
  func.func @transform_2(%arg0: i32) -> (i32, i32, i32) {
    %c0_i32 = arith.constant 0 : i32
    %c0_i32_0 = arith.constant 0 : i32
    %c0_i32_1 = arith.constant 0 : i32
    return %arg0, %c0_i32, %c0_i32_0 : i32, i32, i32
  }
  func.func @transform_3(%arg0: i32) -> (i32, i32) {
    %c0_i32 = arith.constant 0 : i32
    %c0_i32_0 = arith.constant 0 : i32
    %c0_i32_1 = arith.constant 0 : i32
    return %c0_i32, %c0_i32_0 : i32, i32
  }
  func.func @transform_4(%arg0: i32) -> (i32, i32) {
    %c0_i32 = arith.constant 0 : i32
    %c0_i32_0 = arith.constant 0 : i32
    %c0_i32_1 = arith.constant 0 : i32
    return %c0_i32, %c0_i32_0 : i32, i32
  }
  func.func @transform_5(%arg0: i32) -> (i32, i32) {
    %c0_i32 = arith.constant 0 : i32
    %c0_i32_0 = arith.constant 0 : i32
    %c0_i32_1 = arith.constant 0 : i32
    return %c0_i32, %c0_i32_0 : i32, i32
  }
  func.func @transform_6(%arg0: i32) -> (i32, i32) {
    %c0_i32 = arith.constant 0 : i32
    %c0_i32_0 = arith.constant 0 : i32
    %c0_i32_1 = arith.constant 0 : i32
    return %c0_i32, %c0_i32_0 : i32, i32
  }
  func.func @transform_7(%arg0: i32) -> (i32, i32) {
    %c0_i32 = arith.constant 0 : i32
    %c0_i32_0 = arith.constant 0 : i32
    %c0_i32_1 = arith.constant 0 : i32
    return %c0_i32, %c0_i32_0 : i32, i32
  }
  func.func @transform_8(%arg0: i32) -> (i32, i32) {
    %c0_i32 = arith.constant 0 : i32
    %c0_i32_0 = arith.constant 0 : i32
    %c0_i32_1 = arith.constant 0 : i32
    return %c0_i32, %c0_i32_0 : i32, i32
  }
  func.func @transform_9(%arg0: i32) -> (i32, i32) {
    %c0_i32 = arith.constant 0 : i32
    %c0_i32_0 = arith.constant 0 : i32
    %c0_i32_1 = arith.constant 0 : i32
    return %c0_i32, %c0_i32_0 : i32, i32
  }
  func.func @transform_10(%arg0: i32) -> (i32, i32) {
    %c0_i32 = arith.constant 0 : i32
    %c0_i32_0 = arith.constant 0 : i32
    %c0_i32_1 = arith.constant 0 : i32
    return %c0_i32, %c0_i32_0 : i32, i32
  }
  func.func @transform_11(%arg0: i32) -> (i32, i32) {
    %c0_i32 = arith.constant 0 : i32
    %c0_i32_0 = arith.constant 0 : i32
    %c0_i32_1 = arith.constant 0 : i32
    return %c0_i32, %c0_i32_0 : i32, i32
  }
  func.func @transform_12(%arg0: i32) -> (i32, i32) {
    %c0_i32 = arith.constant 0 : i32
    %c0_i32_0 = arith.constant 0 : i32
    %c0_i32_1 = arith.constant 0 : i32
    return %c0_i32, %c0_i32_0 : i32, i32
  }
  func.func @transform_13(%arg0: i32) -> (i32, i32) {
    %c0_i32 = arith.constant 0 : i32
    %c0_i32_0 = arith.constant 0 : i32
    %c0_i32_1 = arith.constant 0 : i32
    return %c0_i32, %c0_i32_0 : i32, i32
  }
  func.func @transform_14(%arg0: i32) -> (i32, i32) {
    %c0_i32 = arith.constant 0 : i32
    %c0_i32_0 = arith.constant 0 : i32
    %c0_i32_1 = arith.constant 0 : i32
    return %c0_i32, %c0_i32_0 : i32, i32
  }
  func.func @transform_15(%arg0: i32) -> (i32, i32) {
    %c0_i32 = arith.constant 0 : i32
    %c0_i32_0 = arith.constant 0 : i32
    %c0_i32_1 = arith.constant 0 : i32
    return %c0_i32, %c0_i32_0 : i32, i32
  }
  func.func @transform_16(%arg0: i32) -> (i32, i32) {
    %c0_i32 = arith.constant 0 : i32
    %c0_i32_0 = arith.constant 0 : i32
    %c0_i32_1 = arith.constant 0 : i32
    return %c0_i32, %c0_i32_0 : i32, i32
  }
  func.func @transform_17(%arg0: i32) -> (i32, i32) {
    %c0_i32 = arith.constant 0 : i32
    %c0_i32_0 = arith.constant 0 : i32
    %c0_i32_1 = arith.constant 0 : i32
    return %c0_i32, %c0_i32_0 : i32, i32
  }
  func.func @transform_18(%arg0: i32) -> (i32, i32) {
    %c0_i32 = arith.constant 0 : i32
    %c0_i32_0 = arith.constant 0 : i32
    %c0_i32_1 = arith.constant 0 : i32
    return %c0_i32, %c0_i32_0 : i32, i32
  }
  func.func @transform_19(%arg0: i32) -> (i32, i32) {
    %c0_i32 = arith.constant 0 : i32
    %c0_i32_0 = arith.constant 0 : i32
    %c0_i32_1 = arith.constant 0 : i32
    return %c0_i32, %c0_i32_0 : i32, i32
  }
  func.func @transform_20(%arg0: i32) -> (i32, i32) {
    %c0_i32 = arith.constant 0 : i32
    %c0_i32_0 = arith.constant 0 : i32
    %c0_i32_1 = arith.constant 0 : i32
    return %c0_i32, %c0_i32_0 : i32, i32
  }
  func.func @transform_21(%arg0: i32) -> (i32, i32) {
    %c0_i32 = arith.constant 0 : i32
    %c0_i32_0 = arith.constant 0 : i32
    %c0_i32_1 = arith.constant 0 : i32
    return %c0_i32, %c0_i32_0 : i32, i32
  }
  func.func @transform_22(%arg0: i32) -> (i32, i32) {
    %c0_i32 = arith.constant 0 : i32
    %c0_i32_0 = arith.constant 0 : i32
    %c0_i32_1 = arith.constant 0 : i32
    return %c0_i32, %c0_i32_0 : i32, i32
  }
  func.func @transform_23(%arg0: i32) -> (i32, i32) {
    %c0_i32 = arith.constant 0 : i32
    %c0_i32_0 = arith.constant 0 : i32
    %c0_i32_1 = arith.constant 0 : i32
    return %c0_i32, %c0_i32_0 : i32, i32
  }
  func.func @transform_24(%arg0: i32) -> (i32, i32) {
    %c0_i32 = arith.constant 0 : i32
    %c0_i32_0 = arith.constant 0 : i32
    %c0_i32_1 = arith.constant 0 : i32
    return %c0_i32, %c0_i32_0 : i32, i32
  }
  func.func @transform_25(%arg0: i32) -> (i32, i32) {
    %c0_i32 = arith.constant 0 : i32
    %c0_i32_0 = arith.constant 0 : i32
    %c0_i32_1 = arith.constant 0 : i32
    return %c0_i32, %c0_i32_0 : i32, i32
  }
  func.func @transform_26(%arg0: i32) -> (i32, i32) {
    %c0_i32 = arith.constant 0 : i32
    %c0_i32_0 = arith.constant 0 : i32
    %c0_i32_1 = arith.constant 0 : i32
    return %c0_i32, %c0_i32_0 : i32, i32
  }
  func.func @transform_27(%arg0: i32) -> (i32, i32) {
    %c0_i32 = arith.constant 0 : i32
    %c0_i32_0 = arith.constant 0 : i32
    %c0_i32_1 = arith.constant 0 : i32
    return %c0_i32, %c0_i32_0 : i32, i32
  }
  func.func @transform_28(%arg0: i32) -> (i32, i32) {
    %c0_i32 = arith.constant 0 : i32
    %c0_i32_0 = arith.constant 0 : i32
    %c0_i32_1 = arith.constant 0 : i32
    return %c0_i32, %c0_i32_0 : i32, i32
  }
  func.func @transform_29(%arg0: i32) -> (i32, i32) {
    %c0_i32 = arith.constant 0 : i32
    %c0_i32_0 = arith.constant 0 : i32
    %c0_i32_1 = arith.constant 0 : i32
    return %c0_i32, %c0_i32_0 : i32, i32
  }
  func.func @transform_30(%arg0: i32) -> (i32, i32) {
    %c0_i32 = arith.constant 0 : i32
    %c0_i32_0 = arith.constant 0 : i32
    %c0_i32_1 = arith.constant 0 : i32
    return %c0_i32, %c0_i32_0 : i32, i32
  }
  func.func @transform_31(%arg0: i32) -> (i32, i32, i32) {
    %c0_i32 = arith.constant 0 : i32
    %c0_i32_0 = arith.constant 0 : i32
    %c0_i32_1 = arith.constant 0 : i32
    return %arg0, %c0_i32, %c0_i32_0 : i32, i32, i32
  }
  func.func @transform_32(%arg0: i32) -> (i32, i32, i32) {
    %c0_i32 = arith.constant 0 : i32
    %c0_i32_0 = arith.constant 0 : i32
    %c0_i32_1 = arith.constant 0 : i32
    return %arg0, %c0_i32, %c0_i32_0 : i32, i32, i32
  }
  func.func @transform_33(%arg0: i32) -> (i32, i32, i32) {
    %c0_i32 = arith.constant 0 : i32
    %c0_i32_0 = arith.constant 0 : i32
    %c0_i32_1 = arith.constant 0 : i32
    return %arg0, %c0_i32, %c0_i32_0 : i32, i32, i32
  }
}

</mosaic_0001>

<llo_original>
// kernel: down_block.1
$region0: #{down_block.1}
  #allocation0 [shape = 'u32[]', space=smem, size = 0x4, offset = 0x4, fixed_abs, tag = 'smem constant byte address 0x4 - core index']
  #allocation1 [shape = 'u32[72,128]{1,0:T(1,128)}', space=vmem, size = 0x9000, scoped, tag = 'internal scratch']
  %s0 = inlined_call_operand.smem [shape: u32[34], index: -1, kind: input, shape index: {}]
  %s1 = sld [smem:[%s0]]
  %s2 = scalar_lea.smem %s0, 1
  %s3 = sld [smem:[%s2]]
  %s4 = scalar_lea.smem %s0, 2
  %s5 = sld [smem:[%s4]]
  %s6 = scalar_lea.smem %s0, 3
  %s7 = sld [smem:[%s6]]
  %s8 = scalar_lea.smem %s0, 4
  %s9 = sld [smem:[%s8]]
  %s10 = scalar_lea.smem %s0, 5
  %s11 = sld [smem:[%s10]]
  %s12 = scalar_lea.smem %s0, 6
  %s13 = sld [smem:[%s12]]
  %s14 = scalar_lea.smem %s0, 7
  %s15 = sld [smem:[%s14]]
  %s16 = scalar_lea.smem %s0, 8
  %s17 = sld [smem:[%s16]]
  %s18 = scalar_lea.smem %s0, 9
  %s19 = sld [smem:[%s18]]
  %s20 = scalar_lea.smem %s0, 10
  %s21 = sld [smem:[%s20]]
  %s22 = scalar_lea.smem %s0, 11
  %s23 = sld [smem:[%s22]]
  %s24 = scalar_lea.smem %s0, 12
  %s25 = sld [smem:[%s24]]
  %s26 = scalar_lea.smem %s0, 13
  %s27 = sld [smem:[%s26]]
  %s28 = scalar_lea.smem %s0, 14
  %s29 = sld [smem:[%s28]]
  %s30 = scalar_lea.smem %s0, 15
  %s31 = sld [smem:[%s30]]
  %s32 = scalar_lea.smem %s0, 16
  %s33 = sld [smem:[%s32]]
  %s34 = scalar_lea.smem %s0, 17
  %s35 = sld [smem:[%s34]]
  %s36 = scalar_lea.smem %s0, 18
  %s37 = sld [smem:[%s36]]
  %s38 = scalar_lea.smem %s0, 19
  %s39 = sld [smem:[%s38]]
  %s40 = scalar_lea.smem %s0, 20
  %s41 = sld [smem:[%s40]]
  %s42 = scalar_lea.smem %s0, 21
  %s43 = sld [smem:[%s42]]
  %s44 = scalar_lea.smem %s0, 22
  %s45 = sld [smem:[%s44]]
  %s46 = scalar_lea.smem %s0, 23
  %s47 = sld [smem:[%s46]]
  %s48 = scalar_lea.smem %s0, 24
  %s49 = sld [smem:[%s48]]
  %s50 = scalar_lea.smem %s0, 25
  %s51 = sld [smem:[%s50]]
  %s52 = scalar_lea.smem %s0, 26
  %s53 = sld [smem:[%s52]]
  %s54 = scalar_lea.smem %s0, 27
  %s55 = sld [smem:[%s54]]
  %s56 = scalar_lea.smem %s0, 28
  %s57 = sld [smem:[%s56]]
  %s58 = scalar_lea.smem %s0, 29
  %s59 = sld [smem:[%s58]]
  %s60 = scalar_lea.smem %s0, 30
  %s61 = sld [smem:[%s60]]
  %s62 = scalar_lea.smem %s0, 31
  %s63 = sld [smem:[%s62]]
  %s64 = scalar_lea.smem %s0, 32
  %s65 = sld [smem:[%s64]]
  %s66 = scalar_lea.smem %s0, 33
  %s67 = sld [smem:[%s66]]
  %68 = xla_tuple %s63, %s65, %s67
  %s69 = sld [smem:[#allocation0]]
  $region173: #{down_block.1} parent=0
    _
  %s71 = ssub.s32 1, %s69
  %s72 = scalar_select 0, %s71, %s69
  loop: start=0, step=1, limit=4
  $region2: #{down_block.1} parent=0 // loop_pre_header
    _
  $region3: #{down_block.1} parent=0 // loop_header
    %s74 = sphi 0, %s78
    %p75 = scmp.ge.s32.totalorder %s74, 4
    %s84 = sphi 0, %s86
    %s87 = sphi 0, %s84
    %s88 = sphi 0, %s87
    %s104 = sphi 0, %s88
    %s110 = sphi 0, %s112
    %s113 = sphi 0, %s110
    %s114 = sphi 0, %s113
    %s130 = sphi 0, %s114
    %s136 = sphi 0, %s138
    %s139 = sphi 0, %s136
    %s140 = sphi 0, %s139
    %s156 = sphi 0, %s140
    %s160 = sphi 0, %s160
    %s162 = sphi 0, %s160
    %s163 = sphi 0, %s162
    %s177 = sphi 0, %s163
    %s181 = sphi 0, %s181
    %s183 = sphi 0, %s181
    %s184 = sphi 0, %s183
    %s198 = sphi 0, %s184
    %s202 = sphi 0, %s202
    %s204 = sphi 0, %s202
    %s205 = sphi 0, %s204
    %s219 = sphi 0, %s205
    %s223 = sphi 0, %s223
    %s225 = sphi 0, %s223
    %s226 = sphi 0, %s225
    %s240 = sphi 0, %s226
    %s244 = sphi 0, %s244
    %s246 = sphi 0, %s244
    %s247 = sphi 0, %s246
    %s261 = sphi 0, %s247
    %s265 = sphi 0, %s265
    %s267 = sphi 0, %s265
    %s268 = sphi 0, %s267
    %s282 = sphi 0, %s268
    %s286 = sphi 0, %s286
    %s288 = sphi 0, %s286
    %s289 = sphi 0, %s288
    %s303 = sphi 0, %s289
    %s307 = sphi 0, %s307
    %s309 = sphi 0, %s307
    %s310 = sphi 0, %s309
    %s324 = sphi 0, %s310
    %s328 = sphi 0, %s328
    %s330 = sphi 0, %s328
    %s331 = sphi 0, %s330
    %s345 = sphi 0, %s331
    %s349 = sphi 0, %s349
    %s351 = sphi 0, %s349
    %s352 = sphi 0, %s351
    %s366 = sphi 0, %s352
    %s370 = sphi 0, %s370
    %s372 = sphi 0, %s370
    %s373 = sphi 0, %s372
    %s387 = sphi 0, %s373
    %s391 = sphi 0, %s391
    %s393 = sphi 0, %s391
    %s394 = sphi 0, %s393
    %s408 = sphi 0, %s394
    %s412 = sphi 0, %s412
    %s414 = sphi 0, %s412
    %s415 = sphi 0, %s414
    %s429 = sphi 0, %s415
    %s433 = sphi 0, %s433
    %s435 = sphi 0, %s433
    %s436 = sphi 0, %s435
    %s450 = sphi 0, %s436
    %s454 = sphi 0, %s454
    %s456 = sphi 0, %s454
    %s457 = sphi 0, %s456
    %s471 = sphi 0, %s457
    %s475 = sphi 0, %s475
    %s477 = sphi 0, %s475
    %s478 = sphi 0, %s477
    %s492 = sphi 0, %s478
    %s496 = sphi 0, %s496
    %s498 = sphi 0, %s496
    %s499 = sphi 0, %s498
    %s513 = sphi 0, %s499
    %s517 = sphi 0, %s517
    %s519 = sphi 0, %s517
    %s520 = sphi 0, %s519
    %s534 = sphi 0, %s520
    %s538 = sphi 0, %s538
    %s540 = sphi 0, %s538
    %s541 = sphi 0, %s540
    %s555 = sphi 0, %s541
    %s559 = sphi 0, %s559
    %s561 = sphi 0, %s559
    %s562 = sphi 0, %s561
    %s576 = sphi 0, %s562
    %s580 = sphi 0, %s580
    %s582 = sphi 0, %s580
    %s583 = sphi 0, %s582
    %s597 = sphi 0, %s583
    %s601 = sphi 0, %s601
    %s603 = sphi 0, %s601
    %s604 = sphi 0, %s603
    %s618 = sphi 0, %s604
    %s622 = sphi 0, %s622
    %s624 = sphi 0, %s622
    %s625 = sphi 0, %s624
    %s639 = sphi 0, %s625
    %s643 = sphi 0, %s643
    %s645 = sphi 0, %s643
    %s646 = sphi 0, %s645
    %s660 = sphi 0, %s646
    %s664 = sphi 0, %s664
    %s666 = sphi 0, %s664
    %s667 = sphi 0, %s666
    %s681 = sphi 0, %s667
    %s685 = sphi 0, %s685
    %s687 = sphi 0, %s685
    %s688 = sphi 0, %s687
    %s702 = sphi 0, %s688
    %s706 = sphi 0, %s706
    %s708 = sphi 0, %s706
    %s709 = sphi 0, %s708
    %s723 = sphi 0, %s709
    %s727 = sphi 0, %s727
    %s729 = sphi 0, %s727
    %s730 = sphi 0, %s729
    %s744 = sphi 0, %s730
    %s750 = sphi 0, %s752
    %s753 = sphi 0, %s750
    %s754 = sphi 0, %s753
    %s770 = sphi 0, %s754
    %s776 = sphi 0, %s778
    %s779 = sphi 0, %s776
    %s780 = sphi 0, %s779
    %s796 = sphi 0, %s780
    %s802 = sphi 0, %s804
    %s805 = sphi 0, %s802
    %s806 = sphi 0, %s805
    %s822 = sphi 0, %s806
  $region4: #{down_block.1} parent=0 // loop_header_branch
    %77 = sbr.rel (%p75) target = $region8
  $region5: #{down_block.1} parent=0 // loop_body
    %s79 = ssub.s32 %s74, 1
    %s80 = ssub.s32 %s74, 2
    %s81 = sadd.s32 %s74, 1
    %s82 = ssub.s32 %s74, %s81
    %p83 = scmp.eq.s32.totalorder %s82, 0
    %s85 = sadd.s32 %s84, 1
    %s86 = scalar_select %p83, %s84, %s85
    %p89 = pneg %p83
    %p90 = scmp.eq.s32.totalorder %s74, 1
    %p91 = por %p89, %p90
    %p92 = scmp.ne.s32.totalorder %s84, %s87
    %p93 = scmp.eq.s32.totalorder %s74, 0
    %p94 = por %p92, %p93
    %p95 = scmp.ne.s32.totalorder %s84, %s87
    %p96 = scmp.eq.s32.totalorder %s79, 1
    %p97 = por %p95, %p96
    %p98 = scmp.ne.s32.totalorder %s87, %s88
    %p99 = scmp.eq.s32.totalorder %s79, 0
    %p100 = por %p98, %p99
    %p101 = scmp.ne.s32.totalorder %s87, %s88
    %p102 = scmp.eq.s32.totalorder %s80, 1
    %p103 = por %p101, %p102
    %p105 = scmp.ne.s32.totalorder %s88, %s104
    %p106 = scmp.eq.s32.totalorder %s80, 0
    %p107 = por %p105, %p106
    %s108 = ssub.s32 %s74, %s81
    %p109 = scmp.eq.s32.totalorder %s108, 0
    %s111 = sadd.s32 %s110, 1
    %s112 = scalar_select %p109, %s110, %s111
    %p115 = pneg %p109
    %p116 = scmp.eq.s32.totalorder %s74, 1
    %p117 = por %p115, %p116
    %p118 = scmp.ne.s32.totalorder %s110, %s113
    %p119 = scmp.eq.s32.totalorder %s74, 0
    %p120 = por %p118, %p119
    %p121 = scmp.ne.s32.totalorder %s110, %s113
    %p122 = scmp.eq.s32.totalorder %s79, 1
    %p123 = por %p121, %p122
    %p124 = scmp.ne.s32.totalorder %s113, %s114
    %p125 = scmp.eq.s32.totalorder %s79, 0
    %p126 = por %p124, %p125
    %p127 = scmp.ne.s32.totalorder %s113, %s114
    %p128 = scmp.eq.s32.totalorder %s80, 1
    %p129 = por %p127, %p128
    %p131 = scmp.ne.s32.totalorder %s114, %s130
    %p132 = scmp.eq.s32.totalorder %s80, 0
    %p133 = por %p131, %p132
    %s134 = ssub.s32 %s74, %s81
    %p135 = scmp.eq.s32.totalorder %s134, 0
    %s137 = sadd.s32 %s136, 1
    %s138 = scalar_select %p135, %s136, %s137
    %p141 = pneg %p135
    %p142 = scmp.eq.s32.totalorder %s74, 1
    %p143 = por %p141, %p142
    %p144 = scmp.ne.s32.totalorder %s136, %s139
    %p145 = scmp.eq.s32.totalorder %s74, 0
    %p146 = por %p144, %p145
    %p147 = scmp.ne.s32.totalorder %s136, %s139
    %p148 = scmp.eq.s32.totalorder %s79, 1
    %p149 = por %p147, %p148
    %p150 = scmp.ne.s32.totalorder %s139, %s140
    %p151 = scmp.eq.s32.totalorder %s79, 0
    %p152 = por %p150, %p151
    %p153 = scmp.ne.s32.totalorder %s139, %s140
    %p154 = scmp.eq.s32.totalorder %s80, 1
    %p155 = por %p153, %p154
    %p157 = scmp.ne.s32.totalorder %s140, %s156
    %p158 = scmp.eq.s32.totalorder %s80, 0
    %p159 = por %p157, %p158
    %s161 = sadd.s32 %s160, 1
    %p164 = scmp.eq.s32.totalorder %s74, 1
    %p165 = scmp.ne.s32.totalorder %s160, %s162
    %p166 = scmp.eq.s32.totalorder %s74, 0
    %p167 = por %p165, %p166
    %p168 = scmp.ne.s32.totalorder %s160, %s162
    %p169 = scmp.eq.s32.totalorder %s79, 1
    %p170 = por %p168, %p169
    %p171 = scmp.ne.s32.totalorder %s162, %s163
    %p172 = scmp.eq.s32.totalorder %s79, 0
    %p173 = por %p171, %p172
    %p174 = scmp.ne.s32.totalorder %s162, %s163
    %p175 = scmp.eq.s32.totalorder %s80, 1
    %p176 = por %p174, %p175
    %p178 = scmp.ne.s32.totalorder %s163, %s177
    %p179 = scmp.eq.s32.totalorder %s80, 0
    %p180 = por %p178, %p179
    %s182 = sadd.s32 %s181, 1
    %p185 = scmp.eq.s32.totalorder %s74, 1
    %p186 = scmp.ne.s32.totalorder %s181, %s183
    %p187 = scmp.eq.s32.totalorder %s74, 0
    %p188 = por %p186, %p187
    %p189 = scmp.ne.s32.totalorder %s181, %s183
    %p190 = scmp.eq.s32.totalorder %s79, 1
    %p191 = por %p189, %p190
    %p192 = scmp.ne.s32.totalorder %s183, %s184
    %p193 = scmp.eq.s32.totalorder %s79, 0
    %p194 = por %p192, %p193
    %p195 = scmp.ne.s32.totalorder %s183, %s184
    %p196 = scmp.eq.s32.totalorder %s80, 1
    %p197 = por %p195, %p196
    %p199 = scmp.ne.s32.totalorder %s184, %s198
    %p200 = scmp.eq.s32.totalorder %s80, 0
    %p201 = por %p199, %p200
    %s203 = sadd.s32 %s202, 1
    %p206 = scmp.eq.s32.totalorder %s74, 1
    %p207 = scmp.ne.s32.totalorder %s202, %s204
    %p208 = scmp.eq.s32.totalorder %s74, 0
    %p209 = por %p207, %p208
    %p210 = scmp.ne.s32.totalorder %s202, %s204
    %p211 = scmp.eq.s32.totalorder %s79, 1
    %p212 = por %p210, %p211
    %p213 = scmp.ne.s32.totalorder %s204, %s205
    %p214 = scmp.eq.s32.totalorder %s79, 0
    %p215 = por %p213, %p214
    %p216 = scmp.ne.s32.totalorder %s204, %s205
    %p217 = scmp.eq.s32.totalorder %s80, 1
    %p218 = por %p216, %p217
    %p220 = scmp.ne.s32.totalorder %s205, %s219
    %p221 = scmp.eq.s32.totalorder %s80, 0
    %p222 = por %p220, %p221
    %s224 = sadd.s32 %s223, 1
    %p227 = scmp.eq.s32.totalorder %s74, 1
    %p228 = scmp.ne.s32.totalorder %s223, %s225
    %p229 = scmp.eq.s32.totalorder %s74, 0
    %p230 = por %p228, %p229
    %p231 = scmp.ne.s32.totalorder %s223, %s225
    %p232 = scmp.eq.s32.totalorder %s79, 1
    %p233 = por %p231, %p232
    %p234 = scmp.ne.s32.totalorder %s225, %s226
    %p235 = scmp.eq.s32.totalorder %s79, 0
    %p236 = por %p234, %p235
    %p237 = scmp.ne.s32.totalorder %s225, %s226
    %p238 = scmp.eq.s32.totalorder %s80, 1
    %p239 = por %p237, %p238
    %p241 = scmp.ne.s32.totalorder %s226, %s240
    %p242 = scmp.eq.s32.totalorder %s80, 0
    %p243 = por %p241, %p242
    %s245 = sadd.s32 %s244, 1
    %p248 = scmp.eq.s32.totalorder %s74, 1
    %p249 = scmp.ne.s32.totalorder %s244, %s246
    %p250 = scmp.eq.s32.totalorder %s74, 0
    %p251 = por %p249, %p250
    %p252 = scmp.ne.s32.totalorder %s244, %s246
    %p253 = scmp.eq.s32.totalorder %s79, 1
    %p254 = por %p252, %p253
    %p255 = scmp.ne.s32.totalorder %s246, %s247
    %p256 = scmp.eq.s32.totalorder %s79, 0
    %p257 = por %p255, %p256
    %p258 = scmp.ne.s32.totalorder %s246, %s247
    %p259 = scmp.eq.s32.totalorder %s80, 1
    %p260 = por %p258, %p259
    %p262 = scmp.ne.s32.totalorder %s247, %s261
    %p263 = scmp.eq.s32.totalorder %s80, 0
    %p264 = por %p262, %p263
    %s266 = sadd.s32 %s265, 1
    %p269 = scmp.eq.s32.totalorder %s74, 1
    %p270 = scmp.ne.s32.totalorder %s265, %s267
    %p271 = scmp.eq.s32.totalorder %s74, 0
    %p272 = por %p270, %p271
    %p273 = scmp.ne.s32.totalorder %s265, %s267
    %p274 = scmp.eq.s32.totalorder %s79, 1
    %p275 = por %p273, %p274
    %p276 = scmp.ne.s32.totalorder %s267, %s268
    %p277 = scmp.eq.s32.totalorder %s79, 0
    %p278 = por %p276, %p277
    %p279 = scmp.ne.s32.totalorder %s267, %s268
    %p280 = scmp.eq.s32.totalorder %s80, 1
    %p281 = por %p279, %p280
    %p283 = scmp.ne.s32.totalorder %s268, %s282
    %p284 = scmp.eq.s32.totalorder %s80, 0
    %p285 = por %p283, %p284
    %s287 = sadd.s32 %s286, 1
    %p290 = scmp.eq.s32.totalorder %s74, 1
    %p291 = scmp.ne.s32.totalorder %s286, %s288
    %p292 = scmp.eq.s32.totalorder %s74, 0
    %p293 = por %p291, %p292
    %p294 = scmp.ne.s32.totalorder %s286, %s288
    %p295 = scmp.eq.s32.totalorder %s79, 1
    %p296 = por %p294, %p295
    %p297 = scmp.ne.s32.totalorder %s288, %s289
    %p298 = scmp.eq.s32.totalorder %s79, 0
    %p299 = por %p297, %p298
    %p300 = scmp.ne.s32.totalorder %s288, %s289
    %p301 = scmp.eq.s32.totalorder %s80, 1
    %p302 = por %p300, %p301
    %p304 = scmp.ne.s32.totalorder %s289, %s303
    %p305 = scmp.eq.s32.totalorder %s80, 0
    %p306 = por %p304, %p305
    %s308 = sadd.s32 %s307, 1
    %p311 = scmp.eq.s32.totalorder %s74, 1
    %p312 = scmp.ne.s32.totalorder %s307, %s309
    %p313 = scmp.eq.s32.totalorder %s74, 0
    %p314 = por %p312, %p313
    %p315 = scmp.ne.s32.totalorder %s307, %s309
    %p316 = scmp.eq.s32.totalorder %s79, 1
    %p317 = por %p315, %p316
    %p318 = scmp.ne.s32.totalorder %s309, %s310
    %p319 = scmp.eq.s32.totalorder %s79, 0
    %p320 = por %p318, %p319
    %p321 = scmp.ne.s32.totalorder %s309, %s310
    %p322 = scmp.eq.s32.totalorder %s80, 1
    %p323 = por %p321, %p322
    %p325 = scmp.ne.s32.totalorder %s310, %s324
    %p326 = scmp.eq.s32.totalorder %s80, 0
    %p327 = por %p325, %p326
    %s329 = sadd.s32 %s328, 1
    %p332 = scmp.eq.s32.totalorder %s74, 1
    %p333 = scmp.ne.s32.totalorder %s328, %s330
    %p334 = scmp.eq.s32.totalorder %s74, 0
    %p335 = por %p333, %p334
    %p336 = scmp.ne.s32.totalorder %s328, %s330
    %p337 = scmp.eq.s32.totalorder %s79, 1
    %p338 = por %p336, %p337
    %p339 = scmp.ne.s32.totalorder %s330, %s331
    %p340 = scmp.eq.s32.totalorder %s79, 0
    %p341 = por %p339, %p340
    %p342 = scmp.ne.s32.totalorder %s330, %s331
    %p343 = scmp.eq.s32.totalorder %s80, 1
    %p344 = por %p342, %p343
    %p346 = scmp.ne.s32.totalorder %s331, %s345
    %p347 = scmp.eq.s32.totalorder %s80, 0
    %p348 = por %p346, %p347
    %s350 = sadd.s32 %s349, 1
    %p353 = scmp.eq.s32.totalorder %s74, 1
    %p354 = scmp.ne.s32.totalorder %s349, %s351
    %p355 = scmp.eq.s32.totalorder %s74, 0
    %p356 = por %p354, %p355
    %p357 = scmp.ne.s32.totalorder %s349, %s351
    %p358 = scmp.eq.s32.totalorder %s79, 1
    %p359 = por %p357, %p358
    %p360 = scmp.ne.s32.totalorder %s351, %s352
    %p361 = scmp.eq.s32.totalorder %s79, 0
    %p362 = por %p360, %p361
    %p363 = scmp.ne.s32.totalorder %s351, %s352
    %p364 = scmp.eq.s32.totalorder %s80, 1
    %p365 = por %p363, %p364
    %p367 = scmp.ne.s32.totalorder %s352, %s366
    %p368 = scmp.eq.s32.totalorder %s80, 0
    %p369 = por %p367, %p368
    %s371 = sadd.s32 %s370, 1
    %p374 = scmp.eq.s32.totalorder %s74, 1
    %p375 = scmp.ne.s32.totalorder %s370, %s372
    %p376 = scmp.eq.s32.totalorder %s74, 0
    %p377 = por %p375, %p376
    %p378 = scmp.ne.s32.totalorder %s370, %s372
    %p379 = scmp.eq.s32.totalorder %s79, 1
    %p380 = por %p378, %p379
    %p381 = scmp.ne.s32.totalorder %s372, %s373
    %p382 = scmp.eq.s32.totalorder %s79, 0
    %p383 = por %p381, %p382
    %p384 = scmp.ne.s32.totalorder %s372, %s373
    %p385 = scmp.eq.s32.totalorder %s80, 1
    %p386 = por %p384, %p385
    %p388 = scmp.ne.s32.totalorder %s373, %s387
    %p389 = scmp.eq.s32.totalorder %s80, 0
    %p390 = por %p388, %p389
    %s392 = sadd.s32 %s391, 1
    %p395 = scmp.eq.s32.totalorder %s74, 1
    %p396 = scmp.ne.s32.totalorder %s391, %s393
    %p397 = scmp.eq.s32.totalorder %s74, 0
    %p398 = por %p396, %p397
    %p399 = scmp.ne.s32.totalorder %s391, %s393
    %p400 = scmp.eq.s32.totalorder %s79, 1
    %p401 = por %p399, %p400
    %p402 = scmp.ne.s32.totalorder %s393, %s394
    %p403 = scmp.eq.s32.totalorder %s79, 0
    %p404 = por %p402, %p403
    %p405 = scmp.ne.s32.totalorder %s393, %s394
    %p406 = scmp.eq.s32.totalorder %s80, 1
    %p407 = por %p405, %p406
    %p409 = scmp.ne.s32.totalorder %s394, %s408
    %p410 = scmp.eq.s32.totalorder %s80, 0
    %p411 = por %p409, %p410
    %s413 = sadd.s32 %s412, 1
    %p416 = scmp.eq.s32.totalorder %s74, 1
    %p417 = scmp.ne.s32.totalorder %s412, %s414
    %p418 = scmp.eq.s32.totalorder %s74, 0
    %p419 = por %p417, %p418
    %p420 = scmp.ne.s32.totalorder %s412, %s414
    %p421 = scmp.eq.s32.totalorder %s79, 1
    %p422 = por %p420, %p421
    %p423 = scmp.ne.s32.totalorder %s414, %s415
    %p424 = scmp.eq.s32.totalorder %s79, 0
    %p425 = por %p423, %p424
    %p426 = scmp.ne.s32.totalorder %s414, %s415
    %p427 = scmp.eq.s32.totalorder %s80, 1
    %p428 = por %p426, %p427
    %p430 = scmp.ne.s32.totalorder %s415, %s429
    %p431 = scmp.eq.s32.totalorder %s80, 0
    %p432 = por %p430, %p431
    %s434 = sadd.s32 %s433, 1
    %p437 = scmp.eq.s32.totalorder %s74, 1
    %p438 = scmp.ne.s32.totalorder %s433, %s435
    %p439 = scmp.eq.s32.totalorder %s74, 0
    %p440 = por %p438, %p439
    %p441 = scmp.ne.s32.totalorder %s433, %s435
    %p442 = scmp.eq.s32.totalorder %s79, 1
    %p443 = por %p441, %p442
    %p444 = scmp.ne.s32.totalorder %s435, %s436
    %p445 = scmp.eq.s32.totalorder %s79, 0
    %p446 = por %p444, %p445
    %p447 = scmp.ne.s32.totalorder %s435, %s436
    %p448 = scmp.eq.s32.totalorder %s80, 1
    %p449 = por %p447, %p448
    %p451 = scmp.ne.s32.totalorder %s436, %s450
    %p452 = scmp.eq.s32.totalorder %s80, 0
    %p453 = por %p451, %p452
    %s455 = sadd.s32 %s454, 1
    %p458 = scmp.eq.s32.totalorder %s74, 1
    %p459 = scmp.ne.s32.totalorder %s454, %s456
    %p460 = scmp.eq.s32.totalorder %s74, 0
    %p461 = por %p459, %p460
    %p462 = scmp.ne.s32.totalorder %s454, %s456
    %p463 = scmp.eq.s32.totalorder %s79, 1
    %p464 = por %p462, %p463
    %p465 = scmp.ne.s32.totalorder %s456, %s457
    %p466 = scmp.eq.s32.totalorder %s79, 0
    %p467 = por %p465, %p466
    %p468 = scmp.ne.s32.totalorder %s456, %s457
    %p469 = scmp.eq.s32.totalorder %s80, 1
    %p470 = por %p468, %p469
    %p472 = scmp.ne.s32.totalorder %s457, %s471
    %p473 = scmp.eq.s32.totalorder %s80, 0
    %p474 = por %p472, %p473
    %s476 = sadd.s32 %s475, 1
    %p479 = scmp.eq.s32.totalorder %s74, 1
    %p480 = scmp.ne.s32.totalorder %s475, %s477
    %p481 = scmp.eq.s32.totalorder %s74, 0
    %p482 = por %p480, %p481
    %p483 = scmp.ne.s32.totalorder %s475, %s477
    %p484 = scmp.eq.s32.totalorder %s79, 1
    %p485 = por %p483, %p484
    %p486 = scmp.ne.s32.totalorder %s477, %s478
    %p487 = scmp.eq.s32.totalorder %s79, 0
    %p488 = por %p486, %p487
    %p489 = scmp.ne.s32.totalorder %s477, %s478
    %p490 = scmp.eq.s32.totalorder %s80, 1
    %p491 = por %p489, %p490
    %p493 = scmp.ne.s32.totalorder %s478, %s492
    %p494 = scmp.eq.s32.totalorder %s80, 0
    %p495 = por %p493, %p494
    %s497 = sadd.s32 %s496, 1
    %p500 = scmp.eq.s32.totalorder %s74, 1
    %p501 = scmp.ne.s32.totalorder %s496, %s498
    %p502 = scmp.eq.s32.totalorder %s74, 0
    %p503 = por %p501, %p502
    %p504 = scmp.ne.s32.totalorder %s496, %s498
    %p505 = scmp.eq.s32.totalorder %s79, 1
    %p506 = por %p504, %p505
    %p507 = scmp.ne.s32.totalorder %s498, %s499
    %p508 = scmp.eq.s32.totalorder %s79, 0
    %p509 = por %p507, %p508
    %p510 = scmp.ne.s32.totalorder %s498, %s499
    %p511 = scmp.eq.s32.totalorder %s80, 1
    %p512 = por %p510, %p511
    %p514 = scmp.ne.s32.totalorder %s499, %s513
    %p515 = scmp.eq.s32.totalorder %s80, 0
    %p516 = por %p514, %p515
    %s518 = sadd.s32 %s517, 1
    %p521 = scmp.eq.s32.totalorder %s74, 1
    %p522 = scmp.ne.s32.totalorder %s517, %s519
    %p523 = scmp.eq.s32.totalorder %s74, 0
    %p524 = por %p522, %p523
    %p525 = scmp.ne.s32.totalorder %s517, %s519
    %p526 = scmp.eq.s32.totalorder %s79, 1
    %p527 = por %p525, %p526
    %p528 = scmp.ne.s32.totalorder %s519, %s520
    %p529 = scmp.eq.s32.totalorder %s79, 0
    %p530 = por %p528, %p529
    %p531 = scmp.ne.s32.totalorder %s519, %s520
    %p532 = scmp.eq.s32.totalorder %s80, 1
    %p533 = por %p531, %p532
    %p535 = scmp.ne.s32.totalorder %s520, %s534
    %p536 = scmp.eq.s32.totalorder %s80, 0
    %p537 = por %p535, %p536
    %s539 = sadd.s32 %s538, 1
    %p542 = scmp.eq.s32.totalorder %s74, 1
    %p543 = scmp.ne.s32.totalorder %s538, %s540
    %p544 = scmp.eq.s32.totalorder %s74, 0
    %p545 = por %p543, %p544
    %p546 = scmp.ne.s32.totalorder %s538, %s540
    %p547 = scmp.eq.s32.totalorder %s79, 1
    %p548 = por %p546, %p547
    %p549 = scmp.ne.s32.totalorder %s540, %s541
    %p550 = scmp.eq.s32.totalorder %s79, 0
    %p551 = por %p549, %p550
    %p552 = scmp.ne.s32.totalorder %s540, %s541
    %p553 = scmp.eq.s32.totalorder %s80, 1
    %p554 = por %p552, %p553
    %p556 = scmp.ne.s32.totalorder %s541, %s555
    %p557 = scmp.eq.s32.totalorder %s80, 0
    %p558 = por %p556, %p557
    %s560 = sadd.s32 %s559, 1
    %p563 = scmp.eq.s32.totalorder %s74, 1
    %p564 = scmp.ne.s32.totalorder %s559, %s561
    %p565 = scmp.eq.s32.totalorder %s74, 0
    %p566 = por %p564, %p565
    %p567 = scmp.ne.s32.totalorder %s559, %s561
    %p568 = scmp.eq.s32.totalorder %s79, 1
    %p569 = por %p567, %p568
    %p570 = scmp.ne.s32.totalorder %s561, %s562
    %p571 = scmp.eq.s32.totalorder %s79, 0
    %p572 = por %p570, %p571
    %p573 = scmp.ne.s32.totalorder %s561, %s562
    %p574 = scmp.eq.s32.totalorder %s80, 1
    %p575 = por %p573, %p574
    %p577 = scmp.ne.s32.totalorder %s562, %s576
    %p578 = scmp.eq.s32.totalorder %s80, 0
    %p579 = por %p577, %p578
    %s581 = sadd.s32 %s580, 1
    %p584 = scmp.eq.s32.totalorder %s74, 1
    %p585 = scmp.ne.s32.totalorder %s580, %s582
    %p586 = scmp.eq.s32.totalorder %s74, 0
    %p587 = por %p585, %p586
    %p588 = scmp.ne.s32.totalorder %s580, %s582
    %p589 = scmp.eq.s32.totalorder %s79, 1
    %p590 = por %p588, %p589
    %p591 = scmp.ne.s32.totalorder %s582, %s583
    %p592 = scmp.eq.s32.totalorder %s79, 0
    %p593 = por %p591, %p592
    %p594 = scmp.ne.s32.totalorder %s582, %s583
    %p595 = scmp.eq.s32.totalorder %s80, 1
    %p596 = por %p594, %p595
    %p598 = scmp.ne.s32.totalorder %s583, %s597
    %p599 = scmp.eq.s32.totalorder %s80, 0
    %p600 = por %p598, %p599
    %s602 = sadd.s32 %s601, 1
    %p605 = scmp.eq.s32.totalorder %s74, 1
    %p606 = scmp.ne.s32.totalorder %s601, %s603
    %p607 = scmp.eq.s32.totalorder %s74, 0
    %p608 = por %p606, %p607
    %p609 = scmp.ne.s32.totalorder %s601, %s603
    %p610 = scmp.eq.s32.totalorder %s79, 1
    %p611 = por %p609, %p610
    %p612 = scmp.ne.s32.totalorder %s603, %s604
    %p613 = scmp.eq.s32.totalorder %s79, 0
    %p614 = por %p612, %p613
    %p615 = scmp.ne.s32.totalorder %s603, %s604
    %p616 = scmp.eq.s32.totalorder %s80, 1
    %p617 = por %p615, %p616
    %p619 = scmp.ne.s32.totalorder %s604, %s618
    %p620 = scmp.eq.s32.totalorder %s80, 0
    %p621 = por %p619, %p620
    %s623 = sadd.s32 %s622, 1
    %p626 = scmp.eq.s32.totalorder %s74, 1
    %p627 = scmp.ne.s32.totalorder %s622, %s624
    %p628 = scmp.eq.s32.totalorder %s74, 0
    %p629 = por %p627, %p628
    %p630 = scmp.ne.s32.totalorder %s622, %s624
    %p631 = scmp.eq.s32.totalorder %s79, 1
    %p632 = por %p630, %p631
    %p633 = scmp.ne.s32.totalorder %s624, %s625
    %p634 = scmp.eq.s32.totalorder %s79, 0
    %p635 = por %p633, %p634
    %p636 = scmp.ne.s32.totalorder %s624, %s625
    %p637 = scmp.eq.s32.totalorder %s80, 1
    %p638 = por %p636, %p637
    %p640 = scmp.ne.s32.totalorder %s625, %s639
    %p641 = scmp.eq.s32.totalorder %s80, 0
    %p642 = por %p640, %p641
    %s644 = sadd.s32 %s643, 1
    %p647 = scmp.eq.s32.totalorder %s74, 1
    %p648 = scmp.ne.s32.totalorder %s643, %s645
    %p649 = scmp.eq.s32.totalorder %s74, 0
    %p650 = por %p648, %p649
    %p651 = scmp.ne.s32.totalorder %s643, %s645
    %p652 = scmp.eq.s32.totalorder %s79, 1
    %p653 = por %p651, %p652
    %p654 = scmp.ne.s32.totalorder %s645, %s646
    %p655 = scmp.eq.s32.totalorder %s79, 0
    %p656 = por %p654, %p655
    %p657 = scmp.ne.s32.totalorder %s645, %s646
    %p658 = scmp.eq.s32.totalorder %s80, 1
    %p659 = por %p657, %p658
    %p661 = scmp.ne.s32.totalorder %s646, %s660
    %p662 = scmp.eq.s32.totalorder %s80, 0
    %p663 = por %p661, %p662
    %s665 = sadd.s32 %s664, 1
    %p668 = scmp.eq.s32.totalorder %s74, 1
    %p669 = scmp.ne.s32.totalorder %s664, %s666
    %p670 = scmp.eq.s32.totalorder %s74, 0
    %p671 = por %p669, %p670
    %p672 = scmp.ne.s32.totalorder %s664, %s666
    %p673 = scmp.eq.s32.totalorder %s79, 1
    %p674 = por %p672, %p673
    %p675 = scmp.ne.s32.totalorder %s666, %s667
    %p676 = scmp.eq.s32.totalorder %s79, 0
    %p677 = por %p675, %p676
    %p678 = scmp.ne.s32.totalorder %s666, %s667
    %p679 = scmp.eq.s32.totalorder %s80, 1
    %p680 = por %p678, %p679
    %p682 = scmp.ne.s32.totalorder %s667, %s681
    %p683 = scmp.eq.s32.totalorder %s80, 0
    %p684 = por %p682, %p683
    %s686 = sadd.s32 %s685, 1
    %p689 = scmp.eq.s32.totalorder %s74, 1
    %p690 = scmp.ne.s32.totalorder %s685, %s687
    %p691 = scmp.eq.s32.totalorder %s74, 0
    %p692 = por %p690, %p691
    %p693 = scmp.ne.s32.totalorder %s685, %s687
    %p694 = scmp.eq.s32.totalorder %s79, 1
    %p695 = por %p693, %p694
    %p696 = scmp.ne.s32.totalorder %s687, %s688
    %p697 = scmp.eq.s32.totalorder %s79, 0
    %p698 = por %p696, %p697
    %p699 = scmp.ne.s32.totalorder %s687, %s688
    %p700 = scmp.eq.s32.totalorder %s80, 1
    %p701 = por %p699, %p700
    %p703 = scmp.ne.s32.totalorder %s688, %s702
    %p704 = scmp.eq.s32.totalorder %s80, 0
    %p705 = por %p703, %p704
    %s707 = sadd.s32 %s706, 1
    %p710 = scmp.eq.s32.totalorder %s74, 1
    %p711 = scmp.ne.s32.totalorder %s706, %s708
    %p712 = scmp.eq.s32.totalorder %s74, 0
    %p713 = por %p711, %p712
    %p714 = scmp.ne.s32.totalorder %s706, %s708
    %p715 = scmp.eq.s32.totalorder %s79, 1
    %p716 = por %p714, %p715
    %p717 = scmp.ne.s32.totalorder %s708, %s709
    %p718 = scmp.eq.s32.totalorder %s79, 0
    %p719 = por %p717, %p718
    %p720 = scmp.ne.s32.totalorder %s708, %s709
    %p721 = scmp.eq.s32.totalorder %s80, 1
    %p722 = por %p720, %p721
    %p724 = scmp.ne.s32.totalorder %s709, %s723
    %p725 = scmp.eq.s32.totalorder %s80, 0
    %p726 = por %p724, %p725
    %s728 = sadd.s32 %s727, 1
    %p731 = scmp.eq.s32.totalorder %s74, 1
    %p732 = scmp.ne.s32.totalorder %s727, %s729
    %p733 = scmp.eq.s32.totalorder %s74, 0
    %p734 = por %p732, %p733
    %p735 = scmp.ne.s32.totalorder %s727, %s729
    %p736 = scmp.eq.s32.totalorder %s79, 1
    %p737 = por %p735, %p736
    %p738 = scmp.ne.s32.totalorder %s729, %s730
    %p739 = scmp.eq.s32.totalorder %s79, 0
    %p740 = por %p738, %p739
    %p741 = scmp.ne.s32.totalorder %s729, %s730
    %p742 = scmp.eq.s32.totalorder %s80, 1
    %p743 = por %p741, %p742
    %p745 = scmp.ne.s32.totalorder %s730, %s744
    %p746 = scmp.eq.s32.totalorder %s80, 0
    %p747 = por %p745, %p746
    %s748 = ssub.s32 %s74, %s81
    %p749 = scmp.eq.s32.totalorder %s748, 0
    %s751 = sadd.s32 %s750, 1
    %s752 = scalar_select %p749, %s750, %s751
    %p755 = pneg %p749
    %p756 = scmp.eq.s32.totalorder %s74, 1
    %p757 = por %p755, %p756
    %p758 = scmp.ne.s32.totalorder %s750, %s753
    %p759 = scmp.eq.s32.totalorder %s74, 0
    %p760 = por %p758, %p759
    %p761 = scmp.ne.s32.totalorder %s750, %s753
    %p762 = scmp.eq.s32.totalorder %s79, 1
    %p763 = por %p761, %p762
    %p764 = scmp.ne.s32.totalorder %s753, %s754
    %p765 = scmp.eq.s32.totalorder %s79, 0
    %p766 = por %p764, %p765
    %p767 = scmp.ne.s32.totalorder %s753, %s754
    %p768 = scmp.eq.s32.totalorder %s80, 1
    %p769 = por %p767, %p768
    %p771 = scmp.ne.s32.totalorder %s754, %s770
    %p772 = scmp.eq.s32.totalorder %s80, 0
    %p773 = por %p771, %p772
    %s774 = ssub.s32 %s74, %s81
    %p775 = scmp.eq.s32.totalorder %s774, 0
    %s777 = sadd.s32 %s776, 1
    %s778 = scalar_select %p775, %s776, %s777
    %p781 = pneg %p775
    %p782 = scmp.eq.s32.totalorder %s74, 1
    %p783 = por %p781, %p782
    %p784 = scmp.ne.s32.totalorder %s776, %s779
    %p785 = scmp.eq.s32.totalorder %s74, 0
    %p786 = por %p784, %p785
    %p787 = scmp.ne.s32.totalorder %s776, %s779
    %p788 = scmp.eq.s32.totalorder %s79, 1
    %p789 = por %p787, %p788
    %p790 = scmp.ne.s32.totalorder %s779, %s780
    %p791 = scmp.eq.s32.totalorder %s79, 0
    %p792 = por %p790, %p791
    %p793 = scmp.ne.s32.totalorder %s779, %s780
    %p794 = scmp.eq.s32.totalorder %s80, 1
    %p795 = por %p793, %p794
    %p797 = scmp.ne.s32.totalorder %s780, %s796
    %p798 = scmp.eq.s32.totalorder %s80, 0
    %p799 = por %p797, %p798
    %s800 = ssub.s32 %s74, %s81
    %p801 = scmp.eq.s32.totalorder %s800, 0
    %s803 = sadd.s32 %s802, 1
    %s804 = scalar_select %p801, %s802, %s803
    %p807 = pneg %p801
    %p808 = scmp.eq.s32.totalorder %s74, 1
    %p809 = por %p807, %p808
    %p810 = scmp.ne.s32.totalorder %s802, %s805
    %p811 = scmp.eq.s32.totalorder %s74, 0
    %p812 = por %p810, %p811
    %p813 = scmp.ne.s32.totalorder %s802, %s805
    %p814 = scmp.eq.s32.totalorder %s79, 1
    %p815 = por %p813, %p814
    %p816 = scmp.ne.s32.totalorder %s805, %s806
    %p817 = scmp.eq.s32.totalorder %s79, 0
    %p818 = por %p816, %p817
    %p819 = scmp.ne.s32.totalorder %s805, %s806
    %p820 = scmp.eq.s32.totalorder %s80, 1
    %p821 = por %p819, %p820
    %p823 = scmp.ne.s32.totalorder %s806, %s822
    %p824 = scmp.eq.s32.totalorder %s80, 0
    %p825 = por %p823, %p824
    %p826 = scmp.le.s32.totalorder 1, %s74
    %p827 = scmp.lt.s32.totalorder %s74, 3
    %p828 = pnand %p826, %p827
    %p829 = pneg %p828
    // Predicated region
    $region9: #{down_block.1} parent=5 // pred_check
      _
    $region10: #{down_block.1} parent=5 // pred_check_branch
      %831 = sbr.rel (%p828) target = $region12
    $region11: #{down_block.1} parent=5 // pred_region
      %s832 = ssub.s32 %s74, 1
      // Predicated region
      $region13: #{down_block.1} parent=11 // pred_check
        %p833 = pneg %p173
      $region14: #{down_block.1} parent=11 // pred_check_branch
        %835 = sbr.rel (%p833) target = $region16
      $region15: #{down_block.1} parent=11 // pred_region
        _
      $region16: #{down_block.1} parent=11 // pred_fallthru
        _
      // Predicated region
      $region17: #{down_block.1} parent=11 // pred_check
        %p836 = pneg %p194
      $region18: #{down_block.1} parent=11 // pred_check_branch
        %838 = sbr.rel (%p836) target = $region20
      $region19: #{down_block.1} parent=11 // pred_region
        _
      $region20: #{down_block.1} parent=11 // pred_fallthru
        _
      // Predicated region
      $region21: #{down_block.1} parent=11 // pred_check
        %p839 = pneg %p215
      $region22: #{down_block.1} parent=11 // pred_check_branch
        %841 = sbr.rel (%p839) target = $region24
      $region23: #{down_block.1} parent=11 // pred_region
        _
      $region24: #{down_block.1} parent=11 // pred_fallthru
        _
      // Predicated region
      $region25: #{down_block.1} parent=11 // pred_check
        %p842 = pneg %p236
      $region26: #{down_block.1} parent=11 // pred_check_branch
        %844 = sbr.rel (%p842) target = $region28
      $region27: #{down_block.1} parent=11 // pred_region
        _
      $region28: #{down_block.1} parent=11 // pred_fallthru
        _
      // Predicated region
      $region29: #{down_block.1} parent=11 // pred_check
        %p845 = pneg %p257
      $region30: #{down_block.1} parent=11 // pred_check_branch
        %847 = sbr.rel (%p845) target = $region32
      $region31: #{down_block.1} parent=11 // pred_region
        _
      $region32: #{down_block.1} parent=11 // pred_fallthru
        _
      // Predicated region
      $region33: #{down_block.1} parent=11 // pred_check
        %p848 = pneg %p278
      $region34: #{down_block.1} parent=11 // pred_check_branch
        %850 = sbr.rel (%p848) target = $region36
      $region35: #{down_block.1} parent=11 // pred_region
        _
      $region36: #{down_block.1} parent=11 // pred_fallthru
        _
      // Predicated region
      $region37: #{down_block.1} parent=11 // pred_check
        %p851 = pneg %p299
      $region38: #{down_block.1} parent=11 // pred_check_branch
        %853 = sbr.rel (%p851) target = $region40
      $region39: #{down_block.1} parent=11 // pred_region
        _
      $region40: #{down_block.1} parent=11 // pred_fallthru
        _
      // Predicated region
      $region41: #{down_block.1} parent=11 // pred_check
        %p854 = pneg %p320
      $region42: #{down_block.1} parent=11 // pred_check_branch
        %856 = sbr.rel (%p854) target = $region44
      $region43: #{down_block.1} parent=11 // pred_region
        _
      $region44: #{down_block.1} parent=11 // pred_fallthru
        _
      // Predicated region
      $region45: #{down_block.1} parent=11 // pred_check
        %p857 = pneg %p341
      $region46: #{down_block.1} parent=11 // pred_check_branch
        %859 = sbr.rel (%p857) target = $region48
      $region47: #{down_block.1} parent=11 // pred_region
        _
      $region48: #{down_block.1} parent=11 // pred_fallthru
        _
      // Predicated region
      $region49: #{down_block.1} parent=11 // pred_check
        %p860 = pneg %p362
      $region50: #{down_block.1} parent=11 // pred_check_branch
        %862 = sbr.rel (%p860) target = $region52
      $region51: #{down_block.1} parent=11 // pred_region
        _
      $region52: #{down_block.1} parent=11 // pred_fallthru
        _
      // Predicated region
      $region53: #{down_block.1} parent=11 // pred_check
        %p863 = pneg %p383
      $region54: #{down_block.1} parent=11 // pred_check_branch
        %865 = sbr.rel (%p863) target = $region56
      $region55: #{down_block.1} parent=11 // pred_region
        _
      $region56: #{down_block.1} parent=11 // pred_fallthru
        _
      // Predicated region
      $region57: #{down_block.1} parent=11 // pred_check
        %p866 = pneg %p404
      $region58: #{down_block.1} parent=11 // pred_check_branch
        %868 = sbr.rel (%p866) target = $region60
      $region59: #{down_block.1} parent=11 // pred_region
        _
      $region60: #{down_block.1} parent=11 // pred_fallthru
        _
      // Predicated region
      $region61: #{down_block.1} parent=11 // pred_check
        %p869 = pneg %p425
      $region62: #{down_block.1} parent=11 // pred_check_branch
        %871 = sbr.rel (%p869) target = $region64
      $region63: #{down_block.1} parent=11 // pred_region
        _
      $region64: #{down_block.1} parent=11 // pred_fallthru
        _
      // Predicated region
      $region65: #{down_block.1} parent=11 // pred_check
        %p872 = pneg %p446
      $region66: #{down_block.1} parent=11 // pred_check_branch
        %874 = sbr.rel (%p872) target = $region68
      $region67: #{down_block.1} parent=11 // pred_region
        _
      $region68: #{down_block.1} parent=11 // pred_fallthru
        _
      // Predicated region
      $region69: #{down_block.1} parent=11 // pred_check
        %p875 = pneg %p467
      $region70: #{down_block.1} parent=11 // pred_check_branch
        %877 = sbr.rel (%p875) target = $region72
      $region71: #{down_block.1} parent=11 // pred_region
        _
      $region72: #{down_block.1} parent=11 // pred_fallthru
        _
      // Predicated region
      $region73: #{down_block.1} parent=11 // pred_check
        %p878 = pneg %p488
      $region74: #{down_block.1} parent=11 // pred_check_branch
        %880 = sbr.rel (%p878) target = $region76
      $region75: #{down_block.1} parent=11 // pred_region
        _
      $region76: #{down_block.1} parent=11 // pred_fallthru
        _
      // Predicated region
      $region77: #{down_block.1} parent=11 // pred_check
        %p881 = pneg %p509
      $region78: #{down_block.1} parent=11 // pred_check_branch
        %883 = sbr.rel (%p881) target = $region80
      $region79: #{down_block.1} parent=11 // pred_region
        _
      $region80: #{down_block.1} parent=11 // pred_fallthru
        _
      // Predicated region
      $region81: #{down_block.1} parent=11 // pred_check
        %p884 = pneg %p530
      $region82: #{down_block.1} parent=11 // pred_check_branch
        %886 = sbr.rel (%p884) target = $region84
      $region83: #{down_block.1} parent=11 // pred_region
        _
      $region84: #{down_block.1} parent=11 // pred_fallthru
        _
      // Predicated region
      $region85: #{down_block.1} parent=11 // pred_check
        %p887 = pneg %p551
      $region86: #{down_block.1} parent=11 // pred_check_branch
        %889 = sbr.rel (%p887) target = $region88
      $region87: #{down_block.1} parent=11 // pred_region
        _
      $region88: #{down_block.1} parent=11 // pred_fallthru
        _
      // Predicated region
      $region89: #{down_block.1} parent=11 // pred_check
        %p890 = pneg %p572
      $region90: #{down_block.1} parent=11 // pred_check_branch
        %892 = sbr.rel (%p890) target = $region92
      $region91: #{down_block.1} parent=11 // pred_region
        _
      $region92: #{down_block.1} parent=11 // pred_fallthru
        _
      // Predicated region
      $region93: #{down_block.1} parent=11 // pred_check
        %p893 = pneg %p593
      $region94: #{down_block.1} parent=11 // pred_check_branch
        %895 = sbr.rel (%p893) target = $region96
      $region95: #{down_block.1} parent=11 // pred_region
        _
      $region96: #{down_block.1} parent=11 // pred_fallthru
        _
      // Predicated region
      $region97: #{down_block.1} parent=11 // pred_check
        %p896 = pneg %p614
      $region98: #{down_block.1} parent=11 // pred_check_branch
        %898 = sbr.rel (%p896) target = $region100
      $region99: #{down_block.1} parent=11 // pred_region
        _
      $region100: #{down_block.1} parent=11 // pred_fallthru
        _
      // Predicated region
      $region101: #{down_block.1} parent=11 // pred_check
        %p899 = pneg %p635
      $region102: #{down_block.1} parent=11 // pred_check_branch
        %901 = sbr.rel (%p899) target = $region104
      $region103: #{down_block.1} parent=11 // pred_region
        _
      $region104: #{down_block.1} parent=11 // pred_fallthru
        _
      // Predicated region
      $region105: #{down_block.1} parent=11 // pred_check
        %p902 = pneg %p656
      $region106: #{down_block.1} parent=11 // pred_check_branch
        %904 = sbr.rel (%p902) target = $region108
      $region107: #{down_block.1} parent=11 // pred_region
        _
      $region108: #{down_block.1} parent=11 // pred_fallthru
        _
      // Predicated region
      $region109: #{down_block.1} parent=11 // pred_check
        %p905 = pneg %p677
      $region110: #{down_block.1} parent=11 // pred_check_branch
        %907 = sbr.rel (%p905) target = $region112
      $region111: #{down_block.1} parent=11 // pred_region
        _
      $region112: #{down_block.1} parent=11 // pred_fallthru
        _
      // Predicated region
      $region113: #{down_block.1} parent=11 // pred_check
        %p908 = pneg %p698
      $region114: #{down_block.1} parent=11 // pred_check_branch
        %910 = sbr.rel (%p908) target = $region116
      $region115: #{down_block.1} parent=11 // pred_region
        _
      $region116: #{down_block.1} parent=11 // pred_fallthru
        _
      // Predicated region
      $region117: #{down_block.1} parent=11 // pred_check
        %p911 = pneg %p719
      $region118: #{down_block.1} parent=11 // pred_check_branch
        %913 = sbr.rel (%p911) target = $region120
      $region119: #{down_block.1} parent=11 // pred_region
        _
      $region120: #{down_block.1} parent=11 // pred_fallthru
        _
      // Predicated region
      $region121: #{down_block.1} parent=11 // pred_check
        %p914 = pneg %p740
      $region122: #{down_block.1} parent=11 // pred_check_branch
        %916 = sbr.rel (%p914) target = $region124
      $region123: #{down_block.1} parent=11 // pred_region
        _
      $region124: #{down_block.1} parent=11 // pred_fallthru
        _
    $region12: #{down_block.1} parent=5 // pred_fallthru
      _
    %p917 = scmp.lt.s32.totalorder %s74, 2
    // Predicated region
    $region125: #{down_block.1} parent=5 // pred_check
      %p918 = pneg %p917
    $region126: #{down_block.1} parent=5 // pred_check_branch
      %920 = sbr.rel (%p918) target = $region128
    $region127: #{down_block.1} parent=5 // pred_region
      // Predicated region
      $region129: #{down_block.1} parent=127 // pred_check
        %p921 = pneg %p94
      $region130: #{down_block.1} parent=127 // pred_check_branch
        %923 = sbr.rel (%p921) target = $region132
      $region131: #{down_block.1} parent=127 // pred_region
        %p924 = scmp.lt.s32.totalorder %s74, 1
        %s925 = scalar_select %p924, %s74, 1
        %s926 = smul.addr %s925, 4
        %s927 = smul.addr %s926, 8
        %s928 = scalar_lea.vmem %s1, %s927
      $region132: #{down_block.1} parent=127 // pred_fallthru
        _
      // Predicated region
      $region133: #{down_block.1} parent=127 // pred_check
        %p929 = pneg %p120
      $region134: #{down_block.1} parent=127 // pred_check_branch
        %931 = sbr.rel (%p929) target = $region136
      $region135: #{down_block.1} parent=127 // pred_region
        %p932 = scmp.lt.s32.totalorder %s74, 1
        %s933 = scalar_select %p932, %s74, 1
        %s934 = smul.addr %s933, 4
        %s935 = smul.addr %s934, 8
        %s936 = scalar_lea.vmem %s3, %s935
      $region136: #{down_block.1} parent=127 // pred_fallthru
        _
      // Predicated region
      $region137: #{down_block.1} parent=127 // pred_check
        %p937 = pneg %p146
      $region138: #{down_block.1} parent=127 // pred_check_branch
        %939 = sbr.rel (%p937) target = $region140
      $region139: #{down_block.1} parent=127 // pred_region
        %p940 = scmp.lt.s32.totalorder %s74, 1
        %s941 = scalar_select %p940, %s74, 1
        %s942 = smul.addr %s941, 4
        %s943 = smul.addr %s942, 8
        %s944 = scalar_lea.vmem %s5, %s943
      $region140: #{down_block.1} parent=127 // pred_fallthru
        _
    $region128: #{down_block.1} parent=5 // pred_fallthru
      _
    %p945 = scmp.le.s32.totalorder 1, %s74
    %p946 = scmp.lt.s32.totalorder %s74, 3
    %p947 = pnand %p945, %p946
    %p948 = pneg %p947
    // Predicated region
    $region141: #{down_block.1} parent=5 // pred_check
      _
    $region142: #{down_block.1} parent=5 // pred_check_branch
      %950 = sbr.rel (%p947) target = $region144
    $region143: #{down_block.1} parent=5 // pred_region
      %s951 = ssub.s32 %s74, 1
      %p952 = scmp.lt.s32.totalorder %s79, 1
      %s953 = scalar_select %p952, %s79, 1
      %s954 = smul.addr %s953, 4
      %s955 = smul.addr %s954, 8
      %s956 = scalar_lea.vmem %s1, %s955
      %p957 = pneg %p100
      %p958 = pneg %p97
      %p959 = scmp.lt.s32.totalorder %s79, 1
      %s960 = scalar_select %p959, %s79, 1
      %s961 = smul.addr %s960, 4
      %s962 = smul.addr %s961, 8
      %s963 = scalar_lea.vmem %s3, %s962
      %p964 = pneg %p126
      %p965 = pneg %p123
      %p966 = scmp.lt.s32.totalorder %s79, 1
      %s967 = scalar_select %p966, %s79, 1
      %s968 = smul.addr %s967, 4
      %s969 = smul.addr %s968, 8
      %s970 = scalar_lea.vmem %s5, %s969
      %p971 = pneg %p152
      %p972 = pneg %p149
      %p973 = pneg %p173
      %p974 = pneg %p170
      %p975 = pneg %p194
      %p976 = pneg %p191
      %p977 = pneg %p215
      %p978 = pneg %p212
      %p979 = pneg %p236
      %p980 = pneg %p233
      %p981 = pneg %p257
      %p982 = pneg %p254
      %p983 = pneg %p278
      %p984 = pneg %p275
      %p985 = pneg %p299
      %p986 = pneg %p296
      %p987 = pneg %p320
      %p988 = pneg %p317
      %p989 = pneg %p341
      %p990 = pneg %p338
      %p991 = pneg %p362
      %p992 = pneg %p359
      %p993 = pneg %p383
      %p994 = pneg %p380
      %p995 = pneg %p404
      %p996 = pneg %p401
      %p997 = pneg %p425
      %p998 = pneg %p422
      %p999 = pneg %p446
      %p1000 = pneg %p443
      %p1001 = pneg %p467
      %p1002 = pneg %p464
      %p1003 = pneg %p488
      %p1004 = pneg %p485
      %p1005 = pneg %p509
      %p1006 = pneg %p506
      %p1007 = pneg %p530
      %p1008 = pneg %p527
      %p1009 = pneg %p551
      %p1010 = pneg %p548
      %p1011 = pneg %p572
      %p1012 = pneg %p569
      %p1013 = pneg %p593
      %p1014 = pneg %p590
      %p1015 = pneg %p614
      %p1016 = pneg %p611
      %p1017 = pneg %p635
      %p1018 = pneg %p632
      %p1019 = pneg %p656
      %p1020 = pneg %p653
      %p1021 = pneg %p677
      %p1022 = pneg %p674
      %p1023 = pneg %p698
      %p1024 = pneg %p695
      %p1025 = pneg %p719
      %p1026 = pneg %p716
      %p1027 = pneg %p740
      %p1028 = pneg %p737
      %p1029 = pneg %p766
      %p1030 = pneg %p763
      %p1031 = scmp.lt.s32.totalorder %s79, 1
      %s1032 = scalar_select %p1031, %s79, 1
      %s1033 = smul.addr %s1032, 8
      %s1034 = smul.addr %s1033, 8
      %s1035 = scalar_lea.vmem %s63, %s1034
      %p1036 = pneg %p792
      %p1037 = pneg %p789
      %p1038 = scmp.lt.s32.totalorder %s79, 1
      %s1039 = scalar_select %p1038, %s79, 1
      %s1040 = smul.addr %s1039, 8
      %s1041 = smul.addr %s1040, 8
      %s1042 = scalar_lea.vmem %s65, %s1041
      %p1043 = pneg %p818
      %p1044 = pneg %p815
      %p1045 = scmp.lt.s32.totalorder %s79, 1
      %s1046 = scalar_select %p1045, %s79, 1
      %s1047 = smul.addr %s1046, 4
      %s1048 = smul.addr %s1047, 8
      %s1049 = scalar_lea.vmem %s67, %s1048
      %p1050 = scmp.lt.s32.totalorder %s79, 1
      %s1051 = scalar_select %p1050, %s79, 1
      %s1052 = smul.addr %s1051, 4
      %s1053 = smul.addr %s1052, 8
      %s1054 = scalar_lea.vmem %s1, %s1053
      %p1055 = scmp.lt.s32.totalorder %s79, 1
      %s1056 = scalar_select %p1055, %s79, 1
      %s1057 = smul.addr %s1056, 4
      %s1058 = smul.addr %s1057, 8
      %s1059 = scalar_lea.vmem %s3, %s1058
      %p1060 = scmp.lt.s32.totalorder %s79, 1
      %s1061 = scalar_select %p1060, %s79, 1
      %s1062 = smul.addr %s1061, 4
      %s1063 = smul.addr %s1062, 8
      %s1064 = scalar_lea.vmem %s5, %s1063
      %p1065 = scmp.lt.s32.totalorder %s79, 1
      %s1066 = scalar_select %p1065, %s79, 1
      %s1067 = smul.addr %s1066, 8
      %s1068 = smul.addr %s1067, 8
      %s1069 = scalar_lea.vmem %s63, %s1068
      %p1070 = scmp.lt.s32.totalorder %s79, 1
      %s1071 = scalar_select %p1070, %s79, 1
      %s1072 = smul.addr %s1071, 8
      %s1073 = smul.addr %s1072, 8
      %s1074 = scalar_lea.vmem %s65, %s1073
      %p1075 = scmp.lt.s32.totalorder %s79, 1
      %s1076 = scalar_select %p1075, %s79, 1
      %s1077 = smul.addr %s1076, 4
      %s1078 = smul.addr %s1077, 8
      %s1079 = scalar_lea.vmem %s67, %s1078
      %v1081 = vld [vmem:[%s1054] sm:$0xff]
      %v1082 = vld [vmem:[%s1054 + $0x8] sm:$0xff]
      %v1083 = vld [vmem:[%s1054 + $0x10] sm:$0xff]
      %v1084 = vld [vmem:[%s1054 + $0x18] sm:$0xff]
      %v1085 = vld [vmem:[%s7] sm:$0xff]
      %v1086 = vld [vmem:[%s7 + $0x8] sm:$0xff]
      %v1087 = vld [vmem:[%s7 + $0x10] sm:$0x1]
      %v1088 = vld [vmem:[%s7 + $0x18] sm:$0x1]
      %v1089 = vld [vmem:[%s9] sm:$0xff]
      %v1090 = vld [vmem:[%s9 + $0x8] sm:$0xff]
      %v1091 = vld [vmem:[%s9 + $0x10] sm:$0xff]
      %v1092 = vld [vmem:[%s9 + $0x18] sm:$0xff]
      %v1093 = vld [vmem:[%s11] sm:$0xff]
      %v1094 = vld [vmem:[%s11 + $0x8] sm:$0xff]
      %1095 = vrot.lane.b32.xlu0 %v1081, 17
      %v1096 = vpop.permute.xlu0 %1095
      %1097 = vrot.lane.b32.xlu0 %v1083, 17
      %v1098 = vpop.permute.xlu0 %1097
      %1099 = vrot.lane.b32.xlu0 %v1082, 17
      %v1100 = vpop.permute.xlu0 %1099
      %1101 = vrot.lane.b32.xlu0 %v1084, 17
      %v1102 = vpop.permute.xlu0 %1101
      %v1103 = vlaneseq
      %v1104 = vand.u32 %v1103, 127
      %vm1105 = vcmp.lt.s32.totalorder %v1104, 17
      %v1106 = vsel %vm1105, %v1096, %v1100
      %v1107 = vsel %vm1105, %v1098, %v1102
      %v1108 = vsel %vm1105, %v1100, %v1096
      %v1109 = vsel %vm1105, %v1102, %v1098
      %v1110 = vperm.slane %v1085, 0
      %v1111 = vperm.slane %v1086, 0
      %v1112 = vmul.f32 %v1108, %v1110
      %v1113 = vmul.f32 %v1106, %v1111
      %v1114 = vmul.f32 %v1109, %v1110
      %v1115 = vmul.f32 %v1107, %v1111
      %v1116 = vpack.c.bf16 %v1113, %v1112
      %v1117 = vpack.c.bf16 %v1115, %v1114
      %1118 = vrot.lane.b32.xlu0 %v1081, 16
      %v1119 = vpop.permute.xlu0 %1118
      %1120 = vrot.lane.b32.xlu0 %v1083, 16
      %v1121 = vpop.permute.xlu0 %1120
      %1122 = vrot.lane.b32.xlu0 %v1082, 16
      %v1123 = vpop.permute.xlu0 %1122
      %1124 = vrot.lane.b32.xlu0 %v1084, 16
      %v1125 = vpop.permute.xlu0 %1124
      %vm1126 = vcmp.lt.s32.totalorder %v1104, 16
      %v1127 = vsel %vm1126, %v1119, %v1123
      %v1128 = vsel %vm1126, %v1121, %v1125
      %v1129 = vsel %vm1126, %v1123, %v1119
      %v1130 = vsel %vm1126, %v1125, %v1121
      %v1131 = vperm.slane %v1085, 1
      %v1132 = vperm.slane %v1086, 1
      %v1133 = vmul.f32 %v1129, %v1131
      %v1134 = vmul.f32 %v1127, %v1132
      %v1135 = vmul.f32 %v1130, %v1131
      %v1136 = vmul.f32 %v1128, %v1132
      %v1137 = vpack.c.bf16 %v1134, %v1133
      %v1138 = vpack.c.bf16 %v1136, %v1135
      %1139 = vrot.lane.b32.xlu0 %v1081, 15
      %v1140 = vpop.permute.xlu0 %1139
      %1141 = vrot.lane.b32.xlu0 %v1083, 15
      %v1142 = vpop.permute.xlu0 %1141
      %1143 = vrot.lane.b32.xlu0 %v1082, 15
      %v1144 = vpop.permute.xlu0 %1143
      %1145 = vrot.lane.b32.xlu0 %v1084, 15
      %v1146 = vpop.permute.xlu0 %1145
      %vm1147 = vcmp.lt.s32.totalorder %v1104, 15
      %v1148 = vsel %vm1147, %v1140, %v1144
      %v1149 = vsel %vm1147, %v1142, %v1146
      %v1150 = vsel %vm1147, %v1144, %v1140
      %v1151 = vsel %vm1147, %v1146, %v1142
      %v1152 = vperm.slane %v1085, 2
      %v1153 = vperm.slane %v1086, 2
      %v1154 = vmul.f32 %v1150, %v1152
      %v1155 = vmul.f32 %v1148, %v1153
      %v1156 = vmul.f32 %v1151, %v1152
      %v1157 = vmul.f32 %v1149, %v1153
      %v1158 = vpack.c.bf16 %v1155, %v1154
      %v1159 = vpack.c.bf16 %v1157, %v1156
      %1160 = vrot.lane.b32.xlu0 %v1081, 1
      %v1161 = vpop.permute.xlu0 %1160
      %1162 = vrot.lane.b32.xlu0 %v1083, 1
      %v1163 = vpop.permute.xlu0 %1162
      %1164 = vrot.lane.b32.xlu0 %v1082, 1
      %v1165 = vpop.permute.xlu0 %1164
      %1166 = vrot.lane.b32.xlu0 %v1084, 1
      %v1167 = vpop.permute.xlu0 %1166
      %vm1168 = vcmp.lt.s32.totalorder %v1104, 1
      %v1169 = vsel %vm1168, %v1161, %v1165
      %v1170 = vsel %vm1168, %v1163, %v1167
      %v1171 = vsel %vm1168, %v1165, %v1161
      %v1172 = vsel %vm1168, %v1167, %v1163
      %v1173 = vperm.slane %v1085, 3
      %v1174 = vperm.slane %v1086, 3
      %v1175 = vmul.f32 %v1171, %v1173
      %v1176 = vmul.f32 %v1169, %v1174
      %v1177 = vmul.f32 %v1172, %v1173
      %v1178 = vmul.f32 %v1170, %v1174
      %v1179 = vpack.c.bf16 %v1176, %v1175
      %v1180 = vpack.c.bf16 %v1178, %v1177
      %v1181 = vpack.c.bf16 %v1082, %v1081
      %v1182 = vpack.c.bf16 %v1084, %v1083
      %1183 = vrot.lane.b32.xlu0 %v1081, 127
      %v1184 = vpop.permute.xlu0 %1183
      %1185 = vrot.lane.b32.xlu0 %v1083, 127
      %v1186 = vpop.permute.xlu0 %1185
      %1187 = vrot.lane.b32.xlu0 %v1082, 127
      %v1188 = vpop.permute.xlu0 %1187
      %1189 = vrot.lane.b32.xlu0 %v1084, 127
      %v1190 = vpop.permute.xlu0 %1189
      %vm1191 = vcmp.lt.s32.totalorder %v1104, 127
      %v1192 = vsel %vm1191, %v1184, %v1188
      %v1193 = vsel %vm1191, %v1186, %v1190
      %v1194 = vsel %vm1191, %v1188, %v1184
      %v1195 = vsel %vm1191, %v1190, %v1186
      %v1196 = vperm.slane %v1085, 5
      %v1197 = vperm.slane %v1086, 5
      %v1198 = vmul.f32 %v1192, %v1196
      %v1199 = vmul.f32 %v1194, %v1197
      %v1200 = vmul.f32 %v1193, %v1196
      %v1201 = vmul.f32 %v1195, %v1197
      %v1202 = vpack.c.bf16 %v1199, %v1198
      %v1203 = vpack.c.bf16 %v1201, %v1200
      %1204 = vrot.lane.b32.xlu0 %v1081, 113
      %v1205 = vpop.permute.xlu0 %1204
      %1206 = vrot.lane.b32.xlu0 %v1083, 113
      %v1207 = vpop.permute.xlu0 %1206
      %1208 = vrot.lane.b32.xlu0 %v1082, 113
      %v1209 = vpop.permute.xlu0 %1208
      %1210 = vrot.lane.b32.xlu0 %v1084, 113
      %v1211 = vpop.permute.xlu0 %1210
      %vm1212 = vcmp.lt.s32.totalorder %v1104, 113
      %v1213 = vsel %vm1212, %v1205, %v1209
      %v1214 = vsel %vm1212, %v1207, %v1211
      %v1215 = vsel %vm1212, %v1209, %v1205
      %v1216 = vsel %vm1212, %v1211, %v1207
      %v1217 = vperm.slane %v1085, 6
      %v1218 = vperm.slane %v1086, 6
      %v1219 = vmul.f32 %v1213, %v1217
      %v1220 = vmul.f32 %v1215, %v1218
      %v1221 = vmul.f32 %v1214, %v1217
      %v1222 = vmul.f32 %v1216, %v1218
      %v1223 = vpack.c.bf16 %v1220, %v1219
      %v1224 = vpack.c.bf16 %v1222, %v1221
      %1225 = vrot.lane.b32.xlu0 %v1081, 112
      %v1226 = vpop.permute.xlu0 %1225
      %1227 = vrot.lane.b32.xlu0 %v1083, 112
      %v1228 = vpop.permute.xlu0 %1227
      %1229 = vrot.lane.b32.xlu0 %v1082, 112
      %v1230 = vpop.permute.xlu0 %1229
      %1231 = vrot.lane.b32.xlu0 %v1084, 112
      %v1232 = vpop.permute.xlu0 %1231
      %vm1233 = vcmp.lt.s32.totalorder %v1104, 112
      %v1234 = vsel %vm1233, %v1226, %v1230
      %v1235 = vsel %vm1233, %v1228, %v1232
      %v1236 = vsel %vm1233, %v1230, %v1226
      %v1237 = vsel %vm1233, %v1232, %v1228
      %v1238 = vperm.slane %v1085, 7
      %v1239 = vperm.slane %v1086, 7
      %v1240 = vmul.f32 %v1234, %v1238
      %v1241 = vmul.f32 %v1236, %v1239
      %v1242 = vmul.f32 %v1235, %v1238
      %v1243 = vmul.f32 %v1237, %v1239
      %v1244 = vpack.c.bf16 %v1241, %v1240
      %v1245 = vpack.c.bf16 %v1243, %v1242
      %1246 = vrot.lane.b32.xlu0 %v1081, 111
      %v1247 = vpop.permute.xlu0 %1246
      %1248 = vrot.lane.b32.xlu0 %v1083, 111
      %v1249 = vpop.permute.xlu0 %1248
      %1250 = vrot.lane.b32.xlu0 %v1082, 111
      %v1251 = vpop.permute.xlu0 %1250
      %1252 = vrot.lane.b32.xlu0 %v1084, 111
      %v1253 = vpop.permute.xlu0 %1252
      %vm1254 = vcmp.lt.s32.totalorder %v1104, 111
      %v1255 = vsel %vm1254, %v1247, %v1251
      %v1256 = vsel %vm1254, %v1249, %v1253
      %v1257 = vsel %vm1254, %v1251, %v1247
      %v1258 = vsel %vm1254, %v1253, %v1249
      %v1259 = vperm.slane %v1087, 0
      %v1260 = vperm.slane %v1088, 0
      %v1261 = vmul.f32 %v1255, %v1259
      %v1262 = vmul.f32 %v1257, %v1260
      %v1263 = vmul.f32 %v1256, %v1259
      %v1264 = vmul.f32 %v1258, %v1260
      %v1265 = vpack.c.bf16 %v1262, %v1261
      %v1266 = vpack.c.bf16 %v1264, %v1263
      %v1269 = vunpack.c.l.b16 %v1116
      %v1270 = vunpack.c.h.b16 %v1116
      %v1271 = vunpack.c.l.b16 %v1117
      %v1272 = vunpack.c.h.b16 %v1117
      %v1273 = vpack.c.b16 %v1271, %v1269
      %v1274 = vpack.c.b16 %v1272, %v1270
      %v1279 = vunpack.c.l.b16 %v1137
      %v1280 = vunpack.c.h.b16 %v1137
      %v1281 = vunpack.c.l.b16 %v1138
      %v1282 = vunpack.c.h.b16 %v1138
      %v1283 = vpack.c.b16 %v1281, %v1279
      %v1284 = vpack.c.b16 %v1282, %v1280
      %v1289 = vunpack.c.l.b16 %v1158
      %v1290 = vunpack.c.h.b16 %v1158
      %v1291 = vunpack.c.l.b16 %v1159
      %v1292 = vunpack.c.h.b16 %v1159
      %v1293 = vpack.c.b16 %v1291, %v1289
      %v1294 = vpack.c.b16 %v1292, %v1290
      %v1299 = vunpack.c.l.b16 %v1179
      %v1300 = vunpack.c.h.b16 %v1179
      %v1301 = vunpack.c.l.b16 %v1180
      %v1302 = vunpack.c.h.b16 %v1180
      %v1303 = vpack.c.b16 %v1301, %v1299
      %v1304 = vpack.c.b16 %v1302, %v1300
      %v1309 = vunpack.c.l.b16 %v1181
      %v1310 = vunpack.c.h.b16 %v1181
      %v1311 = vunpack.c.l.b16 %v1182
      %v1312 = vunpack.c.h.b16 %v1182
      %v1313 = vpack.c.b16 %v1311, %v1309
      %v1314 = vpack.c.b16 %v1312, %v1310
      %v1319 = vunpack.c.l.b16 %v1202
      %v1320 = vunpack.c.h.b16 %v1202
      %v1321 = vunpack.c.l.b16 %v1203
      %v1322 = vunpack.c.h.b16 %v1203
      %v1323 = vpack.c.b16 %v1321, %v1319
      %v1324 = vpack.c.b16 %v1322, %v1320
      %v1329 = vunpack.c.l.b16 %v1223
      %v1330 = vunpack.c.h.b16 %v1223
      %v1331 = vunpack.c.l.b16 %v1224
      %v1332 = vunpack.c.h.b16 %v1224
      %v1333 = vpack.c.b16 %v1331, %v1329
      %v1334 = vpack.c.b16 %v1332, %v1330
      %v1339 = vunpack.c.l.b16 %v1244
      %v1340 = vunpack.c.h.b16 %v1244
      %v1341 = vunpack.c.l.b16 %v1245
      %v1342 = vunpack.c.h.b16 %v1245
      %v1343 = vpack.c.b16 %v1341, %v1339
      %v1344 = vpack.c.b16 %v1342, %v1340
      %v1349 = vunpack.c.l.b16 %v1265
      %v1350 = vunpack.c.h.b16 %v1265
      %v1351 = vunpack.c.l.b16 %v1266
      %v1352 = vunpack.c.h.b16 %v1266
      %v1353 = vpack.c.b16 %v1351, %v1349
      %v1354 = vpack.c.b16 %v1352, %v1350
      %v1357 = vld [vmem:[%s15] sm:$0xff]
      %v1358 = vld [vmem:[%s15 + $0x8] sm:$0xff]
      %v1359 = vld [vmem:[%s15 + $0x10] sm:$0xff]
      %v1360 = vld [vmem:[%s15 + $0x18] sm:$0xff]
      %v1361 = vld [vmem:[%s17] sm:$0xff]
      %v1362 = vld [vmem:[%s17 + $0x8] sm:$0xff]
      %v1363 = vld [vmem:[%s17 + $0x10] sm:$0xff]
      %v1364 = vld [vmem:[%s17 + $0x18] sm:$0xff]
      %1366 = vset.pattern.permute.xlu0 0
      %1367 = vperm.xlu0 %1366, %v1361
      %v1368 = vpop.permute.xlu0 %1367
      %1371 = vset.pattern.permute.xlu0 0
      %1372 = vperm.xlu0 %1371, %v1362
      %v1373 = vpop.permute.xlu0 %1372
      %1376 = vset.pattern.permute.xlu0 0
      %1377 = vperm.xlu0 %1376, %v1363
      %v1378 = vpop.permute.xlu0 %1377
      %1381 = vset.pattern.permute.xlu0 0
      %1382 = vperm.xlu0 %1381, %v1364
      %v1383 = vpop.permute.xlu0 %1382
      %v1389 = vunpack.c.l.b16 %v1357
      %v1390 = vunpack.c.h.b16 %v1357
      %v1391 = vunpack.c.l.b16 %v1358
      %v1392 = vunpack.c.h.b16 %v1358
      %v1393 = vunpack.c.l.b16 %v1359
      %v1394 = vunpack.c.h.b16 %v1359
      %v1395 = vunpack.c.l.b16 %v1360
      %v1396 = vunpack.c.h.b16 %v1360
      %v1397 = vpack.c.b16 %v1391, %v1389
      %v1398 = vpack.c.b16 %v1392, %v1390
      %v1399 = vpack.c.b16 %v1395, %v1393
      %v1400 = vpack.c.b16 %v1396, %v1394
      %vm1403 = vcmask 130048
      %v1405 = vsel %vm1403, %v1398, 0
      %v1408 = vsel %vm1403, %v1400, 0
      %1410 = vmatpush.bf16.msra.mxu0 %v1343
      %1411 = vmatpush.bf16.msra.mxu0 %v1333
      %1412 = vmatpush.bf16.msra.mxu0 %v1323
      %1413 = vmatpush.bf16.msra.mxu0 %v1313
      %1414 = vmatpush.bf16.msra.mxu0 %v1303
      %1415 = vmatpush.bf16.msra.mxu0 %v1293
      %1416 = vmatpush.bf16.msra.mxu0 %v1283
      %1417 = vmatpush.bf16.msra.mxu0 %v1273
      %1418 = vmatmul.bf16.gmra.mxu0 %v1397
      %v1419 = vpop.f32.mrf.mxu0
      %v1420 = vadd.f32 %v1368, %v1419
      %v1421 = vpop.f32.mrf.mxu0
      %v1422 = vadd.f32 %v1373, %v1421
      %1423 = vmatmul.bf16.gmra.mxu0 %v1399
      %v1424 = vpop.f32.mrf.mxu0
      %v1425 = vadd.f32 %v1378, %v1424
      %v1426 = vpop.f32.mrf.mxu0
      %v1427 = vadd.f32 %v1383, %v1426
      %1428 = vdwg.mxu0
      %1429 = vmatpush.bf16.msra.mxu0 0
      %1430 = vmatpush.bf16.msra.mxu0 0
      %1431 = vmatpush.bf16.msra.mxu0 0
      %1432 = vmatpush.bf16.msra.mxu0 0
      %1433 = vmatpush.bf16.msra.mxu0 0
      %1434 = vmatpush.bf16.msra.mxu0 0
      %1435 = vmatpush.bf16.msra.mxu0 0
      %1436 = vmatpush.bf16.msra.mxu0 %v1353
      %1437 = vmatmul.bf16.gmra.mxu0 %v1405
      %v1438 = vpop.f32.mrf.mxu0
      %v1439 = vadd.f32 %v1420, %v1438
      %v1440 = vpop.f32.mrf.mxu0
      %v1441 = vadd.f32 %v1422, %v1440
      %1442 = vmatmul.bf16.gmra.mxu0 %v1408
      %v1443 = vpop.f32.mrf.mxu0
      %v1444 = vadd.f32 %v1425, %v1443
      %v1445 = vpop.f32.mrf.mxu0
      %v1446 = vadd.f32 %v1427, %v1445
      %1447 = vdwg.mxu0
      %1448 = vmatpush.bf16.msra.mxu0 %v1344
      %1449 = vmatpush.bf16.msra.mxu0 %v1334
      %1450 = vmatpush.bf16.msra.mxu0 %v1324
      %1451 = vmatpush.bf16.msra.mxu0 %v1314
      %1452 = vmatpush.bf16.msra.mxu0 %v1304
      %1453 = vmatpush.bf16.msra.mxu0 %v1294
      %1454 = vmatpush.bf16.msra.mxu0 %v1284
      %1455 = vmatpush.bf16.msra.mxu0 %v1274
      %1456 = vmatmul.bf16.gmra.mxu0 %v1397
      %v1457 = vpop.f32.mrf.mxu0
      %v1458 = vadd.f32 %v1368, %v1457
      %v1459 = vpop.f32.mrf.mxu0
      %v1460 = vadd.f32 %v1373, %v1459
      %1461 = vmatmul.bf16.gmra.mxu0 %v1399
      %v1462 = vpop.f32.mrf.mxu0
      %v1463 = vadd.f32 %v1378, %v1462
      %v1464 = vpop.f32.mrf.mxu0
      %v1465 = vadd.f32 %v1383, %v1464
      %1466 = vdwg.mxu0
      %1467 = vmatpush.bf16.msra.mxu0 0
      %1468 = vmatpush.bf16.msra.mxu0 0
      %1469 = vmatpush.bf16.msra.mxu0 0
      %1470 = vmatpush.bf16.msra.mxu0 0
      %1471 = vmatpush.bf16.msra.mxu0 0
      %1472 = vmatpush.bf16.msra.mxu0 0
      %1473 = vmatpush.bf16.msra.mxu0 0
      %1474 = vmatpush.bf16.msra.mxu0 %v1354
      %1475 = vmatmul.bf16.gmra.mxu0 %v1405
      %v1476 = vpop.f32.mrf.mxu0
      %v1477 = vadd.f32 %v1458, %v1476
      %v1478 = vpop.f32.mrf.mxu0
      %v1479 = vadd.f32 %v1460, %v1478
      %1480 = vmatmul.bf16.gmra.mxu0 %v1408
      %v1481 = vpop.f32.mrf.mxu0
      %v1482 = vadd.f32 %v1463, %v1481
      %v1483 = vpop.f32.mrf.mxu0
      %v1484 = vadd.f32 %v1465, %v1483
      %1485 = vdwg.mxu0
      %v1486 = vld [vmem:[%s19] sm:$0xff]
      %v1487 = vld [vmem:[%s19 + $0x8] sm:$0xff]
      %v1488 = vld [vmem:[%s19 + $0x10] sm:$0xff]
      %v1489 = vld [vmem:[%s19 + $0x18] sm:$0xff]
      %v1490 = vld [vmem:[%s21] sm:$0xff]
      %v1491 = vld [vmem:[%s21 + $0x8] sm:$0xff]
      %v1492 = vld [vmem:[%s21 + $0x10] sm:$0xff]
      %v1493 = vld [vmem:[%s21 + $0x18] sm:$0xff]
      %1495 = vset.pattern.permute.xlu0 0
      %1496 = vperm.xlu0 %1495, %v1490
      %v1497 = vpop.permute.xlu0 %1496
      %1500 = vset.pattern.permute.xlu0 0
      %1501 = vperm.xlu0 %1500, %v1491
      %v1502 = vpop.permute.xlu0 %1501
      %1505 = vset.pattern.permute.xlu0 0
      %1506 = vperm.xlu0 %1505, %v1492
      %v1507 = vpop.permute.xlu0 %1506
      %1510 = vset.pattern.permute.xlu0 0
      %1511 = vperm.xlu0 %1510, %v1493
      %v1512 = vpop.permute.xlu0 %1511
      %v1518 = vunpack.c.l.b16 %v1486
      %v1519 = vunpack.c.h.b16 %v1486
      %v1520 = vunpack.c.l.b16 %v1487
      %v1521 = vunpack.c.h.b16 %v1487
      %v1522 = vunpack.c.l.b16 %v1488
      %v1523 = vunpack.c.h.b16 %v1488
      %v1524 = vunpack.c.l.b16 %v1489
      %v1525 = vunpack.c.h.b16 %v1489
      %v1526 = vpack.c.b16 %v1520, %v1518
      %v1527 = vpack.c.b16 %v1521, %v1519
      %v1528 = vpack.c.b16 %v1524, %v1522
      %v1529 = vpack.c.b16 %v1525, %v1523
      %v1533 = vsel %vm1403, %v1527, 0
      %v1536 = vsel %vm1403, %v1529, 0
      %1538 = vmatpush.bf16.msra.mxu0 %v1343
      %1539 = vmatpush.bf16.msra.mxu0 %v1333
      %1540 = vmatpush.bf16.msra.mxu0 %v1323
      %1541 = vmatpush.bf16.msra.mxu0 %v1313
      %1542 = vmatpush.bf16.msra.mxu0 %v1303
      %1543 = vmatpush.bf16.msra.mxu0 %v1293
      %1544 = vmatpush.bf16.msra.mxu0 %v1283
      %1545 = vmatpush.bf16.msra.mxu0 %v1273
      %1546 = vmatmul.bf16.gmra.mxu0 %v1526
      %v1547 = vpop.f32.mrf.mxu0
      %v1548 = vadd.f32 %v1497, %v1547
      %v1549 = vpop.f32.mrf.mxu0
      %v1550 = vadd.f32 %v1502, %v1549
      %1551 = vmatmul.bf16.gmra.mxu0 %v1528
      %v1552 = vpop.f32.mrf.mxu0
      %v1553 = vadd.f32 %v1507, %v1552
      %v1554 = vpop.f32.mrf.mxu0
      %v1555 = vadd.f32 %v1512, %v1554
      %1556 = vdwg.mxu0
      %1557 = vmatpush.bf16.msra.mxu0 0
      %1558 = vmatpush.bf16.msra.mxu0 0
      %1559 = vmatpush.bf16.msra.mxu0 0
      %1560 = vmatpush.bf16.msra.mxu0 0
      %1561 = vmatpush.bf16.msra.mxu0 0
      %1562 = vmatpush.bf16.msra.mxu0 0
      %1563 = vmatpush.bf16.msra.mxu0 0
      %1564 = vmatpush.bf16.msra.mxu0 %v1353
      %1565 = vmatmul.bf16.gmra.mxu0 %v1533
      %v1566 = vpop.f32.mrf.mxu0
      %v1567 = vadd.f32 %v1548, %v1566
      %v1568 = vpop.f32.mrf.mxu0
      %v1569 = vadd.f32 %v1550, %v1568
      %1570 = vmatmul.bf16.gmra.mxu0 %v1536
      %v1571 = vpop.f32.mrf.mxu0
      %v1572 = vadd.f32 %v1553, %v1571
      %v1573 = vpop.f32.mrf.mxu0
      %v1574 = vadd.f32 %v1555, %v1573
      %1575 = vdwg.mxu0
      %1576 = vmatpush.bf16.msra.mxu0 %v1344
      %1577 = vmatpush.bf16.msra.mxu0 %v1334
      %1578 = vmatpush.bf16.msra.mxu0 %v1324
      %1579 = vmatpush.bf16.msra.mxu0 %v1314
      %1580 = vmatpush.bf16.msra.mxu0 %v1304
      %1581 = vmatpush.bf16.msra.mxu0 %v1294
      %1582 = vmatpush.bf16.msra.mxu0 %v1284
      %1583 = vmatpush.bf16.msra.mxu0 %v1274
      %1584 = vmatmul.bf16.gmra.mxu0 %v1526
      %v1585 = vpop.f32.mrf.mxu0
      %v1586 = vadd.f32 %v1497, %v1585
      %v1587 = vpop.f32.mrf.mxu0
      %v1588 = vadd.f32 %v1502, %v1587
      %1589 = vmatmul.bf16.gmra.mxu0 %v1528
      %v1590 = vpop.f32.mrf.mxu0
      %v1591 = vadd.f32 %v1507, %v1590
      %v1592 = vpop.f32.mrf.mxu0
      %v1593 = vadd.f32 %v1512, %v1592
      %1594 = vdwg.mxu0
      %1595 = vmatpush.bf16.msra.mxu0 0
      %1596 = vmatpush.bf16.msra.mxu0 0
      %1597 = vmatpush.bf16.msra.mxu0 0
      %1598 = vmatpush.bf16.msra.mxu0 0
      %1599 = vmatpush.bf16.msra.mxu0 0
      %1600 = vmatpush.bf16.msra.mxu0 0
      %1601 = vmatpush.bf16.msra.mxu0 0
      %1602 = vmatpush.bf16.msra.mxu0 %v1354
      %1603 = vmatmul.bf16.gmra.mxu0 %v1533
      %v1604 = vpop.f32.mrf.mxu0
      %v1605 = vadd.f32 %v1586, %v1604
      %v1606 = vpop.f32.mrf.mxu0
      %v1607 = vadd.f32 %v1588, %v1606
      %1608 = vmatmul.bf16.gmra.mxu0 %v1536
      %v1609 = vpop.f32.mrf.mxu0
      %v1610 = vadd.f32 %v1591, %v1609
      %v1611 = vpop.f32.mrf.mxu0
      %v1612 = vadd.f32 %v1593, %v1611
      %1613 = vdwg.mxu0
      %v1614 = vadd.f32 %v1567, %v1605
      %1615 = vadd.xlane.f32.xlu0 %v1614
      %v1616 = vpop.xlane.xlu0 %1615
      %v1617 = vadd.f32 %v1569, %v1607
      %1618 = vadd.xlane.f32.xlu0 %v1617
      %v1619 = vpop.xlane.xlu0 %1618
      %v1620 = vadd.f32 %v1572, %v1610
      %1621 = vadd.xlane.f32.xlu0 %v1620
      %v1622 = vpop.xlane.xlu0 %1621
      %v1623 = vadd.f32 %v1574, %v1612
      %1624 = vadd.xlane.f32.xlu0 %v1623
      %v1625 = vpop.xlane.xlu0 %1624
      %v1626 = vmul.f32 %v1567, %v1567
      %v1627 = vmul.f32 %v1605, %v1605
      %v1628 = vmul.f32 %v1569, %v1569
      %v1629 = vmul.f32 %v1607, %v1607
      %v1630 = vmul.f32 %v1572, %v1572
      %v1631 = vmul.f32 %v1610, %v1610
      %v1632 = vmul.f32 %v1574, %v1574
      %v1633 = vmul.f32 %v1612, %v1612
      %v1634 = vadd.f32 %v1626, %v1627
      %1635 = vadd.xlane.f32.xlu0 %v1634
      %v1636 = vpop.xlane.xlu0 %1635
      %v1637 = vadd.f32 %v1628, %v1629
      %1638 = vadd.xlane.f32.xlu0 %v1637
      %v1639 = vpop.xlane.xlu0 %1638
      %v1640 = vadd.f32 %v1630, %v1631
      %1641 = vadd.xlane.f32.xlu0 %v1640
      %v1642 = vpop.xlane.xlu0 %1641
      %v1643 = vadd.f32 %v1632, %v1633
      %1644 = vadd.xlane.f32.xlu0 %v1643
      %v1645 = vpop.xlane.xlu0 %1644
      %vm1646 = vcmask 7168
      %v1647 = vsel %vm1646, %v1616, %v1636
      %v1648 = vsel %vm1646, %v1619, %v1639
      %v1649 = vsel %vm1646, %v1622, %v1642
      %v1650 = vsel %vm1646, %v1625, %v1645
      %vm1651 = vcmask 261120
      %v1653 = vsel %vm1651, %v1093, 0
      %v1656 = vsel %vm1651, %v1094, 0
      %1658 = vmatpush.msra.mxu0 0.0
      %1659 = vmatpush.msra.mxu0 0.0
      %1660 = vmatpush.msra.mxu0 0.0
      %1661 = vmatpush.msra.mxu0 0.0
      %1662 = vmatpush.msra.mxu0 0.0
      %1663 = vmatpush.msra.mxu0 0.0
      %1664 = vmatpush.msra.mxu0 0.0
      %1665 = vmatpush.msra.mxu0 0.0
      %1666 = vmatpush.msra.mxu0 0.0
      %1667 = vmatpush.msra.mxu0 0.0
      %1668 = vmatpush.msra.mxu0 0.0
      %1669 = vmatpush.msra.mxu0 0.0
      %1670 = vmatpush.msra.mxu0 %v1650
      %1671 = vmatpush.msra.mxu0 %v1649
      %1672 = vmatpush.msra.mxu0 %v1648
      %1673 = vmatpush.msra.mxu0 %v1647
      %1674 = vmatmul.f32.gmra.mxu0 %v1653
      %v1675 = vpop.f32.mrf.mxu0
      %v1676 = vadd.f32 0.0, %v1675
      %1677 = vmatmul.f32.gmra.mxu0 %v1656
      %v1678 = vpop.f32.mrf.mxu0
      %v1679 = vadd.f32 0.0, %v1678
      %1680 = vdwg.mxu0
      %v1682 = vsel %vm1403, %v1089, 0
      %v1685 = vsel %vm1403, %v1090, 0
      %v1688 = vsel %vm1403, %v1091, 0
      %v1691 = vsel %vm1403, %v1092, 0
      %1693 = vmatpush.msra.mxu0 0.0
      %1694 = vmatpush.msra.mxu0 0.0
      %1695 = vmatpush.msra.mxu0 0.0
      %1696 = vmatpush.msra.mxu0 0.0
      %1697 = vmatpush.msra.mxu0 0.0
      %1698 = vmatpush.msra.mxu0 0.0
      %1699 = vmatpush.msra.mxu0 0.0
      %1700 = vmatpush.msra.mxu0 0.0
      %1701 = vmatpush.msra.mxu0 0.0
      %1702 = vmatpush.msra.mxu0 0.0
      %1703 = vmatpush.msra.mxu0 0.0
      %1704 = vmatpush.msra.mxu0 0.0
      %1705 = vmatpush.msra.mxu0 0.0
      %1706 = vmatpush.msra.mxu0 0.0
      %1707 = vmatpush.msra.mxu0 %v1679
      %1708 = vmatpush.msra.mxu0 %v1676
      %1709 = vmatmul.f32.gmra.mxu0 %v1682
      %v1710 = vpop.f32.mrf.mxu0
      %v1711 = vadd.f32 0.0, %v1710
      %1712 = vmatmul.f32.gmra.mxu0 %v1685
      %v1713 = vpop.f32.mrf.mxu0
      %v1714 = vadd.f32 0.0, %v1713
      %1715 = vmatmul.f32.gmra.mxu0 %v1688
      %v1716 = vpop.f32.mrf.mxu0
      %v1717 = vadd.f32 0.0, %v1716
      %1718 = vmatmul.f32.gmra.mxu0 %v1691
      %v1719 = vpop.f32.mrf.mxu0
      %v1720 = vadd.f32 0.0, %v1719
      %1721 = vdwg.mxu0
      %v1722 = vrcp.pop 512.0
      %v1723 = vmul.f32 512.0, %v1722
      %v1724 = vsub.f32 1.0, %v1723
      %v1725 = vmul.f32 %v1722, %v1724
      %v1726 = vadd.f32 %v1722, %v1725
      %vm1727 = vweird.f32 %v1722
      %v1728 = vsel %vm1727, %v1722, %v1726
      %v1729 = vmul.f32 %v1711, %v1728
      %v1730 = vmul.f32 %v1714, %v1728
      %v1731 = vmul.f32 %v1717, %v1728
      %v1732 = vmul.f32 %v1720, %v1728
      %v1733 = vmul.f32 %v1729, %v1729
      %v1734 = vmul.f32 %v1730, %v1730
      %v1735 = vmul.f32 %v1731, %v1731
      %v1736 = vmul.f32 %v1732, %v1732
      %1741 = vrot.lane.b32.xlu0 %v1733, 1
      %v1742 = vpop.permute.xlu0 %1741
      %1743 = vrot.lane.b32.xlu0 %v1734, 1
      %v1744 = vpop.permute.xlu0 %1743
      %1745 = vrot.lane.b32.xlu0 %v1735, 1
      %v1746 = vpop.permute.xlu0 %1745
      %1747 = vrot.lane.b32.xlu0 %v1736, 1
      %v1748 = vpop.permute.xlu0 %1747
      %v1753 = vsub.f32 %v1729, %v1742
      %v1754 = vsub.f32 %v1730, %v1744
      %v1755 = vsub.f32 %v1731, %v1746
      %v1756 = vsub.f32 %v1732, %v1748
      %v1757 = vmax.f32 %v1753, 0.0
      %v1758 = vmax.f32 %v1754, 0.0
      %v1759 = vmax.f32 %v1755, 0.0
      %v1760 = vmax.f32 %v1756, 0.0
      %v1761 = vadd.f32 %v1757, 1e-05
      %v1762 = vadd.f32 %v1758, 1e-05
      %v1763 = vadd.f32 %v1759, 1e-05
      %v1764 = vadd.f32 %v1760, 1e-05
      %v1765 = vrsqrt.pop %v1761
      %v1766 = vmul.f32 %v1765, %v1761
      %v1767 = vmul.f32 %v1766, %v1765
      %v1768 = vmul.f32 0.5, %v1767
      %v1769 = vsub.f32 1.5, %v1768
      %v1770 = vmul.f32 %v1765, %v1769
      %vm1771 = vweird.f32 %v1761
      %vm1772 = vweird.f32 %v1765
      %vm1773 = vmor %vm1771, %vm1772
      %v1774 = vsel %vm1773, %v1765, %v1770
      %v1775 = vrsqrt.pop %v1762
      %v1776 = vmul.f32 %v1775, %v1762
      %v1777 = vmul.f32 %v1776, %v1775
      %v1778 = vmul.f32 0.5, %v1777
      %v1779 = vsub.f32 1.5, %v1778
      %v1780 = vmul.f32 %v1775, %v1779
      %vm1781 = vweird.f32 %v1762
      %vm1782 = vweird.f32 %v1775
      %vm1783 = vmor %vm1781, %vm1782
      %v1784 = vsel %vm1783, %v1775, %v1780
      %v1785 = vrsqrt.pop %v1763
      %v1786 = vmul.f32 %v1785, %v1763
      %v1787 = vmul.f32 %v1786, %v1785
      %v1788 = vmul.f32 0.5, %v1787
      %v1789 = vsub.f32 1.5, %v1788
      %v1790 = vmul.f32 %v1785, %v1789
      %vm1791 = vweird.f32 %v1763
      %vm1792 = vweird.f32 %v1785
      %vm1793 = vmor %vm1791, %vm1792
      %v1794 = vsel %vm1793, %v1785, %v1790
      %v1795 = vrsqrt.pop %v1764
      %v1796 = vmul.f32 %v1795, %v1764
      %v1797 = vmul.f32 %v1796, %v1795
      %v1798 = vmul.f32 0.5, %v1797
      %v1799 = vsub.f32 1.5, %v1798
      %v1800 = vmul.f32 %v1795, %v1799
      %vm1801 = vweird.f32 %v1764
      %vm1802 = vweird.f32 %v1795
      %vm1803 = vmor %vm1801, %vm1802
      %v1804 = vsel %vm1803, %v1795, %v1800
      %1806 = vset.pattern.permute.xlu0 0
      %1807 = vperm.xlu0 %1806, %v1729
      %v1808 = vpop.permute.xlu0 %1807
      %1811 = vset.pattern.permute.xlu0 0
      %1812 = vperm.xlu0 %1811, %v1730
      %v1813 = vpop.permute.xlu0 %1812
      %1816 = vset.pattern.permute.xlu0 0
      %1817 = vperm.xlu0 %1816, %v1731
      %v1818 = vpop.permute.xlu0 %1817
      %1821 = vset.pattern.permute.xlu0 0
      %1822 = vperm.xlu0 %1821, %v1732
      %v1823 = vpop.permute.xlu0 %1822
      %v1825 = vsub.f32 %v1567, %v1808
      %v1826 = vsub.f32 %v1605, %v1808
      %v1827 = vsub.f32 %v1569, %v1813
      %v1828 = vsub.f32 %v1607, %v1813
      %v1829 = vsub.f32 %v1572, %v1818
      %v1830 = vsub.f32 %v1610, %v1818
      %v1831 = vsub.f32 %v1574, %v1823
      %v1832 = vsub.f32 %v1612, %v1823
      %1834 = vset.pattern.permute.xlu0 1
      %1835 = vperm.xlu0 %1834, %v1774
      %v1836 = vpop.permute.xlu0 %1835
      %1839 = vset.pattern.permute.xlu0 1
      %1840 = vperm.xlu0 %1839, %v1784
      %v1841 = vpop.permute.xlu0 %1840
      %1844 = vset.pattern.permute.xlu0 1
      %1845 = vperm.xlu0 %1844, %v1794
      %v1846 = vpop.permute.xlu0 %1845
      %1849 = vset.pattern.permute.xlu0 1
      %1850 = vperm.xlu0 %1849, %v1804
      %v1851 = vpop.permute.xlu0 %1850
      %v1853 = vmul.f32 %v1825, %v1836
      %v1854 = vmul.f32 %v1826, %v1836
      %v1855 = vmul.f32 %v1827, %v1841
      %v1856 = vmul.f32 %v1828, %v1841
      %v1857 = vmul.f32 %v1829, %v1846
      %v1858 = vmul.f32 %v1830, %v1846
      %v1859 = vmul.f32 %v1831, %v1851
      %v1860 = vmul.f32 %v1832, %v1851
      %v1861 = vld [vmem:[%s23] sm:$0xff]
      %v1862 = vld [vmem:[%s23 + $0x8] sm:$0xff]
      %v1863 = vld [vmem:[%s23 + $0x10] sm:$0xff]
      %v1864 = vld [vmem:[%s23 + $0x18] sm:$0xff]
      %1866 = vset.pattern.permute.xlu0 0
      %1867 = vperm.xlu0 %1866, %v1861
      %v1868 = vpop.permute.xlu0 %1867
      %1871 = vset.pattern.permute.xlu0 0
      %1872 = vperm.xlu0 %1871, %v1862
      %v1873 = vpop.permute.xlu0 %1872
      %1876 = vset.pattern.permute.xlu0 0
      %1877 = vperm.xlu0 %1876, %v1863
      %v1878 = vpop.permute.xlu0 %1877
      %1881 = vset.pattern.permute.xlu0 0
      %1882 = vperm.xlu0 %1881, %v1864
      %v1883 = vpop.permute.xlu0 %1882
      %v1885 = vmul.f32 %v1853, %v1868
      %v1886 = vmul.f32 %v1854, %v1868
      %v1887 = vmul.f32 %v1855, %v1873
      %v1888 = vmul.f32 %v1856, %v1873
      %v1889 = vmul.f32 %v1857, %v1878
      %v1890 = vmul.f32 %v1858, %v1878
      %v1891 = vmul.f32 %v1859, %v1883
      %v1892 = vmul.f32 %v1860, %v1883
      %v1893 = vld [vmem:[%s25] sm:$0xff]
      %v1894 = vld [vmem:[%s25 + $0x8] sm:$0xff]
      %v1895 = vld [vmem:[%s25 + $0x10] sm:$0xff]
      %v1896 = vld [vmem:[%s25 + $0x18] sm:$0xff]
      %1898 = vset.pattern.permute.xlu0 0
      %1899 = vperm.xlu0 %1898, %v1893
      %v1900 = vpop.permute.xlu0 %1899
      %1903 = vset.pattern.permute.xlu0 0
      %1904 = vperm.xlu0 %1903, %v1894
      %v1905 = vpop.permute.xlu0 %1904
      %1908 = vset.pattern.permute.xlu0 0
      %1909 = vperm.xlu0 %1908, %v1895
      %v1910 = vpop.permute.xlu0 %1909
      %1913 = vset.pattern.permute.xlu0 0
      %1914 = vperm.xlu0 %1913, %v1896
      %v1915 = vpop.permute.xlu0 %1914
      %v1917 = vadd.f32 %v1885, %v1900
      %v1918 = vadd.f32 %v1886, %v1900
      %v1919 = vadd.f32 %v1887, %v1905
      %v1920 = vadd.f32 %v1888, %v1905
      %v1921 = vadd.f32 %v1889, %v1910
      %v1922 = vadd.f32 %v1890, %v1910
      %v1923 = vadd.f32 %v1891, %v1915
      %v1924 = vadd.f32 %v1892, %v1915
      %v1925 = vld [vmem:[%s1059] sm:$0xff]
      %v1926 = vld [vmem:[%s1059 + $0x8] sm:$0xff]
      %v1927 = vld [vmem:[%s1059 + $0x10] sm:$0xff]
      %v1928 = vld [vmem:[%s1059 + $0x18] sm:$0xff]
      %1930 = vset.pattern.permute.xlu0 0
      %1931 = vperm.xlu0 %1930, %v1925
      %v1932 = vpop.permute.xlu0 %1931
      %1935 = vset.pattern.permute.xlu0 0
      %1936 = vperm.xlu0 %1935, %v1926
      %v1937 = vpop.permute.xlu0 %1936
      %1940 = vset.pattern.permute.xlu0 0
      %1941 = vperm.xlu0 %1940, %v1927
      %v1942 = vpop.permute.xlu0 %1941
      %1945 = vset.pattern.permute.xlu0 0
      %1946 = vperm.xlu0 %1945, %v1928
      %v1947 = vpop.permute.xlu0 %1946
      %v1949 = vadd.f32 %v1917, %v1932
      %v1950 = vadd.f32 %v1918, %v1932
      %v1951 = vadd.f32 %v1919, %v1937
      %v1952 = vadd.f32 %v1920, %v1937
      %v1953 = vadd.f32 %v1921, %v1942
      %v1954 = vadd.f32 %v1922, %v1942
      %v1955 = vadd.f32 %v1923, %v1947
      %v1956 = vadd.f32 %v1924, %v1947
      %v1957 = vxor.u32 %v1949, 2147483648
      %v1958 = vxor.u32 %v1950, 2147483648
      %v1959 = vxor.u32 %v1951, 2147483648
      %v1960 = vxor.u32 %v1952, 2147483648
      %v1961 = vxor.u32 %v1953, 2147483648
      %v1962 = vxor.u32 %v1954, 2147483648
      %v1963 = vxor.u32 %v1955, 2147483648
      %v1964 = vxor.u32 %v1956, 2147483648
      %v1965 = vmul.f32 %v1957, 1.442695
      %v1966 = vpow.pop %v1965
      %v1967 = vmul.f32 %v1958, 1.442695
      %v1968 = vpow.pop %v1967
      %v1969 = vmul.f32 %v1959, 1.442695
      %v1970 = vpow.pop %v1969
      %v1971 = vmul.f32 %v1960, 1.442695
      %v1972 = vpow.pop %v1971
      %v1973 = vmul.f32 %v1961, 1.442695
      %v1974 = vpow.pop %v1973
      %v1975 = vmul.f32 %v1962, 1.442695
      %v1976 = vpow.pop %v1975
      %v1977 = vmul.f32 %v1963, 1.442695
      %v1978 = vpow.pop %v1977
      %v1979 = vmul.f32 %v1964, 1.442695
      %v1980 = vpow.pop %v1979
      %v1981 = vadd.f32 %v1966, 1.0
      %v1982 = vadd.f32 %v1968, 1.0
      %v1983 = vadd.f32 %v1970, 1.0
      %v1984 = vadd.f32 %v1972, 1.0
      %v1985 = vadd.f32 %v1974, 1.0
      %v1986 = vadd.f32 %v1976, 1.0
      %v1987 = vadd.f32 %v1978, 1.0
      %v1988 = vadd.f32 %v1980, 1.0
      %v1989 = vrcp.pop %v1981
      %v1990 = vmul.f32 %v1981, %v1989
      %v1991 = vsub.f32 1.0, %v1990
      %v1992 = vmul.f32 %v1989, %v1991
      %v1993 = vadd.f32 %v1989, %v1992
      %vm1994 = vweird.f32 %v1981
      %vm1995 = vweird.f32 %v1989
      %vm1996 = vmor %vm1994, %vm1995
      %v1997 = vsel %vm1996, %v1989, %v1993
      %v1998 = vand.u32 2147483647, %v1981
      %vm1999 = vcmp.eq.f32.partialorder %v1998, 8.507059e+37
      %v2000 = vand.u32 %v1981, 2147483648
      %v2001 = vor.u32 1.1754944e-38, %v2000
      %v2002 = vsel %vm1999, %v2001, %v1997
      %v2003 = vmul.f32 1.0, %v2002
      %v2004 = vrcp.pop %v1982
      %v2005 = vmul.f32 %v1982, %v2004
      %v2006 = vsub.f32 1.0, %v2005
      %v2007 = vmul.f32 %v2004, %v2006
      %v2008 = vadd.f32 %v2004, %v2007
      %vm2009 = vweird.f32 %v1982
      %vm2010 = vweird.f32 %v2004
      %vm2011 = vmor %vm2009, %vm2010
      %v2012 = vsel %vm2011, %v2004, %v2008
      %v2013 = vand.u32 2147483647, %v1982
      %vm2014 = vcmp.eq.f32.partialorder %v2013, 8.507059e+37
      %v2015 = vand.u32 %v1982, 2147483648
      %v2016 = vor.u32 1.1754944e-38, %v2015
      %v2017 = vsel %vm2014, %v2016, %v2012
      %v2018 = vmul.f32 1.0, %v2017
      %v2019 = vrcp.pop %v1983
      %v2020 = vmul.f32 %v1983, %v2019
      %v2021 = vsub.f32 1.0, %v2020
      %v2022 = vmul.f32 %v2019, %v2021
      %v2023 = vadd.f32 %v2019, %v2022
      %vm2024 = vweird.f32 %v1983
      %vm2025 = vweird.f32 %v2019
      %vm2026 = vmor %vm2024, %vm2025
      %v2027 = vsel %vm2026, %v2019, %v2023
      %v2028 = vand.u32 2147483647, %v1983
      %vm2029 = vcmp.eq.f32.partialorder %v2028, 8.507059e+37
      %v2030 = vand.u32 %v1983, 2147483648
      %v2031 = vor.u32 1.1754944e-38, %v2030
      %v2032 = vsel %vm2029, %v2031, %v2027
      %v2033 = vmul.f32 1.0, %v2032
      %v2034 = vrcp.pop %v1984
      %v2035 = vmul.f32 %v1984, %v2034
      %v2036 = vsub.f32 1.0, %v2035
      %v2037 = vmul.f32 %v2034, %v2036
      %v2038 = vadd.f32 %v2034, %v2037
      %vm2039 = vweird.f32 %v1984
      %vm2040 = vweird.f32 %v2034
      %vm2041 = vmor %vm2039, %vm2040
      %v2042 = vsel %vm2041, %v2034, %v2038
      %v2043 = vand.u32 2147483647, %v1984
      %vm2044 = vcmp.eq.f32.partialorder %v2043, 8.507059e+37
      %v2045 = vand.u32 %v1984, 2147483648
      %v2046 = vor.u32 1.1754944e-38, %v2045
      %v2047 = vsel %vm2044, %v2046, %v2042
      %v2048 = vmul.f32 1.0, %v2047
      %v2049 = vrcp.pop %v1985
      %v2050 = vmul.f32 %v1985, %v2049
      %v2051 = vsub.f32 1.0, %v2050
      %v2052 = vmul.f32 %v2049, %v2051
      %v2053 = vadd.f32 %v2049, %v2052
      %vm2054 = vweird.f32 %v1985
      %vm2055 = vweird.f32 %v2049
      %vm2056 = vmor %vm2054, %vm2055
      %v2057 = vsel %vm2056, %v2049, %v2053
      %v2058 = vand.u32 2147483647, %v1985
      %vm2059 = vcmp.eq.f32.partialorder %v2058, 8.507059e+37
      %v2060 = vand.u32 %v1985, 2147483648
      %v2061 = vor.u32 1.1754944e-38, %v2060
      %v2062 = vsel %vm2059, %v2061, %v2057
      %v2063 = vmul.f32 1.0, %v2062
      %v2064 = vrcp.pop %v1986
      %v2065 = vmul.f32 %v1986, %v2064
      %v2066 = vsub.f32 1.0, %v2065
      %v2067 = vmul.f32 %v2064, %v2066
      %v2068 = vadd.f32 %v2064, %v2067
      %vm2069 = vweird.f32 %v1986
      %vm2070 = vweird.f32 %v2064
      %vm2071 = vmor %vm2069, %vm2070
      %v2072 = vsel %vm2071, %v2064, %v2068
      %v2073 = vand.u32 2147483647, %v1986
      %vm2074 = vcmp.eq.f32.partialorder %v2073, 8.507059e+37
      %v2075 = vand.u32 %v1986, 2147483648
      %v2076 = vor.u32 1.1754944e-38, %v2075
      %v2077 = vsel %vm2074, %v2076, %v2072
      %v2078 = vmul.f32 1.0, %v2077
      %v2079 = vrcp.pop %v1987
      %v2080 = vmul.f32 %v1987, %v2079
      %v2081 = vsub.f32 1.0, %v2080
      %v2082 = vmul.f32 %v2079, %v2081
      %v2083 = vadd.f32 %v2079, %v2082
      %vm2084 = vweird.f32 %v1987
      %vm2085 = vweird.f32 %v2079
      %vm2086 = vmor %vm2084, %vm2085
      %v2087 = vsel %vm2086, %v2079, %v2083
      %v2088 = vand.u32 2147483647, %v1987
      %vm2089 = vcmp.eq.f32.partialorder %v2088, 8.507059e+37
      %v2090 = vand.u32 %v1987, 2147483648
      %v2091 = vor.u32 1.1754944e-38, %v2090
      %v2092 = vsel %vm2089, %v2091, %v2087
      %v2093 = vmul.f32 1.0, %v2092
      %v2094 = vrcp.pop %v1988
      %v2095 = vmul.f32 %v1988, %v2094
      %v2096 = vsub.f32 1.0, %v2095
      %v2097 = vmul.f32 %v2094, %v2096
      %v2098 = vadd.f32 %v2094, %v2097
      %vm2099 = vweird.f32 %v1988
      %vm2100 = vweird.f32 %v2094
      %vm2101 = vmor %vm2099, %vm2100
      %v2102 = vsel %vm2101, %v2094, %v2098
      %v2103 = vand.u32 2147483647, %v1988
      %vm2104 = vcmp.eq.f32.partialorder %v2103, 8.507059e+37
      %v2105 = vand.u32 %v1988, 2147483648
      %v2106 = vor.u32 1.1754944e-38, %v2105
      %v2107 = vsel %vm2104, %v2106, %v2102
      %v2108 = vmul.f32 1.0, %v2107
      %v2109 = vmul.f32 %v1949, %v2003
      %v2110 = vmul.f32 %v1950, %v2018
      %v2111 = vmul.f32 %v1951, %v2033
      %v2112 = vmul.f32 %v1952, %v2048
      %v2113 = vmul.f32 %v1953, %v2063
      %v2114 = vmul.f32 %v1954, %v2078
      %v2115 = vmul.f32 %v1955, %v2093
      %v2116 = vmul.f32 %v1956, %v2108
      %2117 = vrot.lane.b32.xlu0 %v2109, 17
      %v2118 = vpop.permute.xlu0 %2117
      %2119 = vrot.lane.b32.xlu0 %v2111, 17
      %v2120 = vpop.permute.xlu0 %2119
      %2121 = vrot.lane.b32.xlu0 %v2113, 17
      %v2122 = vpop.permute.xlu0 %2121
      %2123 = vrot.lane.b32.xlu0 %v2115, 17
      %v2124 = vpop.permute.xlu0 %2123
      %2125 = vrot.lane.b32.xlu0 %v2110, 17
      %v2126 = vpop.permute.xlu0 %2125
      %2127 = vrot.lane.b32.xlu0 %v2112, 17
      %v2128 = vpop.permute.xlu0 %2127
      %2129 = vrot.lane.b32.xlu0 %v2114, 17
      %v2130 = vpop.permute.xlu0 %2129
      %2131 = vrot.lane.b32.xlu0 %v2116, 17
      %v2132 = vpop.permute.xlu0 %2131
      %v2133 = vsel %vm1105, %v2118, %v2126
      %v2134 = vsel %vm1105, %v2120, %v2128
      %v2135 = vsel %vm1105, %v2122, %v2130
      %v2136 = vsel %vm1105, %v2124, %v2132
      %v2137 = vsel %vm1105, %v2126, %v2118
      %v2138 = vsel %vm1105, %v2128, %v2120
      %v2139 = vsel %vm1105, %v2130, %v2122
      %v2140 = vsel %vm1105, %v2132, %v2124
      %v2141 = vmul.f32 %v2137, %v1110
      %v2142 = vmul.f32 %v2133, %v1111
      %v2143 = vmul.f32 %v2138, %v1110
      %v2144 = vmul.f32 %v2134, %v1111
      %v2145 = vmul.f32 %v2139, %v1110
      %v2146 = vmul.f32 %v2135, %v1111
      %v2147 = vmul.f32 %v2140, %v1110
      %v2148 = vmul.f32 %v2136, %v1111
      %v2149 = vpack.c.bf16 %v2142, %v2141
      %v2150 = vpack.c.bf16 %v2144, %v2143
      %v2151 = vpack.c.bf16 %v2146, %v2145
      %v2152 = vpack.c.bf16 %v2148, %v2147
      %2153 = vrot.lane.b32.xlu0 %v2109, 16
      %v2154 = vpop.permute.xlu0 %2153
      %2155 = vrot.lane.b32.xlu0 %v2111, 16
      %v2156 = vpop.permute.xlu0 %2155
      %2157 = vrot.lane.b32.xlu0 %v2113, 16
      %v2158 = vpop.permute.xlu0 %2157
      %2159 = vrot.lane.b32.xlu0 %v2115, 16
      %v2160 = vpop.permute.xlu0 %2159
      %2161 = vrot.lane.b32.xlu0 %v2110, 16
      %v2162 = vpop.permute.xlu0 %2161
      %2163 = vrot.lane.b32.xlu0 %v2112, 16
      %v2164 = vpop.permute.xlu0 %2163
      %2165 = vrot.lane.b32.xlu0 %v2114, 16
      %v2166 = vpop.permute.xlu0 %2165
      %2167 = vrot.lane.b32.xlu0 %v2116, 16
      %v2168 = vpop.permute.xlu0 %2167
      %v2169 = vsel %vm1126, %v2154, %v2162
      %v2170 = vsel %vm1126, %v2156, %v2164
      %v2171 = vsel %vm1126, %v2158, %v2166
      %v2172 = vsel %vm1126, %v2160, %v2168
      %v2173 = vsel %vm1126, %v2162, %v2154
      %v2174 = vsel %vm1126, %v2164, %v2156
      %v2175 = vsel %vm1126, %v2166, %v2158
      %v2176 = vsel %vm1126, %v2168, %v2160
      %v2177 = vmul.f32 %v2173, %v1131
      %v2178 = vmul.f32 %v2169, %v1132
      %v2179 = vmul.f32 %v2174, %v1131
      %v2180 = vmul.f32 %v2170, %v1132
      %v2181 = vmul.f32 %v2175, %v1131
      %v2182 = vmul.f32 %v2171, %v1132
      %v2183 = vmul.f32 %v2176, %v1131
      %v2184 = vmul.f32 %v2172, %v1132
      %v2185 = vpack.c.bf16 %v2178, %v2177
      %v2186 = vpack.c.bf16 %v2180, %v2179
      %v2187 = vpack.c.bf16 %v2182, %v2181
      %v2188 = vpack.c.bf16 %v2184, %v2183
      %2189 = vrot.lane.b32.xlu0 %v2109, 15
      %v2190 = vpop.permute.xlu0 %2189
      %2191 = vrot.lane.b32.xlu0 %v2111, 15
      %v2192 = vpop.permute.xlu0 %2191
      %2193 = vrot.lane.b32.xlu0 %v2113, 15
      %v2194 = vpop.permute.xlu0 %2193
      %2195 = vrot.lane.b32.xlu0 %v2115, 15
      %v2196 = vpop.permute.xlu0 %2195
      %2197 = vrot.lane.b32.xlu0 %v2110, 15
      %v2198 = vpop.permute.xlu0 %2197
      %2199 = vrot.lane.b32.xlu0 %v2112, 15
      %v2200 = vpop.permute.xlu0 %2199
      %2201 = vrot.lane.b32.xlu0 %v2114, 15
      %v2202 = vpop.permute.xlu0 %2201
      %2203 = vrot.lane.b32.xlu0 %v2116, 15
      %v2204 = vpop.permute.xlu0 %2203
      %v2205 = vsel %vm1147, %v2190, %v2198
      %v2206 = vsel %vm1147, %v2192, %v2200
      %v2207 = vsel %vm1147, %v2194, %v2202
      %v2208 = vsel %vm1147, %v2196, %v2204
      %v2209 = vsel %vm1147, %v2198, %v2190
      %v2210 = vsel %vm1147, %v2200, %v2192
      %v2211 = vsel %vm1147, %v2202, %v2194
      %v2212 = vsel %vm1147, %v2204, %v2196
      %v2213 = vmul.f32 %v2209, %v1152
      %v2214 = vmul.f32 %v2205, %v1153
      %v2215 = vmul.f32 %v2210, %v1152
      %v2216 = vmul.f32 %v2206, %v1153
      %v2217 = vmul.f32 %v2211, %v1152
      %v2218 = vmul.f32 %v2207, %v1153
      %v2219 = vmul.f32 %v2212, %v1152
      %v2220 = vmul.f32 %v2208, %v1153
      %v2221 = vpack.c.bf16 %v2214, %v2213
      %v2222 = vpack.c.bf16 %v2216, %v2215
      %v2223 = vpack.c.bf16 %v2218, %v2217
      %v2224 = vpack.c.bf16 %v2220, %v2219
      %2225 = vrot.lane.b32.xlu0 %v2109, 1
      %v2226 = vpop.permute.xlu0 %2225
      %2227 = vrot.lane.b32.xlu0 %v2111, 1
      %v2228 = vpop.permute.xlu0 %2227
      %2229 = vrot.lane.b32.xlu0 %v2113, 1
      %v2230 = vpop.permute.xlu0 %2229
      %2231 = vrot.lane.b32.xlu0 %v2115, 1
      %v2232 = vpop.permute.xlu0 %2231
      %2233 = vrot.lane.b32.xlu0 %v2110, 1
      %v2234 = vpop.permute.xlu0 %2233
      %2235 = vrot.lane.b32.xlu0 %v2112, 1
      %v2236 = vpop.permute.xlu0 %2235
      %2237 = vrot.lane.b32.xlu0 %v2114, 1
      %v2238 = vpop.permute.xlu0 %2237
      %2239 = vrot.lane.b32.xlu0 %v2116, 1
      %v2240 = vpop.permute.xlu0 %2239
      %v2241 = vsel %vm1168, %v2226, %v2234
      %v2242 = vsel %vm1168, %v2228, %v2236
      %v2243 = vsel %vm1168, %v2230, %v2238
      %v2244 = vsel %vm1168, %v2232, %v2240
      %v2245 = vsel %vm1168, %v2234, %v2226
      %v2246 = vsel %vm1168, %v2236, %v2228
      %v2247 = vsel %vm1168, %v2238, %v2230
      %v2248 = vsel %vm1168, %v2240, %v2232
      %v2249 = vmul.f32 %v2245, %v1173
      %v2250 = vmul.f32 %v2241, %v1174
      %v2251 = vmul.f32 %v2246, %v1173
      %v2252 = vmul.f32 %v2242, %v1174
      %v2253 = vmul.f32 %v2247, %v1173
      %v2254 = vmul.f32 %v2243, %v1174
      %v2255 = vmul.f32 %v2248, %v1173
      %v2256 = vmul.f32 %v2244, %v1174
      %v2257 = vpack.c.bf16 %v2250, %v2249
      %v2258 = vpack.c.bf16 %v2252, %v2251
      %v2259 = vpack.c.bf16 %v2254, %v2253
      %v2260 = vpack.c.bf16 %v2256, %v2255
      %v2261 = vpack.c.bf16 %v2110, %v2109
      %v2262 = vpack.c.bf16 %v2112, %v2111
      %v2263 = vpack.c.bf16 %v2114, %v2113
      %v2264 = vpack.c.bf16 %v2116, %v2115
      %2265 = vrot.lane.b32.xlu0 %v2109, 127
      %v2266 = vpop.permute.xlu0 %2265
      %2267 = vrot.lane.b32.xlu0 %v2111, 127
      %v2268 = vpop.permute.xlu0 %2267
      %2269 = vrot.lane.b32.xlu0 %v2113, 127
      %v2270 = vpop.permute.xlu0 %2269
      %2271 = vrot.lane.b32.xlu0 %v2115, 127
      %v2272 = vpop.permute.xlu0 %2271
      %2273 = vrot.lane.b32.xlu0 %v2110, 127
      %v2274 = vpop.permute.xlu0 %2273
      %2275 = vrot.lane.b32.xlu0 %v2112, 127
      %v2276 = vpop.permute.xlu0 %2275
      %2277 = vrot.lane.b32.xlu0 %v2114, 127
      %v2278 = vpop.permute.xlu0 %2277
      %2279 = vrot.lane.b32.xlu0 %v2116, 127
      %v2280 = vpop.permute.xlu0 %2279
      %v2281 = vsel %vm1191, %v2266, %v2274
      %v2282 = vsel %vm1191, %v2268, %v2276
      %v2283 = vsel %vm1191, %v2270, %v2278
      %v2284 = vsel %vm1191, %v2272, %v2280
      %v2285 = vsel %vm1191, %v2274, %v2266
      %v2286 = vsel %vm1191, %v2276, %v2268
      %v2287 = vsel %vm1191, %v2278, %v2270
      %v2288 = vsel %vm1191, %v2280, %v2272
      %v2289 = vmul.f32 %v2281, %v1196
      %v2290 = vmul.f32 %v2285, %v1197
      %v2291 = vmul.f32 %v2282, %v1196
      %v2292 = vmul.f32 %v2286, %v1197
      %v2293 = vmul.f32 %v2283, %v1196
      %v2294 = vmul.f32 %v2287, %v1197
      %v2295 = vmul.f32 %v2284, %v1196
      %v2296 = vmul.f32 %v2288, %v1197
      %v2297 = vpack.c.bf16 %v2290, %v2289
      %v2298 = vpack.c.bf16 %v2292, %v2291
      %v2299 = vpack.c.bf16 %v2294, %v2293
      %v2300 = vpack.c.bf16 %v2296, %v2295
      %2301 = vrot.lane.b32.xlu0 %v2109, 113
      %v2302 = vpop.permute.xlu0 %2301
      %2303 = vrot.lane.b32.xlu0 %v2111, 113
      %v2304 = vpop.permute.xlu0 %2303
      %2305 = vrot.lane.b32.xlu0 %v2113, 113
      %v2306 = vpop.permute.xlu0 %2305
      %2307 = vrot.lane.b32.xlu0 %v2115, 113
      %v2308 = vpop.permute.xlu0 %2307
      %2309 = vrot.lane.b32.xlu0 %v2110, 113
      %v2310 = vpop.permute.xlu0 %2309
      %2311 = vrot.lane.b32.xlu0 %v2112, 113
      %v2312 = vpop.permute.xlu0 %2311
      %2313 = vrot.lane.b32.xlu0 %v2114, 113
      %v2314 = vpop.permute.xlu0 %2313
      %2315 = vrot.lane.b32.xlu0 %v2116, 113
      %v2316 = vpop.permute.xlu0 %2315
      %v2317 = vsel %vm1212, %v2302, %v2310
      %v2318 = vsel %vm1212, %v2304, %v2312
      %v2319 = vsel %vm1212, %v2306, %v2314
      %v2320 = vsel %vm1212, %v2308, %v2316
      %v2321 = vsel %vm1212, %v2310, %v2302
      %v2322 = vsel %vm1212, %v2312, %v2304
      %v2323 = vsel %vm1212, %v2314, %v2306
      %v2324 = vsel %vm1212, %v2316, %v2308
      %v2325 = vmul.f32 %v2317, %v1217
      %v2326 = vmul.f32 %v2321, %v1218
      %v2327 = vmul.f32 %v2318, %v1217
      %v2328 = vmul.f32 %v2322, %v1218
      %v2329 = vmul.f32 %v2319, %v1217
      %v2330 = vmul.f32 %v2323, %v1218
      %v2331 = vmul.f32 %v2320, %v1217
      %v2332 = vmul.f32 %v2324, %v1218
      %v2333 = vpack.c.bf16 %v2326, %v2325
      %v2334 = vpack.c.bf16 %v2328, %v2327
      %v2335 = vpack.c.bf16 %v2330, %v2329
      %v2336 = vpack.c.bf16 %v2332, %v2331
      %2337 = vrot.lane.b32.xlu0 %v2109, 112
      %v2338 = vpop.permute.xlu0 %2337
      %2339 = vrot.lane.b32.xlu0 %v2111, 112
      %v2340 = vpop.permute.xlu0 %2339
      %2341 = vrot.lane.b32.xlu0 %v2113, 112
      %v2342 = vpop.permute.xlu0 %2341
      %2343 = vrot.lane.b32.xlu0 %v2115, 112
      %v2344 = vpop.permute.xlu0 %2343
      %2345 = vrot.lane.b32.xlu0 %v2110, 112
      %v2346 = vpop.permute.xlu0 %2345
      %2347 = vrot.lane.b32.xlu0 %v2112, 112
      %v2348 = vpop.permute.xlu0 %2347
      %2349 = vrot.lane.b32.xlu0 %v2114, 112
      %v2350 = vpop.permute.xlu0 %2349
      %2351 = vrot.lane.b32.xlu0 %v2116, 112
      %v2352 = vpop.permute.xlu0 %2351
      %v2353 = vsel %vm1233, %v2338, %v2346
      %v2354 = vsel %vm1233, %v2340, %v2348
      %v2355 = vsel %vm1233, %v2342, %v2350
      %v2356 = vsel %vm1233, %v2344, %v2352
      %v2357 = vsel %vm1233, %v2346, %v2338
      %v2358 = vsel %vm1233, %v2348, %v2340
      %v2359 = vsel %vm1233, %v2350, %v2342
      %v2360 = vsel %vm1233, %v2352, %v2344
      %v2361 = vmul.f32 %v2353, %v1238
      %v2362 = vmul.f32 %v2357, %v1239
      %v2363 = vmul.f32 %v2354, %v1238
      %v2364 = vmul.f32 %v2358, %v1239
      %v2365 = vmul.f32 %v2355, %v1238
      %v2366 = vmul.f32 %v2359, %v1239
      %v2367 = vmul.f32 %v2356, %v1238
      %v2368 = vmul.f32 %v2360, %v1239
      %v2369 = vpack.c.bf16 %v2362, %v2361
      %v2370 = vpack.c.bf16 %v2364, %v2363
      %v2371 = vpack.c.bf16 %v2366, %v2365
      %v2372 = vpack.c.bf16 %v2368, %v2367
      %2373 = vrot.lane.b32.xlu0 %v2109, 111
      %v2374 = vpop.permute.xlu0 %2373
      %2375 = vrot.lane.b32.xlu0 %v2111, 111
      %v2376 = vpop.permute.xlu0 %2375
      %2377 = vrot.lane.b32.xlu0 %v2113, 111
      %v2378 = vpop.permute.xlu0 %2377
      %2379 = vrot.lane.b32.xlu0 %v2115, 111
      %v2380 = vpop.permute.xlu0 %2379
      %2381 = vrot.lane.b32.xlu0 %v2110, 111
      %v2382 = vpop.permute.xlu0 %2381
      %2383 = vrot.lane.b32.xlu0 %v2112, 111
      %v2384 = vpop.permute.xlu0 %2383
      %2385 = vrot.lane.b32.xlu0 %v2114, 111
      %v2386 = vpop.permute.xlu0 %2385
      %2387 = vrot.lane.b32.xlu0 %v2116, 111
      %v2388 = vpop.permute.xlu0 %2387
      %v2389 = vsel %vm1254, %v2374, %v2382
      %v2390 = vsel %vm1254, %v2376, %v2384
      %v2391 = vsel %vm1254, %v2378, %v2386
      %v2392 = vsel %vm1254, %v2380, %v2388
      %v2393 = vsel %vm1254, %v2382, %v2374
      %v2394 = vsel %vm1254, %v2384, %v2376
      %v2395 = vsel %vm1254, %v2386, %v2378
      %v2396 = vsel %vm1254, %v2388, %v2380
      %v2397 = vmul.f32 %v2389, %v1259
      %v2398 = vmul.f32 %v2393, %v1260
      %v2399 = vmul.f32 %v2390, %v1259
      %v2400 = vmul.f32 %v2394, %v1260
      %v2401 = vmul.f32 %v2391, %v1259
      %v2402 = vmul.f32 %v2395, %v1260
      %v2403 = vmul.f32 %v2392, %v1259
      %v2404 = vmul.f32 %v2396, %v1260
      %v2405 = vpack.c.bf16 %v2398, %v2397
      %v2406 = vpack.c.bf16 %v2400, %v2399
      %v2407 = vpack.c.bf16 %v2402, %v2401
      %v2408 = vpack.c.bf16 %v2404, %v2403
      %v2413 = vunpack.c.l.b16 %v2149
      %v2414 = vunpack.c.h.b16 %v2149
      %v2415 = vunpack.c.l.b16 %v2150
      %v2416 = vunpack.c.h.b16 %v2150
      %v2417 = vunpack.c.l.b16 %v2151
      %v2418 = vunpack.c.h.b16 %v2151
      %v2419 = vunpack.c.l.b16 %v2152
      %v2420 = vunpack.c.h.b16 %v2152
      %v2421 = vpack.c.b16 %v2415, %v2413
      %v2422 = vpack.c.b16 %v2416, %v2414
      %v2423 = vpack.c.b16 %v2419, %v2417
      %v2424 = vpack.c.b16 %v2420, %v2418
      %v2433 = vunpack.c.l.b16 %v2185
      %v2434 = vunpack.c.h.b16 %v2185
      %v2435 = vunpack.c.l.b16 %v2186
      %v2436 = vunpack.c.h.b16 %v2186
      %v2437 = vunpack.c.l.b16 %v2187
      %v2438 = vunpack.c.h.b16 %v2187
      %v2439 = vunpack.c.l.b16 %v2188
      %v2440 = vunpack.c.h.b16 %v2188
      %v2441 = vpack.c.b16 %v2435, %v2433
      %v2442 = vpack.c.b16 %v2436, %v2434
      %v2443 = vpack.c.b16 %v2439, %v2437
      %v2444 = vpack.c.b16 %v2440, %v2438
      %v2453 = vunpack.c.l.b16 %v2221
      %v2454 = vunpack.c.h.b16 %v2221
      %v2455 = vunpack.c.l.b16 %v2222
      %v2456 = vunpack.c.h.b16 %v2222
      %v2457 = vunpack.c.l.b16 %v2223
      %v2458 = vunpack.c.h.b16 %v2223
      %v2459 = vunpack.c.l.b16 %v2224
      %v2460 = vunpack.c.h.b16 %v2224
      %v2461 = vpack.c.b16 %v2455, %v2453
      %v2462 = vpack.c.b16 %v2456, %v2454
      %v2463 = vpack.c.b16 %v2459, %v2457
      %v2464 = vpack.c.b16 %v2460, %v2458
      %v2473 = vunpack.c.l.b16 %v2257
      %v2474 = vunpack.c.h.b16 %v2257
      %v2475 = vunpack.c.l.b16 %v2258
      %v2476 = vunpack.c.h.b16 %v2258
      %v2477 = vunpack.c.l.b16 %v2259
      %v2478 = vunpack.c.h.b16 %v2259
      %v2479 = vunpack.c.l.b16 %v2260
      %v2480 = vunpack.c.h.b16 %v2260
      %v2481 = vpack.c.b16 %v2475, %v2473
      %v2482 = vpack.c.b16 %v2476, %v2474
      %v2483 = vpack.c.b16 %v2479, %v2477
      %v2484 = vpack.c.b16 %v2480, %v2478
      %v2493 = vunpack.c.l.b16 %v2261
      %v2494 = vunpack.c.h.b16 %v2261
      %v2495 = vunpack.c.l.b16 %v2262
      %v2496 = vunpack.c.h.b16 %v2262
      %v2497 = vunpack.c.l.b16 %v2263
      %v2498 = vunpack.c.h.b16 %v2263
      %v2499 = vunpack.c.l.b16 %v2264
      %v2500 = vunpack.c.h.b16 %v2264
      %v2501 = vpack.c.b16 %v2495, %v2493
      %v2502 = vpack.c.b16 %v2496, %v2494
      %v2503 = vpack.c.b16 %v2499, %v2497
      %v2504 = vpack.c.b16 %v2500, %v2498
      %v2513 = vunpack.c.l.b16 %v2297
      %v2514 = vunpack.c.h.b16 %v2297
      %v2515 = vunpack.c.l.b16 %v2298
      %v2516 = vunpack.c.h.b16 %v2298
      %v2517 = vunpack.c.l.b16 %v2299
      %v2518 = vunpack.c.h.b16 %v2299
      %v2519 = vunpack.c.l.b16 %v2300
      %v2520 = vunpack.c.h.b16 %v2300
      %v2521 = vpack.c.b16 %v2515, %v2513
      %v2522 = vpack.c.b16 %v2516, %v2514
      %v2523 = vpack.c.b16 %v2519, %v2517
      %v2524 = vpack.c.b16 %v2520, %v2518
      %v2533 = vunpack.c.l.b16 %v2333
      %v2534 = vunpack.c.h.b16 %v2333
      %v2535 = vunpack.c.l.b16 %v2334
      %v2536 = vunpack.c.h.b16 %v2334
      %v2537 = vunpack.c.l.b16 %v2335
      %v2538 = vunpack.c.h.b16 %v2335
      %v2539 = vunpack.c.l.b16 %v2336
      %v2540 = vunpack.c.h.b16 %v2336
      %v2541 = vpack.c.b16 %v2535, %v2533
      %v2542 = vpack.c.b16 %v2536, %v2534
      %v2543 = vpack.c.b16 %v2539, %v2537
      %v2544 = vpack.c.b16 %v2540, %v2538
      %v2553 = vunpack.c.l.b16 %v2369
      %v2554 = vunpack.c.h.b16 %v2369
      %v2555 = vunpack.c.l.b16 %v2370
      %v2556 = vunpack.c.h.b16 %v2370
      %v2557 = vunpack.c.l.b16 %v2371
      %v2558 = vunpack.c.h.b16 %v2371
      %v2559 = vunpack.c.l.b16 %v2372
      %v2560 = vunpack.c.h.b16 %v2372
      %v2561 = vpack.c.b16 %v2555, %v2553
      %v2562 = vpack.c.b16 %v2556, %v2554
      %v2563 = vpack.c.b16 %v2559, %v2557
      %v2564 = vpack.c.b16 %v2560, %v2558
      %v2573 = vunpack.c.l.b16 %v2405
      %v2574 = vunpack.c.h.b16 %v2405
      %v2575 = vunpack.c.l.b16 %v2406
      %v2576 = vunpack.c.h.b16 %v2406
      %v2577 = vunpack.c.l.b16 %v2407
      %v2578 = vunpack.c.h.b16 %v2407
      %v2579 = vunpack.c.l.b16 %v2408
      %v2580 = vunpack.c.h.b16 %v2408
      %v2581 = vpack.c.b16 %v2575, %v2573
      %v2582 = vpack.c.b16 %v2576, %v2574
      %v2583 = vpack.c.b16 %v2579, %v2577
      %v2584 = vpack.c.b16 %v2580, %v2578
      %v2589 = vld [vmem:[%s27] sm:$0xff]
      %v2590 = vld [vmem:[%s27 + $0x8] sm:$0xf]
      %v2591 = vld [vmem:[%s27 + $0xc] sm:$0xff]
      %v2592 = vld [vmem:[%s27 + $0x14] sm:$0xf]
      %v2593 = vld [vmem:[%s27 + $0x18] sm:$0xff]
      %v2594 = vld [vmem:[%s27 + $0x20] sm:$0xf]
      %v2595 = vld [vmem:[%s27 + $0x24] sm:$0xff]
      %v2596 = vld [vmem:[%s27 + $0x2c] sm:$0xf]
      %v2597 = vld [vmem:[%s29] sm:$0xff]
      %v2598 = vld [vmem:[%s29 + $0x8] sm:$0xff]
      %v2599 = vld [vmem:[%s29 + $0x10] sm:$0xff]
      %v2600 = vld [vmem:[%s29 + $0x18] sm:$0xff]
      %2602 = vset.pattern.permute.xlu0 0
      %2603 = vperm.xlu0 %2602, %v2597
      %v2604 = vpop.permute.xlu0 %2603
      %2607 = vset.pattern.permute.xlu0 0
      %2608 = vperm.xlu0 %2607, %v2598
      %v2609 = vpop.permute.xlu0 %2608
      %2612 = vset.pattern.permute.xlu0 0
      %2613 = vperm.xlu0 %2612, %v2599
      %v2614 = vpop.permute.xlu0 %2613
      %2617 = vset.pattern.permute.xlu0 0
      %2618 = vperm.xlu0 %2617, %v2600
      %v2619 = vpop.permute.xlu0 %2618
      %v2629 = vunpack.c.l.b16 %v2589
      %v2630 = vunpack.c.h.b16 %v2589
      %v2631 = vunpack.c.l.b16 %v2590
      %v2632 = vunpack.c.l.b16 %v2591
      %v2633 = vunpack.c.h.b16 %v2591
      %v2634 = vunpack.c.l.b16 %v2592
      %v2635 = vunpack.c.l.b16 %v2593
      %v2636 = vunpack.c.h.b16 %v2593
      %v2637 = vunpack.c.l.b16 %v2594
      %v2638 = vunpack.c.l.b16 %v2595
      %v2639 = vunpack.c.h.b16 %v2595
      %v2640 = vunpack.c.l.b16 %v2596
      %v2641 = vpack.c.b16 %v2632, %v2629
      %v2642 = vpack.c.b16 %v2633, %v2630
      %v2643 = vpack.c.b16 %v2634, %v2631
      %v2644 = vpack.c.b16 %v2638, %v2635
      %v2645 = vpack.c.b16 %v2639, %v2636
      %v2646 = vpack.c.b16 %v2640, %v2637
      %v2652 = vsel %vm1651, %v2643, 0
      %v2655 = vsel %vm1651, %v2646, 0
      %2657 = vmatpush.bf16.msra.mxu0 %v2483
      %2658 = vmatpush.bf16.msra.mxu0 %v2481
      %2659 = vmatpush.bf16.msra.mxu0 %v2463
      %2660 = vmatpush.bf16.msra.mxu0 %v2461
      %2661 = vmatpush.bf16.msra.mxu0 %v2443
      %2662 = vmatpush.bf16.msra.mxu0 %v2441
      %2663 = vmatpush.bf16.msra.mxu0 %v2423
      %2664 = vmatpush.bf16.msra.mxu0 %v2421
      %2665 = vmatmul.bf16.gmra.mxu0 %v2641
      %v2666 = vpop.f32.mrf.mxu0
      %v2667 = vadd.f32 %v2604, %v2666
      %v2668 = vpop.f32.mrf.mxu0
      %v2669 = vadd.f32 %v2609, %v2668
      %2670 = vmatmul.bf16.gmra.mxu0 %v2644
      %v2671 = vpop.f32.mrf.mxu0
      %v2672 = vadd.f32 %v2614, %v2671
      %v2673 = vpop.f32.mrf.mxu0
      %v2674 = vadd.f32 %v2619, %v2673
      %2675 = vdwg.mxu0
      %2676 = vmatpush.bf16.msra.mxu0 %v2563
      %2677 = vmatpush.bf16.msra.mxu0 %v2561
      %2678 = vmatpush.bf16.msra.mxu0 %v2543
      %2679 = vmatpush.bf16.msra.mxu0 %v2541
      %2680 = vmatpush.bf16.msra.mxu0 %v2523
      %2681 = vmatpush.bf16.msra.mxu0 %v2521
      %2682 = vmatpush.bf16.msra.mxu0 %v2503
      %2683 = vmatpush.bf16.msra.mxu0 %v2501
      %2684 = vmatmul.bf16.gmra.mxu0 %v2642
      %v2685 = vpop.f32.mrf.mxu0
      %v2686 = vadd.f32 %v2667, %v2685
      %v2687 = vpop.f32.mrf.mxu0
      %v2688 = vadd.f32 %v2669, %v2687
      %2689 = vmatmul.bf16.gmra.mxu0 %v2645
      %v2690 = vpop.f32.mrf.mxu0
      %v2691 = vadd.f32 %v2672, %v2690
      %v2692 = vpop.f32.mrf.mxu0
      %v2693 = vadd.f32 %v2674, %v2692
      %2694 = vdwg.mxu0
      %2695 = vmatpush.bf16.msra.mxu0 0
      %2696 = vmatpush.bf16.msra.mxu0 0
      %2697 = vmatpush.bf16.msra.mxu0 0
      %2698 = vmatpush.bf16.msra.mxu0 0
      %2699 = vmatpush.bf16.msra.mxu0 0
      %2700 = vmatpush.bf16.msra.mxu0 0
      %2701 = vmatpush.bf16.msra.mxu0 %v2583
      %2702 = vmatpush.bf16.msra.mxu0 %v2581
      %2703 = vmatmul.bf16.gmra.mxu0 %v2652
      %v2704 = vpop.f32.mrf.mxu0
      %v2705 = vadd.f32 %v2686, %v2704
      %v2706 = vpop.f32.mrf.mxu0
      %v2707 = vadd.f32 %v2688, %v2706
      %2708 = vmatmul.bf16.gmra.mxu0 %v2655
      %v2709 = vpop.f32.mrf.mxu0
      %v2710 = vadd.f32 %v2691, %v2709
      %v2711 = vpop.f32.mrf.mxu0
      %v2712 = vadd.f32 %v2693, %v2711
      %2713 = vdwg.mxu0
      %2714 = vmatpush.bf16.msra.mxu0 %v2484
      %2715 = vmatpush.bf16.msra.mxu0 %v2482
      %2716 = vmatpush.bf16.msra.mxu0 %v2464
      %2717 = vmatpush.bf16.msra.mxu0 %v2462
      %2718 = vmatpush.bf16.msra.mxu0 %v2444
      %2719 = vmatpush.bf16.msra.mxu0 %v2442
      %2720 = vmatpush.bf16.msra.mxu0 %v2424
      %2721 = vmatpush.bf16.msra.mxu0 %v2422
      %2722 = vmatmul.bf16.gmra.mxu0 %v2641
      %v2723 = vpop.f32.mrf.mxu0
      %v2724 = vadd.f32 %v2604, %v2723
      %v2725 = vpop.f32.mrf.mxu0
      %v2726 = vadd.f32 %v2609, %v2725
      %2727 = vmatmul.bf16.gmra.mxu0 %v2644
      %v2728 = vpop.f32.mrf.mxu0
      %v2729 = vadd.f32 %v2614, %v2728
      %v2730 = vpop.f32.mrf.mxu0
      %v2731 = vadd.f32 %v2619, %v2730
      %2732 = vdwg.mxu0
      %2733 = vmatpush.bf16.msra.mxu0 %v2564
      %2734 = vmatpush.bf16.msra.mxu0 %v2562
      %2735 = vmatpush.bf16.msra.mxu0 %v2544
      %2736 = vmatpush.bf16.msra.mxu0 %v2542
      %2737 = vmatpush.bf16.msra.mxu0 %v2524
      %2738 = vmatpush.bf16.msra.mxu0 %v2522
      %2739 = vmatpush.bf16.msra.mxu0 %v2504
      %2740 = vmatpush.bf16.msra.mxu0 %v2502
      %2741 = vmatmul.bf16.gmra.mxu0 %v2642
      %v2742 = vpop.f32.mrf.mxu0
      %v2743 = vadd.f32 %v2724, %v2742
      %v2744 = vpop.f32.mrf.mxu0
      %v2745 = vadd.f32 %v2726, %v2744
      %2746 = vmatmul.bf16.gmra.mxu0 %v2645
      %v2747 = vpop.f32.mrf.mxu0
      %v2748 = vadd.f32 %v2729, %v2747
      %v2749 = vpop.f32.mrf.mxu0
      %v2750 = vadd.f32 %v2731, %v2749
      %2751 = vdwg.mxu0
      %2752 = vmatpush.bf16.msra.mxu0 0
      %2753 = vmatpush.bf16.msra.mxu0 0
      %2754 = vmatpush.bf16.msra.mxu0 0
      %2755 = vmatpush.bf16.msra.mxu0 0
      %2756 = vmatpush.bf16.msra.mxu0 0
      %2757 = vmatpush.bf16.msra.mxu0 0
      %2758 = vmatpush.bf16.msra.mxu0 %v2584
      %2759 = vmatpush.bf16.msra.mxu0 %v2582
      %2760 = vmatmul.bf16.gmra.mxu0 %v2652
      %v2761 = vpop.f32.mrf.mxu0
      %v2762 = vadd.f32 %v2743, %v2761
      %v2763 = vpop.f32.mrf.mxu0
      %v2764 = vadd.f32 %v2745, %v2763
      %2765 = vmatmul.bf16.gmra.mxu0 %v2655
      %v2766 = vpop.f32.mrf.mxu0
      %v2767 = vadd.f32 %v2748, %v2766
      %v2768 = vpop.f32.mrf.mxu0
      %v2769 = vadd.f32 %v2750, %v2768
      %2770 = vdwg.mxu0
      %v2771 = vadd.f32 %v2705, %v1439
      %v2772 = vadd.f32 %v2762, %v1477
      %v2773 = vadd.f32 %v2707, %v1441
      %v2774 = vadd.f32 %v2764, %v1479
      %v2775 = vadd.f32 %v2710, %v1444
      %v2776 = vadd.f32 %v2767, %v1482
      %v2777 = vadd.f32 %v2712, %v1446
      %v2778 = vadd.f32 %v2769, %v1484
      %2779 = vst [vmem:[%s1069] sm:$0xff] %v2771
      %2780 = vst [vmem:[%s1069 + $0x8] sm:$0xff] %v2772
      %2781 = vst [vmem:[%s1069 + $0x10] sm:$0xff] %v2773
      %2782 = vst [vmem:[%s1069 + $0x18] sm:$0xff] %v2774
      %2783 = vst [vmem:[%s1069 + $0x20] sm:$0xff] %v2775
      %2784 = vst [vmem:[%s1069 + $0x28] sm:$0xff] %v2776
      %2785 = vst [vmem:[%s1069 + $0x30] sm:$0xff] %v2777
      %2786 = vst [vmem:[%s1069 + $0x38] sm:$0xff] %v2778
      %2787 = vrot.lane.b32.xlu0 %v2771, 17
      %v2788 = vpop.permute.xlu0 %2787
      %2789 = vrot.lane.b32.xlu0 %v2773, 17
      %v2790 = vpop.permute.xlu0 %2789
      %2791 = vrot.lane.b32.xlu0 %v2775, 17
      %v2792 = vpop.permute.xlu0 %2791
      %2793 = vrot.lane.b32.xlu0 %v2777, 17
      %v2794 = vpop.permute.xlu0 %2793
      %2795 = vrot.lane.b32.xlu0 %v2772, 17
      %v2796 = vpop.permute.xlu0 %2795
      %2797 = vrot.lane.b32.xlu0 %v2774, 17
      %v2798 = vpop.permute.xlu0 %2797
      %2799 = vrot.lane.b32.xlu0 %v2776, 17
      %v2800 = vpop.permute.xlu0 %2799
      %2801 = vrot.lane.b32.xlu0 %v2778, 17
      %v2802 = vpop.permute.xlu0 %2801
      %v2803 = vsel %vm1105, %v2788, %v2796
      %v2804 = vsel %vm1105, %v2790, %v2798
      %v2805 = vsel %vm1105, %v2792, %v2800
      %v2806 = vsel %vm1105, %v2794, %v2802
      %v2807 = vsel %vm1105, %v2796, %v2788
      %v2808 = vsel %vm1105, %v2798, %v2790
      %v2809 = vsel %vm1105, %v2800, %v2792
      %v2810 = vsel %vm1105, %v2802, %v2794
      %v2811 = vmul.f32 %v2807, %v1110
      %v2812 = vmul.f32 %v2803, %v1111
      %v2813 = vmul.f32 %v2808, %v1110
      %v2814 = vmul.f32 %v2804, %v1111
      %v2815 = vmul.f32 %v2809, %v1110
      %v2816 = vmul.f32 %v2805, %v1111
      %v2817 = vmul.f32 %v2810, %v1110
      %v2818 = vmul.f32 %v2806, %v1111
      %v2819 = vpack.c.bf16 %v2812, %v2811
      %v2820 = vpack.c.bf16 %v2814, %v2813
      %v2821 = vpack.c.bf16 %v2816, %v2815
      %v2822 = vpack.c.bf16 %v2818, %v2817
      %2823 = vrot.lane.b32.xlu0 %v2771, 16
      %v2824 = vpop.permute.xlu0 %2823
      %2825 = vrot.lane.b32.xlu0 %v2773, 16
      %v2826 = vpop.permute.xlu0 %2825
      %2827 = vrot.lane.b32.xlu0 %v2775, 16
      %v2828 = vpop.permute.xlu0 %2827
      %2829 = vrot.lane.b32.xlu0 %v2777, 16
      %v2830 = vpop.permute.xlu0 %2829
      %2831 = vrot.lane.b32.xlu0 %v2772, 16
      %v2832 = vpop.permute.xlu0 %2831
      %2833 = vrot.lane.b32.xlu0 %v2774, 16
      %v2834 = vpop.permute.xlu0 %2833
      %2835 = vrot.lane.b32.xlu0 %v2776, 16
      %v2836 = vpop.permute.xlu0 %2835
      %2837 = vrot.lane.b32.xlu0 %v2778, 16
      %v2838 = vpop.permute.xlu0 %2837
      %v2839 = vsel %vm1126, %v2824, %v2832
      %v2840 = vsel %vm1126, %v2826, %v2834
      %v2841 = vsel %vm1126, %v2828, %v2836
      %v2842 = vsel %vm1126, %v2830, %v2838
      %v2843 = vsel %vm1126, %v2832, %v2824
      %v2844 = vsel %vm1126, %v2834, %v2826
      %v2845 = vsel %vm1126, %v2836, %v2828
      %v2846 = vsel %vm1126, %v2838, %v2830
      %v2847 = vmul.f32 %v2843, %v1131
      %v2848 = vmul.f32 %v2839, %v1132
      %v2849 = vmul.f32 %v2844, %v1131
      %v2850 = vmul.f32 %v2840, %v1132
      %v2851 = vmul.f32 %v2845, %v1131
      %v2852 = vmul.f32 %v2841, %v1132
      %v2853 = vmul.f32 %v2846, %v1131
      %v2854 = vmul.f32 %v2842, %v1132
      %v2855 = vpack.c.bf16 %v2848, %v2847
      %v2856 = vpack.c.bf16 %v2850, %v2849
      %v2857 = vpack.c.bf16 %v2852, %v2851
      %v2858 = vpack.c.bf16 %v2854, %v2853
      %2859 = vrot.lane.b32.xlu0 %v2771, 15
      %v2860 = vpop.permute.xlu0 %2859
      %2861 = vrot.lane.b32.xlu0 %v2773, 15
      %v2862 = vpop.permute.xlu0 %2861
      %2863 = vrot.lane.b32.xlu0 %v2775, 15
      %v2864 = vpop.permute.xlu0 %2863
      %2865 = vrot.lane.b32.xlu0 %v2777, 15
      %v2866 = vpop.permute.xlu0 %2865
      %2867 = vrot.lane.b32.xlu0 %v2772, 15
      %v2868 = vpop.permute.xlu0 %2867
      %2869 = vrot.lane.b32.xlu0 %v2774, 15
      %v2870 = vpop.permute.xlu0 %2869
      %2871 = vrot.lane.b32.xlu0 %v2776, 15
      %v2872 = vpop.permute.xlu0 %2871
      %2873 = vrot.lane.b32.xlu0 %v2778, 15
      %v2874 = vpop.permute.xlu0 %2873
      %v2875 = vsel %vm1147, %v2860, %v2868
      %v2876 = vsel %vm1147, %v2862, %v2870
      %v2877 = vsel %vm1147, %v2864, %v2872
      %v2878 = vsel %vm1147, %v2866, %v2874
      %v2879 = vsel %vm1147, %v2868, %v2860
      %v2880 = vsel %vm1147, %v2870, %v2862
      %v2881 = vsel %vm1147, %v2872, %v2864
      %v2882 = vsel %vm1147, %v2874, %v2866
      %v2883 = vmul.f32 %v2879, %v1152
      %v2884 = vmul.f32 %v2875, %v1153
      %v2885 = vmul.f32 %v2880, %v1152
      %v2886 = vmul.f32 %v2876, %v1153
      %v2887 = vmul.f32 %v2881, %v1152
      %v2888 = vmul.f32 %v2877, %v1153
      %v2889 = vmul.f32 %v2882, %v1152
      %v2890 = vmul.f32 %v2878, %v1153
      %v2891 = vpack.c.bf16 %v2884, %v2883
      %v2892 = vpack.c.bf16 %v2886, %v2885
      %v2893 = vpack.c.bf16 %v2888, %v2887
      %v2894 = vpack.c.bf16 %v2890, %v2889
      %2895 = vrot.lane.b32.xlu0 %v2771, 1
      %v2896 = vpop.permute.xlu0 %2895
      %2897 = vrot.lane.b32.xlu0 %v2773, 1
      %v2898 = vpop.permute.xlu0 %2897
      %2899 = vrot.lane.b32.xlu0 %v2775, 1
      %v2900 = vpop.permute.xlu0 %2899
      %2901 = vrot.lane.b32.xlu0 %v2777, 1
      %v2902 = vpop.permute.xlu0 %2901
      %2903 = vrot.lane.b32.xlu0 %v2772, 1
      %v2904 = vpop.permute.xlu0 %2903
      %2905 = vrot.lane.b32.xlu0 %v2774, 1
      %v2906 = vpop.permute.xlu0 %2905
      %2907 = vrot.lane.b32.xlu0 %v2776, 1
      %v2908 = vpop.permute.xlu0 %2907
      %2909 = vrot.lane.b32.xlu0 %v2778, 1
      %v2910 = vpop.permute.xlu0 %2909
      %v2911 = vsel %vm1168, %v2896, %v2904
      %v2912 = vsel %vm1168, %v2898, %v2906
      %v2913 = vsel %vm1168, %v2900, %v2908
      %v2914 = vsel %vm1168, %v2902, %v2910
      %v2915 = vsel %vm1168, %v2904, %v2896
      %v2916 = vsel %vm1168, %v2906, %v2898
      %v2917 = vsel %vm1168, %v2908, %v2900
      %v2918 = vsel %vm1168, %v2910, %v2902
      %v2919 = vmul.f32 %v2915, %v1173
      %v2920 = vmul.f32 %v2911, %v1174
      %v2921 = vmul.f32 %v2916, %v1173
      %v2922 = vmul.f32 %v2912, %v1174
      %v2923 = vmul.f32 %v2917, %v1173
      %v2924 = vmul.f32 %v2913, %v1174
      %v2925 = vmul.f32 %v2918, %v1173
      %v2926 = vmul.f32 %v2914, %v1174
      %v2927 = vpack.c.bf16 %v2920, %v2919
      %v2928 = vpack.c.bf16 %v2922, %v2921
      %v2929 = vpack.c.bf16 %v2924, %v2923
      %v2930 = vpack.c.bf16 %v2926, %v2925
      %v2931 = vpack.c.bf16 %v2772, %v2771
      %v2932 = vpack.c.bf16 %v2774, %v2773
      %v2933 = vpack.c.bf16 %v2776, %v2775
      %v2934 = vpack.c.bf16 %v2778, %v2777
      %2935 = vrot.lane.b32.xlu0 %v2771, 127
      %v2936 = vpop.permute.xlu0 %2935
      %2937 = vrot.lane.b32.xlu0 %v2773, 127
      %v2938 = vpop.permute.xlu0 %2937
      %2939 = vrot.lane.b32.xlu0 %v2775, 127
      %v2940 = vpop.permute.xlu0 %2939
      %2941 = vrot.lane.b32.xlu0 %v2777, 127
      %v2942 = vpop.permute.xlu0 %2941
      %2943 = vrot.lane.b32.xlu0 %v2772, 127
      %v2944 = vpop.permute.xlu0 %2943
      %2945 = vrot.lane.b32.xlu0 %v2774, 127
      %v2946 = vpop.permute.xlu0 %2945
      %2947 = vrot.lane.b32.xlu0 %v2776, 127
      %v2948 = vpop.permute.xlu0 %2947
      %2949 = vrot.lane.b32.xlu0 %v2778, 127
      %v2950 = vpop.permute.xlu0 %2949
      %v2951 = vsel %vm1191, %v2936, %v2944
      %v2952 = vsel %vm1191, %v2938, %v2946
      %v2953 = vsel %vm1191, %v2940, %v2948
      %v2954 = vsel %vm1191, %v2942, %v2950
      %v2955 = vsel %vm1191, %v2944, %v2936
      %v2956 = vsel %vm1191, %v2946, %v2938
      %v2957 = vsel %vm1191, %v2948, %v2940
      %v2958 = vsel %vm1191, %v2950, %v2942
      %v2959 = vmul.f32 %v2951, %v1196
      %v2960 = vmul.f32 %v2955, %v1197
      %v2961 = vmul.f32 %v2952, %v1196
      %v2962 = vmul.f32 %v2956, %v1197
      %v2963 = vmul.f32 %v2953, %v1196
      %v2964 = vmul.f32 %v2957, %v1197
      %v2965 = vmul.f32 %v2954, %v1196
      %v2966 = vmul.f32 %v2958, %v1197
      %v2967 = vpack.c.bf16 %v2960, %v2959
      %v2968 = vpack.c.bf16 %v2962, %v2961
      %v2969 = vpack.c.bf16 %v2964, %v2963
      %v2970 = vpack.c.bf16 %v2966, %v2965
      %2971 = vrot.lane.b32.xlu0 %v2771, 113
      %v2972 = vpop.permute.xlu0 %2971
      %2973 = vrot.lane.b32.xlu0 %v2773, 113
      %v2974 = vpop.permute.xlu0 %2973
      %2975 = vrot.lane.b32.xlu0 %v2775, 113
      %v2976 = vpop.permute.xlu0 %2975
      %2977 = vrot.lane.b32.xlu0 %v2777, 113
      %v2978 = vpop.permute.xlu0 %2977
      %2979 = vrot.lane.b32.xlu0 %v2772, 113
      %v2980 = vpop.permute.xlu0 %2979
      %2981 = vrot.lane.b32.xlu0 %v2774, 113
      %v2982 = vpop.permute.xlu0 %2981
      %2983 = vrot.lane.b32.xlu0 %v2776, 113
      %v2984 = vpop.permute.xlu0 %2983
      %2985 = vrot.lane.b32.xlu0 %v2778, 113
      %v2986 = vpop.permute.xlu0 %2985
      %v2987 = vsel %vm1212, %v2972, %v2980
      %v2988 = vsel %vm1212, %v2974, %v2982
      %v2989 = vsel %vm1212, %v2976, %v2984
      %v2990 = vsel %vm1212, %v2978, %v2986
      %v2991 = vsel %vm1212, %v2980, %v2972
      %v2992 = vsel %vm1212, %v2982, %v2974
      %v2993 = vsel %vm1212, %v2984, %v2976
      %v2994 = vsel %vm1212, %v2986, %v2978
      %v2995 = vmul.f32 %v2987, %v1217
      %v2996 = vmul.f32 %v2991, %v1218
      %v2997 = vmul.f32 %v2988, %v1217
      %v2998 = vmul.f32 %v2992, %v1218
      %v2999 = vmul.f32 %v2989, %v1217
      %v3000 = vmul.f32 %v2993, %v1218
      %v3001 = vmul.f32 %v2990, %v1217
      %v3002 = vmul.f32 %v2994, %v1218
      %v3003 = vpack.c.bf16 %v2996, %v2995
      %v3004 = vpack.c.bf16 %v2998, %v2997
      %v3005 = vpack.c.bf16 %v3000, %v2999
      %v3006 = vpack.c.bf16 %v3002, %v3001
      %3007 = vrot.lane.b32.xlu0 %v2771, 112
      %v3008 = vpop.permute.xlu0 %3007
      %3009 = vrot.lane.b32.xlu0 %v2773, 112
      %v3010 = vpop.permute.xlu0 %3009
      %3011 = vrot.lane.b32.xlu0 %v2775, 112
      %v3012 = vpop.permute.xlu0 %3011
      %3013 = vrot.lane.b32.xlu0 %v2777, 112
      %v3014 = vpop.permute.xlu0 %3013
      %3015 = vrot.lane.b32.xlu0 %v2772, 112
      %v3016 = vpop.permute.xlu0 %3015
      %3017 = vrot.lane.b32.xlu0 %v2774, 112
      %v3018 = vpop.permute.xlu0 %3017
      %3019 = vrot.lane.b32.xlu0 %v2776, 112
      %v3020 = vpop.permute.xlu0 %3019
      %3021 = vrot.lane.b32.xlu0 %v2778, 112
      %v3022 = vpop.permute.xlu0 %3021
      %v3023 = vsel %vm1233, %v3008, %v3016
      %v3024 = vsel %vm1233, %v3010, %v3018
      %v3025 = vsel %vm1233, %v3012, %v3020
      %v3026 = vsel %vm1233, %v3014, %v3022
      %v3027 = vsel %vm1233, %v3016, %v3008
      %v3028 = vsel %vm1233, %v3018, %v3010
      %v3029 = vsel %vm1233, %v3020, %v3012
      %v3030 = vsel %vm1233, %v3022, %v3014
      %v3031 = vmul.f32 %v3023, %v1238
      %v3032 = vmul.f32 %v3027, %v1239
      %v3033 = vmul.f32 %v3024, %v1238
      %v3034 = vmul.f32 %v3028, %v1239
      %v3035 = vmul.f32 %v3025, %v1238
      %v3036 = vmul.f32 %v3029, %v1239
      %v3037 = vmul.f32 %v3026, %v1238
      %v3038 = vmul.f32 %v3030, %v1239
      %v3039 = vpack.c.bf16 %v3032, %v3031
      %v3040 = vpack.c.bf16 %v3034, %v3033
      %v3041 = vpack.c.bf16 %v3036, %v3035
      %v3042 = vpack.c.bf16 %v3038, %v3037
      %3043 = vrot.lane.b32.xlu0 %v2771, 111
      %v3044 = vpop.permute.xlu0 %3043
      %3045 = vrot.lane.b32.xlu0 %v2773, 111
      %v3046 = vpop.permute.xlu0 %3045
      %3047 = vrot.lane.b32.xlu0 %v2775, 111
      %v3048 = vpop.permute.xlu0 %3047
      %3049 = vrot.lane.b32.xlu0 %v2777, 111
      %v3050 = vpop.permute.xlu0 %3049
      %3051 = vrot.lane.b32.xlu0 %v2772, 111
      %v3052 = vpop.permute.xlu0 %3051
      %3053 = vrot.lane.b32.xlu0 %v2774, 111
      %v3054 = vpop.permute.xlu0 %3053
      %3055 = vrot.lane.b32.xlu0 %v2776, 111
      %v3056 = vpop.permute.xlu0 %3055
      %3057 = vrot.lane.b32.xlu0 %v2778, 111
      %v3058 = vpop.permute.xlu0 %3057
      %v3059 = vsel %vm1254, %v3044, %v3052
      %v3060 = vsel %vm1254, %v3046, %v3054
      %v3061 = vsel %vm1254, %v3048, %v3056
      %v3062 = vsel %vm1254, %v3050, %v3058
      %v3063 = vsel %vm1254, %v3052, %v3044
      %v3064 = vsel %vm1254, %v3054, %v3046
      %v3065 = vsel %vm1254, %v3056, %v3048
      %v3066 = vsel %vm1254, %v3058, %v3050
      %v3067 = vmul.f32 %v3059, %v1259
      %v3068 = vmul.f32 %v3063, %v1260
      %v3069 = vmul.f32 %v3060, %v1259
      %v3070 = vmul.f32 %v3064, %v1260
      %v3071 = vmul.f32 %v3061, %v1259
      %v3072 = vmul.f32 %v3065, %v1260
      %v3073 = vmul.f32 %v3062, %v1259
      %v3074 = vmul.f32 %v3066, %v1260
      %v3075 = vpack.c.bf16 %v3068, %v3067
      %v3076 = vpack.c.bf16 %v3070, %v3069
      %v3077 = vpack.c.bf16 %v3072, %v3071
      %v3078 = vpack.c.bf16 %v3074, %v3073
      %v3083 = vunpack.c.l.b16 %v2819
      %v3084 = vunpack.c.h.b16 %v2819
      %v3085 = vunpack.c.l.b16 %v2820
      %v3086 = vunpack.c.h.b16 %v2820
      %v3087 = vunpack.c.l.b16 %v2821
      %v3088 = vunpack.c.h.b16 %v2821
      %v3089 = vunpack.c.l.b16 %v2822
      %v3090 = vunpack.c.h.b16 %v2822
      %v3091 = vpack.c.b16 %v3085, %v3083
      %v3092 = vpack.c.b16 %v3086, %v3084
      %v3093 = vpack.c.b16 %v3089, %v3087
      %v3094 = vpack.c.b16 %v3090, %v3088
      %v3103 = vunpack.c.l.b16 %v2855
      %v3104 = vunpack.c.h.b16 %v2855
      %v3105 = vunpack.c.l.b16 %v2856
      %v3106 = vunpack.c.h.b16 %v2856
      %v3107 = vunpack.c.l.b16 %v2857
      %v3108 = vunpack.c.h.b16 %v2857
      %v3109 = vunpack.c.l.b16 %v2858
      %v3110 = vunpack.c.h.b16 %v2858
      %v3111 = vpack.c.b16 %v3105, %v3103
      %v3112 = vpack.c.b16 %v3106, %v3104
      %v3113 = vpack.c.b16 %v3109, %v3107
      %v3114 = vpack.c.b16 %v3110, %v3108
      %v3123 = vunpack.c.l.b16 %v2891
      %v3124 = vunpack.c.h.b16 %v2891
      %v3125 = vunpack.c.l.b16 %v2892
      %v3126 = vunpack.c.h.b16 %v2892
      %v3127 = vunpack.c.l.b16 %v2893
      %v3128 = vunpack.c.h.b16 %v2893
      %v3129 = vunpack.c.l.b16 %v2894
      %v3130 = vunpack.c.h.b16 %v2894
      %v3131 = vpack.c.b16 %v3125, %v3123
      %v3132 = vpack.c.b16 %v3126, %v3124
      %v3133 = vpack.c.b16 %v3129, %v3127
      %v3134 = vpack.c.b16 %v3130, %v3128
      %v3143 = vunpack.c.l.b16 %v2927
      %v3144 = vunpack.c.h.b16 %v2927
      %v3145 = vunpack.c.l.b16 %v2928
      %v3146 = vunpack.c.h.b16 %v2928
      %v3147 = vunpack.c.l.b16 %v2929
      %v3148 = vunpack.c.h.b16 %v2929
      %v3149 = vunpack.c.l.b16 %v2930
      %v3150 = vunpack.c.h.b16 %v2930
      %v3151 = vpack.c.b16 %v3145, %v3143
      %v3152 = vpack.c.b16 %v3146, %v3144
      %v3153 = vpack.c.b16 %v3149, %v3147
      %v3154 = vpack.c.b16 %v3150, %v3148
      %v3163 = vunpack.c.l.b16 %v2931
      %v3164 = vunpack.c.h.b16 %v2931
      %v3165 = vunpack.c.l.b16 %v2932
      %v3166 = vunpack.c.h.b16 %v2932
      %v3167 = vunpack.c.l.b16 %v2933
      %v3168 = vunpack.c.h.b16 %v2933
      %v3169 = vunpack.c.l.b16 %v2934
      %v3170 = vunpack.c.h.b16 %v2934
      %v3171 = vpack.c.b16 %v3165, %v3163
      %v3172 = vpack.c.b16 %v3166, %v3164
      %v3173 = vpack.c.b16 %v3169, %v3167
      %v3174 = vpack.c.b16 %v3170, %v3168
      %v3183 = vunpack.c.l.b16 %v2967
      %v3184 = vunpack.c.h.b16 %v2967
      %v3185 = vunpack.c.l.b16 %v2968
      %v3186 = vunpack.c.h.b16 %v2968
      %v3187 = vunpack.c.l.b16 %v2969
      %v3188 = vunpack.c.h.b16 %v2969
      %v3189 = vunpack.c.l.b16 %v2970
      %v3190 = vunpack.c.h.b16 %v2970
      %v3191 = vpack.c.b16 %v3185, %v3183
      %v3192 = vpack.c.b16 %v3186, %v3184
      %v3193 = vpack.c.b16 %v3189, %v3187
      %v3194 = vpack.c.b16 %v3190, %v3188
      %v3203 = vunpack.c.l.b16 %v3003
      %v3204 = vunpack.c.h.b16 %v3003
      %v3205 = vunpack.c.l.b16 %v3004
      %v3206 = vunpack.c.h.b16 %v3004
      %v3207 = vunpack.c.l.b16 %v3005
      %v3208 = vunpack.c.h.b16 %v3005
      %v3209 = vunpack.c.l.b16 %v3006
      %v3210 = vunpack.c.h.b16 %v3006
      %v3211 = vpack.c.b16 %v3205, %v3203
      %v3212 = vpack.c.b16 %v3206, %v3204
      %v3213 = vpack.c.b16 %v3209, %v3207
      %v3214 = vpack.c.b16 %v3210, %v3208
      %v3223 = vunpack.c.l.b16 %v3039
      %v3224 = vunpack.c.h.b16 %v3039
      %v3225 = vunpack.c.l.b16 %v3040
      %v3226 = vunpack.c.h.b16 %v3040
      %v3227 = vunpack.c.l.b16 %v3041
      %v3228 = vunpack.c.h.b16 %v3041
      %v3229 = vunpack.c.l.b16 %v3042
      %v3230 = vunpack.c.h.b16 %v3042
      %v3231 = vpack.c.b16 %v3225, %v3223
      %v3232 = vpack.c.b16 %v3226, %v3224
      %v3233 = vpack.c.b16 %v3229, %v3227
      %v3234 = vpack.c.b16 %v3230, %v3228
      %v3243 = vunpack.c.l.b16 %v3075
      %v3244 = vunpack.c.h.b16 %v3075
      %v3245 = vunpack.c.l.b16 %v3076
      %v3246 = vunpack.c.h.b16 %v3076
      %v3247 = vunpack.c.l.b16 %v3077
      %v3248 = vunpack.c.h.b16 %v3077
      %v3249 = vunpack.c.l.b16 %v3078
      %v3250 = vunpack.c.h.b16 %v3078
      %v3251 = vpack.c.b16 %v3245, %v3243
      %v3252 = vpack.c.b16 %v3246, %v3244
      %v3253 = vpack.c.b16 %v3249, %v3247
      %v3254 = vpack.c.b16 %v3250, %v3248
      %v3259 = vld [vmem:[%s31] sm:$0xff]
      %v3260 = vld [vmem:[%s31 + $0x8] sm:$0xf]
      %v3261 = vld [vmem:[%s31 + $0xc] sm:$0xff]
      %v3262 = vld [vmem:[%s31 + $0x14] sm:$0xf]
      %v3263 = vld [vmem:[%s31 + $0x18] sm:$0xff]
      %v3264 = vld [vmem:[%s31 + $0x20] sm:$0xf]
      %v3265 = vld [vmem:[%s31 + $0x24] sm:$0xff]
      %v3266 = vld [vmem:[%s31 + $0x2c] sm:$0xf]
      %v3267 = vld [vmem:[%s33] sm:$0xff]
      %v3268 = vld [vmem:[%s33 + $0x8] sm:$0xff]
      %v3269 = vld [vmem:[%s33 + $0x10] sm:$0xff]
      %v3270 = vld [vmem:[%s33 + $0x18] sm:$0xff]
      %3272 = vset.pattern.permute.xlu0 0
      %3273 = vperm.xlu0 %3272, %v3267
      %v3274 = vpop.permute.xlu0 %3273
      %3277 = vset.pattern.permute.xlu0 0
      %3278 = vperm.xlu0 %3277, %v3268
      %v3279 = vpop.permute.xlu0 %3278
      %3282 = vset.pattern.permute.xlu0 0
      %3283 = vperm.xlu0 %3282, %v3269
      %v3284 = vpop.permute.xlu0 %3283
      %3287 = vset.pattern.permute.xlu0 0
      %3288 = vperm.xlu0 %3287, %v3270
      %v3289 = vpop.permute.xlu0 %3288
      %v3299 = vunpack.c.l.b16 %v3259
      %v3300 = vunpack.c.h.b16 %v3259
      %v3301 = vunpack.c.l.b16 %v3260
      %v3302 = vunpack.c.l.b16 %v3261
      %v3303 = vunpack.c.h.b16 %v3261
      %v3304 = vunpack.c.l.b16 %v3262
      %v3305 = vunpack.c.l.b16 %v3263
      %v3306 = vunpack.c.h.b16 %v3263
      %v3307 = vunpack.c.l.b16 %v3264
      %v3308 = vunpack.c.l.b16 %v3265
      %v3309 = vunpack.c.h.b16 %v3265
      %v3310 = vunpack.c.l.b16 %v3266
      %v3311 = vpack.c.b16 %v3302, %v3299
      %v3312 = vpack.c.b16 %v3303, %v3300
      %v3313 = vpack.c.b16 %v3304, %v3301
      %v3314 = vpack.c.b16 %v3308, %v3305
      %v3315 = vpack.c.b16 %v3309, %v3306
      %v3316 = vpack.c.b16 %v3310, %v3307
      %v3322 = vsel %vm1651, %v3313, 0
      %v3325 = vsel %vm1651, %v3316, 0
      %3327 = vmatpush.bf16.msra.mxu0 %v3153
      %3328 = vmatpush.bf16.msra.mxu0 %v3151
      %3329 = vmatpush.bf16.msra.mxu0 %v3133
      %3330 = vmatpush.bf16.msra.mxu0 %v3131
      %3331 = vmatpush.bf16.msra.mxu0 %v3113
      %3332 = vmatpush.bf16.msra.mxu0 %v3111
      %3333 = vmatpush.bf16.msra.mxu0 %v3093
      %3334 = vmatpush.bf16.msra.mxu0 %v3091
      %3335 = vmatmul.bf16.gmra.mxu0 %v3311
      %v3336 = vpop.f32.mrf.mxu0
      %v3337 = vadd.f32 %v3274, %v3336
      %v3338 = vpop.f32.mrf.mxu0
      %v3339 = vadd.f32 %v3279, %v3338
      %3340 = vmatmul.bf16.gmra.mxu0 %v3314
      %v3341 = vpop.f32.mrf.mxu0
      %v3342 = vadd.f32 %v3284, %v3341
      %v3343 = vpop.f32.mrf.mxu0
      %v3344 = vadd.f32 %v3289, %v3343
      %3345 = vdwg.mxu0
      %3346 = vmatpush.bf16.msra.mxu0 %v3233
      %3347 = vmatpush.bf16.msra.mxu0 %v3231
      %3348 = vmatpush.bf16.msra.mxu0 %v3213
      %3349 = vmatpush.bf16.msra.mxu0 %v3211
      %3350 = vmatpush.bf16.msra.mxu0 %v3193
      %3351 = vmatpush.bf16.msra.mxu0 %v3191
      %3352 = vmatpush.bf16.msra.mxu0 %v3173
      %3353 = vmatpush.bf16.msra.mxu0 %v3171
      %3354 = vmatmul.bf16.gmra.mxu0 %v3312
      %v3355 = vpop.f32.mrf.mxu0
      %v3356 = vadd.f32 %v3337, %v3355
      %v3357 = vpop.f32.mrf.mxu0
      %v3358 = vadd.f32 %v3339, %v3357
      %3359 = vmatmul.bf16.gmra.mxu0 %v3315
      %v3360 = vpop.f32.mrf.mxu0
      %v3361 = vadd.f32 %v3342, %v3360
      %v3362 = vpop.f32.mrf.mxu0
      %v3363 = vadd.f32 %v3344, %v3362
      %3364 = vdwg.mxu0
      %3365 = vmatpush.bf16.msra.mxu0 0
      %3366 = vmatpush.bf16.msra.mxu0 0
      %3367 = vmatpush.bf16.msra.mxu0 0
      %3368 = vmatpush.bf16.msra.mxu0 0
      %3369 = vmatpush.bf16.msra.mxu0 0
      %3370 = vmatpush.bf16.msra.mxu0 0
      %3371 = vmatpush.bf16.msra.mxu0 %v3253
      %3372 = vmatpush.bf16.msra.mxu0 %v3251
      %3373 = vmatmul.bf16.gmra.mxu0 %v3322
      %v3374 = vpop.f32.mrf.mxu0
      %v3375 = vadd.f32 %v3356, %v3374
      %v3376 = vpop.f32.mrf.mxu0
      %v3377 = vadd.f32 %v3358, %v3376
      %3378 = vmatmul.bf16.gmra.mxu0 %v3325
      %v3379 = vpop.f32.mrf.mxu0
      %v3380 = vadd.f32 %v3361, %v3379
      %v3381 = vpop.f32.mrf.mxu0
      %v3382 = vadd.f32 %v3363, %v3381
      %3383 = vdwg.mxu0
      %3384 = vmatpush.bf16.msra.mxu0 %v3154
      %3385 = vmatpush.bf16.msra.mxu0 %v3152
      %3386 = vmatpush.bf16.msra.mxu0 %v3134
      %3387 = vmatpush.bf16.msra.mxu0 %v3132
      %3388 = vmatpush.bf16.msra.mxu0 %v3114
      %3389 = vmatpush.bf16.msra.mxu0 %v3112
      %3390 = vmatpush.bf16.msra.mxu0 %v3094
      %3391 = vmatpush.bf16.msra.mxu0 %v3092
      %3392 = vmatmul.bf16.gmra.mxu0 %v3311
      %v3393 = vpop.f32.mrf.mxu0
      %v3394 = vadd.f32 %v3274, %v3393
      %v3395 = vpop.f32.mrf.mxu0
      %v3396 = vadd.f32 %v3279, %v3395
      %3397 = vmatmul.bf16.gmra.mxu0 %v3314
      %v3398 = vpop.f32.mrf.mxu0
      %v3399 = vadd.f32 %v3284, %v3398
      %v3400 = vpop.f32.mrf.mxu0
      %v3401 = vadd.f32 %v3289, %v3400
      %3402 = vdwg.mxu0
      %3403 = vmatpush.bf16.msra.mxu0 %v3234
      %3404 = vmatpush.bf16.msra.mxu0 %v3232
      %3405 = vmatpush.bf16.msra.mxu0 %v3214
      %3406 = vmatpush.bf16.msra.mxu0 %v3212
      %3407 = vmatpush.bf16.msra.mxu0 %v3194
      %3408 = vmatpush.bf16.msra.mxu0 %v3192
      %3409 = vmatpush.bf16.msra.mxu0 %v3174
      %3410 = vmatpush.bf16.msra.mxu0 %v3172
      %3411 = vmatmul.bf16.gmra.mxu0 %v3312
      %v3412 = vpop.f32.mrf.mxu0
      %v3413 = vadd.f32 %v3394, %v3412
      %v3414 = vpop.f32.mrf.mxu0
      %v3415 = vadd.f32 %v3396, %v3414
      %3416 = vmatmul.bf16.gmra.mxu0 %v3315
      %v3417 = vpop.f32.mrf.mxu0
      %v3418 = vadd.f32 %v3399, %v3417
      %v3419 = vpop.f32.mrf.mxu0
      %v3420 = vadd.f32 %v3401, %v3419
      %3421 = vdwg.mxu0
      %3422 = vmatpush.bf16.msra.mxu0 0
      %3423 = vmatpush.bf16.msra.mxu0 0
      %3424 = vmatpush.bf16.msra.mxu0 0
      %3425 = vmatpush.bf16.msra.mxu0 0
      %3426 = vmatpush.bf16.msra.mxu0 0
      %3427 = vmatpush.bf16.msra.mxu0 0
      %3428 = vmatpush.bf16.msra.mxu0 %v3254
      %3429 = vmatpush.bf16.msra.mxu0 %v3252
      %3430 = vmatmul.bf16.gmra.mxu0 %v3322
      %v3431 = vpop.f32.mrf.mxu0
      %v3432 = vadd.f32 %v3413, %v3431
      %v3433 = vpop.f32.mrf.mxu0
      %v3434 = vadd.f32 %v3415, %v3433
      %3435 = vmatmul.bf16.gmra.mxu0 %v3325
      %v3436 = vpop.f32.mrf.mxu0
      %v3437 = vadd.f32 %v3418, %v3436
      %v3438 = vpop.f32.mrf.mxu0
      %v3439 = vadd.f32 %v3420, %v3438
      %3440 = vdwg.mxu0
      %v3441 = vadd.f32 %v3375, %v3432
      %3442 = vadd.xlane.f32.xlu0 %v3441
      %v3443 = vpop.xlane.xlu0 %3442
      %v3444 = vadd.f32 %v3377, %v3434
      %3445 = vadd.xlane.f32.xlu0 %v3444
      %v3446 = vpop.xlane.xlu0 %3445
      %v3447 = vadd.f32 %v3380, %v3437
      %3448 = vadd.xlane.f32.xlu0 %v3447
      %v3449 = vpop.xlane.xlu0 %3448
      %v3450 = vadd.f32 %v3382, %v3439
      %3451 = vadd.xlane.f32.xlu0 %v3450
      %v3452 = vpop.xlane.xlu0 %3451
      %v3453 = vmul.f32 %v3375, %v3375
      %v3454 = vmul.f32 %v3432, %v3432
      %v3455 = vmul.f32 %v3377, %v3377
      %v3456 = vmul.f32 %v3434, %v3434
      %v3457 = vmul.f32 %v3380, %v3380
      %v3458 = vmul.f32 %v3437, %v3437
      %v3459 = vmul.f32 %v3382, %v3382
      %v3460 = vmul.f32 %v3439, %v3439
      %v3461 = vadd.f32 %v3453, %v3454
      %3462 = vadd.xlane.f32.xlu0 %v3461
      %v3463 = vpop.xlane.xlu0 %3462
      %v3464 = vadd.f32 %v3455, %v3456
      %3465 = vadd.xlane.f32.xlu0 %v3464
      %v3466 = vpop.xlane.xlu0 %3465
      %v3467 = vadd.f32 %v3457, %v3458
      %3468 = vadd.xlane.f32.xlu0 %v3467
      %v3469 = vpop.xlane.xlu0 %3468
      %v3470 = vadd.f32 %v3459, %v3460
      %3471 = vadd.xlane.f32.xlu0 %v3470
      %v3472 = vpop.xlane.xlu0 %3471
      %v3473 = vsel %vm1646, %v3443, %v3463
      %v3474 = vsel %vm1646, %v3446, %v3466
      %v3475 = vsel %vm1646, %v3449, %v3469
      %v3476 = vsel %vm1646, %v3452, %v3472
      %3477 = vmatpush.msra.mxu0 0.0
      %3478 = vmatpush.msra.mxu0 0.0
      %3479 = vmatpush.msra.mxu0 0.0
      %3480 = vmatpush.msra.mxu0 0.0
      %3481 = vmatpush.msra.mxu0 0.0
      %3482 = vmatpush.msra.mxu0 0.0
      %3483 = vmatpush.msra.mxu0 0.0
      %3484 = vmatpush.msra.mxu0 0.0
      %3485 = vmatpush.msra.mxu0 0.0
      %3486 = vmatpush.msra.mxu0 0.0
      %3487 = vmatpush.msra.mxu0 0.0
      %3488 = vmatpush.msra.mxu0 0.0
      %3489 = vmatpush.msra.mxu0 %v3476
      %3490 = vmatpush.msra.mxu0 %v3475
      %3491 = vmatpush.msra.mxu0 %v3474
      %3492 = vmatpush.msra.mxu0 %v3473
      %3493 = vmatmul.f32.gmra.mxu0 %v1653
      %v3494 = vpop.f32.mrf.mxu0
      %v3495 = vadd.f32 0.0, %v3494
      %3496 = vmatmul.f32.gmra.mxu0 %v1656
      %v3497 = vpop.f32.mrf.mxu0
      %v3498 = vadd.f32 0.0, %v3497
      %3499 = vdwg.mxu0
      %3500 = vmatpush.msra.mxu0 0.0
      %3501 = vmatpush.msra.mxu0 0.0
      %3502 = vmatpush.msra.mxu0 0.0
      %3503 = vmatpush.msra.mxu0 0.0
      %3504 = vmatpush.msra.mxu0 0.0
      %3505 = vmatpush.msra.mxu0 0.0
      %3506 = vmatpush.msra.mxu0 0.0
      %3507 = vmatpush.msra.mxu0 0.0
      %3508 = vmatpush.msra.mxu0 0.0
      %3509 = vmatpush.msra.mxu0 0.0
      %3510 = vmatpush.msra.mxu0 0.0
      %3511 = vmatpush.msra.mxu0 0.0
      %3512 = vmatpush.msra.mxu0 0.0
      %3513 = vmatpush.msra.mxu0 0.0
      %3514 = vmatpush.msra.mxu0 %v3498
      %3515 = vmatpush.msra.mxu0 %v3495
      %3516 = vmatmul.f32.gmra.mxu0 %v1682
      %v3517 = vpop.f32.mrf.mxu0
      %v3518 = vadd.f32 0.0, %v3517
      %3519 = vmatmul.f32.gmra.mxu0 %v1685
      %v3520 = vpop.f32.mrf.mxu0
      %v3521 = vadd.f32 0.0, %v3520
      %3522 = vmatmul.f32.gmra.mxu0 %v1688
      %v3523 = vpop.f32.mrf.mxu0
      %v3524 = vadd.f32 0.0, %v3523
      %3525 = vmatmul.f32.gmra.mxu0 %v1691
      %v3526 = vpop.f32.mrf.mxu0
      %v3527 = vadd.f32 0.0, %v3526
      %3528 = vdwg.mxu0
      %v3529 = vmul.f32 %v3518, %v1728
      %v3530 = vmul.f32 %v3521, %v1728
      %v3531 = vmul.f32 %v3524, %v1728
      %v3532 = vmul.f32 %v3527, %v1728
      %v3533 = vmul.f32 %v3529, %v3529
      %v3534 = vmul.f32 %v3530, %v3530
      %v3535 = vmul.f32 %v3531, %v3531
      %v3536 = vmul.f32 %v3532, %v3532
      %3541 = vrot.lane.b32.xlu0 %v3533, 1
      %v3542 = vpop.permute.xlu0 %3541
      %3543 = vrot.lane.b32.xlu0 %v3534, 1
      %v3544 = vpop.permute.xlu0 %3543
      %3545 = vrot.lane.b32.xlu0 %v3535, 1
      %v3546 = vpop.permute.xlu0 %3545
      %3547 = vrot.lane.b32.xlu0 %v3536, 1
      %v3548 = vpop.permute.xlu0 %3547
      %v3553 = vsub.f32 %v3529, %v3542
      %v3554 = vsub.f32 %v3530, %v3544
      %v3555 = vsub.f32 %v3531, %v3546
      %v3556 = vsub.f32 %v3532, %v3548
      %v3557 = vmax.f32 %v3553, 0.0
      %v3558 = vmax.f32 %v3554, 0.0
      %v3559 = vmax.f32 %v3555, 0.0
      %v3560 = vmax.f32 %v3556, 0.0
      %v3561 = vadd.f32 %v3557, 1e-05
      %v3562 = vadd.f32 %v3558, 1e-05
      %v3563 = vadd.f32 %v3559, 1e-05
      %v3564 = vadd.f32 %v3560, 1e-05
      %v3565 = vrsqrt.pop %v3561
      %v3566 = vmul.f32 %v3565, %v3561
      %v3567 = vmul.f32 %v3566, %v3565
      %v3568 = vmul.f32 0.5, %v3567
      %v3569 = vsub.f32 1.5, %v3568
      %v3570 = vmul.f32 %v3565, %v3569
      %vm3571 = vweird.f32 %v3561
      %vm3572 = vweird.f32 %v3565
      %vm3573 = vmor %vm3571, %vm3572
      %v3574 = vsel %vm3573, %v3565, %v3570
      %v3575 = vrsqrt.pop %v3562
      %v3576 = vmul.f32 %v3575, %v3562
      %v3577 = vmul.f32 %v3576, %v3575
      %v3578 = vmul.f32 0.5, %v3577
      %v3579 = vsub.f32 1.5, %v3578
      %v3580 = vmul.f32 %v3575, %v3579
      %vm3581 = vweird.f32 %v3562
      %vm3582 = vweird.f32 %v3575
      %vm3583 = vmor %vm3581, %vm3582
      %v3584 = vsel %vm3583, %v3575, %v3580
      %v3585 = vrsqrt.pop %v3563
      %v3586 = vmul.f32 %v3585, %v3563
      %v3587 = vmul.f32 %v3586, %v3585
      %v3588 = vmul.f32 0.5, %v3587
      %v3589 = vsub.f32 1.5, %v3588
      %v3590 = vmul.f32 %v3585, %v3589
      %vm3591 = vweird.f32 %v3563
      %vm3592 = vweird.f32 %v3585
      %vm3593 = vmor %vm3591, %vm3592
      %v3594 = vsel %vm3593, %v3585, %v3590
      %v3595 = vrsqrt.pop %v3564
      %v3596 = vmul.f32 %v3595, %v3564
      %v3597 = vmul.f32 %v3596, %v3595
      %v3598 = vmul.f32 0.5, %v3597
      %v3599 = vsub.f32 1.5, %v3598
      %v3600 = vmul.f32 %v3595, %v3599
      %vm3601 = vweird.f32 %v3564
      %vm3602 = vweird.f32 %v3595
      %vm3603 = vmor %vm3601, %vm3602
      %v3604 = vsel %vm3603, %v3595, %v3600
      %3606 = vset.pattern.permute.xlu0 0
      %3607 = vperm.xlu0 %3606, %v3529
      %v3608 = vpop.permute.xlu0 %3607
      %3611 = vset.pattern.permute.xlu0 0
      %3612 = vperm.xlu0 %3611, %v3530
      %v3613 = vpop.permute.xlu0 %3612
      %3616 = vset.pattern.permute.xlu0 0
      %3617 = vperm.xlu0 %3616, %v3531
      %v3618 = vpop.permute.xlu0 %3617
      %3621 = vset.pattern.permute.xlu0 0
      %3622 = vperm.xlu0 %3621, %v3532
      %v3623 = vpop.permute.xlu0 %3622
      %v3625 = vsub.f32 %v3375, %v3608
      %v3626 = vsub.f32 %v3432, %v3608
      %v3627 = vsub.f32 %v3377, %v3613
      %v3628 = vsub.f32 %v3434, %v3613
      %v3629 = vsub.f32 %v3380, %v3618
      %v3630 = vsub.f32 %v3437, %v3618
      %v3631 = vsub.f32 %v3382, %v3623
      %v3632 = vsub.f32 %v3439, %v3623
      %3634 = vset.pattern.permute.xlu0 1
      %3635 = vperm.xlu0 %3634, %v3574
      %v3636 = vpop.permute.xlu0 %3635
      %3639 = vset.pattern.permute.xlu0 1
      %3640 = vperm.xlu0 %3639, %v3584
      %v3641 = vpop.permute.xlu0 %3640
      %3644 = vset.pattern.permute.xlu0 1
      %3645 = vperm.xlu0 %3644, %v3594
      %v3646 = vpop.permute.xlu0 %3645
      %3649 = vset.pattern.permute.xlu0 1
      %3650 = vperm.xlu0 %3649, %v3604
      %v3651 = vpop.permute.xlu0 %3650
      %v3653 = vmul.f32 %v3625, %v3636
      %v3654 = vmul.f32 %v3626, %v3636
      %v3655 = vmul.f32 %v3627, %v3641
      %v3656 = vmul.f32 %v3628, %v3641
      %v3657 = vmul.f32 %v3629, %v3646
      %v3658 = vmul.f32 %v3630, %v3646
      %v3659 = vmul.f32 %v3631, %v3651
      %v3660 = vmul.f32 %v3632, %v3651
      %v3661 = vld [vmem:[%s35] sm:$0xff]
      %v3662 = vld [vmem:[%s35 + $0x8] sm:$0xff]
      %v3663 = vld [vmem:[%s35 + $0x10] sm:$0xff]
      %v3664 = vld [vmem:[%s35 + $0x18] sm:$0xff]
      %3666 = vset.pattern.permute.xlu0 0
      %3667 = vperm.xlu0 %3666, %v3661
      %v3668 = vpop.permute.xlu0 %3667
      %3671 = vset.pattern.permute.xlu0 0
      %3672 = vperm.xlu0 %3671, %v3662
      %v3673 = vpop.permute.xlu0 %3672
      %3676 = vset.pattern.permute.xlu0 0
      %3677 = vperm.xlu0 %3676, %v3663
      %v3678 = vpop.permute.xlu0 %3677
      %3681 = vset.pattern.permute.xlu0 0
      %3682 = vperm.xlu0 %3681, %v3664
      %v3683 = vpop.permute.xlu0 %3682
      %v3685 = vmul.f32 %v3653, %v3668
      %v3686 = vmul.f32 %v3654, %v3668
      %v3687 = vmul.f32 %v3655, %v3673
      %v3688 = vmul.f32 %v3656, %v3673
      %v3689 = vmul.f32 %v3657, %v3678
      %v3690 = vmul.f32 %v3658, %v3678
      %v3691 = vmul.f32 %v3659, %v3683
      %v3692 = vmul.f32 %v3660, %v3683
      %v3693 = vld [vmem:[%s37] sm:$0xff]
      %v3694 = vld [vmem:[%s37 + $0x8] sm:$0xff]
      %v3695 = vld [vmem:[%s37 + $0x10] sm:$0xff]
      %v3696 = vld [vmem:[%s37 + $0x18] sm:$0xff]
      %3698 = vset.pattern.permute.xlu0 0
      %3699 = vperm.xlu0 %3698, %v3693
      %v3700 = vpop.permute.xlu0 %3699
      %3703 = vset.pattern.permute.xlu0 0
      %3704 = vperm.xlu0 %3703, %v3694
      %v3705 = vpop.permute.xlu0 %3704
      %3708 = vset.pattern.permute.xlu0 0
      %3709 = vperm.xlu0 %3708, %v3695
      %v3710 = vpop.permute.xlu0 %3709
      %3713 = vset.pattern.permute.xlu0 0
      %3714 = vperm.xlu0 %3713, %v3696
      %v3715 = vpop.permute.xlu0 %3714
      %v3717 = vadd.f32 %v3685, %v3700
      %v3718 = vadd.f32 %v3686, %v3700
      %v3719 = vadd.f32 %v3687, %v3705
      %v3720 = vadd.f32 %v3688, %v3705
      %v3721 = vadd.f32 %v3689, %v3710
      %v3722 = vadd.f32 %v3690, %v3710
      %v3723 = vadd.f32 %v3691, %v3715
      %v3724 = vadd.f32 %v3692, %v3715
      %v3725 = vld [vmem:[%s1064] sm:$0xff]
      %v3726 = vld [vmem:[%s1064 + $0x8] sm:$0xff]
      %v3727 = vld [vmem:[%s1064 + $0x10] sm:$0xff]
      %v3728 = vld [vmem:[%s1064 + $0x18] sm:$0xff]
      %3730 = vset.pattern.permute.xlu0 0
      %3731 = vperm.xlu0 %3730, %v3725
      %v3732 = vpop.permute.xlu0 %3731
      %3735 = vset.pattern.permute.xlu0 0
      %3736 = vperm.xlu0 %3735, %v3726
      %v3737 = vpop.permute.xlu0 %3736
      %3740 = vset.pattern.permute.xlu0 0
      %3741 = vperm.xlu0 %3740, %v3727
      %v3742 = vpop.permute.xlu0 %3741
      %3745 = vset.pattern.permute.xlu0 0
      %3746 = vperm.xlu0 %3745, %v3728
      %v3747 = vpop.permute.xlu0 %3746
      %v3749 = vadd.f32 %v3717, %v3732
      %v3750 = vadd.f32 %v3718, %v3732
      %v3751 = vadd.f32 %v3719, %v3737
      %v3752 = vadd.f32 %v3720, %v3737
      %v3753 = vadd.f32 %v3721, %v3742
      %v3754 = vadd.f32 %v3722, %v3742
      %v3755 = vadd.f32 %v3723, %v3747
      %v3756 = vadd.f32 %v3724, %v3747
      %v3757 = vxor.u32 %v3749, 2147483648
      %v3758 = vxor.u32 %v3750, 2147483648
      %v3759 = vxor.u32 %v3751, 2147483648
      %v3760 = vxor.u32 %v3752, 2147483648
      %v3761 = vxor.u32 %v3753, 2147483648
      %v3762 = vxor.u32 %v3754, 2147483648
      %v3763 = vxor.u32 %v3755, 2147483648
      %v3764 = vxor.u32 %v3756, 2147483648
      %v3765 = vmul.f32 %v3757, 1.442695
      %v3766 = vpow.pop %v3765
      %v3767 = vmul.f32 %v3758, 1.442695
      %v3768 = vpow.pop %v3767
      %v3769 = vmul.f32 %v3759, 1.442695
      %v3770 = vpow.pop %v3769
      %v3771 = vmul.f32 %v3760, 1.442695
      %v3772 = vpow.pop %v3771
      %v3773 = vmul.f32 %v3761, 1.442695
      %v3774 = vpow.pop %v3773
      %v3775 = vmul.f32 %v3762, 1.442695
      %v3776 = vpow.pop %v3775
      %v3777 = vmul.f32 %v3763, 1.442695
      %v3778 = vpow.pop %v3777
      %v3779 = vmul.f32 %v3764, 1.442695
      %v3780 = vpow.pop %v3779
      %v3781 = vadd.f32 %v3766, 1.0
      %v3782 = vadd.f32 %v3768, 1.0
      %v3783 = vadd.f32 %v3770, 1.0
      %v3784 = vadd.f32 %v3772, 1.0
      %v3785 = vadd.f32 %v3774, 1.0
      %v3786 = vadd.f32 %v3776, 1.0
      %v3787 = vadd.f32 %v3778, 1.0
      %v3788 = vadd.f32 %v3780, 1.0
      %v3789 = vrcp.pop %v3781
      %v3790 = vmul.f32 %v3781, %v3789
      %v3791 = vsub.f32 1.0, %v3790
      %v3792 = vmul.f32 %v3789, %v3791
      %v3793 = vadd.f32 %v3789, %v3792
      %vm3794 = vweird.f32 %v3781
      %vm3795 = vweird.f32 %v3789
      %vm3796 = vmor %vm3794, %vm3795
      %v3797 = vsel %vm3796, %v3789, %v3793
      %v3798 = vand.u32 2147483647, %v3781
      %vm3799 = vcmp.eq.f32.partialorder %v3798, 8.507059e+37
      %v3800 = vand.u32 %v3781, 2147483648
      %v3801 = vor.u32 1.1754944e-38, %v3800
      %v3802 = vsel %vm3799, %v3801, %v3797
      %v3803 = vmul.f32 1.0, %v3802
      %v3804 = vrcp.pop %v3782
      %v3805 = vmul.f32 %v3782, %v3804
      %v3806 = vsub.f32 1.0, %v3805
      %v3807 = vmul.f32 %v3804, %v3806
      %v3808 = vadd.f32 %v3804, %v3807
      %vm3809 = vweird.f32 %v3782
      %vm3810 = vweird.f32 %v3804
      %vm3811 = vmor %vm3809, %vm3810
      %v3812 = vsel %vm3811, %v3804, %v3808
      %v3813 = vand.u32 2147483647, %v3782
      %vm3814 = vcmp.eq.f32.partialorder %v3813, 8.507059e+37
      %v3815 = vand.u32 %v3782, 2147483648
      %v3816 = vor.u32 1.1754944e-38, %v3815
      %v3817 = vsel %vm3814, %v3816, %v3812
      %v3818 = vmul.f32 1.0, %v3817
      %v3819 = vrcp.pop %v3783
      %v3820 = vmul.f32 %v3783, %v3819
      %v3821 = vsub.f32 1.0, %v3820
      %v3822 = vmul.f32 %v3819, %v3821
      %v3823 = vadd.f32 %v3819, %v3822
      %vm3824 = vweird.f32 %v3783
      %vm3825 = vweird.f32 %v3819
      %vm3826 = vmor %vm3824, %vm3825
      %v3827 = vsel %vm3826, %v3819, %v3823
      %v3828 = vand.u32 2147483647, %v3783
      %vm3829 = vcmp.eq.f32.partialorder %v3828, 8.507059e+37
      %v3830 = vand.u32 %v3783, 2147483648
      %v3831 = vor.u32 1.1754944e-38, %v3830
      %v3832 = vsel %vm3829, %v3831, %v3827
      %v3833 = vmul.f32 1.0, %v3832
      %v3834 = vrcp.pop %v3784
      %v3835 = vmul.f32 %v3784, %v3834
      %v3836 = vsub.f32 1.0, %v3835
      %v3837 = vmul.f32 %v3834, %v3836
      %v3838 = vadd.f32 %v3834, %v3837
      %vm3839 = vweird.f32 %v3784
      %vm3840 = vweird.f32 %v3834
      %vm3841 = vmor %vm3839, %vm3840
      %v3842 = vsel %vm3841, %v3834, %v3838
      %v3843 = vand.u32 2147483647, %v3784
      %vm3844 = vcmp.eq.f32.partialorder %v3843, 8.507059e+37
      %v3845 = vand.u32 %v3784, 2147483648
      %v3846 = vor.u32 1.1754944e-38, %v3845
      %v3847 = vsel %vm3844, %v3846, %v3842
      %v3848 = vmul.f32 1.0, %v3847
      %v3849 = vrcp.pop %v3785
      %v3850 = vmul.f32 %v3785, %v3849
      %v3851 = vsub.f32 1.0, %v3850
      %v3852 = vmul.f32 %v3849, %v3851
      %v3853 = vadd.f32 %v3849, %v3852
      %vm3854 = vweird.f32 %v3785
      %vm3855 = vweird.f32 %v3849
      %vm3856 = vmor %vm3854, %vm3855
      %v3857 = vsel %vm3856, %v3849, %v3853
      %v3858 = vand.u32 2147483647, %v3785
      %vm3859 = vcmp.eq.f32.partialorder %v3858, 8.507059e+37
      %v3860 = vand.u32 %v3785, 2147483648
      %v3861 = vor.u32 1.1754944e-38, %v3860
      %v3862 = vsel %vm3859, %v3861, %v3857
      %v3863 = vmul.f32 1.0, %v3862
      %v3864 = vrcp.pop %v3786
      %v3865 = vmul.f32 %v3786, %v3864
      %v3866 = vsub.f32 1.0, %v3865
      %v3867 = vmul.f32 %v3864, %v3866
      %v3868 = vadd.f32 %v3864, %v3867
      %vm3869 = vweird.f32 %v3786
      %vm3870 = vweird.f32 %v3864
      %vm3871 = vmor %vm3869, %vm3870
      %v3872 = vsel %vm3871, %v3864, %v3868
      %v3873 = vand.u32 2147483647, %v3786
      %vm3874 = vcmp.eq.f32.partialorder %v3873, 8.507059e+37
      %v3875 = vand.u32 %v3786, 2147483648
      %v3876 = vor.u32 1.1754944e-38, %v3875
      %v3877 = vsel %vm3874, %v3876, %v3872
      %v3878 = vmul.f32 1.0, %v3877
      %v3879 = vrcp.pop %v3787
      %v3880 = vmul.f32 %v3787, %v3879
      %v3881 = vsub.f32 1.0, %v3880
      %v3882 = vmul.f32 %v3879, %v3881
      %v3883 = vadd.f32 %v3879, %v3882
      %vm3884 = vweird.f32 %v3787
      %vm3885 = vweird.f32 %v3879
      %vm3886 = vmor %vm3884, %vm3885
      %v3887 = vsel %vm3886, %v3879, %v3883
      %v3888 = vand.u32 2147483647, %v3787
      %vm3889 = vcmp.eq.f32.partialorder %v3888, 8.507059e+37
      %v3890 = vand.u32 %v3787, 2147483648
      %v3891 = vor.u32 1.1754944e-38, %v3890
      %v3892 = vsel %vm3889, %v3891, %v3887
      %v3893 = vmul.f32 1.0, %v3892
      %v3894 = vrcp.pop %v3788
      %v3895 = vmul.f32 %v3788, %v3894
      %v3896 = vsub.f32 1.0, %v3895
      %v3897 = vmul.f32 %v3894, %v3896
      %v3898 = vadd.f32 %v3894, %v3897
      %vm3899 = vweird.f32 %v3788
      %vm3900 = vweird.f32 %v3894
      %vm3901 = vmor %vm3899, %vm3900
      %v3902 = vsel %vm3901, %v3894, %v3898
      %v3903 = vand.u32 2147483647, %v3788
      %vm3904 = vcmp.eq.f32.partialorder %v3903, 8.507059e+37
      %v3905 = vand.u32 %v3788, 2147483648
      %v3906 = vor.u32 1.1754944e-38, %v3905
      %v3907 = vsel %vm3904, %v3906, %v3902
      %v3908 = vmul.f32 1.0, %v3907
      %v3909 = vmul.f32 %v3749, %v3803
      %v3910 = vmul.f32 %v3750, %v3818
      %v3911 = vmul.f32 %v3751, %v3833
      %v3912 = vmul.f32 %v3752, %v3848
      %v3913 = vmul.f32 %v3753, %v3863
      %v3914 = vmul.f32 %v3754, %v3878
      %v3915 = vmul.f32 %v3755, %v3893
      %v3916 = vmul.f32 %v3756, %v3908
      %3917 = vrot.lane.b32.xlu0 %v3909, 17
      %v3918 = vpop.permute.xlu0 %3917
      %3919 = vrot.lane.b32.xlu0 %v3911, 17
      %v3920 = vpop.permute.xlu0 %3919
      %3921 = vrot.lane.b32.xlu0 %v3913, 17
      %v3922 = vpop.permute.xlu0 %3921
      %3923 = vrot.lane.b32.xlu0 %v3915, 17
      %v3924 = vpop.permute.xlu0 %3923
      %3925 = vrot.lane.b32.xlu0 %v3910, 17
      %v3926 = vpop.permute.xlu0 %3925
      %3927 = vrot.lane.b32.xlu0 %v3912, 17
      %v3928 = vpop.permute.xlu0 %3927
      %3929 = vrot.lane.b32.xlu0 %v3914, 17
      %v3930 = vpop.permute.xlu0 %3929
      %3931 = vrot.lane.b32.xlu0 %v3916, 17
      %v3932 = vpop.permute.xlu0 %3931
      %v3933 = vsel %vm1105, %v3918, %v3926
      %v3934 = vsel %vm1105, %v3920, %v3928
      %v3935 = vsel %vm1105, %v3922, %v3930
      %v3936 = vsel %vm1105, %v3924, %v3932
      %v3937 = vsel %vm1105, %v3926, %v3918
      %v3938 = vsel %vm1105, %v3928, %v3920
      %v3939 = vsel %vm1105, %v3930, %v3922
      %v3940 = vsel %vm1105, %v3932, %v3924
      %v3941 = vmul.f32 %v3937, %v1110
      %v3942 = vmul.f32 %v3933, %v1111
      %v3943 = vmul.f32 %v3938, %v1110
      %v3944 = vmul.f32 %v3934, %v1111
      %v3945 = vmul.f32 %v3939, %v1110
      %v3946 = vmul.f32 %v3935, %v1111
      %v3947 = vmul.f32 %v3940, %v1110
      %v3948 = vmul.f32 %v3936, %v1111
      %v3949 = vpack.c.bf16 %v3942, %v3941
      %v3950 = vpack.c.bf16 %v3944, %v3943
      %v3951 = vpack.c.bf16 %v3946, %v3945
      %v3952 = vpack.c.bf16 %v3948, %v3947
      %3953 = vrot.lane.b32.xlu0 %v3909, 16
      %v3954 = vpop.permute.xlu0 %3953
      %3955 = vrot.lane.b32.xlu0 %v3911, 16
      %v3956 = vpop.permute.xlu0 %3955
      %3957 = vrot.lane.b32.xlu0 %v3913, 16
      %v3958 = vpop.permute.xlu0 %3957
      %3959 = vrot.lane.b32.xlu0 %v3915, 16
      %v3960 = vpop.permute.xlu0 %3959
      %3961 = vrot.lane.b32.xlu0 %v3910, 16
      %v3962 = vpop.permute.xlu0 %3961
      %3963 = vrot.lane.b32.xlu0 %v3912, 16
      %v3964 = vpop.permute.xlu0 %3963
      %3965 = vrot.lane.b32.xlu0 %v3914, 16
      %v3966 = vpop.permute.xlu0 %3965
      %3967 = vrot.lane.b32.xlu0 %v3916, 16
      %v3968 = vpop.permute.xlu0 %3967
      %v3969 = vsel %vm1126, %v3954, %v3962
      %v3970 = vsel %vm1126, %v3956, %v3964
      %v3971 = vsel %vm1126, %v3958, %v3966
      %v3972 = vsel %vm1126, %v3960, %v3968
      %v3973 = vsel %vm1126, %v3962, %v3954
      %v3974 = vsel %vm1126, %v3964, %v3956
      %v3975 = vsel %vm1126, %v3966, %v3958
      %v3976 = vsel %vm1126, %v3968, %v3960
      %v3977 = vmul.f32 %v3973, %v1131
      %v3978 = vmul.f32 %v3969, %v1132
      %v3979 = vmul.f32 %v3974, %v1131
      %v3980 = vmul.f32 %v3970, %v1132
      %v3981 = vmul.f32 %v3975, %v1131
      %v3982 = vmul.f32 %v3971, %v1132
      %v3983 = vmul.f32 %v3976, %v1131
      %v3984 = vmul.f32 %v3972, %v1132
      %v3985 = vpack.c.bf16 %v3978, %v3977
      %v3986 = vpack.c.bf16 %v3980, %v3979
      %v3987 = vpack.c.bf16 %v3982, %v3981
      %v3988 = vpack.c.bf16 %v3984, %v3983
      %3989 = vrot.lane.b32.xlu0 %v3909, 15
      %v3990 = vpop.permute.xlu0 %3989
      %3991 = vrot.lane.b32.xlu0 %v3911, 15
      %v3992 = vpop.permute.xlu0 %3991
      %3993 = vrot.lane.b32.xlu0 %v3913, 15
      %v3994 = vpop.permute.xlu0 %3993
      %3995 = vrot.lane.b32.xlu0 %v3915, 15
      %v3996 = vpop.permute.xlu0 %3995
      %3997 = vrot.lane.b32.xlu0 %v3910, 15
      %v3998 = vpop.permute.xlu0 %3997
      %3999 = vrot.lane.b32.xlu0 %v3912, 15
      %v4000 = vpop.permute.xlu0 %3999
      %4001 = vrot.lane.b32.xlu0 %v3914, 15
      %v4002 = vpop.permute.xlu0 %4001
      %4003 = vrot.lane.b32.xlu0 %v3916, 15
      %v4004 = vpop.permute.xlu0 %4003
      %v4005 = vsel %vm1147, %v3990, %v3998
      %v4006 = vsel %vm1147, %v3992, %v4000
      %v4007 = vsel %vm1147, %v3994, %v4002
      %v4008 = vsel %vm1147, %v3996, %v4004
      %v4009 = vsel %vm1147, %v3998, %v3990
      %v4010 = vsel %vm1147, %v4000, %v3992
      %v4011 = vsel %vm1147, %v4002, %v3994
      %v4012 = vsel %vm1147, %v4004, %v3996
      %v4013 = vmul.f32 %v4009, %v1152
      %v4014 = vmul.f32 %v4005, %v1153
      %v4015 = vmul.f32 %v4010, %v1152
      %v4016 = vmul.f32 %v4006, %v1153
      %v4017 = vmul.f32 %v4011, %v1152
      %v4018 = vmul.f32 %v4007, %v1153
      %v4019 = vmul.f32 %v4012, %v1152
      %v4020 = vmul.f32 %v4008, %v1153
      %v4021 = vpack.c.bf16 %v4014, %v4013
      %v4022 = vpack.c.bf16 %v4016, %v4015
      %v4023 = vpack.c.bf16 %v4018, %v4017
      %v4024 = vpack.c.bf16 %v4020, %v4019
      %4025 = vrot.lane.b32.xlu0 %v3909, 1
      %v4026 = vpop.permute.xlu0 %4025
      %4027 = vrot.lane.b32.xlu0 %v3911, 1
      %v4028 = vpop.permute.xlu0 %4027
      %4029 = vrot.lane.b32.xlu0 %v3913, 1
      %v4030 = vpop.permute.xlu0 %4029
      %4031 = vrot.lane.b32.xlu0 %v3915, 1
      %v4032 = vpop.permute.xlu0 %4031
      %4033 = vrot.lane.b32.xlu0 %v3910, 1
      %v4034 = vpop.permute.xlu0 %4033
      %4035 = vrot.lane.b32.xlu0 %v3912, 1
      %v4036 = vpop.permute.xlu0 %4035
      %4037 = vrot.lane.b32.xlu0 %v3914, 1
      %v4038 = vpop.permute.xlu0 %4037
      %4039 = vrot.lane.b32.xlu0 %v3916, 1
      %v4040 = vpop.permute.xlu0 %4039
      %v4041 = vsel %vm1168, %v4026, %v4034
      %v4042 = vsel %vm1168, %v4028, %v4036
      %v4043 = vsel %vm1168, %v4030, %v4038
      %v4044 = vsel %vm1168, %v4032, %v4040
      %v4045 = vsel %vm1168, %v4034, %v4026
      %v4046 = vsel %vm1168, %v4036, %v4028
      %v4047 = vsel %vm1168, %v4038, %v4030
      %v4048 = vsel %vm1168, %v4040, %v4032
      %v4049 = vmul.f32 %v4045, %v1173
      %v4050 = vmul.f32 %v4041, %v1174
      %v4051 = vmul.f32 %v4046, %v1173
      %v4052 = vmul.f32 %v4042, %v1174
      %v4053 = vmul.f32 %v4047, %v1173
      %v4054 = vmul.f32 %v4043, %v1174
      %v4055 = vmul.f32 %v4048, %v1173
      %v4056 = vmul.f32 %v4044, %v1174
      %v4057 = vpack.c.bf16 %v4050, %v4049
      %v4058 = vpack.c.bf16 %v4052, %v4051
      %v4059 = vpack.c.bf16 %v4054, %v4053
      %v4060 = vpack.c.bf16 %v4056, %v4055
      %v4061 = vpack.c.bf16 %v3910, %v3909
      %v4062 = vpack.c.bf16 %v3912, %v3911
      %v4063 = vpack.c.bf16 %v3914, %v3913
      %v4064 = vpack.c.bf16 %v3916, %v3915
      %4065 = vrot.lane.b32.xlu0 %v3909, 127
      %v4066 = vpop.permute.xlu0 %4065
      %4067 = vrot.lane.b32.xlu0 %v3911, 127
      %v4068 = vpop.permute.xlu0 %4067
      %4069 = vrot.lane.b32.xlu0 %v3913, 127
      %v4070 = vpop.permute.xlu0 %4069
      %4071 = vrot.lane.b32.xlu0 %v3915, 127
      %v4072 = vpop.permute.xlu0 %4071
      %4073 = vrot.lane.b32.xlu0 %v3910, 127
      %v4074 = vpop.permute.xlu0 %4073
      %4075 = vrot.lane.b32.xlu0 %v3912, 127
      %v4076 = vpop.permute.xlu0 %4075
      %4077 = vrot.lane.b32.xlu0 %v3914, 127
      %v4078 = vpop.permute.xlu0 %4077
      %4079 = vrot.lane.b32.xlu0 %v3916, 127
      %v4080 = vpop.permute.xlu0 %4079
      %v4081 = vsel %vm1191, %v4066, %v4074
      %v4082 = vsel %vm1191, %v4068, %v4076
      %v4083 = vsel %vm1191, %v4070, %v4078
      %v4084 = vsel %vm1191, %v4072, %v4080
      %v4085 = vsel %vm1191, %v4074, %v4066
      %v4086 = vsel %vm1191, %v4076, %v4068
      %v4087 = vsel %vm1191, %v4078, %v4070
      %v4088 = vsel %vm1191, %v4080, %v4072
      %v4089 = vmul.f32 %v4081, %v1196
      %v4090 = vmul.f32 %v4085, %v1197
      %v4091 = vmul.f32 %v4082, %v1196
      %v4092 = vmul.f32 %v4086, %v1197
      %v4093 = vmul.f32 %v4083, %v1196
      %v4094 = vmul.f32 %v4087, %v1197
      %v4095 = vmul.f32 %v4084, %v1196
      %v4096 = vmul.f32 %v4088, %v1197
      %v4097 = vpack.c.bf16 %v4090, %v4089
      %v4098 = vpack.c.bf16 %v4092, %v4091
      %v4099 = vpack.c.bf16 %v4094, %v4093
      %v4100 = vpack.c.bf16 %v4096, %v4095
      %4101 = vrot.lane.b32.xlu0 %v3909, 113
      %v4102 = vpop.permute.xlu0 %4101
      %4103 = vrot.lane.b32.xlu0 %v3911, 113
      %v4104 = vpop.permute.xlu0 %4103
      %4105 = vrot.lane.b32.xlu0 %v3913, 113
      %v4106 = vpop.permute.xlu0 %4105
      %4107 = vrot.lane.b32.xlu0 %v3915, 113
      %v4108 = vpop.permute.xlu0 %4107
      %4109 = vrot.lane.b32.xlu0 %v3910, 113
      %v4110 = vpop.permute.xlu0 %4109
      %4111 = vrot.lane.b32.xlu0 %v3912, 113
      %v4112 = vpop.permute.xlu0 %4111
      %4113 = vrot.lane.b32.xlu0 %v3914, 113
      %v4114 = vpop.permute.xlu0 %4113
      %4115 = vrot.lane.b32.xlu0 %v3916, 113
      %v4116 = vpop.permute.xlu0 %4115
      %v4117 = vsel %vm1212, %v4102, %v4110
      %v4118 = vsel %vm1212, %v4104, %v4112
      %v4119 = vsel %vm1212, %v4106, %v4114
      %v4120 = vsel %vm1212, %v4108, %v4116
      %v4121 = vsel %vm1212, %v4110, %v4102
      %v4122 = vsel %vm1212, %v4112, %v4104
      %v4123 = vsel %vm1212, %v4114, %v4106
      %v4124 = vsel %vm1212, %v4116, %v4108
      %v4125 = vmul.f32 %v4117, %v1217
      %v4126 = vmul.f32 %v4121, %v1218
      %v4127 = vmul.f32 %v4118, %v1217
      %v4128 = vmul.f32 %v4122, %v1218
      %v4129 = vmul.f32 %v4119, %v1217
      %v4130 = vmul.f32 %v4123, %v1218
      %v4131 = vmul.f32 %v4120, %v1217
      %v4132 = vmul.f32 %v4124, %v1218
      %v4133 = vpack.c.bf16 %v4126, %v4125
      %v4134 = vpack.c.bf16 %v4128, %v4127
      %v4135 = vpack.c.bf16 %v4130, %v4129
      %v4136 = vpack.c.bf16 %v4132, %v4131
      %4137 = vrot.lane.b32.xlu0 %v3909, 112
      %v4138 = vpop.permute.xlu0 %4137
      %4139 = vrot.lane.b32.xlu0 %v3911, 112
      %v4140 = vpop.permute.xlu0 %4139
      %4141 = vrot.lane.b32.xlu0 %v3913, 112
      %v4142 = vpop.permute.xlu0 %4141
      %4143 = vrot.lane.b32.xlu0 %v3915, 112
      %v4144 = vpop.permute.xlu0 %4143
      %4145 = vrot.lane.b32.xlu0 %v3910, 112
      %v4146 = vpop.permute.xlu0 %4145
      %4147 = vrot.lane.b32.xlu0 %v3912, 112
      %v4148 = vpop.permute.xlu0 %4147
      %4149 = vrot.lane.b32.xlu0 %v3914, 112
      %v4150 = vpop.permute.xlu0 %4149
      %4151 = vrot.lane.b32.xlu0 %v3916, 112
      %v4152 = vpop.permute.xlu0 %4151
      %v4153 = vsel %vm1233, %v4138, %v4146
      %v4154 = vsel %vm1233, %v4140, %v4148
      %v4155 = vsel %vm1233, %v4142, %v4150
      %v4156 = vsel %vm1233, %v4144, %v4152
      %v4157 = vsel %vm1233, %v4146, %v4138
      %v4158 = vsel %vm1233, %v4148, %v4140
      %v4159 = vsel %vm1233, %v4150, %v4142
      %v4160 = vsel %vm1233, %v4152, %v4144
      %v4161 = vmul.f32 %v4153, %v1238
      %v4162 = vmul.f32 %v4157, %v1239
      %v4163 = vmul.f32 %v4154, %v1238
      %v4164 = vmul.f32 %v4158, %v1239
      %v4165 = vmul.f32 %v4155, %v1238
      %v4166 = vmul.f32 %v4159, %v1239
      %v4167 = vmul.f32 %v4156, %v1238
      %v4168 = vmul.f32 %v4160, %v1239
      %v4169 = vpack.c.bf16 %v4162, %v4161
      %v4170 = vpack.c.bf16 %v4164, %v4163
      %v4171 = vpack.c.bf16 %v4166, %v4165
      %v4172 = vpack.c.bf16 %v4168, %v4167
      %4173 = vrot.lane.b32.xlu0 %v3909, 111
      %v4174 = vpop.permute.xlu0 %4173
      %4175 = vrot.lane.b32.xlu0 %v3911, 111
      %v4176 = vpop.permute.xlu0 %4175
      %4177 = vrot.lane.b32.xlu0 %v3913, 111
      %v4178 = vpop.permute.xlu0 %4177
      %4179 = vrot.lane.b32.xlu0 %v3915, 111
      %v4180 = vpop.permute.xlu0 %4179
      %4181 = vrot.lane.b32.xlu0 %v3910, 111
      %v4182 = vpop.permute.xlu0 %4181
      %4183 = vrot.lane.b32.xlu0 %v3912, 111
      %v4184 = vpop.permute.xlu0 %4183
      %4185 = vrot.lane.b32.xlu0 %v3914, 111
      %v4186 = vpop.permute.xlu0 %4185
      %4187 = vrot.lane.b32.xlu0 %v3916, 111
      %v4188 = vpop.permute.xlu0 %4187
      %v4189 = vsel %vm1254, %v4174, %v4182
      %v4190 = vsel %vm1254, %v4176, %v4184
      %v4191 = vsel %vm1254, %v4178, %v4186
      %v4192 = vsel %vm1254, %v4180, %v4188
      %v4193 = vsel %vm1254, %v4182, %v4174
      %v4194 = vsel %vm1254, %v4184, %v4176
      %v4195 = vsel %vm1254, %v4186, %v4178
      %v4196 = vsel %vm1254, %v4188, %v4180
      %v4197 = vmul.f32 %v4189, %v1259
      %v4198 = vmul.f32 %v4193, %v1260
      %v4199 = vmul.f32 %v4190, %v1259
      %v4200 = vmul.f32 %v4194, %v1260
      %v4201 = vmul.f32 %v4191, %v1259
      %v4202 = vmul.f32 %v4195, %v1260
      %v4203 = vmul.f32 %v4192, %v1259
      %v4204 = vmul.f32 %v4196, %v1260
      %v4205 = vpack.c.bf16 %v4198, %v4197
      %v4206 = vpack.c.bf16 %v4200, %v4199
      %v4207 = vpack.c.bf16 %v4202, %v4201
      %v4208 = vpack.c.bf16 %v4204, %v4203
      %v4213 = vunpack.c.l.b16 %v3949
      %v4214 = vunpack.c.h.b16 %v3949
      %v4215 = vunpack.c.l.b16 %v3950
      %v4216 = vunpack.c.h.b16 %v3950
      %v4217 = vunpack.c.l.b16 %v3951
      %v4218 = vunpack.c.h.b16 %v3951
      %v4219 = vunpack.c.l.b16 %v3952
      %v4220 = vunpack.c.h.b16 %v3952
      %v4221 = vpack.c.b16 %v4215, %v4213
      %v4222 = vpack.c.b16 %v4216, %v4214
      %v4223 = vpack.c.b16 %v4219, %v4217
      %v4224 = vpack.c.b16 %v4220, %v4218
      %v4233 = vunpack.c.l.b16 %v3985
      %v4234 = vunpack.c.h.b16 %v3985
      %v4235 = vunpack.c.l.b16 %v3986
      %v4236 = vunpack.c.h.b16 %v3986
      %v4237 = vunpack.c.l.b16 %v3987
      %v4238 = vunpack.c.h.b16 %v3987
      %v4239 = vunpack.c.l.b16 %v3988
      %v4240 = vunpack.c.h.b16 %v3988
      %v4241 = vpack.c.b16 %v4235, %v4233
      %v4242 = vpack.c.b16 %v4236, %v4234
      %v4243 = vpack.c.b16 %v4239, %v4237
      %v4244 = vpack.c.b16 %v4240, %v4238
      %v4253 = vunpack.c.l.b16 %v4021
      %v4254 = vunpack.c.h.b16 %v4021
      %v4255 = vunpack.c.l.b16 %v4022
      %v4256 = vunpack.c.h.b16 %v4022
      %v4257 = vunpack.c.l.b16 %v4023
      %v4258 = vunpack.c.h.b16 %v4023
      %v4259 = vunpack.c.l.b16 %v4024
      %v4260 = vunpack.c.h.b16 %v4024
      %v4261 = vpack.c.b16 %v4255, %v4253
      %v4262 = vpack.c.b16 %v4256, %v4254
      %v4263 = vpack.c.b16 %v4259, %v4257
      %v4264 = vpack.c.b16 %v4260, %v4258
      %v4273 = vunpack.c.l.b16 %v4057
      %v4274 = vunpack.c.h.b16 %v4057
      %v4275 = vunpack.c.l.b16 %v4058
      %v4276 = vunpack.c.h.b16 %v4058
      %v4277 = vunpack.c.l.b16 %v4059
      %v4278 = vunpack.c.h.b16 %v4059
      %v4279 = vunpack.c.l.b16 %v4060
      %v4280 = vunpack.c.h.b16 %v4060
      %v4281 = vpack.c.b16 %v4275, %v4273
      %v4282 = vpack.c.b16 %v4276, %v4274
      %v4283 = vpack.c.b16 %v4279, %v4277
      %v4284 = vpack.c.b16 %v4280, %v4278
      %v4293 = vunpack.c.l.b16 %v4061
      %v4294 = vunpack.c.h.b16 %v4061
      %v4295 = vunpack.c.l.b16 %v4062
      %v4296 = vunpack.c.h.b16 %v4062
      %v4297 = vunpack.c.l.b16 %v4063
      %v4298 = vunpack.c.h.b16 %v4063
      %v4299 = vunpack.c.l.b16 %v4064
      %v4300 = vunpack.c.h.b16 %v4064
      %v4301 = vpack.c.b16 %v4295, %v4293
      %v4302 = vpack.c.b16 %v4296, %v4294
      %v4303 = vpack.c.b16 %v4299, %v4297
      %v4304 = vpack.c.b16 %v4300, %v4298
      %v4313 = vunpack.c.l.b16 %v4097
      %v4314 = vunpack.c.h.b16 %v4097
      %v4315 = vunpack.c.l.b16 %v4098
      %v4316 = vunpack.c.h.b16 %v4098
      %v4317 = vunpack.c.l.b16 %v4099
      %v4318 = vunpack.c.h.b16 %v4099
      %v4319 = vunpack.c.l.b16 %v4100
      %v4320 = vunpack.c.h.b16 %v4100
      %v4321 = vpack.c.b16 %v4315, %v4313
      %v4322 = vpack.c.b16 %v4316, %v4314
      %v4323 = vpack.c.b16 %v4319, %v4317
      %v4324 = vpack.c.b16 %v4320, %v4318
      %v4333 = vunpack.c.l.b16 %v4133
      %v4334 = vunpack.c.h.b16 %v4133
      %v4335 = vunpack.c.l.b16 %v4134
      %v4336 = vunpack.c.h.b16 %v4134
      %v4337 = vunpack.c.l.b16 %v4135
      %v4338 = vunpack.c.h.b16 %v4135
      %v4339 = vunpack.c.l.b16 %v4136
      %v4340 = vunpack.c.h.b16 %v4136
      %v4341 = vpack.c.b16 %v4335, %v4333
      %v4342 = vpack.c.b16 %v4336, %v4334
      %v4343 = vpack.c.b16 %v4339, %v4337
      %v4344 = vpack.c.b16 %v4340, %v4338
      %v4353 = vunpack.c.l.b16 %v4169
      %v4354 = vunpack.c.h.b16 %v4169
      %v4355 = vunpack.c.l.b16 %v4170
      %v4356 = vunpack.c.h.b16 %v4170
      %v4357 = vunpack.c.l.b16 %v4171
      %v4358 = vunpack.c.h.b16 %v4171
      %v4359 = vunpack.c.l.b16 %v4172
      %v4360 = vunpack.c.h.b16 %v4172
      %v4361 = vpack.c.b16 %v4355, %v4353
      %v4362 = vpack.c.b16 %v4356, %v4354
      %v4363 = vpack.c.b16 %v4359, %v4357
      %v4364 = vpack.c.b16 %v4360, %v4358
      %v4373 = vunpack.c.l.b16 %v4205
      %v4374 = vunpack.c.h.b16 %v4205
      %v4375 = vunpack.c.l.b16 %v4206
      %v4376 = vunpack.c.h.b16 %v4206
      %v4377 = vunpack.c.l.b16 %v4207
      %v4378 = vunpack.c.h.b16 %v4207
      %v4379 = vunpack.c.l.b16 %v4208
      %v4380 = vunpack.c.h.b16 %v4208
      %v4381 = vpack.c.b16 %v4375, %v4373
      %v4382 = vpack.c.b16 %v4376, %v4374
      %v4383 = vpack.c.b16 %v4379, %v4377
      %v4384 = vpack.c.b16 %v4380, %v4378
      %v4389 = vld [vmem:[%s39] sm:$0xff]
      %v4390 = vld [vmem:[%s39 + $0x8] sm:$0xf]
      %v4391 = vld [vmem:[%s39 + $0xc] sm:$0xff]
      %v4392 = vld [vmem:[%s39 + $0x14] sm:$0xf]
      %v4393 = vld [vmem:[%s39 + $0x18] sm:$0xff]
      %v4394 = vld [vmem:[%s39 + $0x20] sm:$0xf]
      %v4395 = vld [vmem:[%s39 + $0x24] sm:$0xff]
      %v4396 = vld [vmem:[%s39 + $0x2c] sm:$0xf]
      %v4397 = vld [vmem:[%s41] sm:$0xff]
      %v4398 = vld [vmem:[%s41 + $0x8] sm:$0xff]
      %v4399 = vld [vmem:[%s41 + $0x10] sm:$0xff]
      %v4400 = vld [vmem:[%s41 + $0x18] sm:$0xff]
      %4402 = vset.pattern.permute.xlu0 0
      %4403 = vperm.xlu0 %4402, %v4397
      %v4404 = vpop.permute.xlu0 %4403
      %4407 = vset.pattern.permute.xlu0 0
      %4408 = vperm.xlu0 %4407, %v4398
      %v4409 = vpop.permute.xlu0 %4408
      %4412 = vset.pattern.permute.xlu0 0
      %4413 = vperm.xlu0 %4412, %v4399
      %v4414 = vpop.permute.xlu0 %4413
      %4417 = vset.pattern.permute.xlu0 0
      %4418 = vperm.xlu0 %4417, %v4400
      %v4419 = vpop.permute.xlu0 %4418
      %v4429 = vunpack.c.l.b16 %v4389
      %v4430 = vunpack.c.h.b16 %v4389
      %v4431 = vunpack.c.l.b16 %v4390
      %v4432 = vunpack.c.l.b16 %v4391
      %v4433 = vunpack.c.h.b16 %v4391
      %v4434 = vunpack.c.l.b16 %v4392
      %v4435 = vunpack.c.l.b16 %v4393
      %v4436 = vunpack.c.h.b16 %v4393
      %v4437 = vunpack.c.l.b16 %v4394
      %v4438 = vunpack.c.l.b16 %v4395
      %v4439 = vunpack.c.h.b16 %v4395
      %v4440 = vunpack.c.l.b16 %v4396
      %v4441 = vpack.c.b16 %v4432, %v4429
      %v4442 = vpack.c.b16 %v4433, %v4430
      %v4443 = vpack.c.b16 %v4434, %v4431
      %v4444 = vpack.c.b16 %v4438, %v4435
      %v4445 = vpack.c.b16 %v4439, %v4436
      %v4446 = vpack.c.b16 %v4440, %v4437
      %v4452 = vsel %vm1651, %v4443, 0
      %v4455 = vsel %vm1651, %v4446, 0
      %4457 = vmatpush.bf16.msra.mxu0 %v4283
      %4458 = vmatpush.bf16.msra.mxu0 %v4281
      %4459 = vmatpush.bf16.msra.mxu0 %v4263
      %4460 = vmatpush.bf16.msra.mxu0 %v4261
      %4461 = vmatpush.bf16.msra.mxu0 %v4243
      %4462 = vmatpush.bf16.msra.mxu0 %v4241
      %4463 = vmatpush.bf16.msra.mxu0 %v4223
      %4464 = vmatpush.bf16.msra.mxu0 %v4221
      %4465 = vmatmul.bf16.gmra.mxu0 %v4441
      %v4466 = vpop.f32.mrf.mxu0
      %v4467 = vadd.f32 %v4404, %v4466
      %v4468 = vpop.f32.mrf.mxu0
      %v4469 = vadd.f32 %v4409, %v4468
      %4470 = vmatmul.bf16.gmra.mxu0 %v4444
      %v4471 = vpop.f32.mrf.mxu0
      %v4472 = vadd.f32 %v4414, %v4471
      %v4473 = vpop.f32.mrf.mxu0
      %v4474 = vadd.f32 %v4419, %v4473
      %4475 = vdwg.mxu0
      %4476 = vmatpush.bf16.msra.mxu0 %v4363
      %4477 = vmatpush.bf16.msra.mxu0 %v4361
      %4478 = vmatpush.bf16.msra.mxu0 %v4343
      %4479 = vmatpush.bf16.msra.mxu0 %v4341
      %4480 = vmatpush.bf16.msra.mxu0 %v4323
      %4481 = vmatpush.bf16.msra.mxu0 %v4321
      %4482 = vmatpush.bf16.msra.mxu0 %v4303
      %4483 = vmatpush.bf16.msra.mxu0 %v4301
      %4484 = vmatmul.bf16.gmra.mxu0 %v4442
      %v4485 = vpop.f32.mrf.mxu0
      %v4486 = vadd.f32 %v4467, %v4485
      %v4487 = vpop.f32.mrf.mxu0
      %v4488 = vadd.f32 %v4469, %v4487
      %4489 = vmatmul.bf16.gmra.mxu0 %v4445
      %v4490 = vpop.f32.mrf.mxu0
      %v4491 = vadd.f32 %v4472, %v4490
      %v4492 = vpop.f32.mrf.mxu0
      %v4493 = vadd.f32 %v4474, %v4492
      %4494 = vdwg.mxu0
      %4495 = vmatpush.bf16.msra.mxu0 0
      %4496 = vmatpush.bf16.msra.mxu0 0
      %4497 = vmatpush.bf16.msra.mxu0 0
      %4498 = vmatpush.bf16.msra.mxu0 0
      %4499 = vmatpush.bf16.msra.mxu0 0
      %4500 = vmatpush.bf16.msra.mxu0 0
      %4501 = vmatpush.bf16.msra.mxu0 %v4383
      %4502 = vmatpush.bf16.msra.mxu0 %v4381
      %4503 = vmatmul.bf16.gmra.mxu0 %v4452
      %v4504 = vpop.f32.mrf.mxu0
      %v4505 = vadd.f32 %v4486, %v4504
      %v4506 = vpop.f32.mrf.mxu0
      %v4507 = vadd.f32 %v4488, %v4506
      %4508 = vmatmul.bf16.gmra.mxu0 %v4455
      %v4509 = vpop.f32.mrf.mxu0
      %v4510 = vadd.f32 %v4491, %v4509
      %v4511 = vpop.f32.mrf.mxu0
      %v4512 = vadd.f32 %v4493, %v4511
      %4513 = vdwg.mxu0
      %4514 = vmatpush.bf16.msra.mxu0 %v4284
      %4515 = vmatpush.bf16.msra.mxu0 %v4282
      %4516 = vmatpush.bf16.msra.mxu0 %v4264
      %4517 = vmatpush.bf16.msra.mxu0 %v4262
      %4518 = vmatpush.bf16.msra.mxu0 %v4244
      %4519 = vmatpush.bf16.msra.mxu0 %v4242
      %4520 = vmatpush.bf16.msra.mxu0 %v4224
      %4521 = vmatpush.bf16.msra.mxu0 %v4222
      %4522 = vmatmul.bf16.gmra.mxu0 %v4441
      %v4523 = vpop.f32.mrf.mxu0
      %v4524 = vadd.f32 %v4404, %v4523
      %v4525 = vpop.f32.mrf.mxu0
      %v4526 = vadd.f32 %v4409, %v4525
      %4527 = vmatmul.bf16.gmra.mxu0 %v4444
      %v4528 = vpop.f32.mrf.mxu0
      %v4529 = vadd.f32 %v4414, %v4528
      %v4530 = vpop.f32.mrf.mxu0
      %v4531 = vadd.f32 %v4419, %v4530
      %4532 = vdwg.mxu0
      %4533 = vmatpush.bf16.msra.mxu0 %v4364
      %4534 = vmatpush.bf16.msra.mxu0 %v4362
      %4535 = vmatpush.bf16.msra.mxu0 %v4344
      %4536 = vmatpush.bf16.msra.mxu0 %v4342
      %4537 = vmatpush.bf16.msra.mxu0 %v4324
      %4538 = vmatpush.bf16.msra.mxu0 %v4322
      %4539 = vmatpush.bf16.msra.mxu0 %v4304
      %4540 = vmatpush.bf16.msra.mxu0 %v4302
      %4541 = vmatmul.bf16.gmra.mxu0 %v4442
      %v4542 = vpop.f32.mrf.mxu0
      %v4543 = vadd.f32 %v4524, %v4542
      %v4544 = vpop.f32.mrf.mxu0
      %v4545 = vadd.f32 %v4526, %v4544
      %4546 = vmatmul.bf16.gmra.mxu0 %v4445
      %v4547 = vpop.f32.mrf.mxu0
      %v4548 = vadd.f32 %v4529, %v4547
      %v4549 = vpop.f32.mrf.mxu0
      %v4550 = vadd.f32 %v4531, %v4549
      %4551 = vdwg.mxu0
      %4552 = vmatpush.bf16.msra.mxu0 0
      %4553 = vmatpush.bf16.msra.mxu0 0
      %4554 = vmatpush.bf16.msra.mxu0 0
      %4555 = vmatpush.bf16.msra.mxu0 0
      %4556 = vmatpush.bf16.msra.mxu0 0
      %4557 = vmatpush.bf16.msra.mxu0 0
      %4558 = vmatpush.bf16.msra.mxu0 %v4384
      %4559 = vmatpush.bf16.msra.mxu0 %v4382
      %4560 = vmatmul.bf16.gmra.mxu0 %v4452
      %v4561 = vpop.f32.mrf.mxu0
      %v4562 = vadd.f32 %v4543, %v4561
      %v4563 = vpop.f32.mrf.mxu0
      %v4564 = vadd.f32 %v4545, %v4563
      %4565 = vmatmul.bf16.gmra.mxu0 %v4455
      %v4566 = vpop.f32.mrf.mxu0
      %v4567 = vadd.f32 %v4548, %v4566
      %v4568 = vpop.f32.mrf.mxu0
      %v4569 = vadd.f32 %v4550, %v4568
      %4570 = vdwg.mxu0
      %v4571 = vadd.f32 %v4505, %v2771
      %v4572 = vadd.f32 %v4562, %v2772
      %v4573 = vadd.f32 %v4507, %v2773
      %v4574 = vadd.f32 %v4564, %v2774
      %v4575 = vadd.f32 %v4510, %v2775
      %v4576 = vadd.f32 %v4567, %v2776
      %v4577 = vadd.f32 %v4512, %v2777
      %v4578 = vadd.f32 %v4569, %v2778
      %4579 = vst [vmem:[%s1074] sm:$0xff] %v4571
      %4580 = vst [vmem:[%s1074 + $0x8] sm:$0xff] %v4572
      %4581 = vst [vmem:[%s1074 + $0x10] sm:$0xff] %v4573
      %4582 = vst [vmem:[%s1074 + $0x18] sm:$0xff] %v4574
      %4583 = vst [vmem:[%s1074 + $0x20] sm:$0xff] %v4575
      %4584 = vst [vmem:[%s1074 + $0x28] sm:$0xff] %v4576
      %4585 = vst [vmem:[%s1074 + $0x30] sm:$0xff] %v4577
      %4586 = vst [vmem:[%s1074 + $0x38] sm:$0xff] %v4578
      %v4587 = vadd.f32 %v4571, %v4572
      %4588 = vadd.xlane.f32.xlu0 %v4587
      %v4589 = vpop.xlane.xlu0 %4588
      %v4590 = vadd.f32 %v4573, %v4574
      %4591 = vadd.xlane.f32.xlu0 %v4590
      %v4592 = vpop.xlane.xlu0 %4591
      %v4593 = vadd.f32 %v4575, %v4576
      %4594 = vadd.xlane.f32.xlu0 %v4593
      %v4595 = vpop.xlane.xlu0 %4594
      %v4596 = vadd.f32 %v4577, %v4578
      %4597 = vadd.xlane.f32.xlu0 %v4596
      %v4598 = vpop.xlane.xlu0 %4597
      %v4599 = vmul.f32 %v4571, %v4571
      %v4600 = vmul.f32 %v4572, %v4572
      %v4601 = vmul.f32 %v4573, %v4573
      %v4602 = vmul.f32 %v4574, %v4574
      %v4603 = vmul.f32 %v4575, %v4575
      %v4604 = vmul.f32 %v4576, %v4576
      %v4605 = vmul.f32 %v4577, %v4577
      %v4606 = vmul.f32 %v4578, %v4578
      %v4607 = vadd.f32 %v4599, %v4600
      %4608 = vadd.xlane.f32.xlu0 %v4607
      %v4609 = vpop.xlane.xlu0 %4608
      %v4610 = vadd.f32 %v4601, %v4602
      %4611 = vadd.xlane.f32.xlu0 %v4610
      %v4612 = vpop.xlane.xlu0 %4611
      %v4613 = vadd.f32 %v4603, %v4604
      %4614 = vadd.xlane.f32.xlu0 %v4613
      %v4615 = vpop.xlane.xlu0 %4614
      %v4616 = vadd.f32 %v4605, %v4606
      %4617 = vadd.xlane.f32.xlu0 %v4616
      %v4618 = vpop.xlane.xlu0 %4617
      %v4619 = vsel %vm1646, %v4589, %v4609
      %v4620 = vsel %vm1646, %v4592, %v4612
      %v4621 = vsel %vm1646, %v4595, %v4615
      %v4622 = vsel %vm1646, %v4598, %v4618
      %4623 = vmatpush.msra.mxu0 0.0
      %4624 = vmatpush.msra.mxu0 0.0
      %4625 = vmatpush.msra.mxu0 0.0
      %4626 = vmatpush.msra.mxu0 0.0
      %4627 = vmatpush.msra.mxu0 0.0
      %4628 = vmatpush.msra.mxu0 0.0
      %4629 = vmatpush.msra.mxu0 0.0
      %4630 = vmatpush.msra.mxu0 0.0
      %4631 = vmatpush.msra.mxu0 0.0
      %4632 = vmatpush.msra.mxu0 0.0
      %4633 = vmatpush.msra.mxu0 0.0
      %4634 = vmatpush.msra.mxu0 0.0
      %4635 = vmatpush.msra.mxu0 %v4622
      %4636 = vmatpush.msra.mxu0 %v4621
      %4637 = vmatpush.msra.mxu0 %v4620
      %4638 = vmatpush.msra.mxu0 %v4619
      %4639 = vmatmul.f32.gmra.mxu0 %v1653
      %v4640 = vpop.f32.mrf.mxu0
      %v4641 = vadd.f32 0.0, %v4640
      %4642 = vmatmul.f32.gmra.mxu0 %v1656
      %v4643 = vpop.f32.mrf.mxu0
      %v4644 = vadd.f32 0.0, %v4643
      %4645 = vdwg.mxu0
      %4646 = vmatpush.msra.mxu0 0.0
      %4647 = vmatpush.msra.mxu0 0.0
      %4648 = vmatpush.msra.mxu0 0.0
      %4649 = vmatpush.msra.mxu0 0.0
      %4650 = vmatpush.msra.mxu0 0.0
      %4651 = vmatpush.msra.mxu0 0.0
      %4652 = vmatpush.msra.mxu0 0.0
      %4653 = vmatpush.msra.mxu0 0.0
      %4654 = vmatpush.msra.mxu0 0.0
      %4655 = vmatpush.msra.mxu0 0.0
      %4656 = vmatpush.msra.mxu0 0.0
      %4657 = vmatpush.msra.mxu0 0.0
      %4658 = vmatpush.msra.mxu0 0.0
      %4659 = vmatpush.msra.mxu0 0.0
      %4660 = vmatpush.msra.mxu0 %v4644
      %4661 = vmatpush.msra.mxu0 %v4641
      %4662 = vmatmul.f32.gmra.mxu0 %v1682
      %v4663 = vpop.f32.mrf.mxu0
      %v4664 = vadd.f32 0.0, %v4663
      %4665 = vmatmul.f32.gmra.mxu0 %v1685
      %v4666 = vpop.f32.mrf.mxu0
      %v4667 = vadd.f32 0.0, %v4666
      %4668 = vmatmul.f32.gmra.mxu0 %v1688
      %v4669 = vpop.f32.mrf.mxu0
      %v4670 = vadd.f32 0.0, %v4669
      %4671 = vmatmul.f32.gmra.mxu0 %v1691
      %v4672 = vpop.f32.mrf.mxu0
      %v4673 = vadd.f32 0.0, %v4672
      %4674 = vdwg.mxu0
      %v4675 = vmul.f32 %v4664, %v1728
      %v4676 = vmul.f32 %v4667, %v1728
      %v4677 = vmul.f32 %v4670, %v1728
      %v4678 = vmul.f32 %v4673, %v1728
      %v4679 = vmul.f32 %v4675, %v4675
      %v4680 = vmul.f32 %v4676, %v4676
      %v4681 = vmul.f32 %v4677, %v4677
      %v4682 = vmul.f32 %v4678, %v4678
      %4687 = vrot.lane.b32.xlu0 %v4679, 1
      %v4688 = vpop.permute.xlu0 %4687
      %4689 = vrot.lane.b32.xlu0 %v4680, 1
      %v4690 = vpop.permute.xlu0 %4689
      %4691 = vrot.lane.b32.xlu0 %v4681, 1
      %v4692 = vpop.permute.xlu0 %4691
      %4693 = vrot.lane.b32.xlu0 %v4682, 1
      %v4694 = vpop.permute.xlu0 %4693
      %v4699 = vsub.f32 %v4675, %v4688
      %v4700 = vsub.f32 %v4676, %v4690
      %v4701 = vsub.f32 %v4677, %v4692
      %v4702 = vsub.f32 %v4678, %v4694
      %v4703 = vmax.f32 %v4699, 0.0
      %v4704 = vmax.f32 %v4700, 0.0
      %v4705 = vmax.f32 %v4701, 0.0
      %v4706 = vmax.f32 %v4702, 0.0
      %v4707 = vadd.f32 %v4703, 1e-06
      %v4708 = vadd.f32 %v4704, 1e-06
      %v4709 = vadd.f32 %v4705, 1e-06
      %v4710 = vadd.f32 %v4706, 1e-06
      %v4711 = vrsqrt.pop %v4707
      %v4712 = vmul.f32 %v4711, %v4707
      %v4713 = vmul.f32 %v4712, %v4711
      %v4714 = vmul.f32 0.5, %v4713
      %v4715 = vsub.f32 1.5, %v4714
      %v4716 = vmul.f32 %v4711, %v4715
      %vm4717 = vweird.f32 %v4707
      %vm4718 = vweird.f32 %v4711
      %vm4719 = vmor %vm4717, %vm4718
      %v4720 = vsel %vm4719, %v4711, %v4716
      %v4721 = vrsqrt.pop %v4708
      %v4722 = vmul.f32 %v4721, %v4708
      %v4723 = vmul.f32 %v4722, %v4721
      %v4724 = vmul.f32 0.5, %v4723
      %v4725 = vsub.f32 1.5, %v4724
      %v4726 = vmul.f32 %v4721, %v4725
      %vm4727 = vweird.f32 %v4708
      %vm4728 = vweird.f32 %v4721
      %vm4729 = vmor %vm4727, %vm4728
      %v4730 = vsel %vm4729, %v4721, %v4726
      %v4731 = vrsqrt.pop %v4709
      %v4732 = vmul.f32 %v4731, %v4709
      %v4733 = vmul.f32 %v4732, %v4731
      %v4734 = vmul.f32 0.5, %v4733
      %v4735 = vsub.f32 1.5, %v4734
      %v4736 = vmul.f32 %v4731, %v4735
      %vm4737 = vweird.f32 %v4709
      %vm4738 = vweird.f32 %v4731
      %vm4739 = vmor %vm4737, %vm4738
      %v4740 = vsel %vm4739, %v4731, %v4736
      %v4741 = vrsqrt.pop %v4710
      %v4742 = vmul.f32 %v4741, %v4710
      %v4743 = vmul.f32 %v4742, %v4741
      %v4744 = vmul.f32 0.5, %v4743
      %v4745 = vsub.f32 1.5, %v4744
      %v4746 = vmul.f32 %v4741, %v4745
      %vm4747 = vweird.f32 %v4710
      %vm4748 = vweird.f32 %v4741
      %vm4749 = vmor %vm4747, %vm4748
      %v4750 = vsel %vm4749, %v4741, %v4746
      %4752 = vset.pattern.permute.xlu0 0
      %4753 = vperm.xlu0 %4752, %v4675
      %v4754 = vpop.permute.xlu0 %4753
      %4757 = vset.pattern.permute.xlu0 0
      %4758 = vperm.xlu0 %4757, %v4676
      %v4759 = vpop.permute.xlu0 %4758
      %4762 = vset.pattern.permute.xlu0 0
      %4763 = vperm.xlu0 %4762, %v4677
      %v4764 = vpop.permute.xlu0 %4763
      %4767 = vset.pattern.permute.xlu0 0
      %4768 = vperm.xlu0 %4767, %v4678
      %v4769 = vpop.permute.xlu0 %4768
      %v4771 = vsub.f32 %v4571, %v4754
      %v4772 = vsub.f32 %v4572, %v4754
      %v4773 = vsub.f32 %v4573, %v4759
      %v4774 = vsub.f32 %v4574, %v4759
      %v4775 = vsub.f32 %v4575, %v4764
      %v4776 = vsub.f32 %v4576, %v4764
      %v4777 = vsub.f32 %v4577, %v4769
      %v4778 = vsub.f32 %v4578, %v4769
      %4780 = vset.pattern.permute.xlu0 1
      %4781 = vperm.xlu0 %4780, %v4720
      %v4782 = vpop.permute.xlu0 %4781
      %4785 = vset.pattern.permute.xlu0 1
      %4786 = vperm.xlu0 %4785, %v4730
      %v4787 = vpop.permute.xlu0 %4786
      %4790 = vset.pattern.permute.xlu0 1
      %4791 = vperm.xlu0 %4790, %v4740
      %v4792 = vpop.permute.xlu0 %4791
      %4795 = vset.pattern.permute.xlu0 1
      %4796 = vperm.xlu0 %4795, %v4750
      %v4797 = vpop.permute.xlu0 %4796
      %v4799 = vmul.f32 %v4771, %v4782
      %v4800 = vmul.f32 %v4772, %v4782
      %v4801 = vmul.f32 %v4773, %v4787
      %v4802 = vmul.f32 %v4774, %v4787
      %v4803 = vmul.f32 %v4775, %v4792
      %v4804 = vmul.f32 %v4776, %v4792
      %v4805 = vmul.f32 %v4777, %v4797
      %v4806 = vmul.f32 %v4778, %v4797
      %v4807 = vld [vmem:[%s43] sm:$0xff]
      %v4808 = vld [vmem:[%s43 + $0x8] sm:$0xff]
      %v4809 = vld [vmem:[%s43 + $0x10] sm:$0xff]
      %v4810 = vld [vmem:[%s43 + $0x18] sm:$0xff]
      %4812 = vset.pattern.permute.xlu0 0
      %4813 = vperm.xlu0 %4812, %v4807
      %v4814 = vpop.permute.xlu0 %4813
      %4817 = vset.pattern.permute.xlu0 0
      %4818 = vperm.xlu0 %4817, %v4808
      %v4819 = vpop.permute.xlu0 %4818
      %4822 = vset.pattern.permute.xlu0 0
      %4823 = vperm.xlu0 %4822, %v4809
      %v4824 = vpop.permute.xlu0 %4823
      %4827 = vset.pattern.permute.xlu0 0
      %4828 = vperm.xlu0 %4827, %v4810
      %v4829 = vpop.permute.xlu0 %4828
      %v4831 = vmul.f32 %v4799, %v4814
      %v4832 = vmul.f32 %v4800, %v4814
      %v4833 = vmul.f32 %v4801, %v4819
      %v4834 = vmul.f32 %v4802, %v4819
      %v4835 = vmul.f32 %v4803, %v4824
      %v4836 = vmul.f32 %v4804, %v4824
      %v4837 = vmul.f32 %v4805, %v4829
      %v4838 = vmul.f32 %v4806, %v4829
      %v4839 = vld [vmem:[%s45] sm:$0xff]
      %v4840 = vld [vmem:[%s45 + $0x8] sm:$0xff]
      %v4841 = vld [vmem:[%s45 + $0x10] sm:$0xff]
      %v4842 = vld [vmem:[%s45 + $0x18] sm:$0xff]
      %4844 = vset.pattern.permute.xlu0 0
      %4845 = vperm.xlu0 %4844, %v4839
      %v4846 = vpop.permute.xlu0 %4845
      %4849 = vset.pattern.permute.xlu0 0
      %4850 = vperm.xlu0 %4849, %v4840
      %v4851 = vpop.permute.xlu0 %4850
      %4854 = vset.pattern.permute.xlu0 0
      %4855 = vperm.xlu0 %4854, %v4841
      %v4856 = vpop.permute.xlu0 %4855
      %4859 = vset.pattern.permute.xlu0 0
      %4860 = vperm.xlu0 %4859, %v4842
      %v4861 = vpop.permute.xlu0 %4860
      %v4863 = vadd.f32 %v4831, %v4846
      %v4864 = vadd.f32 %v4832, %v4846
      %v4865 = vadd.f32 %v4833, %v4851
      %v4866 = vadd.f32 %v4834, %v4851
      %v4867 = vadd.f32 %v4835, %v4856
      %v4868 = vadd.f32 %v4836, %v4856
      %v4869 = vadd.f32 %v4837, %v4861
      %v4870 = vadd.f32 %v4838, %v4861
      %v4871 = vpack.c.bf16 %v4865, %v4863
      %v4872 = vpack.c.bf16 %v4866, %v4864
      %v4873 = vpack.c.bf16 %v4869, %v4867
      %v4874 = vpack.c.bf16 %v4870, %v4868
      %v4875 = vld [vmem:[%s47] sm:$0xf]
      %v4876 = vld [vmem:[%s47 + $0x4] sm:$0xf]
      %v4877 = vld [vmem:[%s47 + $0x8] sm:$0xf]
      %v4878 = vld [vmem:[%s47 + $0xc] sm:$0xf]
      %v4879 = vld [vmem:[%s49] sm:$0xff]
      %v4880 = vld [vmem:[%s49 + $0x8] sm:$0xff]
      %v4881 = vld [vmem:[%s49 + $0x10] sm:$0xff]
      %v4882 = vld [vmem:[%s49 + $0x18] sm:$0xff]
      %4884 = vset.pattern.permute.xlu0 0
      %4885 = vperm.xlu0 %4884, %v4879
      %v4886 = vpop.permute.xlu0 %4885
      %4889 = vset.pattern.permute.xlu0 0
      %4890 = vperm.xlu0 %4889, %v4880
      %v4891 = vpop.permute.xlu0 %4890
      %4894 = vset.pattern.permute.xlu0 0
      %4895 = vperm.xlu0 %4894, %v4881
      %v4896 = vpop.permute.xlu0 %4895
      %4899 = vset.pattern.permute.xlu0 0
      %4900 = vperm.xlu0 %4899, %v4882
      %v4901 = vpop.permute.xlu0 %4900
      %v4907 = vunpack.c.l.b16 %v4875
      %v4908 = vunpack.c.l.b16 %v4876
      %v4909 = vunpack.c.l.b16 %v4877
      %v4910 = vunpack.c.l.b16 %v4878
      %v4911 = vpack.c.b16 %v4908, %v4907
      %v4912 = vpack.c.b16 %v4910, %v4909
      %v4914 = vsel %vm1651, %v4911, 0
      %v4917 = vsel %vm1651, %v4912, 0
      %4919 = vmatpush.bf16.msra.mxu0 0
      %4920 = vmatpush.bf16.msra.mxu0 0
      %4921 = vmatpush.bf16.msra.mxu0 0
      %4922 = vmatpush.bf16.msra.mxu0 0
      %4923 = vmatpush.bf16.msra.mxu0 0
      %4924 = vmatpush.bf16.msra.mxu0 0
      %4925 = vmatpush.bf16.msra.mxu0 %v4873
      %4926 = vmatpush.bf16.msra.mxu0 %v4871
      %4927 = vmatmul.bf16.gmra.mxu0 %v4914
      %v4928 = vpop.f32.mrf.mxu0
      %v4929 = vadd.f32 %v4886, %v4928
      %v4930 = vpop.f32.mrf.mxu0
      %v4931 = vadd.f32 %v4891, %v4930
      %4932 = vmatmul.bf16.gmra.mxu0 %v4917
      %v4933 = vpop.f32.mrf.mxu0
      %v4934 = vadd.f32 %v4896, %v4933
      %v4935 = vpop.f32.mrf.mxu0
      %v4936 = vadd.f32 %v4901, %v4935
      %4937 = vdwg.mxu0
      %4938 = vmatpush.bf16.msra.mxu0 0
      %4939 = vmatpush.bf16.msra.mxu0 0
      %4940 = vmatpush.bf16.msra.mxu0 0
      %4941 = vmatpush.bf16.msra.mxu0 0
      %4942 = vmatpush.bf16.msra.mxu0 0
      %4943 = vmatpush.bf16.msra.mxu0 0
      %4944 = vmatpush.bf16.msra.mxu0 %v4874
      %4945 = vmatpush.bf16.msra.mxu0 %v4872
      %4946 = vmatmul.bf16.gmra.mxu0 %v4914
      %v4947 = vpop.f32.mrf.mxu0
      %v4948 = vadd.f32 %v4886, %v4947
      %v4949 = vpop.f32.mrf.mxu0
      %v4950 = vadd.f32 %v4891, %v4949
      %4951 = vmatmul.bf16.gmra.mxu0 %v4917
      %v4952 = vpop.f32.mrf.mxu0
      %v4953 = vadd.f32 %v4896, %v4952
      %v4954 = vpop.f32.mrf.mxu0
      %v4955 = vadd.f32 %v4901, %v4954
      %4956 = vdwg.mxu0
      %v4957 = vld [vmem:[%s51] sm:$0xf]
      %v4958 = vld [vmem:[%s51 + $0x4] sm:$0xf]
      %v4959 = vld [vmem:[%s51 + $0x8] sm:$0xf]
      %v4960 = vld [vmem:[%s51 + $0xc] sm:$0xf]
      %v4961 = vld [vmem:[%s53] sm:$0xff]
      %v4962 = vld [vmem:[%s53 + $0x8] sm:$0xff]
      %v4963 = vld [vmem:[%s53 + $0x10] sm:$0xff]
      %v4964 = vld [vmem:[%s53 + $0x18] sm:$0xff]
      %4966 = vset.pattern.permute.xlu0 0
      %4967 = vperm.xlu0 %4966, %v4961
      %v4968 = vpop.permute.xlu0 %4967
      %4971 = vset.pattern.permute.xlu0 0
      %4972 = vperm.xlu0 %4971, %v4962
      %v4973 = vpop.permute.xlu0 %4972
      %4976 = vset.pattern.permute.xlu0 0
      %4977 = vperm.xlu0 %4976, %v4963
      %v4978 = vpop.permute.xlu0 %4977
      %4981 = vset.pattern.permute.xlu0 0
      %4982 = vperm.xlu0 %4981, %v4964
      %v4983 = vpop.permute.xlu0 %4982
      %v4989 = vunpack.c.l.b16 %v4957
      %v4990 = vunpack.c.l.b16 %v4958
      %v4991 = vunpack.c.l.b16 %v4959
      %v4992 = vunpack.c.l.b16 %v4960
      %v4993 = vpack.c.b16 %v4990, %v4989
      %v4994 = vpack.c.b16 %v4992, %v4991
      %v4996 = vsel %vm1651, %v4993, 0
      %v4999 = vsel %vm1651, %v4994, 0
      %5001 = vmatpush.bf16.msra.mxu0 0
      %5002 = vmatpush.bf16.msra.mxu0 0
      %5003 = vmatpush.bf16.msra.mxu0 0
      %5004 = vmatpush.bf16.msra.mxu0 0
      %5005 = vmatpush.bf16.msra.mxu0 0
      %5006 = vmatpush.bf16.msra.mxu0 0
      %5007 = vmatpush.bf16.msra.mxu0 %v4873
      %5008 = vmatpush.bf16.msra.mxu0 %v4871
      %5009 = vmatmul.bf16.gmra.mxu0 %v4996
      %v5010 = vpop.f32.mrf.mxu0
      %v5011 = vadd.f32 %v4968, %v5010
      %v5012 = vpop.f32.mrf.mxu0
      %v5013 = vadd.f32 %v4973, %v5012
      %5014 = vmatmul.bf16.gmra.mxu0 %v4999
      %v5015 = vpop.f32.mrf.mxu0
      %v5016 = vadd.f32 %v4978, %v5015
      %v5017 = vpop.f32.mrf.mxu0
      %v5018 = vadd.f32 %v4983, %v5017
      %5019 = vdwg.mxu0
      %5020 = vmatpush.bf16.msra.mxu0 0
      %5021 = vmatpush.bf16.msra.mxu0 0
      %5022 = vmatpush.bf16.msra.mxu0 0
      %5023 = vmatpush.bf16.msra.mxu0 0
      %5024 = vmatpush.bf16.msra.mxu0 0
      %5025 = vmatpush.bf16.msra.mxu0 0
      %5026 = vmatpush.bf16.msra.mxu0 %v4874
      %5027 = vmatpush.bf16.msra.mxu0 %v4872
      %5028 = vmatmul.bf16.gmra.mxu0 %v4996
      %v5029 = vpop.f32.mrf.mxu0
      %v5030 = vadd.f32 %v4968, %v5029
      %v5031 = vpop.f32.mrf.mxu0
      %v5032 = vadd.f32 %v4973, %v5031
      %5033 = vmatmul.bf16.gmra.mxu0 %v4999
      %v5034 = vpop.f32.mrf.mxu0
      %v5035 = vadd.f32 %v4978, %v5034
      %v5036 = vpop.f32.mrf.mxu0
      %v5037 = vadd.f32 %v4983, %v5036
      %5038 = vdwg.mxu0
      %v5039 = vld [vmem:[%s55] sm:$0xf]
      %v5040 = vld [vmem:[%s55 + $0x4] sm:$0xf]
      %v5041 = vld [vmem:[%s55 + $0x8] sm:$0xf]
      %v5042 = vld [vmem:[%s55 + $0xc] sm:$0xf]
      %v5043 = vld [vmem:[%s57] sm:$0xff]
      %v5044 = vld [vmem:[%s57 + $0x8] sm:$0xff]
      %v5045 = vld [vmem:[%s57 + $0x10] sm:$0xff]
      %v5046 = vld [vmem:[%s57 + $0x18] sm:$0xff]
      %5048 = vset.pattern.permute.xlu0 0
      %5049 = vperm.xlu0 %5048, %v5043
      %v5050 = vpop.permute.xlu0 %5049
      %5053 = vset.pattern.permute.xlu0 0
      %5054 = vperm.xlu0 %5053, %v5044
      %v5055 = vpop.permute.xlu0 %5054
      %5058 = vset.pattern.permute.xlu0 0
      %5059 = vperm.xlu0 %5058, %v5045
      %v5060 = vpop.permute.xlu0 %5059
      %5063 = vset.pattern.permute.xlu0 0
      %5064 = vperm.xlu0 %5063, %v5046
      %v5065 = vpop.permute.xlu0 %5064
      %v5071 = vunpack.c.l.b16 %v5039
      %v5072 = vunpack.c.l.b16 %v5040
      %v5073 = vunpack.c.l.b16 %v5041
      %v5074 = vunpack.c.l.b16 %v5042
      %v5075 = vpack.c.b16 %v5072, %v5071
      %v5076 = vpack.c.b16 %v5074, %v5073
      %v5078 = vsel %vm1651, %v5075, 0
      %v5081 = vsel %vm1651, %v5076, 0
      %5083 = vmatpush.bf16.msra.mxu0 0
      %5084 = vmatpush.bf16.msra.mxu0 0
      %5085 = vmatpush.bf16.msra.mxu0 0
      %5086 = vmatpush.bf16.msra.mxu0 0
      %5087 = vmatpush.bf16.msra.mxu0 0
      %5088 = vmatpush.bf16.msra.mxu0 0
      %5089 = vmatpush.bf16.msra.mxu0 %v4873
      %5090 = vmatpush.bf16.msra.mxu0 %v4871
      %5091 = vmatmul.bf16.gmra.mxu0 %v5078
      %v5092 = vpop.f32.mrf.mxu0
      %v5093 = vadd.f32 %v5050, %v5092
      %v5094 = vpop.f32.mrf.mxu0
      %v5095 = vadd.f32 %v5055, %v5094
      %5096 = vmatmul.bf16.gmra.mxu0 %v5081
      %v5097 = vpop.f32.mrf.mxu0
      %v5098 = vadd.f32 %v5060, %v5097
      %v5099 = vpop.f32.mrf.mxu0
      %v5100 = vadd.f32 %v5065, %v5099
      %5101 = vdwg.mxu0
      %5102 = vmatpush.bf16.msra.mxu0 0
      %5103 = vmatpush.bf16.msra.mxu0 0
      %5104 = vmatpush.bf16.msra.mxu0 0
      %5105 = vmatpush.bf16.msra.mxu0 0
      %5106 = vmatpush.bf16.msra.mxu0 0
      %5107 = vmatpush.bf16.msra.mxu0 0
      %5108 = vmatpush.bf16.msra.mxu0 %v4874
      %5109 = vmatpush.bf16.msra.mxu0 %v4872
      %5110 = vmatmul.bf16.gmra.mxu0 %v5078
      %v5111 = vpop.f32.mrf.mxu0
      %v5112 = vadd.f32 %v5050, %v5111
      %v5113 = vpop.f32.mrf.mxu0
      %v5114 = vadd.f32 %v5055, %v5113
      %5115 = vmatmul.bf16.gmra.mxu0 %v5081
      %v5116 = vpop.f32.mrf.mxu0
      %v5117 = vadd.f32 %v5060, %v5116
      %v5118 = vpop.f32.mrf.mxu0
      %v5119 = vadd.f32 %v5065, %v5118
      %5120 = vdwg.mxu0
      %5121 = vxpose.xlu0.b32.start [1/16] %v4929, 128
      %5122 = vxpose.xlu0.b32.cont [2/16] %v4931, 128
      %5123 = vxpose.xlu0.b32.cont [3/16] %v4934, 128
      %5124 = vxpose.xlu0.b32.cont [4/16] %v4936, 128
      %5125 = vxpose.xlu0.b32.cont [5/16] 0.0, 128
      %5126 = vxpose.xlu0.b32.cont [6/16] 0.0, 128
      %5127 = vxpose.xlu0.b32.cont [7/16] 0.0, 128
      %5128 = vxpose.xlu0.b32.cont [8/16] 0.0, 128
      %5129 = vxpose.xlu0.b32.cont [9/16] 0.0, 128
      %5130 = vxpose.xlu0.b32.cont [10/16] 0.0, 128
      %5131 = vxpose.xlu0.b32.cont [11/16] 0.0, 128
      %5132 = vxpose.xlu0.b32.cont [12/16] 0.0, 128
      %5133 = vxpose.xlu0.b32.cont [13/16] 0.0, 128
      %5134 = vxpose.xlu0.b32.cont [14/16] 0.0, 128
      %5135 = vxpose.xlu0.b32.cont [15/16] 0.0, 128
      %5136 = vxpose.xlu0.b32.end [16/16] 0.0, 128
      %v5137 = vpop.trf.xlu0
      %v5138 = vpop.trf.xlu0
      %v5139 = vpop.trf.xlu0
      %v5140 = vpop.trf.xlu0
      %v5141 = vpop.trf.xlu0
      %v5142 = vpop.trf.xlu0
      %v5143 = vpop.trf.xlu0
      %v5144 = vpop.trf.xlu0
      %v5145 = vpop.trf.xlu0
      %v5146 = vpop.trf.xlu0
      %v5147 = vpop.trf.xlu0
      %v5148 = vpop.trf.xlu0
      %v5149 = vpop.trf.xlu0
      %v5150 = vpop.trf.xlu0
      %v5151 = vpop.trf.xlu0
      %v5152 = vpop.trf.xlu0
      %5153 = vxpose.xlu0.b32.start [1/16] %v4948, 128
      %5154 = vxpose.xlu0.b32.cont [2/16] %v4950, 128
      %5155 = vxpose.xlu0.b32.cont [3/16] %v4953, 128
      %5156 = vxpose.xlu0.b32.cont [4/16] %v4955, 128
      %5157 = vxpose.xlu0.b32.cont [5/16] 0.0, 128
      %5158 = vxpose.xlu0.b32.cont [6/16] 0.0, 128
      %5159 = vxpose.xlu0.b32.cont [7/16] 0.0, 128
      %5160 = vxpose.xlu0.b32.cont [8/16] 0.0, 128
      %5161 = vxpose.xlu0.b32.cont [9/16] 0.0, 128
      %5162 = vxpose.xlu0.b32.cont [10/16] 0.0, 128
      %5163 = vxpose.xlu0.b32.cont [11/16] 0.0, 128
      %5164 = vxpose.xlu0.b32.cont [12/16] 0.0, 128
      %5165 = vxpose.xlu0.b32.cont [13/16] 0.0, 128
      %5166 = vxpose.xlu0.b32.cont [14/16] 0.0, 128
      %5167 = vxpose.xlu0.b32.cont [15/16] 0.0, 128
      %5168 = vxpose.xlu0.b32.end [16/16] 0.0, 128
      %v5169 = vpop.trf.xlu0
      %v5170 = vpop.trf.xlu0
      %v5171 = vpop.trf.xlu0
      %v5172 = vpop.trf.xlu0
      %v5173 = vpop.trf.xlu0
      %v5174 = vpop.trf.xlu0
      %v5175 = vpop.trf.xlu0
      %v5176 = vpop.trf.xlu0
      %v5177 = vpop.trf.xlu0
      %v5178 = vpop.trf.xlu0
      %v5179 = vpop.trf.xlu0
      %v5180 = vpop.trf.xlu0
      %v5181 = vpop.trf.xlu0
      %v5182 = vpop.trf.xlu0
      %v5183 = vpop.trf.xlu0
      %v5184 = vpop.trf.xlu0
      %v5185 = vpack.c.bf16 %v5138, %v5137
      %v5186 = vpack.c.bf16 %v5140, %v5139
      %v5187 = vpack.c.bf16 %v5142, %v5141
      %v5188 = vpack.c.bf16 %v5144, %v5143
      %v5189 = vpack.c.bf16 %v5146, %v5145
      %v5190 = vpack.c.bf16 %v5148, %v5147
      %v5191 = vpack.c.bf16 %v5150, %v5149
      %v5192 = vpack.c.bf16 %v5152, %v5151
      %v5193 = vpack.c.bf16 %v5170, %v5169
      %v5194 = vpack.c.bf16 %v5172, %v5171
      %v5195 = vpack.c.bf16 %v5174, %v5173
      %v5196 = vpack.c.bf16 %v5176, %v5175
      %v5197 = vpack.c.bf16 %v5178, %v5177
      %v5198 = vpack.c.bf16 %v5180, %v5179
      %v5199 = vpack.c.bf16 %v5182, %v5181
      %v5200 = vpack.c.bf16 %v5184, %v5183
      %v5201 = vpack.c.bf16 %v5013, %v5011
      %v5202 = vpack.c.bf16 %v5032, %v5030
      %v5203 = vpack.c.bf16 %v5018, %v5016
      %v5204 = vpack.c.bf16 %v5037, %v5035
      %v5206 = vsel %vm1651, %v5185, 0
      %v5209 = vsel %vm1651, %v5186, 0
      %v5212 = vsel %vm1651, %v5187, 0
      %v5215 = vsel %vm1651, %v5188, 0
      %v5218 = vsel %vm1651, %v5189, 0
      %v5221 = vsel %vm1651, %v5190, 0
      %v5224 = vsel %vm1651, %v5191, 0
      %v5227 = vsel %vm1651, %v5192, 0
      %v5230 = vsel %vm1651, %v5193, 0
      %v5233 = vsel %vm1651, %v5194, 0
      %v5236 = vsel %vm1651, %v5195, 0
      %v5239 = vsel %vm1651, %v5196, 0
      %v5242 = vsel %vm1651, %v5197, 0
      %v5245 = vsel %vm1651, %v5198, 0
      %v5248 = vsel %vm1651, %v5199, 0
      %v5251 = vsel %vm1651, %v5200, 0
      %5253 = vmatpush.bf16.msra.mxu0 0
      %5254 = vmatpush.bf16.msra.mxu0 0
      %5255 = vmatpush.bf16.msra.mxu0 0
      %5256 = vmatpush.bf16.msra.mxu0 0
      %5257 = vmatpush.bf16.msra.mxu0 0
      %5258 = vmatpush.bf16.msra.mxu0 0
      %5259 = vmatpush.bf16.msra.mxu0 %v5203
      %5260 = vmatpush.bf16.msra.mxu0 %v5201
      %5261 = vmatmul.bf16.gmra.mxu0 %v5206
      %v5262 = vpop.f32.mrf.mxu0
      %v5263 = vadd.f32 0.0, %v5262
      %v5264 = vpop.f32.mrf.mxu0
      %v5265 = vadd.f32 0.0, %v5264
      %5266 = vmatmul.bf16.gmra.mxu0 %v5209
      %v5267 = vpop.f32.mrf.mxu0
      %v5268 = vadd.f32 0.0, %v5267
      %v5269 = vpop.f32.mrf.mxu0
      %v5270 = vadd.f32 0.0, %v5269
      %5271 = vmatmul.bf16.gmra.mxu0 %v5212
      %v5272 = vpop.f32.mrf.mxu0
      %v5273 = vadd.f32 0.0, %v5272
      %v5274 = vpop.f32.mrf.mxu0
      %v5275 = vadd.f32 0.0, %v5274
      %5276 = vmatmul.bf16.gmra.mxu0 %v5215
      %v5277 = vpop.f32.mrf.mxu0
      %v5278 = vadd.f32 0.0, %v5277
      %v5279 = vpop.f32.mrf.mxu0
      %v5280 = vadd.f32 0.0, %v5279
      %5281 = vmatmul.bf16.gmra.mxu0 %v5218
      %v5282 = vpop.f32.mrf.mxu0
      %v5283 = vadd.f32 0.0, %v5282
      %v5284 = vpop.f32.mrf.mxu0
      %v5285 = vadd.f32 0.0, %v5284
      %5286 = vmatmul.bf16.gmra.mxu0 %v5221
      %v5287 = vpop.f32.mrf.mxu0
      %v5288 = vadd.f32 0.0, %v5287
      %v5289 = vpop.f32.mrf.mxu0
      %v5290 = vadd.f32 0.0, %v5289
      %5291 = vmatmul.bf16.gmra.mxu0 %v5224
      %v5292 = vpop.f32.mrf.mxu0
      %v5293 = vadd.f32 0.0, %v5292
      %v5294 = vpop.f32.mrf.mxu0
      %v5295 = vadd.f32 0.0, %v5294
      %5296 = vmatmul.bf16.gmra.mxu0 %v5227
      %v5297 = vpop.f32.mrf.mxu0
      %v5298 = vadd.f32 0.0, %v5297
      %v5299 = vpop.f32.mrf.mxu0
      %v5300 = vadd.f32 0.0, %v5299
      %5301 = vmatmul.bf16.gmra.mxu0 %v5230
      %v5302 = vpop.f32.mrf.mxu0
      %v5303 = vadd.f32 0.0, %v5302
      %v5304 = vpop.f32.mrf.mxu0
      %v5305 = vadd.f32 0.0, %v5304
      %5306 = vmatmul.bf16.gmra.mxu0 %v5233
      %v5307 = vpop.f32.mrf.mxu0
      %v5308 = vadd.f32 0.0, %v5307
      %v5309 = vpop.f32.mrf.mxu0
      %v5310 = vadd.f32 0.0, %v5309
      %5311 = vmatmul.bf16.gmra.mxu0 %v5236
      %v5312 = vpop.f32.mrf.mxu0
      %v5313 = vadd.f32 0.0, %v5312
      %v5314 = vpop.f32.mrf.mxu0
      %v5315 = vadd.f32 0.0, %v5314
      %5316 = vmatmul.bf16.gmra.mxu0 %v5239
      %v5317 = vpop.f32.mrf.mxu0
      %v5318 = vadd.f32 0.0, %v5317
      %v5319 = vpop.f32.mrf.mxu0
      %v5320 = vadd.f32 0.0, %v5319
      %5321 = vmatmul.bf16.gmra.mxu0 %v5242
      %v5322 = vpop.f32.mrf.mxu0
      %v5323 = vadd.f32 0.0, %v5322
      %v5324 = vpop.f32.mrf.mxu0
      %v5325 = vadd.f32 0.0, %v5324
      %5326 = vmatmul.bf16.gmra.mxu0 %v5245
      %v5327 = vpop.f32.mrf.mxu0
      %v5328 = vadd.f32 0.0, %v5327
      %v5329 = vpop.f32.mrf.mxu0
      %v5330 = vadd.f32 0.0, %v5329
      %5331 = vmatmul.bf16.gmra.mxu0 %v5248
      %v5332 = vpop.f32.mrf.mxu0
      %v5333 = vadd.f32 0.0, %v5332
      %v5334 = vpop.f32.mrf.mxu0
      %v5335 = vadd.f32 0.0, %v5334
      %5336 = vmatmul.bf16.gmra.mxu0 %v5251
      %v5337 = vpop.f32.mrf.mxu0
      %v5338 = vadd.f32 0.0, %v5337
      %v5339 = vpop.f32.mrf.mxu0
      %v5340 = vadd.f32 0.0, %v5339
      %5341 = vdwg.mxu0
      %5342 = vmatpush.bf16.msra.mxu0 0
      %5343 = vmatpush.bf16.msra.mxu0 0
      %5344 = vmatpush.bf16.msra.mxu0 0
      %5345 = vmatpush.bf16.msra.mxu0 0
      %5346 = vmatpush.bf16.msra.mxu0 0
      %5347 = vmatpush.bf16.msra.mxu0 0
      %5348 = vmatpush.bf16.msra.mxu0 %v5204
      %5349 = vmatpush.bf16.msra.mxu0 %v5202
      %5350 = vmatmul.bf16.gmra.mxu0 %v5206
      %v5351 = vpop.f32.mrf.mxu0
      %v5352 = vadd.f32 0.0, %v5351
      %v5353 = vpop.f32.mrf.mxu0
      %v5354 = vadd.f32 0.0, %v5353
      %5355 = vmatmul.bf16.gmra.mxu0 %v5209
      %v5356 = vpop.f32.mrf.mxu0
      %v5357 = vadd.f32 0.0, %v5356
      %v5358 = vpop.f32.mrf.mxu0
      %v5359 = vadd.f32 0.0, %v5358
      %5360 = vmatmul.bf16.gmra.mxu0 %v5212
      %v5361 = vpop.f32.mrf.mxu0
      %v5362 = vadd.f32 0.0, %v5361
      %v5363 = vpop.f32.mrf.mxu0
      %v5364 = vadd.f32 0.0, %v5363
      %5365 = vmatmul.bf16.gmra.mxu0 %v5215
      %v5366 = vpop.f32.mrf.mxu0
      %v5367 = vadd.f32 0.0, %v5366
      %v5368 = vpop.f32.mrf.mxu0
      %v5369 = vadd.f32 0.0, %v5368
      %5370 = vmatmul.bf16.gmra.mxu0 %v5218
      %v5371 = vpop.f32.mrf.mxu0
      %v5372 = vadd.f32 0.0, %v5371
      %v5373 = vpop.f32.mrf.mxu0
      %v5374 = vadd.f32 0.0, %v5373
      %5375 = vmatmul.bf16.gmra.mxu0 %v5221
      %v5376 = vpop.f32.mrf.mxu0
      %v5377 = vadd.f32 0.0, %v5376
      %v5378 = vpop.f32.mrf.mxu0
      %v5379 = vadd.f32 0.0, %v5378
      %5380 = vmatmul.bf16.gmra.mxu0 %v5224
      %v5381 = vpop.f32.mrf.mxu0
      %v5382 = vadd.f32 0.0, %v5381
      %v5383 = vpop.f32.mrf.mxu0
      %v5384 = vadd.f32 0.0, %v5383
      %5385 = vmatmul.bf16.gmra.mxu0 %v5227
      %v5386 = vpop.f32.mrf.mxu0
      %v5387 = vadd.f32 0.0, %v5386
      %v5388 = vpop.f32.mrf.mxu0
      %v5389 = vadd.f32 0.0, %v5388
      %5390 = vmatmul.bf16.gmra.mxu0 %v5230
      %v5391 = vpop.f32.mrf.mxu0
      %v5392 = vadd.f32 0.0, %v5391
      %v5393 = vpop.f32.mrf.mxu0
      %v5394 = vadd.f32 0.0, %v5393
      %5395 = vmatmul.bf16.gmra.mxu0 %v5233
      %v5396 = vpop.f32.mrf.mxu0
      %v5397 = vadd.f32 0.0, %v5396
      %v5398 = vpop.f32.mrf.mxu0
      %v5399 = vadd.f32 0.0, %v5398
      %5400 = vmatmul.bf16.gmra.mxu0 %v5236
      %v5401 = vpop.f32.mrf.mxu0
      %v5402 = vadd.f32 0.0, %v5401
      %v5403 = vpop.f32.mrf.mxu0
      %v5404 = vadd.f32 0.0, %v5403
      %5405 = vmatmul.bf16.gmra.mxu0 %v5239
      %v5406 = vpop.f32.mrf.mxu0
      %v5407 = vadd.f32 0.0, %v5406
      %v5408 = vpop.f32.mrf.mxu0
      %v5409 = vadd.f32 0.0, %v5408
      %5410 = vmatmul.bf16.gmra.mxu0 %v5242
      %v5411 = vpop.f32.mrf.mxu0
      %v5412 = vadd.f32 0.0, %v5411
      %v5413 = vpop.f32.mrf.mxu0
      %v5414 = vadd.f32 0.0, %v5413
      %5415 = vmatmul.bf16.gmra.mxu0 %v5245
      %v5416 = vpop.f32.mrf.mxu0
      %v5417 = vadd.f32 0.0, %v5416
      %v5418 = vpop.f32.mrf.mxu0
      %v5419 = vadd.f32 0.0, %v5418
      %5420 = vmatmul.bf16.gmra.mxu0 %v5248
      %v5421 = vpop.f32.mrf.mxu0
      %v5422 = vadd.f32 0.0, %v5421
      %v5423 = vpop.f32.mrf.mxu0
      %v5424 = vadd.f32 0.0, %v5423
      %5425 = vmatmul.bf16.gmra.mxu0 %v5251
      %v5426 = vpop.f32.mrf.mxu0
      %v5427 = vadd.f32 0.0, %v5426
      %v5428 = vpop.f32.mrf.mxu0
      %v5429 = vadd.f32 0.0, %v5428
      %5430 = vdwg.mxu0
      %v5431 = vmul.f32 %v5263, 0.17677669
      %v5432 = vmul.f32 %v5352, 0.17677669
      %v5433 = vmul.f32 %v5265, 0.17677669
      %v5434 = vmul.f32 %v5354, 0.17677669
      %v5435 = vmul.f32 %v5268, 0.17677669
      %v5436 = vmul.f32 %v5357, 0.17677669
      %v5437 = vmul.f32 %v5270, 0.17677669
      %v5438 = vmul.f32 %v5359, 0.17677669
      %v5439 = vmul.f32 %v5273, 0.17677669
      %v5440 = vmul.f32 %v5362, 0.17677669
      %v5441 = vmul.f32 %v5275, 0.17677669
      %v5442 = vmul.f32 %v5364, 0.17677669
      %v5443 = vmul.f32 %v5278, 0.17677669
      %v5444 = vmul.f32 %v5367, 0.17677669
      %v5445 = vmul.f32 %v5280, 0.17677669
      %v5446 = vmul.f32 %v5369, 0.17677669
      %v5447 = vmul.f32 %v5283, 0.17677669
      %v5448 = vmul.f32 %v5372, 0.17677669
      %v5449 = vmul.f32 %v5285, 0.17677669
      %v5450 = vmul.f32 %v5374, 0.17677669
      %v5451 = vmul.f32 %v5288, 0.17677669
      %v5452 = vmul.f32 %v5377, 0.17677669
      %v5453 = vmul.f32 %v5290, 0.17677669
      %v5454 = vmul.f32 %v5379, 0.17677669
      %v5455 = vmul.f32 %v5293, 0.17677669
      %v5456 = vmul.f32 %v5382, 0.17677669
      %v5457 = vmul.f32 %v5295, 0.17677669
      %v5458 = vmul.f32 %v5384, 0.17677669
      %v5459 = vmul.f32 %v5298, 0.17677669
      %v5460 = vmul.f32 %v5387, 0.17677669
      %v5461 = vmul.f32 %v5300, 0.17677669
      %v5462 = vmul.f32 %v5389, 0.17677669
      %v5463 = vmul.f32 %v5303, 0.17677669
      %v5464 = vmul.f32 %v5392, 0.17677669
      %v5465 = vmul.f32 %v5305, 0.17677669
      %v5466 = vmul.f32 %v5394, 0.17677669
      %v5467 = vmul.f32 %v5308, 0.17677669
      %v5468 = vmul.f32 %v5397, 0.17677669
      %v5469 = vmul.f32 %v5310, 0.17677669
      %v5470 = vmul.f32 %v5399, 0.17677669
      %v5471 = vmul.f32 %v5313, 0.17677669
      %v5472 = vmul.f32 %v5402, 0.17677669
      %v5473 = vmul.f32 %v5315, 0.17677669
      %v5474 = vmul.f32 %v5404, 0.17677669
      %v5475 = vmul.f32 %v5318, 0.17677669
      %v5476 = vmul.f32 %v5407, 0.17677669
      %v5477 = vmul.f32 %v5320, 0.17677669
      %v5478 = vmul.f32 %v5409, 0.17677669
      %v5479 = vmul.f32 %v5323, 0.17677669
      %v5480 = vmul.f32 %v5412, 0.17677669
      %v5481 = vmul.f32 %v5325, 0.17677669
      %v5482 = vmul.f32 %v5414, 0.17677669
      %v5483 = vmul.f32 %v5328, 0.17677669
      %v5484 = vmul.f32 %v5417, 0.17677669
      %v5485 = vmul.f32 %v5330, 0.17677669
      %v5486 = vmul.f32 %v5419, 0.17677669
      %v5487 = vmul.f32 %v5333, 0.17677669
      %v5488 = vmul.f32 %v5422, 0.17677669
      %v5489 = vmul.f32 %v5335, 0.17677669
      %v5490 = vmul.f32 %v5424, 0.17677669
      %v5491 = vmul.f32 %v5338, 0.17677669
      %v5492 = vmul.f32 %v5427, 0.17677669
      %v5493 = vmul.f32 %v5340, 0.17677669
      %v5494 = vmul.f32 %v5429, 0.17677669
      %v5495 = vmax.f32 %v5431, %v5432
      %5496 = vmax.xlane.f32.xlu0 %v5495
      %v5497 = vpop.xlane.xlu0 %5496
      %v5498 = vmax.f32 %v5433, %v5434
      %5499 = vmax.xlane.f32.xlu0 %v5498
      %v5500 = vpop.xlane.xlu0 %5499
      %v5501 = vmax.f32 %v5435, %v5436
      %5502 = vmax.xlane.f32.xlu0 %v5501
      %v5503 = vpop.xlane.xlu0 %5502
      %v5504 = vmax.f32 %v5437, %v5438
      %5505 = vmax.xlane.f32.xlu0 %v5504
      %v5506 = vpop.xlane.xlu0 %5505
      %v5507 = vmax.f32 %v5439, %v5440
      %5508 = vmax.xlane.f32.xlu0 %v5507
      %v5509 = vpop.xlane.xlu0 %5508
      %v5510 = vmax.f32 %v5441, %v5442
      %5511 = vmax.xlane.f32.xlu0 %v5510
      %v5512 = vpop.xlane.xlu0 %5511
      %v5513 = vmax.f32 %v5443, %v5444
      %5514 = vmax.xlane.f32.xlu0 %v5513
      %v5515 = vpop.xlane.xlu0 %5514
      %v5516 = vmax.f32 %v5445, %v5446
      %5517 = vmax.xlane.f32.xlu0 %v5516
      %v5518 = vpop.xlane.xlu0 %5517
      %v5519 = vmax.f32 %v5447, %v5448
      %5520 = vmax.xlane.f32.xlu0 %v5519
      %v5521 = vpop.xlane.xlu0 %5520
      %v5522 = vmax.f32 %v5449, %v5450
      %5523 = vmax.xlane.f32.xlu0 %v5522
      %v5524 = vpop.xlane.xlu0 %5523
      %v5525 = vmax.f32 %v5451, %v5452
      %5526 = vmax.xlane.f32.xlu0 %v5525
      %v5527 = vpop.xlane.xlu0 %5526
      %v5528 = vmax.f32 %v5453, %v5454
      %5529 = vmax.xlane.f32.xlu0 %v5528
      %v5530 = vpop.xlane.xlu0 %5529
      %v5531 = vmax.f32 %v5455, %v5456
      %5532 = vmax.xlane.f32.xlu0 %v5531
      %v5533 = vpop.xlane.xlu0 %5532
      %v5534 = vmax.f32 %v5457, %v5458
      %5535 = vmax.xlane.f32.xlu0 %v5534
      %v5536 = vpop.xlane.xlu0 %5535
      %v5537 = vmax.f32 %v5459, %v5460
      %5538 = vmax.xlane.f32.xlu0 %v5537
      %v5539 = vpop.xlane.xlu0 %5538
      %v5540 = vmax.f32 %v5461, %v5462
      %5541 = vmax.xlane.f32.xlu0 %v5540
      %v5542 = vpop.xlane.xlu0 %5541
      %v5543 = vmax.f32 %v5463, %v5464
      %5544 = vmax.xlane.f32.xlu0 %v5543
      %v5545 = vpop.xlane.xlu0 %5544
      %v5546 = vmax.f32 %v5465, %v5466
      %5547 = vmax.xlane.f32.xlu0 %v5546
      %v5548 = vpop.xlane.xlu0 %5547
      %v5549 = vmax.f32 %v5467, %v5468
      %5550 = vmax.xlane.f32.xlu0 %v5549
      %v5551 = vpop.xlane.xlu0 %5550
      %v5552 = vmax.f32 %v5469, %v5470
      %5553 = vmax.xlane.f32.xlu0 %v5552
      %v5554 = vpop.xlane.xlu0 %5553
      %v5555 = vmax.f32 %v5471, %v5472
      %5556 = vmax.xlane.f32.xlu0 %v5555
      %v5557 = vpop.xlane.xlu0 %5556
      %v5558 = vmax.f32 %v5473, %v5474
      %5559 = vmax.xlane.f32.xlu0 %v5558
      %v5560 = vpop.xlane.xlu0 %5559
      %v5561 = vmax.f32 %v5475, %v5476
      %5562 = vmax.xlane.f32.xlu0 %v5561
      %v5563 = vpop.xlane.xlu0 %5562
      %v5564 = vmax.f32 %v5477, %v5478
      %5565 = vmax.xlane.f32.xlu0 %v5564
      %v5566 = vpop.xlane.xlu0 %5565
      %v5567 = vmax.f32 %v5479, %v5480
      %5568 = vmax.xlane.f32.xlu0 %v5567
      %v5569 = vpop.xlane.xlu0 %5568
      %v5570 = vmax.f32 %v5481, %v5482
      %5571 = vmax.xlane.f32.xlu0 %v5570
      %v5572 = vpop.xlane.xlu0 %5571
      %v5573 = vmax.f32 %v5483, %v5484
      %5574 = vmax.xlane.f32.xlu0 %v5573
      %v5575 = vpop.xlane.xlu0 %5574
      %v5576 = vmax.f32 %v5485, %v5486
      %5577 = vmax.xlane.f32.xlu0 %v5576
      %v5578 = vpop.xlane.xlu0 %5577
      %v5579 = vmax.f32 %v5487, %v5488
      %5580 = vmax.xlane.f32.xlu0 %v5579
      %v5581 = vpop.xlane.xlu0 %5580
      %v5582 = vmax.f32 %v5489, %v5490
      %5583 = vmax.xlane.f32.xlu0 %v5582
      %v5584 = vpop.xlane.xlu0 %5583
      %v5585 = vmax.f32 %v5491, %v5492
      %5586 = vmax.xlane.f32.xlu0 %v5585
      %v5587 = vpop.xlane.xlu0 %5586
      %v5588 = vmax.f32 %v5493, %v5494
      %5589 = vmax.xlane.f32.xlu0 %v5588
      %v5590 = vpop.xlane.xlu0 %5589
      %v5591 = vsub.f32 %v5431, %v5497
      %v5592 = vsub.f32 %v5432, %v5497
      %v5593 = vsub.f32 %v5433, %v5500
      %v5594 = vsub.f32 %v5434, %v5500
      %v5595 = vsub.f32 %v5435, %v5503
      %v5596 = vsub.f32 %v5436, %v5503
      %v5597 = vsub.f32 %v5437, %v5506
      %v5598 = vsub.f32 %v5438, %v5506
      %v5599 = vsub.f32 %v5439, %v5509
      %v5600 = vsub.f32 %v5440, %v5509
      %v5601 = vsub.f32 %v5441, %v5512
      %v5602 = vsub.f32 %v5442, %v5512
      %v5603 = vsub.f32 %v5443, %v5515
      %v5604 = vsub.f32 %v5444, %v5515
      %v5605 = vsub.f32 %v5445, %v5518
      %v5606 = vsub.f32 %v5446, %v5518
      %v5607 = vsub.f32 %v5447, %v5521
      %v5608 = vsub.f32 %v5448, %v5521
      %v5609 = vsub.f32 %v5449, %v5524
      %v5610 = vsub.f32 %v5450, %v5524
      %v5611 = vsub.f32 %v5451, %v5527
      %v5612 = vsub.f32 %v5452, %v5527
      %v5613 = vsub.f32 %v5453, %v5530
      %v5614 = vsub.f32 %v5454, %v5530
      %v5615 = vsub.f32 %v5455, %v5533
      %v5616 = vsub.f32 %v5456, %v5533
      %v5617 = vsub.f32 %v5457, %v5536
      %v5618 = vsub.f32 %v5458, %v5536
      %v5619 = vsub.f32 %v5459, %v5539
      %v5620 = vsub.f32 %v5460, %v5539
      %v5621 = vsub.f32 %v5461, %v5542
      %v5622 = vsub.f32 %v5462, %v5542
      %v5623 = vsub.f32 %v5463, %v5545
      %v5624 = vsub.f32 %v5464, %v5545
      %v5625 = vsub.f32 %v5465, %v5548
      %v5626 = vsub.f32 %v5466, %v5548
      %v5627 = vsub.f32 %v5467, %v5551
      %v5628 = vsub.f32 %v5468, %v5551
      %v5629 = vsub.f32 %v5469, %v5554
      %v5630 = vsub.f32 %v5470, %v5554
      %v5631 = vsub.f32 %v5471, %v5557
      %v5632 = vsub.f32 %v5472, %v5557
      %v5633 = vsub.f32 %v5473, %v5560
      %v5634 = vsub.f32 %v5474, %v5560
      %v5635 = vsub.f32 %v5475, %v5563
      %v5636 = vsub.f32 %v5476, %v5563
      %v5637 = vsub.f32 %v5477, %v5566
      %v5638 = vsub.f32 %v5478, %v5566
      %v5639 = vsub.f32 %v5479, %v5569
      %v5640 = vsub.f32 %v5480, %v5569
      %v5641 = vsub.f32 %v5481, %v5572
      %v5642 = vsub.f32 %v5482, %v5572
      %v5643 = vsub.f32 %v5483, %v5575
      %v5644 = vsub.f32 %v5484, %v5575
      %v5645 = vsub.f32 %v5485, %v5578
      %v5646 = vsub.f32 %v5486, %v5578
      %v5647 = vsub.f32 %v5487, %v5581
      %v5648 = vsub.f32 %v5488, %v5581
      %v5649 = vsub.f32 %v5489, %v5584
      %v5650 = vsub.f32 %v5490, %v5584
      %v5651 = vsub.f32 %v5491, %v5587
      %v5652 = vsub.f32 %v5492, %v5587
      %v5653 = vsub.f32 %v5493, %v5590
      %v5654 = vsub.f32 %v5494, %v5590
      %v5655 = vmul.f32 %v5591, 1.442695
      %v5656 = vpow.pop %v5655
      %v5657 = vmul.f32 %v5592, 1.442695
      %v5658 = vpow.pop %v5657
      %v5659 = vmul.f32 %v5593, 1.442695
      %v5660 = vpow.pop %v5659
      %v5661 = vmul.f32 %v5594, 1.442695
      %v5662 = vpow.pop %v5661
      %v5663 = vmul.f32 %v5595, 1.442695
      %v5664 = vpow.pop %v5663
      %v5665 = vmul.f32 %v5596, 1.442695
      %v5666 = vpow.pop %v5665
      %v5667 = vmul.f32 %v5597, 1.442695
      %v5668 = vpow.pop %v5667
      %v5669 = vmul.f32 %v5598, 1.442695
      %v5670 = vpow.pop %v5669
      %v5671 = vmul.f32 %v5599, 1.442695
      %v5672 = vpow.pop %v5671
      %v5673 = vmul.f32 %v5600, 1.442695
      %v5674 = vpow.pop %v5673
      %v5675 = vmul.f32 %v5601, 1.442695
      %v5676 = vpow.pop %v5675
      %v5677 = vmul.f32 %v5602, 1.442695
      %v5678 = vpow.pop %v5677
      %v5679 = vmul.f32 %v5603, 1.442695
      %v5680 = vpow.pop %v5679
      %v5681 = vmul.f32 %v5604, 1.442695
      %v5682 = vpow.pop %v5681
      %v5683 = vmul.f32 %v5605, 1.442695
      %v5684 = vpow.pop %v5683
      %v5685 = vmul.f32 %v5606, 1.442695
      %v5686 = vpow.pop %v5685
      %v5687 = vmul.f32 %v5607, 1.442695
      %v5688 = vpow.pop %v5687
      %v5689 = vmul.f32 %v5608, 1.442695
      %v5690 = vpow.pop %v5689
      %v5691 = vmul.f32 %v5609, 1.442695
      %v5692 = vpow.pop %v5691
      %v5693 = vmul.f32 %v5610, 1.442695
      %v5694 = vpow.pop %v5693
      %v5695 = vmul.f32 %v5611, 1.442695
      %v5696 = vpow.pop %v5695
      %v5697 = vmul.f32 %v5612, 1.442695
      %v5698 = vpow.pop %v5697
      %v5699 = vmul.f32 %v5613, 1.442695
      %v5700 = vpow.pop %v5699
      %v5701 = vmul.f32 %v5614, 1.442695
      %v5702 = vpow.pop %v5701
      %v5703 = vmul.f32 %v5615, 1.442695
      %v5704 = vpow.pop %v5703
      %v5705 = vmul.f32 %v5616, 1.442695
      %v5706 = vpow.pop %v5705
      %v5707 = vmul.f32 %v5617, 1.442695
      %v5708 = vpow.pop %v5707
      %v5709 = vmul.f32 %v5618, 1.442695
      %v5710 = vpow.pop %v5709
      %v5711 = vmul.f32 %v5619, 1.442695
      %v5712 = vpow.pop %v5711
      %v5713 = vmul.f32 %v5620, 1.442695
      %v5714 = vpow.pop %v5713
      %v5715 = vmul.f32 %v5621, 1.442695
      %v5716 = vpow.pop %v5715
      %v5717 = vmul.f32 %v5622, 1.442695
      %v5718 = vpow.pop %v5717
      %v5719 = vmul.f32 %v5623, 1.442695
      %v5720 = vpow.pop %v5719
      %v5721 = vmul.f32 %v5624, 1.442695
      %v5722 = vpow.pop %v5721
      %v5723 = vmul.f32 %v5625, 1.442695
      %v5724 = vpow.pop %v5723
      %v5725 = vmul.f32 %v5626, 1.442695
      %v5726 = vpow.pop %v5725
      %v5727 = vmul.f32 %v5627, 1.442695
      %v5728 = vpow.pop %v5727
      %v5729 = vmul.f32 %v5628, 1.442695
      %v5730 = vpow.pop %v5729
      %v5731 = vmul.f32 %v5629, 1.442695
      %v5732 = vpow.pop %v5731
      %v5733 = vmul.f32 %v5630, 1.442695
      %v5734 = vpow.pop %v5733
      %v5735 = vmul.f32 %v5631, 1.442695
      %v5736 = vpow.pop %v5735
      %v5737 = vmul.f32 %v5632, 1.442695
      %v5738 = vpow.pop %v5737
      %v5739 = vmul.f32 %v5633, 1.442695
      %v5740 = vpow.pop %v5739
      %v5741 = vmul.f32 %v5634, 1.442695
      %v5742 = vpow.pop %v5741
      %v5743 = vmul.f32 %v5635, 1.442695
      %v5744 = vpow.pop %v5743
      %v5745 = vmul.f32 %v5636, 1.442695
      %v5746 = vpow.pop %v5745
      %v5747 = vmul.f32 %v5637, 1.442695
      %v5748 = vpow.pop %v5747
      %v5749 = vmul.f32 %v5638, 1.442695
      %v5750 = vpow.pop %v5749
      %v5751 = vmul.f32 %v5639, 1.442695
      %v5752 = vpow.pop %v5751
      %v5753 = vmul.f32 %v5640, 1.442695
      %v5754 = vpow.pop %v5753
      %v5755 = vmul.f32 %v5641, 1.442695
      %v5756 = vpow.pop %v5755
      %v5757 = vmul.f32 %v5642, 1.442695
      %v5758 = vpow.pop %v5757
      %v5759 = vmul.f32 %v5643, 1.442695
      %v5760 = vpow.pop %v5759
      %v5761 = vmul.f32 %v5644, 1.442695
      %v5762 = vpow.pop %v5761
      %v5763 = vmul.f32 %v5645, 1.442695
      %v5764 = vpow.pop %v5763
      %v5765 = vmul.f32 %v5646, 1.442695
      %v5766 = vpow.pop %v5765
      %v5767 = vmul.f32 %v5647, 1.442695
      %v5768 = vpow.pop %v5767
      %v5769 = vmul.f32 %v5648, 1.442695
      %v5770 = vpow.pop %v5769
      %v5771 = vmul.f32 %v5649, 1.442695
      %v5772 = vpow.pop %v5771
      %v5773 = vmul.f32 %v5650, 1.442695
      %v5774 = vpow.pop %v5773
      %v5775 = vmul.f32 %v5651, 1.442695
      %v5776 = vpow.pop %v5775
      %v5777 = vmul.f32 %v5652, 1.442695
      %v5778 = vpow.pop %v5777
      %v5779 = vmul.f32 %v5653, 1.442695
      %v5780 = vpow.pop %v5779
      %v5781 = vmul.f32 %v5654, 1.442695
      %v5782 = vpow.pop %v5781
      %v5783 = vadd.f32 %v5656, %v5658
      %5784 = vadd.xlane.f32.xlu0 %v5783
      %v5785 = vpop.xlane.xlu0 %5784
      %v5786 = vadd.f32 %v5660, %v5662
      %5787 = vadd.xlane.f32.xlu0 %v5786
      %v5788 = vpop.xlane.xlu0 %5787
      %v5789 = vadd.f32 %v5664, %v5666
      %5790 = vadd.xlane.f32.xlu0 %v5789
      %v5791 = vpop.xlane.xlu0 %5790
      %v5792 = vadd.f32 %v5668, %v5670
      %5793 = vadd.xlane.f32.xlu0 %v5792
      %v5794 = vpop.xlane.xlu0 %5793
      %v5795 = vadd.f32 %v5672, %v5674
      %5796 = vadd.xlane.f32.xlu0 %v5795
      %v5797 = vpop.xlane.xlu0 %5796
      %v5798 = vadd.f32 %v5676, %v5678
      %5799 = vadd.xlane.f32.xlu0 %v5798
      %v5800 = vpop.xlane.xlu0 %5799
      %v5801 = vadd.f32 %v5680, %v5682
      %5802 = vadd.xlane.f32.xlu0 %v5801
      %v5803 = vpop.xlane.xlu0 %5802
      %v5804 = vadd.f32 %v5684, %v5686
      %5805 = vadd.xlane.f32.xlu0 %v5804
      %v5806 = vpop.xlane.xlu0 %5805
      %v5807 = vadd.f32 %v5688, %v5690
      %5808 = vadd.xlane.f32.xlu0 %v5807
      %v5809 = vpop.xlane.xlu0 %5808
      %v5810 = vadd.f32 %v5692, %v5694
      %5811 = vadd.xlane.f32.xlu0 %v5810
      %v5812 = vpop.xlane.xlu0 %5811
      %v5813 = vadd.f32 %v5696, %v5698
      %5814 = vadd.xlane.f32.xlu0 %v5813
      %v5815 = vpop.xlane.xlu0 %5814
      %v5816 = vadd.f32 %v5700, %v5702
      %5817 = vadd.xlane.f32.xlu0 %v5816
      %v5818 = vpop.xlane.xlu0 %5817
      %v5819 = vadd.f32 %v5704, %v5706
      %5820 = vadd.xlane.f32.xlu0 %v5819
      %v5821 = vpop.xlane.xlu0 %5820
      %v5822 = vadd.f32 %v5708, %v5710
      %5823 = vadd.xlane.f32.xlu0 %v5822
      %v5824 = vpop.xlane.xlu0 %5823
      %v5825 = vadd.f32 %v5712, %v5714
      %5826 = vadd.xlane.f32.xlu0 %v5825
      %v5827 = vpop.xlane.xlu0 %5826
      %v5828 = vadd.f32 %v5716, %v5718
      %5829 = vadd.xlane.f32.xlu0 %v5828
      %v5830 = vpop.xlane.xlu0 %5829
      %v5831 = vadd.f32 %v5720, %v5722
      %5832 = vadd.xlane.f32.xlu0 %v5831
      %v5833 = vpop.xlane.xlu0 %5832
      %v5834 = vadd.f32 %v5724, %v5726
      %5835 = vadd.xlane.f32.xlu0 %v5834
      %v5836 = vpop.xlane.xlu0 %5835
      %v5837 = vadd.f32 %v5728, %v5730
      %5838 = vadd.xlane.f32.xlu0 %v5837
      %v5839 = vpop.xlane.xlu0 %5838
      %v5840 = vadd.f32 %v5732, %v5734
      %5841 = vadd.xlane.f32.xlu0 %v5840
      %v5842 = vpop.xlane.xlu0 %5841
      %v5843 = vadd.f32 %v5736, %v5738
      %5844 = vadd.xlane.f32.xlu0 %v5843
      %v5845 = vpop.xlane.xlu0 %5844
      %v5846 = vadd.f32 %v5740, %v5742
      %5847 = vadd.xlane.f32.xlu0 %v5846
      %v5848 = vpop.xlane.xlu0 %5847
      %v5849 = vadd.f32 %v5744, %v5746
      %5850 = vadd.xlane.f32.xlu0 %v5849
      %v5851 = vpop.xlane.xlu0 %5850
      %v5852 = vadd.f32 %v5748, %v5750
      %5853 = vadd.xlane.f32.xlu0 %v5852
      %v5854 = vpop.xlane.xlu0 %5853
      %v5855 = vadd.f32 %v5752, %v5754
      %5856 = vadd.xlane.f32.xlu0 %v5855
      %v5857 = vpop.xlane.xlu0 %5856
      %v5858 = vadd.f32 %v5756, %v5758
      %5859 = vadd.xlane.f32.xlu0 %v5858
      %v5860 = vpop.xlane.xlu0 %5859
      %v5861 = vadd.f32 %v5760, %v5762
      %5862 = vadd.xlane.f32.xlu0 %v5861
      %v5863 = vpop.xlane.xlu0 %5862
      %v5864 = vadd.f32 %v5764, %v5766
      %5865 = vadd.xlane.f32.xlu0 %v5864
      %v5866 = vpop.xlane.xlu0 %5865
      %v5867 = vadd.f32 %v5768, %v5770
      %5868 = vadd.xlane.f32.xlu0 %v5867
      %v5869 = vpop.xlane.xlu0 %5868
      %v5870 = vadd.f32 %v5772, %v5774
      %5871 = vadd.xlane.f32.xlu0 %v5870
      %v5872 = vpop.xlane.xlu0 %5871
      %v5873 = vadd.f32 %v5776, %v5778
      %5874 = vadd.xlane.f32.xlu0 %v5873
      %v5875 = vpop.xlane.xlu0 %5874
      %v5876 = vadd.f32 %v5780, %v5782
      %5877 = vadd.xlane.f32.xlu0 %v5876
      %v5878 = vpop.xlane.xlu0 %5877
      %v5879 = vrcp.pop %v5785
      %v5880 = vmul.f32 %v5785, %v5879
      %v5881 = vsub.f32 1.0, %v5880
      %v5882 = vmul.f32 %v5879, %v5881
      %v5883 = vadd.f32 %v5879, %v5882
      %vm5884 = vweird.f32 %v5785
      %vm5885 = vweird.f32 %v5879
      %vm5886 = vmor %vm5884, %vm5885
      %v5887 = vsel %vm5886, %v5879, %v5883
      %v5888 = vand.u32 2147483647, %v5785
      %vm5889 = vcmp.eq.f32.partialorder %v5888, 8.507059e+37
      %v5890 = vand.u32 %v5785, 2147483648
      %v5891 = vor.u32 1.1754944e-38, %v5890
      %v5892 = vsel %vm5889, %v5891, %v5887
      %v5893 = vrcp.pop %v5788
      %v5894 = vmul.f32 %v5788, %v5893
      %v5895 = vsub.f32 1.0, %v5894
      %v5896 = vmul.f32 %v5893, %v5895
      %v5897 = vadd.f32 %v5893, %v5896
      %vm5898 = vweird.f32 %v5788
      %vm5899 = vweird.f32 %v5893
      %vm5900 = vmor %vm5898, %vm5899
      %v5901 = vsel %vm5900, %v5893, %v5897
      %v5902 = vand.u32 2147483647, %v5788
      %vm5903 = vcmp.eq.f32.partialorder %v5902, 8.507059e+37
      %v5904 = vand.u32 %v5788, 2147483648
      %v5905 = vor.u32 1.1754944e-38, %v5904
      %v5906 = vsel %vm5903, %v5905, %v5901
      %v5907 = vrcp.pop %v5791
      %v5908 = vmul.f32 %v5791, %v5907
      %v5909 = vsub.f32 1.0, %v5908
      %v5910 = vmul.f32 %v5907, %v5909
      %v5911 = vadd.f32 %v5907, %v5910
      %vm5912 = vweird.f32 %v5791
      %vm5913 = vweird.f32 %v5907
      %vm5914 = vmor %vm5912, %vm5913
      %v5915 = vsel %vm5914, %v5907, %v5911
      %v5916 = vand.u32 2147483647, %v5791
      %vm5917 = vcmp.eq.f32.partialorder %v5916, 8.507059e+37
      %v5918 = vand.u32 %v5791, 2147483648
      %v5919 = vor.u32 1.1754944e-38, %v5918
      %v5920 = vsel %vm5917, %v5919, %v5915
      %v5921 = vrcp.pop %v5794
      %v5922 = vmul.f32 %v5794, %v5921
      %v5923 = vsub.f32 1.0, %v5922
      %v5924 = vmul.f32 %v5921, %v5923
      %v5925 = vadd.f32 %v5921, %v5924
      %vm5926 = vweird.f32 %v5794
      %vm5927 = vweird.f32 %v5921
      %vm5928 = vmor %vm5926, %vm5927
      %v5929 = vsel %vm5928, %v5921, %v5925
      %v5930 = vand.u32 2147483647, %v5794
      %vm5931 = vcmp.eq.f32.partialorder %v5930, 8.507059e+37
      %v5932 = vand.u32 %v5794, 2147483648
      %v5933 = vor.u32 1.1754944e-38, %v5932
      %v5934 = vsel %vm5931, %v5933, %v5929
      %v5935 = vrcp.pop %v5797
      %v5936 = vmul.f32 %v5797, %v5935
      %v5937 = vsub.f32 1.0, %v5936
      %v5938 = vmul.f32 %v5935, %v5937
      %v5939 = vadd.f32 %v5935, %v5938
      %vm5940 = vweird.f32 %v5797
      %vm5941 = vweird.f32 %v5935
      %vm5942 = vmor %vm5940, %vm5941
      %v5943 = vsel %vm5942, %v5935, %v5939
      %v5944 = vand.u32 2147483647, %v5797
      %vm5945 = vcmp.eq.f32.partialorder %v5944, 8.507059e+37
      %v5946 = vand.u32 %v5797, 2147483648
      %v5947 = vor.u32 1.1754944e-38, %v5946
      %v5948 = vsel %vm5945, %v5947, %v5943
      %v5949 = vrcp.pop %v5800
      %v5950 = vmul.f32 %v5800, %v5949
      %v5951 = vsub.f32 1.0, %v5950
      %v5952 = vmul.f32 %v5949, %v5951
      %v5953 = vadd.f32 %v5949, %v5952
      %vm5954 = vweird.f32 %v5800
      %vm5955 = vweird.f32 %v5949
      %vm5956 = vmor %vm5954, %vm5955
      %v5957 = vsel %vm5956, %v5949, %v5953
      %v5958 = vand.u32 2147483647, %v5800
      %vm5959 = vcmp.eq.f32.partialorder %v5958, 8.507059e+37
      %v5960 = vand.u32 %v5800, 2147483648
      %v5961 = vor.u32 1.1754944e-38, %v5960
      %v5962 = vsel %vm5959, %v5961, %v5957
      %v5963 = vrcp.pop %v5803
      %v5964 = vmul.f32 %v5803, %v5963
      %v5965 = vsub.f32 1.0, %v5964
      %v5966 = vmul.f32 %v5963, %v5965
      %v5967 = vadd.f32 %v5963, %v5966
      %vm5968 = vweird.f32 %v5803
      %vm5969 = vweird.f32 %v5963
      %vm5970 = vmor %vm5968, %vm5969
      %v5971 = vsel %vm5970, %v5963, %v5967
      %v5972 = vand.u32 2147483647, %v5803
      %vm5973 = vcmp.eq.f32.partialorder %v5972, 8.507059e+37
      %v5974 = vand.u32 %v5803, 2147483648
      %v5975 = vor.u32 1.1754944e-38, %v5974
      %v5976 = vsel %vm5973, %v5975, %v5971
      %v5977 = vrcp.pop %v5806
      %v5978 = vmul.f32 %v5806, %v5977
      %v5979 = vsub.f32 1.0, %v5978
      %v5980 = vmul.f32 %v5977, %v5979
      %v5981 = vadd.f32 %v5977, %v5980
      %vm5982 = vweird.f32 %v5806
      %vm5983 = vweird.f32 %v5977
      %vm5984 = vmor %vm5982, %vm5983
      %v5985 = vsel %vm5984, %v5977, %v5981
      %v5986 = vand.u32 2147483647, %v5806
      %vm5987 = vcmp.eq.f32.partialorder %v5986, 8.507059e+37
      %v5988 = vand.u32 %v5806, 2147483648
      %v5989 = vor.u32 1.1754944e-38, %v5988
      %v5990 = vsel %vm5987, %v5989, %v5985
      %v5991 = vrcp.pop %v5809
      %v5992 = vmul.f32 %v5809, %v5991
      %v5993 = vsub.f32 1.0, %v5992
      %v5994 = vmul.f32 %v5991, %v5993
      %v5995 = vadd.f32 %v5991, %v5994
      %vm5996 = vweird.f32 %v5809
      %vm5997 = vweird.f32 %v5991
      %vm5998 = vmor %vm5996, %vm5997
      %v5999 = vsel %vm5998, %v5991, %v5995
      %v6000 = vand.u32 2147483647, %v5809
      %vm6001 = vcmp.eq.f32.partialorder %v6000, 8.507059e+37
      %v6002 = vand.u32 %v5809, 2147483648
      %v6003 = vor.u32 1.1754944e-38, %v6002
      %v6004 = vsel %vm6001, %v6003, %v5999
      %v6005 = vrcp.pop %v5812
      %v6006 = vmul.f32 %v5812, %v6005
      %v6007 = vsub.f32 1.0, %v6006
      %v6008 = vmul.f32 %v6005, %v6007
      %v6009 = vadd.f32 %v6005, %v6008
      %vm6010 = vweird.f32 %v5812
      %vm6011 = vweird.f32 %v6005
      %vm6012 = vmor %vm6010, %vm6011
      %v6013 = vsel %vm6012, %v6005, %v6009
      %v6014 = vand.u32 2147483647, %v5812
      %vm6015 = vcmp.eq.f32.partialorder %v6014, 8.507059e+37
      %v6016 = vand.u32 %v5812, 2147483648
      %v6017 = vor.u32 1.1754944e-38, %v6016
      %v6018 = vsel %vm6015, %v6017, %v6013
      %v6019 = vrcp.pop %v5815
      %v6020 = vmul.f32 %v5815, %v6019
      %v6021 = vsub.f32 1.0, %v6020
      %v6022 = vmul.f32 %v6019, %v6021
      %v6023 = vadd.f32 %v6019, %v6022
      %vm6024 = vweird.f32 %v5815
      %vm6025 = vweird.f32 %v6019
      %vm6026 = vmor %vm6024, %vm6025
      %v6027 = vsel %vm6026, %v6019, %v6023
      %v6028 = vand.u32 2147483647, %v5815
      %vm6029 = vcmp.eq.f32.partialorder %v6028, 8.507059e+37
      %v6030 = vand.u32 %v5815, 2147483648
      %v6031 = vor.u32 1.1754944e-38, %v6030
      %v6032 = vsel %vm6029, %v6031, %v6027
      %v6033 = vrcp.pop %v5818
      %v6034 = vmul.f32 %v5818, %v6033
      %v6035 = vsub.f32 1.0, %v6034
      %v6036 = vmul.f32 %v6033, %v6035
      %v6037 = vadd.f32 %v6033, %v6036
      %vm6038 = vweird.f32 %v5818
      %vm6039 = vweird.f32 %v6033
      %vm6040 = vmor %vm6038, %vm6039
      %v6041 = vsel %vm6040, %v6033, %v6037
      %v6042 = vand.u32 2147483647, %v5818
      %vm6043 = vcmp.eq.f32.partialorder %v6042, 8.507059e+37
      %v6044 = vand.u32 %v5818, 2147483648
      %v6045 = vor.u32 1.1754944e-38, %v6044
      %v6046 = vsel %vm6043, %v6045, %v6041
      %v6047 = vrcp.pop %v5821
      %v6048 = vmul.f32 %v5821, %v6047
      %v6049 = vsub.f32 1.0, %v6048
      %v6050 = vmul.f32 %v6047, %v6049
      %v6051 = vadd.f32 %v6047, %v6050
      %vm6052 = vweird.f32 %v5821
      %vm6053 = vweird.f32 %v6047
      %vm6054 = vmor %vm6052, %vm6053
      %v6055 = vsel %vm6054, %v6047, %v6051
      %v6056 = vand.u32 2147483647, %v5821
      %vm6057 = vcmp.eq.f32.partialorder %v6056, 8.507059e+37
      %v6058 = vand.u32 %v5821, 2147483648
      %v6059 = vor.u32 1.1754944e-38, %v6058
      %v6060 = vsel %vm6057, %v6059, %v6055
      %v6061 = vrcp.pop %v5824
      %v6062 = vmul.f32 %v5824, %v6061
      %v6063 = vsub.f32 1.0, %v6062
      %v6064 = vmul.f32 %v6061, %v6063
      %v6065 = vadd.f32 %v6061, %v6064
      %vm6066 = vweird.f32 %v5824
      %vm6067 = vweird.f32 %v6061
      %vm6068 = vmor %vm6066, %vm6067
      %v6069 = vsel %vm6068, %v6061, %v6065
      %v6070 = vand.u32 2147483647, %v5824
      %vm6071 = vcmp.eq.f32.partialorder %v6070, 8.507059e+37
      %v6072 = vand.u32 %v5824, 2147483648
      %v6073 = vor.u32 1.1754944e-38, %v6072
      %v6074 = vsel %vm6071, %v6073, %v6069
      %v6075 = vrcp.pop %v5827
      %v6076 = vmul.f32 %v5827, %v6075
      %v6077 = vsub.f32 1.0, %v6076
      %v6078 = vmul.f32 %v6075, %v6077
      %v6079 = vadd.f32 %v6075, %v6078
      %vm6080 = vweird.f32 %v5827
      %vm6081 = vweird.f32 %v6075
      %vm6082 = vmor %vm6080, %vm6081
      %v6083 = vsel %vm6082, %v6075, %v6079
      %v6084 = vand.u32 2147483647, %v5827
      %vm6085 = vcmp.eq.f32.partialorder %v6084, 8.507059e+37
      %v6086 = vand.u32 %v5827, 2147483648
      %v6087 = vor.u32 1.1754944e-38, %v6086
      %v6088 = vsel %vm6085, %v6087, %v6083
      %v6089 = vrcp.pop %v5830
      %v6090 = vmul.f32 %v5830, %v6089
      %v6091 = vsub.f32 1.0, %v6090
      %v6092 = vmul.f32 %v6089, %v6091
      %v6093 = vadd.f32 %v6089, %v6092
      %vm6094 = vweird.f32 %v5830
      %vm6095 = vweird.f32 %v6089
      %vm6096 = vmor %vm6094, %vm6095
      %v6097 = vsel %vm6096, %v6089, %v6093
      %v6098 = vand.u32 2147483647, %v5830
      %vm6099 = vcmp.eq.f32.partialorder %v6098, 8.507059e+37
      %v6100 = vand.u32 %v5830, 2147483648
      %v6101 = vor.u32 1.1754944e-38, %v6100
      %v6102 = vsel %vm6099, %v6101, %v6097
      %v6103 = vrcp.pop %v5833
      %v6104 = vmul.f32 %v5833, %v6103
      %v6105 = vsub.f32 1.0, %v6104
      %v6106 = vmul.f32 %v6103, %v6105
      %v6107 = vadd.f32 %v6103, %v6106
      %vm6108 = vweird.f32 %v5833
      %vm6109 = vweird.f32 %v6103
      %vm6110 = vmor %vm6108, %vm6109
      %v6111 = vsel %vm6110, %v6103, %v6107
      %v6112 = vand.u32 2147483647, %v5833
      %vm6113 = vcmp.eq.f32.partialorder %v6112, 8.507059e+37
      %v6114 = vand.u32 %v5833, 2147483648
      %v6115 = vor.u32 1.1754944e-38, %v6114
      %v6116 = vsel %vm6113, %v6115, %v6111
      %v6117 = vrcp.pop %v5836
      %v6118 = vmul.f32 %v5836, %v6117
      %v6119 = vsub.f32 1.0, %v6118
      %v6120 = vmul.f32 %v6117, %v6119
      %v6121 = vadd.f32 %v6117, %v6120
      %vm6122 = vweird.f32 %v5836
      %vm6123 = vweird.f32 %v6117
      %vm6124 = vmor %vm6122, %vm6123
      %v6125 = vsel %vm6124, %v6117, %v6121
      %v6126 = vand.u32 2147483647, %v5836
      %vm6127 = vcmp.eq.f32.partialorder %v6126, 8.507059e+37
      %v6128 = vand.u32 %v5836, 2147483648
      %v6129 = vor.u32 1.1754944e-38, %v6128
      %v6130 = vsel %vm6127, %v6129, %v6125
      %v6131 = vrcp.pop %v5839
      %v6132 = vmul.f32 %v5839, %v6131
      %v6133 = vsub.f32 1.0, %v6132
      %v6134 = vmul.f32 %v6131, %v6133
      %v6135 = vadd.f32 %v6131, %v6134
      %vm6136 = vweird.f32 %v5839
      %vm6137 = vweird.f32 %v6131
      %vm6138 = vmor %vm6136, %vm6137
      %v6139 = vsel %vm6138, %v6131, %v6135
      %v6140 = vand.u32 2147483647, %v5839
      %vm6141 = vcmp.eq.f32.partialorder %v6140, 8.507059e+37
      %v6142 = vand.u32 %v5839, 2147483648
      %v6143 = vor.u32 1.1754944e-38, %v6142
      %v6144 = vsel %vm6141, %v6143, %v6139
      %v6145 = vrcp.pop %v5842
      %v6146 = vmul.f32 %v5842, %v6145
      %v6147 = vsub.f32 1.0, %v6146
      %v6148 = vmul.f32 %v6145, %v6147
      %v6149 = vadd.f32 %v6145, %v6148
      %vm6150 = vweird.f32 %v5842
      %vm6151 = vweird.f32 %v6145
      %vm6152 = vmor %vm6150, %vm6151
      %v6153 = vsel %vm6152, %v6145, %v6149
      %v6154 = vand.u32 2147483647, %v5842
      %vm6155 = vcmp.eq.f32.partialorder %v6154, 8.507059e+37
      %v6156 = vand.u32 %v5842, 2147483648
      %v6157 = vor.u32 1.1754944e-38, %v6156
      %v6158 = vsel %vm6155, %v6157, %v6153
      %v6159 = vrcp.pop %v5845
      %v6160 = vmul.f32 %v5845, %v6159
      %v6161 = vsub.f32 1.0, %v6160
      %v6162 = vmul.f32 %v6159, %v6161
      %v6163 = vadd.f32 %v6159, %v6162
      %vm6164 = vweird.f32 %v5845
      %vm6165 = vweird.f32 %v6159
      %vm6166 = vmor %vm6164, %vm6165
      %v6167 = vsel %vm6166, %v6159, %v6163
      %v6168 = vand.u32 2147483647, %v5845
      %vm6169 = vcmp.eq.f32.partialorder %v6168, 8.507059e+37
      %v6170 = vand.u32 %v5845, 2147483648
      %v6171 = vor.u32 1.1754944e-38, %v6170
      %v6172 = vsel %vm6169, %v6171, %v6167
      %v6173 = vrcp.pop %v5848
      %v6174 = vmul.f32 %v5848, %v6173
      %v6175 = vsub.f32 1.0, %v6174
      %v6176 = vmul.f32 %v6173, %v6175
      %v6177 = vadd.f32 %v6173, %v6176
      %vm6178 = vweird.f32 %v5848
      %vm6179 = vweird.f32 %v6173
      %vm6180 = vmor %vm6178, %vm6179
      %v6181 = vsel %vm6180, %v6173, %v6177
      %v6182 = vand.u32 2147483647, %v5848
      %vm6183 = vcmp.eq.f32.partialorder %v6182, 8.507059e+37
      %v6184 = vand.u32 %v5848, 2147483648
      %v6185 = vor.u32 1.1754944e-38, %v6184
      %v6186 = vsel %vm6183, %v6185, %v6181
      %v6187 = vrcp.pop %v5851
      %v6188 = vmul.f32 %v5851, %v6187
      %v6189 = vsub.f32 1.0, %v6188
      %v6190 = vmul.f32 %v6187, %v6189
      %v6191 = vadd.f32 %v6187, %v6190
      %vm6192 = vweird.f32 %v5851
      %vm6193 = vweird.f32 %v6187
      %vm6194 = vmor %vm6192, %vm6193
      %v6195 = vsel %vm6194, %v6187, %v6191
      %v6196 = vand.u32 2147483647, %v5851
      %vm6197 = vcmp.eq.f32.partialorder %v6196, 8.507059e+37
      %v6198 = vand.u32 %v5851, 2147483648
      %v6199 = vor.u32 1.1754944e-38, %v6198
      %v6200 = vsel %vm6197, %v6199, %v6195
      %v6201 = vrcp.pop %v5854
      %v6202 = vmul.f32 %v5854, %v6201
      %v6203 = vsub.f32 1.0, %v6202
      %v6204 = vmul.f32 %v6201, %v6203
      %v6205 = vadd.f32 %v6201, %v6204
      %vm6206 = vweird.f32 %v5854
      %vm6207 = vweird.f32 %v6201
      %vm6208 = vmor %vm6206, %vm6207
      %v6209 = vsel %vm6208, %v6201, %v6205
      %v6210 = vand.u32 2147483647, %v5854
      %vm6211 = vcmp.eq.f32.partialorder %v6210, 8.507059e+37
      %v6212 = vand.u32 %v5854, 2147483648
      %v6213 = vor.u32 1.1754944e-38, %v6212
      %v6214 = vsel %vm6211, %v6213, %v6209
      %v6215 = vrcp.pop %v5857
      %v6216 = vmul.f32 %v5857, %v6215
      %v6217 = vsub.f32 1.0, %v6216
      %v6218 = vmul.f32 %v6215, %v6217
      %v6219 = vadd.f32 %v6215, %v6218
      %vm6220 = vweird.f32 %v5857
      %vm6221 = vweird.f32 %v6215
      %vm6222 = vmor %vm6220, %vm6221
      %v6223 = vsel %vm6222, %v6215, %v6219
      %v6224 = vand.u32 2147483647, %v5857
      %vm6225 = vcmp.eq.f32.partialorder %v6224, 8.507059e+37
      %v6226 = vand.u32 %v5857, 2147483648
      %v6227 = vor.u32 1.1754944e-38, %v6226
      %v6228 = vsel %vm6225, %v6227, %v6223
      %v6229 = vrcp.pop %v5860
      %v6230 = vmul.f32 %v5860, %v6229
      %v6231 = vsub.f32 1.0, %v6230
      %v6232 = vmul.f32 %v6229, %v6231
      %v6233 = vadd.f32 %v6229, %v6232
      %vm6234 = vweird.f32 %v5860
      %vm6235 = vweird.f32 %v6229
      %vm6236 = vmor %vm6234, %vm6235
      %v6237 = vsel %vm6236, %v6229, %v6233
      %v6238 = vand.u32 2147483647, %v5860
      %vm6239 = vcmp.eq.f32.partialorder %v6238, 8.507059e+37
      %v6240 = vand.u32 %v5860, 2147483648
      %v6241 = vor.u32 1.1754944e-38, %v6240
      %v6242 = vsel %vm6239, %v6241, %v6237
      %v6243 = vrcp.pop %v5863
      %v6244 = vmul.f32 %v5863, %v6243
      %v6245 = vsub.f32 1.0, %v6244
      %v6246 = vmul.f32 %v6243, %v6245
      %v6247 = vadd.f32 %v6243, %v6246
      %vm6248 = vweird.f32 %v5863
      %vm6249 = vweird.f32 %v6243
      %vm6250 = vmor %vm6248, %vm6249
      %v6251 = vsel %vm6250, %v6243, %v6247
      %v6252 = vand.u32 2147483647, %v5863
      %vm6253 = vcmp.eq.f32.partialorder %v6252, 8.507059e+37
      %v6254 = vand.u32 %v5863, 2147483648
      %v6255 = vor.u32 1.1754944e-38, %v6254
      %v6256 = vsel %vm6253, %v6255, %v6251
      %v6257 = vrcp.pop %v5866
      %v6258 = vmul.f32 %v5866, %v6257
      %v6259 = vsub.f32 1.0, %v6258
      %v6260 = vmul.f32 %v6257, %v6259
      %v6261 = vadd.f32 %v6257, %v6260
      %vm6262 = vweird.f32 %v5866
      %vm6263 = vweird.f32 %v6257
      %vm6264 = vmor %vm6262, %vm6263
      %v6265 = vsel %vm6264, %v6257, %v6261
      %v6266 = vand.u32 2147483647, %v5866
      %vm6267 = vcmp.eq.f32.partialorder %v6266, 8.507059e+37
      %v6268 = vand.u32 %v5866, 2147483648
      %v6269 = vor.u32 1.1754944e-38, %v6268
      %v6270 = vsel %vm6267, %v6269, %v6265
      %v6271 = vrcp.pop %v5869
      %v6272 = vmul.f32 %v5869, %v6271
      %v6273 = vsub.f32 1.0, %v6272
      %v6274 = vmul.f32 %v6271, %v6273
      %v6275 = vadd.f32 %v6271, %v6274
      %vm6276 = vweird.f32 %v5869
      %vm6277 = vweird.f32 %v6271
      %vm6278 = vmor %vm6276, %vm6277
      %v6279 = vsel %vm6278, %v6271, %v6275
      %v6280 = vand.u32 2147483647, %v5869
      %vm6281 = vcmp.eq.f32.partialorder %v6280, 8.507059e+37
      %v6282 = vand.u32 %v5869, 2147483648
      %v6283 = vor.u32 1.1754944e-38, %v6282
      %v6284 = vsel %vm6281, %v6283, %v6279
      %v6285 = vrcp.pop %v5872
      %v6286 = vmul.f32 %v5872, %v6285
      %v6287 = vsub.f32 1.0, %v6286
      %v6288 = vmul.f32 %v6285, %v6287
      %v6289 = vadd.f32 %v6285, %v6288
      %vm6290 = vweird.f32 %v5872
      %vm6291 = vweird.f32 %v6285
      %vm6292 = vmor %vm6290, %vm6291
      %v6293 = vsel %vm6292, %v6285, %v6289
      %v6294 = vand.u32 2147483647, %v5872
      %vm6295 = vcmp.eq.f32.partialorder %v6294, 8.507059e+37
      %v6296 = vand.u32 %v5872, 2147483648
      %v6297 = vor.u32 1.1754944e-38, %v6296
      %v6298 = vsel %vm6295, %v6297, %v6293
      %v6299 = vrcp.pop %v5875
      %v6300 = vmul.f32 %v5875, %v6299
      %v6301 = vsub.f32 1.0, %v6300
      %v6302 = vmul.f32 %v6299, %v6301
      %v6303 = vadd.f32 %v6299, %v6302
      %vm6304 = vweird.f32 %v5875
      %vm6305 = vweird.f32 %v6299
      %vm6306 = vmor %vm6304, %vm6305
      %v6307 = vsel %vm6306, %v6299, %v6303
      %v6308 = vand.u32 2147483647, %v5875
      %vm6309 = vcmp.eq.f32.partialorder %v6308, 8.507059e+37
      %v6310 = vand.u32 %v5875, 2147483648
      %v6311 = vor.u32 1.1754944e-38, %v6310
      %v6312 = vsel %vm6309, %v6311, %v6307
      %v6313 = vrcp.pop %v5878
      %v6314 = vmul.f32 %v5878, %v6313
      %v6315 = vsub.f32 1.0, %v6314
      %v6316 = vmul.f32 %v6313, %v6315
      %v6317 = vadd.f32 %v6313, %v6316
      %vm6318 = vweird.f32 %v5878
      %vm6319 = vweird.f32 %v6313
      %vm6320 = vmor %vm6318, %vm6319
      %v6321 = vsel %vm6320, %v6313, %v6317
      %v6322 = vand.u32 2147483647, %v5878
      %vm6323 = vcmp.eq.f32.partialorder %v6322, 8.507059e+37
      %v6324 = vand.u32 %v5878, 2147483648
      %v6325 = vor.u32 1.1754944e-38, %v6324
      %v6326 = vsel %vm6323, %v6325, %v6321
      %v6327 = vmul.f32 %v5656, %v5892
      %v6328 = vmul.f32 %v5658, %v5892
      %v6329 = vmul.f32 %v5660, %v5906
      %v6330 = vmul.f32 %v5662, %v5906
      %v6331 = vmul.f32 %v5664, %v5920
      %v6332 = vmul.f32 %v5666, %v5920
      %v6333 = vmul.f32 %v5668, %v5934
      %v6334 = vmul.f32 %v5670, %v5934
      %v6335 = vmul.f32 %v5672, %v5948
      %v6336 = vmul.f32 %v5674, %v5948
      %v6337 = vmul.f32 %v5676, %v5962
      %v6338 = vmul.f32 %v5678, %v5962
      %v6339 = vmul.f32 %v5680, %v5976
      %v6340 = vmul.f32 %v5682, %v5976
      %v6341 = vmul.f32 %v5684, %v5990
      %v6342 = vmul.f32 %v5686, %v5990
      %v6343 = vmul.f32 %v5688, %v6004
      %v6344 = vmul.f32 %v5690, %v6004
      %v6345 = vmul.f32 %v5692, %v6018
      %v6346 = vmul.f32 %v5694, %v6018
      %v6347 = vmul.f32 %v5696, %v6032
      %v6348 = vmul.f32 %v5698, %v6032
      %v6349 = vmul.f32 %v5700, %v6046
      %v6350 = vmul.f32 %v5702, %v6046
      %v6351 = vmul.f32 %v5704, %v6060
      %v6352 = vmul.f32 %v5706, %v6060
      %v6353 = vmul.f32 %v5708, %v6074
      %v6354 = vmul.f32 %v5710, %v6074
      %v6355 = vmul.f32 %v5712, %v6088
      %v6356 = vmul.f32 %v5714, %v6088
      %v6357 = vmul.f32 %v5716, %v6102
      %v6358 = vmul.f32 %v5718, %v6102
      %v6359 = vmul.f32 %v5720, %v6116
      %v6360 = vmul.f32 %v5722, %v6116
      %v6361 = vmul.f32 %v5724, %v6130
      %v6362 = vmul.f32 %v5726, %v6130
      %v6363 = vmul.f32 %v5728, %v6144
      %v6364 = vmul.f32 %v5730, %v6144
      %v6365 = vmul.f32 %v5732, %v6158
      %v6366 = vmul.f32 %v5734, %v6158
      %v6367 = vmul.f32 %v5736, %v6172
      %v6368 = vmul.f32 %v5738, %v6172
      %v6369 = vmul.f32 %v5740, %v6186
      %v6370 = vmul.f32 %v5742, %v6186
      %v6371 = vmul.f32 %v5744, %v6200
      %v6372 = vmul.f32 %v5746, %v6200
      %v6373 = vmul.f32 %v5748, %v6214
      %v6374 = vmul.f32 %v5750, %v6214
      %v6375 = vmul.f32 %v5752, %v6228
      %v6376 = vmul.f32 %v5754, %v6228
      %v6377 = vmul.f32 %v5756, %v6242
      %v6378 = vmul.f32 %v5758, %v6242
      %v6379 = vmul.f32 %v5760, %v6256
      %v6380 = vmul.f32 %v5762, %v6256
      %v6381 = vmul.f32 %v5764, %v6270
      %v6382 = vmul.f32 %v5766, %v6270
      %v6383 = vmul.f32 %v5768, %v6284
      %v6384 = vmul.f32 %v5770, %v6284
      %v6385 = vmul.f32 %v5772, %v6298
      %v6386 = vmul.f32 %v5774, %v6298
      %v6387 = vmul.f32 %v5776, %v6312
      %v6388 = vmul.f32 %v5778, %v6312
      %v6389 = vmul.f32 %v5780, %v6326
      %v6390 = vmul.f32 %v5782, %v6326
      %v6391 = vpack.c.bf16 %v5095, %v5093
      %v6392 = vpack.c.bf16 %v5114, %v5112
      %v6393 = vpack.c.bf16 %v5100, %v5098
      %v6394 = vpack.c.bf16 %v5119, %v5117
      %v6395 = vpack.c.bf16 %v6329, %v6327
      %v6396 = vpack.c.bf16 %v6330, %v6328
      %v6397 = vpack.c.bf16 %v6333, %v6331
      %v6398 = vpack.c.bf16 %v6334, %v6332
      %v6399 = vpack.c.bf16 %v6337, %v6335
      %v6400 = vpack.c.bf16 %v6338, %v6336
      %v6401 = vpack.c.bf16 %v6341, %v6339
      %v6402 = vpack.c.bf16 %v6342, %v6340
      %v6403 = vpack.c.bf16 %v6345, %v6343
      %v6404 = vpack.c.bf16 %v6346, %v6344
      %v6405 = vpack.c.bf16 %v6349, %v6347
      %v6406 = vpack.c.bf16 %v6350, %v6348
      %v6407 = vpack.c.bf16 %v6353, %v6351
      %v6408 = vpack.c.bf16 %v6354, %v6352
      %v6409 = vpack.c.bf16 %v6357, %v6355
      %v6410 = vpack.c.bf16 %v6358, %v6356
      %v6411 = vpack.c.bf16 %v6361, %v6359
      %v6412 = vpack.c.bf16 %v6362, %v6360
      %v6413 = vpack.c.bf16 %v6365, %v6363
      %v6414 = vpack.c.bf16 %v6366, %v6364
      %v6415 = vpack.c.bf16 %v6369, %v6367
      %v6416 = vpack.c.bf16 %v6370, %v6368
      %v6417 = vpack.c.bf16 %v6373, %v6371
      %v6418 = vpack.c.bf16 %v6374, %v6372
      %v6419 = vpack.c.bf16 %v6377, %v6375
      %v6420 = vpack.c.bf16 %v6378, %v6376
      %v6421 = vpack.c.bf16 %v6381, %v6379
      %v6422 = vpack.c.bf16 %v6382, %v6380
      %v6423 = vpack.c.bf16 %v6385, %v6383
      %v6424 = vpack.c.bf16 %v6386, %v6384
      %v6425 = vpack.c.bf16 %v6389, %v6387
      %v6426 = vpack.c.bf16 %v6390, %v6388
      %6427 = vmatpush.bf16.xpose.msra.mxu0 %v6409
      %6428 = vmatpush.bf16.xpose.msra.mxu0 %v6407
      %6429 = vmatpush.bf16.xpose.msra.mxu0 %v6405
      %6430 = vmatpush.bf16.xpose.msra.mxu0 %v6403
      %6431 = vmatpush.bf16.xpose.msra.mxu0 %v6401
      %6432 = vmatpush.bf16.xpose.msra.mxu0 %v6399
      %6433 = vmatpush.bf16.xpose.msra.mxu0 %v6397
      %6434 = vmatpush.bf16.xpose.msra.mxu0 %v6395
      %6435 = vmatmul.bf16.gmra.mxu0 %v6391
      %v6436 = vpop.f32.mrf.mxu0
      %v6437 = vadd.f32 0.0, %v6436
      %v6438 = vpop.f32.mrf.mxu0
      %v6439 = vadd.f32 0.0, %v6438
      %6440 = vmatmul.bf16.gmra.mxu0 %v6393
      %v6441 = vpop.f32.mrf.mxu0
      %v6442 = vadd.f32 0.0, %v6441
      %v6443 = vpop.f32.mrf.mxu0
      %v6444 = vadd.f32 0.0, %v6443
      %6445 = vdwg.mxu0
      %6446 = vmatpush.bf16.xpose.msra.mxu0 %v6410
      %6447 = vmatpush.bf16.xpose.msra.mxu0 %v6408
      %6448 = vmatpush.bf16.xpose.msra.mxu0 %v6406
      %6449 = vmatpush.bf16.xpose.msra.mxu0 %v6404
      %6450 = vmatpush.bf16.xpose.msra.mxu0 %v6402
      %6451 = vmatpush.bf16.xpose.msra.mxu0 %v6400
      %6452 = vmatpush.bf16.xpose.msra.mxu0 %v6398
      %6453 = vmatpush.bf16.xpose.msra.mxu0 %v6396
      %6454 = vmatmul.bf16.gmra.mxu0 %v6392
      %v6455 = vpop.f32.mrf.mxu0
      %v6456 = vadd.f32 %v6437, %v6455
      %v6457 = vpop.f32.mrf.mxu0
      %v6458 = vadd.f32 %v6439, %v6457
      %6459 = vmatmul.bf16.gmra.mxu0 %v6394
      %v6460 = vpop.f32.mrf.mxu0
      %v6461 = vadd.f32 %v6442, %v6460
      %v6462 = vpop.f32.mrf.mxu0
      %v6463 = vadd.f32 %v6444, %v6462
      %6464 = vdwg.mxu0
      %6465 = vmatpush.bf16.xpose.msra.mxu0 %v6425
      %6466 = vmatpush.bf16.xpose.msra.mxu0 %v6423
      %6467 = vmatpush.bf16.xpose.msra.mxu0 %v6421
      %6468 = vmatpush.bf16.xpose.msra.mxu0 %v6419
      %6469 = vmatpush.bf16.xpose.msra.mxu0 %v6417
      %6470 = vmatpush.bf16.xpose.msra.mxu0 %v6415
      %6471 = vmatpush.bf16.xpose.msra.mxu0 %v6413
      %6472 = vmatpush.bf16.xpose.msra.mxu0 %v6411
      %6473 = vmatmul.bf16.gmra.mxu0 %v6391
      %v6474 = vpop.f32.mrf.mxu0
      %v6475 = vadd.f32 0.0, %v6474
      %v6476 = vpop.f32.mrf.mxu0
      %v6477 = vadd.f32 0.0, %v6476
      %6478 = vmatmul.bf16.gmra.mxu0 %v6393
      %v6479 = vpop.f32.mrf.mxu0
      %v6480 = vadd.f32 0.0, %v6479
      %v6481 = vpop.f32.mrf.mxu0
      %v6482 = vadd.f32 0.0, %v6481
      %6483 = vdwg.mxu0
      %6484 = vmatpush.bf16.xpose.msra.mxu0 %v6426
      %6485 = vmatpush.bf16.xpose.msra.mxu0 %v6424
      %6486 = vmatpush.bf16.xpose.msra.mxu0 %v6422
      %6487 = vmatpush.bf16.xpose.msra.mxu0 %v6420
      %6488 = vmatpush.bf16.xpose.msra.mxu0 %v6418
      %6489 = vmatpush.bf16.xpose.msra.mxu0 %v6416
      %6490 = vmatpush.bf16.xpose.msra.mxu0 %v6414
      %6491 = vmatpush.bf16.xpose.msra.mxu0 %v6412
      %6492 = vmatmul.bf16.gmra.mxu0 %v6392
      %v6493 = vpop.f32.mrf.mxu0
      %v6494 = vadd.f32 %v6475, %v6493
      %v6495 = vpop.f32.mrf.mxu0
      %v6496 = vadd.f32 %v6477, %v6495
      %6497 = vmatmul.bf16.gmra.mxu0 %v6394
      %v6498 = vpop.f32.mrf.mxu0
      %v6499 = vadd.f32 %v6480, %v6498
      %v6500 = vpop.f32.mrf.mxu0
      %v6501 = vadd.f32 %v6482, %v6500
      %6502 = vdwg.mxu0
      %v6503 = vld [vmem:[%s59] sm:$0xf]
      %v6504 = vld [vmem:[%s59 + $0x4] sm:$0xf]
      %v6505 = vld [vmem:[%s59 + $0x8] sm:$0xf]
      %v6506 = vld [vmem:[%s59 + $0xc] sm:$0xf]
      %v6507 = vpack.c.bf16 %v6458, %v6456
      %v6508 = vpack.c.bf16 %v6496, %v6494
      %v6509 = vpack.c.bf16 %v6463, %v6461
      %v6510 = vpack.c.bf16 %v6501, %v6499
      %v6511 = vld [vmem:[%s61] sm:$0xff]
      %v6512 = vld [vmem:[%s61 + $0x8] sm:$0xff]
      %v6513 = vld [vmem:[%s61 + $0x10] sm:$0xff]
      %v6514 = vld [vmem:[%s61 + $0x18] sm:$0xff]
      %6516 = vset.pattern.permute.xlu0 0
      %6517 = vperm.xlu0 %6516, %v6511
      %v6518 = vpop.permute.xlu0 %6517
      %6521 = vset.pattern.permute.xlu0 0
      %6522 = vperm.xlu0 %6521, %v6512
      %v6523 = vpop.permute.xlu0 %6522
      %6526 = vset.pattern.permute.xlu0 0
      %6527 = vperm.xlu0 %6526, %v6513
      %v6528 = vpop.permute.xlu0 %6527
      %6531 = vset.pattern.permute.xlu0 0
      %6532 = vperm.xlu0 %6531, %v6514
      %v6533 = vpop.permute.xlu0 %6532
      %v6539 = vunpack.c.l.b16 %v6503
      %v6540 = vunpack.c.l.b16 %v6504
      %v6541 = vunpack.c.l.b16 %v6505
      %v6542 = vunpack.c.l.b16 %v6506
      %v6543 = vpack.c.b16 %v6540, %v6539
      %v6544 = vpack.c.b16 %v6542, %v6541
      %v6546 = vsel %vm1651, %v6543, 0
      %v6549 = vsel %vm1651, %v6544, 0
      %6551 = vmatpush.bf16.msra.mxu0 0
      %6552 = vmatpush.bf16.msra.mxu0 0
      %6553 = vmatpush.bf16.msra.mxu0 0
      %6554 = vmatpush.bf16.msra.mxu0 0
      %6555 = vmatpush.bf16.msra.mxu0 0
      %6556 = vmatpush.bf16.msra.mxu0 0
      %6557 = vmatpush.bf16.msra.mxu0 %v6509
      %6558 = vmatpush.bf16.msra.mxu0 %v6507
      %6559 = vmatmul.bf16.gmra.mxu0 %v6546
      %v6560 = vpop.f32.mrf.mxu0
      %v6561 = vadd.f32 %v6518, %v6560
      %v6562 = vpop.f32.mrf.mxu0
      %v6563 = vadd.f32 %v6523, %v6562
      %6564 = vmatmul.bf16.gmra.mxu0 %v6549
      %v6565 = vpop.f32.mrf.mxu0
      %v6566 = vadd.f32 %v6528, %v6565
      %v6567 = vpop.f32.mrf.mxu0
      %v6568 = vadd.f32 %v6533, %v6567
      %6569 = vdwg.mxu0
      %6570 = vmatpush.bf16.msra.mxu0 0
      %6571 = vmatpush.bf16.msra.mxu0 0
      %6572 = vmatpush.bf16.msra.mxu0 0
      %6573 = vmatpush.bf16.msra.mxu0 0
      %6574 = vmatpush.bf16.msra.mxu0 0
      %6575 = vmatpush.bf16.msra.mxu0 0
      %6576 = vmatpush.bf16.msra.mxu0 %v6510
      %6577 = vmatpush.bf16.msra.mxu0 %v6508
      %6578 = vmatmul.bf16.gmra.mxu0 %v6546
      %v6579 = vpop.f32.mrf.mxu0
      %v6580 = vadd.f32 %v6518, %v6579
      %v6581 = vpop.f32.mrf.mxu0
      %v6582 = vadd.f32 %v6523, %v6581
      %6583 = vmatmul.bf16.gmra.mxu0 %v6549
      %v6584 = vpop.f32.mrf.mxu0
      %v6585 = vadd.f32 %v6528, %v6584
      %v6586 = vpop.f32.mrf.mxu0
      %v6587 = vadd.f32 %v6533, %v6586
      %6588 = vdwg.mxu0
      %v6589 = vadd.f32 %v4571, %v6561
      %v6590 = vadd.f32 %v4572, %v6580
      %v6591 = vadd.f32 %v4573, %v6563
      %v6592 = vadd.f32 %v4574, %v6582
      %v6593 = vadd.f32 %v4575, %v6566
      %v6594 = vadd.f32 %v4576, %v6585
      %v6595 = vadd.f32 %v4577, %v6568
      %v6596 = vadd.f32 %v4578, %v6587
      %v6597 = vpack.c.bf16 %v6591, %v6589
      %v6598 = vpack.c.bf16 %v6592, %v6590
      %v6599 = vpack.c.bf16 %v6595, %v6593
      %v6600 = vpack.c.bf16 %v6596, %v6594
      %v6601 = vld [vmem:[%s13] sm:$0xf]
      %v6602 = vld [vmem:[%s13 + $0x4] sm:$0xf]
      %v6603 = vld [vmem:[%s13 + $0x8] sm:$0xf]
      %v6604 = vld [vmem:[%s13 + $0xc] sm:$0xf]
      %v6605 = vld [vmem:[%s13 + $0x10] sm:$0xf]
      %v6606 = vld [vmem:[%s13 + $0x14] sm:$0xf]
      %v6607 = vld [vmem:[%s13 + $0x18] sm:$0xf]
      %v6608 = vld [vmem:[%s13 + $0x1c] sm:$0xf]
      %v6609 = vld [vmem:[%s13 + $0x20] sm:$0xf]
      %v6610 = vld [vmem:[%s13 + $0x24] sm:$0xf]
      %v6611 = vld [vmem:[%s13 + $0x28] sm:$0xf]
      %v6612 = vld [vmem:[%s13 + $0x2c] sm:$0xf]
      %v6613 = vld [vmem:[%s13 + $0x30] sm:$0xf]
      %v6614 = vld [vmem:[%s13 + $0x34] sm:$0xf]
      %v6615 = vld [vmem:[%s13 + $0x38] sm:$0xf]
      %v6616 = vld [vmem:[%s13 + $0x3c] sm:$0xf]
      %v6617 = vld [vmem:[%s13 + $0x40] sm:$0xf]
      %v6618 = vld [vmem:[%s13 + $0x44] sm:$0xf]
      %v6619 = vld [vmem:[%s13 + $0x48] sm:$0xf]
      %v6620 = vld [vmem:[%s13 + $0x4c] sm:$0xf]
      %v6621 = vld [vmem:[%s13 + $0x50] sm:$0xf]
      %v6622 = vld [vmem:[%s13 + $0x54] sm:$0xf]
      %v6623 = vld [vmem:[%s13 + $0x58] sm:$0xf]
      %v6624 = vld [vmem:[%s13 + $0x5c] sm:$0xf]
      %v6625 = vld [vmem:[%s13 + $0x60] sm:$0xf]
      %v6626 = vld [vmem:[%s13 + $0x64] sm:$0xf]
      %v6627 = vld [vmem:[%s13 + $0x68] sm:$0xf]
      %v6628 = vld [vmem:[%s13 + $0x6c] sm:$0xf]
      %v6629 = vld [vmem:[%s13 + $0x70] sm:$0xf]
      %v6630 = vld [vmem:[%s13 + $0x74] sm:$0xf]
      %v6631 = vld [vmem:[%s13 + $0x78] sm:$0xf]
      %v6632 = vld [vmem:[%s13 + $0x7c] sm:$0xf]
      %v6665 = vunpack.c.l.b16 %v6601
      %v6666 = vunpack.c.l.b16 %v6602
      %v6667 = vunpack.c.l.b16 %v6603
      %v6668 = vunpack.c.l.b16 %v6604
      %v6669 = vunpack.c.l.b16 %v6605
      %v6670 = vunpack.c.l.b16 %v6606
      %v6671 = vunpack.c.l.b16 %v6607
      %v6672 = vunpack.c.l.b16 %v6608
      %v6673 = vunpack.c.l.b16 %v6609
      %v6674 = vunpack.c.l.b16 %v6610
      %v6675 = vunpack.c.l.b16 %v6611
      %v6676 = vunpack.c.l.b16 %v6612
      %v6677 = vunpack.c.l.b16 %v6613
      %v6678 = vunpack.c.l.b16 %v6614
      %v6679 = vunpack.c.l.b16 %v6615
      %v6680 = vunpack.c.l.b16 %v6616
      %v6681 = vunpack.c.l.b16 %v6617
      %v6682 = vunpack.c.l.b16 %v6618
      %v6683 = vunpack.c.l.b16 %v6619
      %v6684 = vunpack.c.l.b16 %v6620
      %v6685 = vunpack.c.l.b16 %v6621
      %v6686 = vunpack.c.l.b16 %v6622
      %v6687 = vunpack.c.l.b16 %v6623
      %v6688 = vunpack.c.l.b16 %v6624
      %v6689 = vunpack.c.l.b16 %v6625
      %v6690 = vunpack.c.l.b16 %v6626
      %v6691 = vunpack.c.l.b16 %v6627
      %v6692 = vunpack.c.l.b16 %v6628
      %v6693 = vunpack.c.l.b16 %v6629
      %v6694 = vunpack.c.l.b16 %v6630
      %v6695 = vunpack.c.l.b16 %v6631
      %v6696 = vunpack.c.l.b16 %v6632
      %v6697 = vpack.c.b16 %v6666, %v6665
      %v6698 = vpack.c.b16 %v6668, %v6667
      %v6699 = vpack.c.b16 %v6670, %v6669
      %v6700 = vpack.c.b16 %v6672, %v6671
      %v6701 = vpack.c.b16 %v6674, %v6673
      %v6702 = vpack.c.b16 %v6676, %v6675
      %v6703 = vpack.c.b16 %v6678, %v6677
      %v6704 = vpack.c.b16 %v6680, %v6679
      %v6705 = vpack.c.b16 %v6682, %v6681
      %v6706 = vpack.c.b16 %v6684, %v6683
      %v6707 = vpack.c.b16 %v6686, %v6685
      %v6708 = vpack.c.b16 %v6688, %v6687
      %v6709 = vpack.c.b16 %v6690, %v6689
      %v6710 = vpack.c.b16 %v6692, %v6691
      %v6711 = vpack.c.b16 %v6694, %v6693
      %v6712 = vpack.c.b16 %v6696, %v6695
      %6729 = vmatpush.bf16.msra.mxu0 %v6704
      %6730 = vmatpush.bf16.msra.mxu0 %v6703
      %6731 = vmatpush.bf16.msra.mxu0 %v6702
      %6732 = vmatpush.bf16.msra.mxu0 %v6701
      %6733 = vmatpush.bf16.msra.mxu0 %v6700
      %6734 = vmatpush.bf16.msra.mxu0 %v6699
      %6735 = vmatpush.bf16.msra.mxu0 %v6698
      %6736 = vmatpush.bf16.msra.mxu0 %v6697
      %6737 = vmatmul.bf16.gmra.mxu0 %v6597
      %v6738 = vpop.f32.mrf.mxu0
      %v6739 = vadd.f32 0.0, %v6738
      %v6740 = vpop.f32.mrf.mxu0
      %v6741 = vadd.f32 0.0, %v6740
      %6742 = vmatmul.bf16.gmra.mxu0 %v6599
      %v6743 = vpop.f32.mrf.mxu0
      %v6744 = vadd.f32 0.0, %v6743
      %v6745 = vpop.f32.mrf.mxu0
      %v6746 = vadd.f32 0.0, %v6745
      %6747 = vdwg.mxu0
      %6748 = vmatpush.bf16.msra.mxu0 %v6712
      %6749 = vmatpush.bf16.msra.mxu0 %v6711
      %6750 = vmatpush.bf16.msra.mxu0 %v6710
      %6751 = vmatpush.bf16.msra.mxu0 %v6709
      %6752 = vmatpush.bf16.msra.mxu0 %v6708
      %6753 = vmatpush.bf16.msra.mxu0 %v6707
      %6754 = vmatpush.bf16.msra.mxu0 %v6706
      %6755 = vmatpush.bf16.msra.mxu0 %v6705
      %6756 = vmatmul.bf16.gmra.mxu0 %v6598
      %v6757 = vpop.f32.mrf.mxu0
      %v6758 = vadd.f32 %v6739, %v6757
      %v6759 = vpop.f32.mrf.mxu0
      %v6760 = vadd.f32 %v6741, %v6759
      %6761 = vmatmul.bf16.gmra.mxu0 %v6600
      %v6762 = vpop.f32.mrf.mxu0
      %v6763 = vadd.f32 %v6744, %v6762
      %v6764 = vpop.f32.mrf.mxu0
      %v6765 = vadd.f32 %v6746, %v6764
      %6766 = vdwg.mxu0
      %vm6767 = vcmask 523264
      %6768 = vst.msk [vmem:[%s1079] sm:$0xff] %vm6767, %v6758
      %6769 = vst.msk [vmem:[%s1079 + $0x8] sm:$0xff] %vm6767, %v6760
      %6770 = vst.msk [vmem:[%s1079 + $0x10] sm:$0xff] %vm6767, %v6763
      %6771 = vst.msk [vmem:[%s1079 + $0x18] sm:$0xff] %vm6767, %v6765
      %p6772 = scmp.lt.s32.totalorder %s79, 1
      %s6773 = scalar_select %p6772, %s79, 1
      %s6774 = smul.addr %s6773, 8
      %s6775 = smul.addr %s6774, 8
      %s6776 = scalar_lea.vmem %s63, %s6775
      %p6777 = scmp.lt.s32.totalorder %s79, 1
      %s6778 = scalar_select %p6777, %s79, 1
      %s6779 = smul.addr %s6778, 8
      %s6780 = smul.addr %s6779, 8
      %s6781 = scalar_lea.vmem %s65, %s6780
      %p6782 = scmp.lt.s32.totalorder %s79, 1
      %s6783 = scalar_select %p6782, %s79, 1
      %s6784 = smul.addr %s6783, 4
      %s6785 = smul.addr %s6784, 8
      %s6786 = scalar_lea.vmem %s67, %s6785
      // Predicated region
      $region145: #{down_block.1} parent=143 // pred_check
        %p6787 = pneg %p763
      $region146: #{down_block.1} parent=143 // pred_check_branch
        %6789 = sbr.rel (%p6787) target = $region148
      $region147: #{down_block.1} parent=143 // pred_region
        _
      $region148: #{down_block.1} parent=143 // pred_fallthru
        _
      // Predicated region
      $region149: #{down_block.1} parent=143 // pred_check
        %p6790 = pneg %p789
      $region150: #{down_block.1} parent=143 // pred_check_branch
        %6792 = sbr.rel (%p6790) target = $region152
      $region151: #{down_block.1} parent=143 // pred_region
        _
      $region152: #{down_block.1} parent=143 // pred_fallthru
        _
      // Predicated region
      $region153: #{down_block.1} parent=143 // pred_check
        %p6793 = pneg %p815
      $region154: #{down_block.1} parent=143 // pred_check_branch
        %6795 = sbr.rel (%p6793) target = $region156
      $region155: #{down_block.1} parent=143 // pred_region
        _
      $region156: #{down_block.1} parent=143 // pred_fallthru
        _
    $region144: #{down_block.1} parent=5 // pred_fallthru
      _
    %p6796 = scmp.le.s32.totalorder 2, %s74
    // Predicated region
    $region157: #{down_block.1} parent=5 // pred_check
      %p6797 = pneg %p6796
    $region158: #{down_block.1} parent=5 // pred_check_branch
      %6799 = sbr.rel (%p6797) target = $region160
    $region159: #{down_block.1} parent=5 // pred_region
      %s6800 = ssub.s32 %s74, 2
      // Predicated region
      $region161: #{down_block.1} parent=159 // pred_check
        %p6801 = pneg %p769
      $region162: #{down_block.1} parent=159 // pred_check_branch
        %6803 = sbr.rel (%p6801) target = $region164
      $region163: #{down_block.1} parent=159 // pred_region
        %p6804 = scmp.lt.s32.totalorder %s80, 1
        %s6805 = scalar_select %p6804, %s80, 1
        %s6806 = smul.addr %s6805, 8
        %s6807 = smul.addr %s6806, 8
        %s6808 = scalar_lea.vmem %s63, %s6807
      $region164: #{down_block.1} parent=159 // pred_fallthru
        _
      // Predicated region
      $region165: #{down_block.1} parent=159 // pred_check
        %p6809 = pneg %p795
      $region166: #{down_block.1} parent=159 // pred_check_branch
        %6811 = sbr.rel (%p6809) target = $region168
      $region167: #{down_block.1} parent=159 // pred_region
        %p6812 = scmp.lt.s32.totalorder %s80, 1
        %s6813 = scalar_select %p6812, %s80, 1
        %s6814 = smul.addr %s6813, 8
        %s6815 = smul.addr %s6814, 8
        %s6816 = scalar_lea.vmem %s65, %s6815
      $region168: #{down_block.1} parent=159 // pred_fallthru
        _
      // Predicated region
      $region169: #{down_block.1} parent=159 // pred_check
        %p6817 = pneg %p821
      $region170: #{down_block.1} parent=159 // pred_check_branch
        %6819 = sbr.rel (%p6817) target = $region172
      $region171: #{down_block.1} parent=159 // pred_region
        %p6820 = scmp.lt.s32.totalorder %s80, 1
        %s6821 = scalar_select %p6820, %s80, 1
        %s6822 = smul.addr %s6821, 4
        %s6823 = smul.addr %s6822, 8
        %s6824 = scalar_lea.vmem %s67, %s6823
      $region172: #{down_block.1} parent=159 // pred_fallthru
        _
    $region160: #{down_block.1} parent=5 // pred_fallthru
      _
  $region6: #{down_block.1} parent=0 // loop_footer
    %s78 = sadd.s32 1, %s74
  $region7: #{down_block.1} parent=0 // loop_footer_branch
    %73 = sbr.rel target = $region3
  $region8: #{down_block.1} parent=0 // loop_exit
    _

</llo_original>
